<compile_context>
chip_gen: v7x
topology: tpu7x:2x2x1
jax: 0.10.0
libtpu: 0.0.40
codegen_flags: <defaults>
</compile_context>

<pallas_src>
import jax
import jax.numpy as jnp
from jax.experimental import pallas as pl
from jax.experimental.pallas import tpu as pltpu

D_IN, H0, H1, D_OUT = 768, 1024, 2048, 5
D_OUT_PAD = 8  # pad fc2 rows to a full sublane so the transposed weight tile is dense


def _mlp_head_kernel(x_hbm_ref, w0_ref, b0_ref, w1_ref, b1_ref, w2t_ref, b2_ref,
                     o_ref, x_cls_ref, dma_sem):
    # CLS-token gather done in-kernel: DMA only x[:, 0:1, :] (B*768 floats) from HBM.
    cp = pltpu.make_async_copy(x_hbm_ref.at[:, pl.ds(0, 1), :], x_cls_ref, dma_sem)
    cp.start()
    cp.wait()

    x = x_cls_ref[:, 0, :].astype(jnp.bfloat16)  # (B, 768) bf16 for the MXU

    # fc0 + ReLU (bf16 operands, f32 accumulation, f32 bias)
    h = jnp.dot(x, w0_ref[...], preferred_element_type=jnp.float32) + b0_ref[...]
    h = jnp.maximum(h, 0.0).astype(jnp.bfloat16)

    # fc1 + ReLU
    h = jnp.dot(h, w1_ref[...], preferred_element_type=jnp.float32) + b1_ref[...]
    h = jnp.maximum(h, 0.0).astype(jnp.bfloat16)

    # fc2: weight stored transposed as (8, 2048); contract over the lane-dense axis.
    y = jax.lax.dot_general(
        h, w2t_ref[...],
        dimension_numbers=(((1,), (1,)), ((), ())),
        preferred_element_type=jnp.float32,
    )
    o_ref[...] = (y + b2_ref[...]).astype(o_ref.dtype)


def last_module_forward(x, prepared_params):
    """x: (B, S, 768) float32. prepared_params from prepare_params(). Returns (B, 5) f32."""
    w0, b0, w1, b1, w2t, b2 = prepared_params
    B = x.shape[0]

    vmem = pl.BlockSpec(memory_space=pltpu.MemorySpace.VMEM)

    flops = 2 * B * (D_IN * H0 + H0 * H1 + H1 * D_OUT)
    bytes_accessed = int(
        sum(int(a.size) * a.dtype.itemsize for a in (w0, b0, w1, b1, w2t, b2))
        + B * D_IN * 4 + B * D_OUT_PAD * 4
    )

    out = pl.pallas_call(
        _mlp_head_kernel,
        out_shape=jax.ShapeDtypeStruct((B, D_OUT_PAD), jnp.float32),
        in_specs=[
            pl.BlockSpec(memory_space=pl.ANY),  # x: stays in HBM; kernel DMAs only CLS slab
            vmem,  # W0 bf16 (768, 1024)
            vmem,  # b0 f32  (1, 1024)
            vmem,  # W1 bf16 (1024, 2048)
            vmem,  # b1 f32  (1, 2048)
            vmem,  # W2^T bf16 (8, 2048), zero-padded rows 5..7
            vmem,  # b2 f32  (1, 8), zero-padded
        ],
        out_specs=vmem,
        scratch_shapes=[
            pltpu.VMEM((B, 1, D_IN), jnp.float32),  # CLS activation landing buffer
            pltpu.SemaphoreType.DMA,
        ],
        cost_estimate=pl.CostEstimate(
            flops=flops, transcendentals=0, bytes_accessed=bytes_accessed
        ),
    )(x, w0, b0, w1, b1, w2t, b2)

    return out[:, :D_OUT]


def init_params(key):
    """f32 params mimicking nn.Linear default init; weights stored (in, out)."""
    ks = jax.random.split(key, 6)

    def linear(kw, kb, fan_in, fan_out):
        bound = 1.0 / jnp.sqrt(jnp.float32(fan_in))
        w = jax.random.uniform(kw, (fan_in, fan_out), jnp.float32, -bound, bound)
        b = jax.random.uniform(kb, (fan_out,), jnp.float32, -bound, bound)
        return w, b

    w0, b0 = linear(ks[0], ks[1], D_IN, H0)
    w1, b1 = linear(ks[2], ks[3], H0, H1)
    w2, b2 = linear(ks[4], ks[5], H1, D_OUT)
    return (w0, b0, w1, b1, w2, b2)


def prepare_params(params):
    """Kernel layout: bf16 weights (halve HBM traffic), f32 biases as (1, out),
    fc2 transposed + zero-padded to (8, 2048) for a lane-dense tile."""
    w0, b0, w1, b1, w2, b2 = params
    w2t = jnp.zeros((D_OUT_PAD, H1), jnp.float32).at[:D_OUT, :].set(w2.T)
    b2p = jnp.zeros((1, D_OUT_PAD), jnp.float32).at[0, :D_OUT].set(b2)
    return (
        w0.astype(jnp.bfloat16), b0.reshape(1, H0).astype(jnp.float32),
        w1.astype(jnp.bfloat16), b1.reshape(1, H1).astype(jnp.float32),
        w2t.astype(jnp.bfloat16), b2p.astype(jnp.float32),
    )


def reference_forward(x, prepared_params):
    """Plain-JAX reference at matching precision (bf16 weights/acts, f32 accum)."""
    w0, b0, w1, b1, w2t, b2 = prepared_params
    h = x[:, 0, :].astype(jnp.bfloat16)
    h = jnp.maximum(jnp.dot(h, w0, preferred_element_type=jnp.float32) + b0, 0.0)
    h = h.astype(jnp.bfloat16)
    h = jnp.maximum(jnp.dot(h, w1, preferred_element_type=jnp.float32) + b1, 0.0)
    h = h.astype(jnp.bfloat16)
    y = jax.lax.dot_general(
        h, w2t, (((1,), (1,)), ((), ())), preferred_element_type=jnp.float32
    ) + b2
    return y[:, :D_OUT]


if __name__ == "__main__":
    key = jax.random.PRNGKey(0)
    k_x, k_p = jax.random.split(key)

    B, S = 2, 8  # small batch / sequence; feature dims are fixed by the module
    x = jax.random.normal(k_x, (B, S, D_IN), dtype=jnp.float32)
    params = prepare_params(init_params(k_p))

    out = last_module_forward(x, params)
    out = jax.block_until_ready(out)

    ref = reference_forward(x, params)
    assert out.shape == (B, D_OUT), out.shape
    max_diff = float(jnp.max(jnp.abs(out - ref)))
    assert jnp.allclose(out, ref, atol=2e-2, rtol=2e-2), f"mismatch vs reference (max abs diff {max_diff})"

    print("KERNEL_OK")
</pallas_src>

<mosaic_0001>
module attributes {stable_mosaic.version = 11 : i64} {
  func.func @_mlp_head_kernel(%arg0: memref<2x8x768xf32, #tpu.memory_space<any>>, %arg1: memref<768x1024xbf16, #tpu.memory_space<vmem>>, %arg2: memref<1x1024xf32, #tpu.memory_space<vmem>>, %arg3: memref<1024x2048xbf16, #tpu.memory_space<vmem>>, %arg4: memref<1x2048xf32, #tpu.memory_space<vmem>>, %arg5: memref<8x2048xbf16, #tpu.memory_space<vmem>>, %arg6: memref<1x8xf32, #tpu.memory_space<vmem>>, %arg7: memref<2x8xf32, #tpu.memory_space<vmem>>, %arg8: memref<2x1x768xf32, #tpu.memory_space<vmem>>, %arg9: memref<!tpu.dma_semaphore, #tpu.memory_space<semaphore_mem>>) attributes {dimension_semantics = [], scalar_prefetch = 0 : i64, scratch_operands = 2 : i64, tpu.core_type = #tpu.core_type<tc>} {
    %c0_i32 = arith.constant 0 : i32
    %c0_i32_0 = arith.constant 0 : i32
    %c0_i32_1 = arith.constant 0 : i32
    %0 = tpu.memref_slice %arg0[%c0_i32, %c0_i32_0, %c0_i32_1] : memref<2x8x768xf32, #tpu.memory_space<any>> -> memref<2x1x768xf32, #tpu.memory_space<any>>
    tpu.enqueue_dma source(%0 : memref<2x1x768xf32, #tpu.memory_space<any>>) target(%arg8 : memref<2x1x768xf32, #tpu.memory_space<vmem>>) target_semaphore(%arg9 : memref<!tpu.dma_semaphore, #tpu.memory_space<semaphore_mem>>)
    %c0_i32_2 = arith.constant 0 : i32
    %c0_i32_3 = arith.constant 0 : i32
    %c0_i32_4 = arith.constant 0 : i32
    %1 = tpu.memref_slice %arg0[%c0_i32_2, %c0_i32_3, %c0_i32_4] : memref<2x8x768xf32, #tpu.memory_space<any>> -> memref<2x1x768xf32, #tpu.memory_space<any>>
    tpu.wait_dma2 semaphore(%arg9 : memref<!tpu.dma_semaphore, #tpu.memory_space<semaphore_mem>>) src(%1 : memref<2x1x768xf32, #tpu.memory_space<any>>) dst(%arg8 : memref<2x1x768xf32, #tpu.memory_space<vmem>>)
    %c0 = arith.constant 0 : index
    %c0_5 = arith.constant 0 : index
    %c0_6 = arith.constant 0 : index
    %2 = vector.load %arg8[%c0, %c0_5, %c0_6] : memref<2x1x768xf32, #tpu.memory_space<vmem>>, vector<2x1x768xf32>
    %3 = vector.shape_cast %2 : vector<2x1x768xf32> to vector<2x768xf32>
    %4 = arith.truncf %3 : vector<2x768xf32> to vector<2x768xbf16>
    %c0_7 = arith.constant 0 : index
    %c0_8 = arith.constant 0 : index
    %5 = vector.load %arg1[%c0_7, %c0_8] : memref<768x1024xbf16, #tpu.memory_space<vmem>>, vector<768x1024xbf16>
    %cst = arith.constant dense<0.000000e+00> : vector<2x1024xf32>
    %6 = tpu.matmul %4, %5, %cst {dimension_numbers = #tpu.dot_dimension_numbers<[1], [0], [0], [1], [0, 0, 1, 1], [], []>} : vector<2x768xbf16>, vector<768x1024xbf16>, vector<2x1024xf32> -> vector<2x1024xf32>
    %c0_9 = arith.constant 0 : index
    %c0_10 = arith.constant 0 : index
    %7 = vector.load %arg2[%c0_9, %c0_10] : memref<1x1024xf32, #tpu.memory_space<vmem>>, vector<1x1024xf32>
    %8 = vector.broadcast %7 : vector<1x1024xf32> to vector<2x1024xf32>
    %9 = arith.addf %6, %8 : vector<2x1024xf32>
    %cst_11 = arith.constant 0.000000e+00 : f32
    %10 = vector.broadcast %cst_11 : f32 to vector<2x1024xf32>
    %11 = arith.maximumf %9, %10 : vector<2x1024xf32>
    %12 = arith.truncf %11 : vector<2x1024xf32> to vector<2x1024xbf16>
    %c0_12 = arith.constant 0 : index
    %c0_13 = arith.constant 0 : index
    %13 = vector.load %arg3[%c0_12, %c0_13] : memref<1024x2048xbf16, #tpu.memory_space<vmem>>, vector<1024x2048xbf16>
    %cst_14 = arith.constant dense<0.000000e+00> : vector<2x2048xf32>
    %14 = tpu.matmul %12, %13, %cst_14 {dimension_numbers = #tpu.dot_dimension_numbers<[1], [0], [0], [1], [0, 0, 1, 1], [], []>} : vector<2x1024xbf16>, vector<1024x2048xbf16>, vector<2x2048xf32> -> vector<2x2048xf32>
    %c0_15 = arith.constant 0 : index
    %c0_16 = arith.constant 0 : index
    %15 = vector.load %arg4[%c0_15, %c0_16] : memref<1x2048xf32, #tpu.memory_space<vmem>>, vector<1x2048xf32>
    %16 = vector.broadcast %15 : vector<1x2048xf32> to vector<2x2048xf32>
    %17 = arith.addf %14, %16 : vector<2x2048xf32>
    %cst_17 = arith.constant 0.000000e+00 : f32
    %18 = vector.broadcast %cst_17 : f32 to vector<2x2048xf32>
    %19 = arith.maximumf %17, %18 : vector<2x2048xf32>
    %20 = arith.truncf %19 : vector<2x2048xf32> to vector<2x2048xbf16>
    %c0_18 = arith.constant 0 : index
    %c0_19 = arith.constant 0 : index
    %21 = vector.load %arg5[%c0_18, %c0_19] : memref<8x2048xbf16, #tpu.memory_space<vmem>>, vector<8x2048xbf16>
    %cst_20 = arith.constant dense<0.000000e+00> : vector<2x8xf32>
    %22 = tpu.matmul %20, %21, %cst_20 {dimension_numbers = #tpu.dot_dimension_numbers<[1], [1], [0], [0], [0, 0, 1, 0], [], []>} : vector<2x2048xbf16>, vector<8x2048xbf16>, vector<2x8xf32> -> vector<2x8xf32>
    %c0_21 = arith.constant 0 : index
    %c0_22 = arith.constant 0 : index
    %23 = vector.load %arg6[%c0_21, %c0_22] : memref<1x8xf32, #tpu.memory_space<vmem>>, vector<1x8xf32>
    %24 = vector.broadcast %23 : vector<1x8xf32> to vector<2x8xf32>
    %25 = arith.addf %22, %24 : vector<2x8xf32>
    %c0_23 = arith.constant 0 : index
    %c0_24 = arith.constant 0 : index
    %26 = vector.load %arg7[%c0_23, %c0_24] : memref<2x8xf32, #tpu.memory_space<vmem>>, vector<2x8xf32>
    tpu.vector_store %arg7[%c0_23, %c0_24], %25 {strides = array<i32>} : memref<2x8xf32, #tpu.memory_space<vmem>>, vector<2x8xf32>,
    return
  }
}

</mosaic_0001>

<llo_original>
// kernel: tpu_custom_call.1
$region0: #{tpu_custom_call.1}
  #allocation0 [shape = 'u32[]', space=smem, size = 0x4, offset = 0x4, fixed_abs, tag = 'smem constant byte address 0x4 - core index']
  #allocation1 [shape = 'u32[144,128]{1,0:T(1,128)}', space=vmem, size = 0x12000, scoped, tag = 'internal scratch']
  #allocation2 [shape = 'f32[2,1,768]{2,1,0:T(1,128)}', space=vmem, size = 0x1800, scoped, tag = 'scratch operand']
  #allocation3 [shape = 's32[1]{0}', space=sflag, size = 0x4, scoped, tag = 'scratch operand']
  #allocation16 [shape = 's32[]', space=sflag, size = 0x4, offset = 0, fixed_abs, tag = 'sflag constant byte address 0x0 - dummy sync flag']
  %s0 = inlined_call_operand.hbm [shape: f32[2,8,768], index: 0, kind: input, shape index: {}]
  %s1 = inlined_call_operand.hbm [shape: bf16[768,1024], index: 1, kind: input, shape index: {}]
  %s2 = inlined_call_operand.hbm [shape: f32[1,1024], index: 2, kind: input, shape index: {}]
  %s3 = inlined_call_operand.hbm [shape: bf16[1024,2048], index: 3, kind: input, shape index: {}]
  %s4 = inlined_call_operand.hbm [shape: f32[1,2048], index: 4, kind: input, shape index: {}]
  %s5 = inlined_call_operand.hbm [shape: bf16[8,2048], index: 5, kind: input, shape index: {}]
  %s6 = inlined_call_operand.hbm [shape: f32[1,8], index: 6, kind: input, shape index: {}]
  %s7 = inlined_call_operand.hbm [shape: f32[2,8], index: 7, kind: output, shape index: {}]
  %s8 = sld [smem:[#allocation0]]
  $region58: #{tpu_custom_call.1} parent=0
    _
  %s10 = ssub.s32 1, %s8
  %s11 = scalar_select 0, %s10, %s8
  $region1: #{tpu_custom_call.1} parent=0
    #allocation4 [shape = 'u8[1572864]{0}', space=vmem, size = 0x180000, scoped, tag = 'input window, operand 1, single buffered']
    #allocation5 [shape = 's32[1]{0}', space=sflag, size = 0x4, scoped, tag = 'scoped memory for tpu_custom_call.1']
    #allocation6 [shape = 's32[1]{0}', space=sflag, size = 0x4, scoped, tag = 'scoped memory for tpu_custom_call.1']
    #allocation7 [shape = 'u8[4096]{0}', space=vmem, size = 0x1000, scoped, tag = 'input window, operand 2, single buffered']
    #allocation8 [shape = 's32[1]{0}', space=sflag, size = 0x4, scoped, tag = 'scoped memory for tpu_custom_call.1']
    #allocation9 [shape = 'u8[4194304]{0}', space=vmem, size = 0x400000, scoped, tag = 'input window, operand 3, single buffered']
    #allocation10 [shape = 'u8[8192]{0}', space=vmem, size = 0x2000, scoped, tag = 'input window, operand 4, single buffered']
    #allocation11 [shape = 's32[1]{0}', space=sflag, size = 0x4, scoped, tag = 'scoped memory for tpu_custom_call.1']
    #allocation12 [shape = 'u8[32768]{0}', space=vmem, size = 0x8000, scoped, tag = 'input window, operand 5, single buffered']
    #allocation13 [shape = 'u8[512]{0}', space=vmem, size = 0x400, scoped, tag = 'input window, operand 6, single buffered']
    #allocation14 [shape = 's32[1]{0}', space=sflag, size = 0x4, scoped, tag = 'scoped memory for tpu_custom_call.1']
    #allocation15 [shape = 'u8[1024]{0}', space=vmem, size = 0x400, scoped, tag = 'output window, operand 0, single buffered']
    %12 = vsyncpa [#allocation5], 0
    %13 = vsyncpa [#allocation8], 0
    %14 = vsyncpa [#allocation11], 0
    %15 = vsyncpa [#allocation14], 0
    %16 = vsyncpa [#allocation6], 0
    // Predicated region
    $region2: #{tpu_custom_call.1} parent=1 // pred_check
      _
    $region3: #{tpu_custom_call.1} parent=1 // pred_check_branch
      %18 = sbr.rel (0) target = $region5
    $region4: #{tpu_custom_call.1} parent=1 // pred_region
      %s20 = ssub.s32 49152, 49152
      %21 = vsyncadd [#allocation5], %s20
      %s22 = sshll.u32 [#allocation4], 4
      %s23 = int_to_ptr.vmem [resolvable:$true] %s22
      %28 = dma.hbm_to_vmem [thread:$0]  %s1, 49152, %s23, [#allocation5], 512, 512, 32
    $region5: #{tpu_custom_call.1} parent=1 // pred_fallthru
      _
    // Predicated region
    $region6: #{tpu_custom_call.1} parent=1 // pred_check
      _
    $region7: #{tpu_custom_call.1} parent=1 // pred_check_branch
      %30 = sbr.rel (0) target = $region9
    $region8: #{tpu_custom_call.1} parent=1 // pred_region
      %s32 = ssub.s32 128, 128
      %33 = vsyncadd [#allocation8], %s32
      %s35 = sshll.u32 [#allocation7], 4
      %s36 = int_to_ptr.vmem [resolvable:$true] %s35
      %38 = dma.hbm_to_vmem [thread:$0]  %s2, 128, %s36, [#allocation8]
    $region9: #{tpu_custom_call.1} parent=1 // pred_fallthru
      _
    // Predicated region
    $region10: #{tpu_custom_call.1} parent=1 // pred_check
      _
    $region11: #{tpu_custom_call.1} parent=1 // pred_check_branch
      %40 = sbr.rel (0) target = $region13
    $region12: #{tpu_custom_call.1} parent=1 // pred_region
      %s42 = ssub.s32 131072, 131072
      %43 = vsyncadd [#allocation8], %s42
      %s44 = sshll.u32 [#allocation9], 4
      %s45 = int_to_ptr.vmem [resolvable:$true] %s44
      %50 = dma.hbm_to_vmem [thread:$0]  %s3, 131072, %s45, [#allocation8], 1024, 1024, 64
    $region13: #{tpu_custom_call.1} parent=1 // pred_fallthru
      _
    // Predicated region
    $region14: #{tpu_custom_call.1} parent=1 // pred_check
      _
    $region15: #{tpu_custom_call.1} parent=1 // pred_check_branch
      %52 = sbr.rel (0) target = $region17
    $region16: #{tpu_custom_call.1} parent=1 // pred_region
      %s54 = ssub.s32 256, 256
      %55 = vsyncadd [#allocation11], %s54
      %s57 = sshll.u32 [#allocation10], 4
      %s58 = int_to_ptr.vmem [resolvable:$true] %s57
      %60 = dma.hbm_to_vmem [thread:$0]  %s4, 256, %s58, [#allocation11]
    $region17: #{tpu_custom_call.1} parent=1 // pred_fallthru
      _
    // Predicated region
    $region18: #{tpu_custom_call.1} parent=1 // pred_check
      _
    $region19: #{tpu_custom_call.1} parent=1 // pred_check_branch
      %62 = sbr.rel (0) target = $region21
    $region20: #{tpu_custom_call.1} parent=1 // pred_region
      %s64 = ssub.s32 1024, 1024
      %65 = vsyncadd [#allocation11], %s64
      %s67 = sshll.u32 [#allocation12], 4
      %s68 = int_to_ptr.vmem [resolvable:$true] %s67
      %70 = dma.hbm_to_vmem [thread:$0]  %s5, 1024, %s68, [#allocation11]
    $region21: #{tpu_custom_call.1} parent=1 // pred_fallthru
      _
    // Predicated region
    $region22: #{tpu_custom_call.1} parent=1 // pred_check
      _
    $region23: #{tpu_custom_call.1} parent=1 // pred_check_branch
      %72 = sbr.rel (0) target = $region25
    $region24: #{tpu_custom_call.1} parent=1 // pred_region
      %s74 = ssub.s32 16, 16
      %75 = vsyncadd [#allocation14], %s74
      %s77 = sshll.u32 [#allocation13], 4
      %s78 = int_to_ptr.vmem [resolvable:$true] %s77
      %80 = dma.hbm_to_vmem [thread:$0]  %s6, 16, %s78, [#allocation14]
    $region25: #{tpu_custom_call.1} parent=1 // pred_fallthru
      _
    // Predicated region
    $region26: #{tpu_custom_call.1} parent=1 // pred_check
      _
    $region27: #{tpu_custom_call.1} parent=1 // pred_check_branch
      %82 = sbr.rel (0) target = $region29
    $region28: #{tpu_custom_call.1} parent=1 // pred_region
      %83 = dma.done [#allocation5], 49152
    $region29: #{tpu_custom_call.1} parent=1 // pred_fallthru
      _
    // Predicated region
    $region30: #{tpu_custom_call.1} parent=1 // pred_check
      _
    $region31: #{tpu_custom_call.1} parent=1 // pred_check_branch
      %85 = sbr.rel (0) target = $region33
    $region32: #{tpu_custom_call.1} parent=1 // pred_region
      %86 = dma.done [#allocation8], 128
    $region33: #{tpu_custom_call.1} parent=1 // pred_fallthru
      _
    // Predicated region
    $region34: #{tpu_custom_call.1} parent=1 // pred_check
      _
    $region35: #{tpu_custom_call.1} parent=1 // pred_check_branch
      %88 = sbr.rel (0) target = $region37
    $region36: #{tpu_custom_call.1} parent=1 // pred_region
      %89 = dma.done [#allocation8], 131072
    $region37: #{tpu_custom_call.1} parent=1 // pred_fallthru
      _
    // Predicated region
    $region38: #{tpu_custom_call.1} parent=1 // pred_check
      _
    $region39: #{tpu_custom_call.1} parent=1 // pred_check_branch
      %91 = sbr.rel (0) target = $region41
    $region40: #{tpu_custom_call.1} parent=1 // pred_region
      %92 = dma.done [#allocation11], 256
    $region41: #{tpu_custom_call.1} parent=1 // pred_fallthru
      _
    // Predicated region
    $region42: #{tpu_custom_call.1} parent=1 // pred_check
      _
    $region43: #{tpu_custom_call.1} parent=1 // pred_check_branch
      %94 = sbr.rel (0) target = $region45
    $region44: #{tpu_custom_call.1} parent=1 // pred_region
      %95 = dma.done [#allocation11], 1024
    $region45: #{tpu_custom_call.1} parent=1 // pred_fallthru
      _
    // Predicated region
    $region46: #{tpu_custom_call.1} parent=1 // pred_check
      _
    $region47: #{tpu_custom_call.1} parent=1 // pred_check_branch
      %97 = sbr.rel (0) target = $region49
    $region48: #{tpu_custom_call.1} parent=1 // pred_region
      %98 = dma.done [#allocation14], 16
    $region49: #{tpu_custom_call.1} parent=1 // pred_fallthru
      _
    %s101 = sshll.u32 [#allocation2], 4
    %s102 = int_to_ptr.vmem [resolvable:$true] %s101
    %104 = dma.hbm_to_vmem [thread:$0]  %s0, 192, %s102, [#allocation3], 128, 16, 1
    %s105 = smul.u32 2, 1
    %s106 = smul.u32 %s105, 6
    %s107 = sshll.u32 %s106, 4
    %108 = dma.done [#allocation3], %s107
    %v109 = vld [vmem:[#allocation2] sm:$0x3f]
    %v110 = vld [vmem:[#allocation2 + $0x6] sm:$0x3f]
    %v113 = vlaneseq
    %v114 = vshrl.u32 %v113, 7
    %v115 = vsub.s32 0, %v114
    %v116 = vrot.slane %v109, %v115
    %v117 = vlaneseq
    %v118 = vshrl.u32 %v117, 7
    %v119 = vsub.s32 1, %v118
    %v120 = vrot.slane %v109, %v119
    %v121 = vlaneseq
    %v122 = vshrl.u32 %v121, 7
    %v123 = vsub.s32 2, %v122
    %v124 = vrot.slane %v109, %v123
    %v125 = vlaneseq
    %v126 = vshrl.u32 %v125, 7
    %v127 = vsub.s32 3, %v126
    %v128 = vrot.slane %v109, %v127
    %v129 = vlaneseq
    %v130 = vshrl.u32 %v129, 7
    %v131 = vsub.s32 4, %v130
    %v132 = vrot.slane %v109, %v131
    %v133 = vlaneseq
    %v134 = vshrl.u32 %v133, 7
    %v135 = vsub.s32 5, %v134
    %v136 = vrot.slane %v109, %v135
    %v137 = vlaneseq
    %v138 = vshrl.u32 %v137, 7
    %v139 = vsub.s32 0, %v138
    %v140 = vrot.slane %v110, %v139
    %v141 = vlaneseq
    %v142 = vshrl.u32 %v141, 7
    %v143 = vsub.s32 1, %v142
    %v144 = vrot.slane %v110, %v143
    %v145 = vlaneseq
    %v146 = vshrl.u32 %v145, 7
    %v147 = vsub.s32 2, %v146
    %v148 = vrot.slane %v110, %v147
    %v149 = vlaneseq
    %v150 = vshrl.u32 %v149, 7
    %v151 = vsub.s32 3, %v150
    %v152 = vrot.slane %v110, %v151
    %v153 = vlaneseq
    %v154 = vshrl.u32 %v153, 7
    %v155 = vsub.s32 4, %v154
    %v156 = vrot.slane %v110, %v155
    %v157 = vlaneseq
    %v158 = vshrl.u32 %v157, 7
    %v159 = vsub.s32 5, %v158
    %v160 = vrot.slane %v110, %v159
    %v173 = vpack.c.bf16 %v116, %v116
    %v174 = vpack.c.bf16 %v120, %v120
    %v175 = vpack.c.bf16 %v124, %v124
    %v176 = vpack.c.bf16 %v128, %v128
    %v177 = vpack.c.bf16 %v132, %v132
    %v178 = vpack.c.bf16 %v136, %v136
    %v179 = vpack.c.bf16 %v140, %v140
    %v180 = vpack.c.bf16 %v144, %v144
    %v181 = vpack.c.bf16 %v148, %v148
    %v182 = vpack.c.bf16 %v152, %v152
    %v183 = vpack.c.bf16 %v156, %v156
    %v184 = vpack.c.bf16 %v160, %v160
    %v185 = vld [vmem:[#allocation4] sm:$0xff]
    %v186 = vld [vmem:[#allocation4 + $0x8] sm:$0xff]
    %v187 = vld [vmem:[#allocation4 + $0x10] sm:$0xff]
    %v188 = vld [vmem:[#allocation4 + $0x18] sm:$0xff]
    %v189 = vld [vmem:[#allocation4 + $0x20] sm:$0xff]
    %v190 = vld [vmem:[#allocation4 + $0x28] sm:$0xff]
    %v191 = vld [vmem:[#allocation4 + $0x30] sm:$0xff]
    %v192 = vld [vmem:[#allocation4 + $0x38] sm:$0xff]
    %v193 = vld [vmem:[#allocation4 + $0x40] sm:$0xff]
    %v194 = vld [vmem:[#allocation4 + $0x48] sm:$0xff]
    %v195 = vld [vmem:[#allocation4 + $0x50] sm:$0xff]
    %v196 = vld [vmem:[#allocation4 + $0x58] sm:$0xff]
    %v197 = vld [vmem:[#allocation4 + $0x60] sm:$0xff]
    %v198 = vld [vmem:[#allocation4 + $0x68] sm:$0xff]
    %v199 = vld [vmem:[#allocation4 + $0x70] sm:$0xff]
    %v200 = vld [vmem:[#allocation4 + $0x78] sm:$0xff]
    %v201 = vld [vmem:[#allocation4 + $0x80] sm:$0xff]
    %v202 = vld [vmem:[#allocation4 + $0x88] sm:$0xff]
    %v203 = vld [vmem:[#allocation4 + $0x90] sm:$0xff]
    %v204 = vld [vmem:[#allocation4 + $0x98] sm:$0xff]
    %v205 = vld [vmem:[#allocation4 + $0xa0] sm:$0xff]
    %v206 = vld [vmem:[#allocation4 + $0xa8] sm:$0xff]
    %v207 = vld [vmem:[#allocation4 + $0xb0] sm:$0xff]
    %v208 = vld [vmem:[#allocation4 + $0xb8] sm:$0xff]
    %v209 = vld [vmem:[#allocation4 + $0xc0] sm:$0xff]
    %v210 = vld [vmem:[#allocation4 + $0xc8] sm:$0xff]
    %v211 = vld [vmem:[#allocation4 + $0xd0] sm:$0xff]
    %v212 = vld [vmem:[#allocation4 + $0xd8] sm:$0xff]
    %v213 = vld [vmem:[#allocation4 + $0xe0] sm:$0xff]
    %v214 = vld [vmem:[#allocation4 + $0xe8] sm:$0xff]
    %v215 = vld [vmem:[#allocation4 + $0xf0] sm:$0xff]
    %v216 = vld [vmem:[#allocation4 + $0xf8] sm:$0xff]
    %v217 = vld [vmem:[#allocation4 + $0x100] sm:$0xff]
    %v218 = vld [vmem:[#allocation4 + $0x108] sm:$0xff]
    %v219 = vld [vmem:[#allocation4 + $0x110] sm:$0xff]
    %v220 = vld [vmem:[#allocation4 + $0x118] sm:$0xff]
    %v221 = vld [vmem:[#allocation4 + $0x120] sm:$0xff]
    %v222 = vld [vmem:[#allocation4 + $0x128] sm:$0xff]
    %v223 = vld [vmem:[#allocation4 + $0x130] sm:$0xff]
    %v224 = vld [vmem:[#allocation4 + $0x138] sm:$0xff]
    %v225 = vld [vmem:[#allocation4 + $0x140] sm:$0xff]
    %v226 = vld [vmem:[#allocation4 + $0x148] sm:$0xff]
    %v227 = vld [vmem:[#allocation4 + $0x150] sm:$0xff]
    %v228 = vld [vmem:[#allocation4 + $0x158] sm:$0xff]
    %v229 = vld [vmem:[#allocation4 + $0x160] sm:$0xff]
    %v230 = vld [vmem:[#allocation4 + $0x168] sm:$0xff]
    %v231 = vld [vmem:[#allocation4 + $0x170] sm:$0xff]
    %v232 = vld [vmem:[#allocation4 + $0x178] sm:$0xff]
    %v233 = vld [vmem:[#allocation4 + $0x180] sm:$0xff]
    %v234 = vld [vmem:[#allocation4 + $0x188] sm:$0xff]
    %v235 = vld [vmem:[#allocation4 + $0x190] sm:$0xff]
    %v236 = vld [vmem:[#allocation4 + $0x198] sm:$0xff]
    %v237 = vld [vmem:[#allocation4 + $0x1a0] sm:$0xff]
    %v238 = vld [vmem:[#allocation4 + $0x1a8] sm:$0xff]
    %v239 = vld [vmem:[#allocation4 + $0x1b0] sm:$0xff]
    %v240 = vld [vmem:[#allocation4 + $0x1b8] sm:$0xff]
    %v241 = vld [vmem:[#allocation4 + $0x1c0] sm:$0xff]
    %v242 = vld [vmem:[#allocation4 + $0x1c8] sm:$0xff]
    %v243 = vld [vmem:[#allocation4 + $0x1d0] sm:$0xff]
    %v244 = vld [vmem:[#allocation4 + $0x1d8] sm:$0xff]
    %v245 = vld [vmem:[#allocation4 + $0x1e0] sm:$0xff]
    %v246 = vld [vmem:[#allocation4 + $0x1e8] sm:$0xff]
    %v247 = vld [vmem:[#allocation4 + $0x1f0] sm:$0xff]
    %v248 = vld [vmem:[#allocation4 + $0x1f8] sm:$0xff]
    %v249 = vld [vmem:[#allocation4 + $0x200] sm:$0xff]
    %v250 = vld [vmem:[#allocation4 + $0x208] sm:$0xff]
    %v251 = vld [vmem:[#allocation4 + $0x210] sm:$0xff]
    %v252 = vld [vmem:[#allocation4 + $0x218] sm:$0xff]
    %v253 = vld [vmem:[#allocation4 + $0x220] sm:$0xff]
    %v254 = vld [vmem:[#allocation4 + $0x228] sm:$0xff]
    %v255 = vld [vmem:[#allocation4 + $0x230] sm:$0xff]
    %v256 = vld [vmem:[#allocation4 + $0x238] sm:$0xff]
    %v257 = vld [vmem:[#allocation4 + $0x240] sm:$0xff]
    %v258 = vld [vmem:[#allocation4 + $0x248] sm:$0xff]
    %v259 = vld [vmem:[#allocation4 + $0x250] sm:$0xff]
    %v260 = vld [vmem:[#allocation4 + $0x258] sm:$0xff]
    %v261 = vld [vmem:[#allocation4 + $0x260] sm:$0xff]
    %v262 = vld [vmem:[#allocation4 + $0x268] sm:$0xff]
    %v263 = vld [vmem:[#allocation4 + $0x270] sm:$0xff]
    %v264 = vld [vmem:[#allocation4 + $0x278] sm:$0xff]
    %v265 = vld [vmem:[#allocation4 + $0x280] sm:$0xff]
    %v266 = vld [vmem:[#allocation4 + $0x288] sm:$0xff]
    %v267 = vld [vmem:[#allocation4 + $0x290] sm:$0xff]
    %v268 = vld [vmem:[#allocation4 + $0x298] sm:$0xff]
    %v269 = vld [vmem:[#allocation4 + $0x2a0] sm:$0xff]
    %v270 = vld [vmem:[#allocation4 + $0x2a8] sm:$0xff]
    %v271 = vld [vmem:[#allocation4 + $0x2b0] sm:$0xff]
    %v272 = vld [vmem:[#allocation4 + $0x2b8] sm:$0xff]
    %v273 = vld [vmem:[#allocation4 + $0x2c0] sm:$0xff]
    %v274 = vld [vmem:[#allocation4 + $0x2c8] sm:$0xff]
    %v275 = vld [vmem:[#allocation4 + $0x2d0] sm:$0xff]
    %v276 = vld [vmem:[#allocation4 + $0x2d8] sm:$0xff]
    %v277 = vld [vmem:[#allocation4 + $0x2e0] sm:$0xff]
    %v278 = vld [vmem:[#allocation4 + $0x2e8] sm:$0xff]
    %v279 = vld [vmem:[#allocation4 + $0x2f0] sm:$0xff]
    %v280 = vld [vmem:[#allocation4 + $0x2f8] sm:$0xff]
    %v281 = vld [vmem:[#allocation4 + $0x300] sm:$0xff]
    %v282 = vld [vmem:[#allocation4 + $0x308] sm:$0xff]
    %v283 = vld [vmem:[#allocation4 + $0x310] sm:$0xff]
    %v284 = vld [vmem:[#allocation4 + $0x318] sm:$0xff]
    %v285 = vld [vmem:[#allocation4 + $0x320] sm:$0xff]
    %v286 = vld [vmem:[#allocation4 + $0x328] sm:$0xff]
    %v287 = vld [vmem:[#allocation4 + $0x330] sm:$0xff]
    %v288 = vld [vmem:[#allocation4 + $0x338] sm:$0xff]
    %v289 = vld [vmem:[#allocation4 + $0x340] sm:$0xff]
    %v290 = vld [vmem:[#allocation4 + $0x348] sm:$0xff]
    %v291 = vld [vmem:[#allocation4 + $0x350] sm:$0xff]
    %v292 = vld [vmem:[#allocation4 + $0x358] sm:$0xff]
    %v293 = vld [vmem:[#allocation4 + $0x360] sm:$0xff]
    %v294 = vld [vmem:[#allocation4 + $0x368] sm:$0xff]
    %v295 = vld [vmem:[#allocation4 + $0x370] sm:$0xff]
    %v296 = vld [vmem:[#allocation4 + $0x378] sm:$0xff]
    %v297 = vld [vmem:[#allocation4 + $0x380] sm:$0xff]
    %v298 = vld [vmem:[#allocation4 + $0x388] sm:$0xff]
    %v299 = vld [vmem:[#allocation4 + $0x390] sm:$0xff]
    %v300 = vld [vmem:[#allocation4 + $0x398] sm:$0xff]
    %v301 = vld [vmem:[#allocation4 + $0x3a0] sm:$0xff]
    %v302 = vld [vmem:[#allocation4 + $0x3a8] sm:$0xff]
    %v303 = vld [vmem:[#allocation4 + $0x3b0] sm:$0xff]
    %v304 = vld [vmem:[#allocation4 + $0x3b8] sm:$0xff]
    %v305 = vld [vmem:[#allocation4 + $0x3c0] sm:$0xff]
    %v306 = vld [vmem:[#allocation4 + $0x3c8] sm:$0xff]
    %v307 = vld [vmem:[#allocation4 + $0x3d0] sm:$0xff]
    %v308 = vld [vmem:[#allocation4 + $0x3d8] sm:$0xff]
    %v309 = vld [vmem:[#allocation4 + $0x3e0] sm:$0xff]
    %v310 = vld [vmem:[#allocation4 + $0x3e8] sm:$0xff]
    %v311 = vld [vmem:[#allocation4 + $0x3f0] sm:$0xff]
    %v312 = vld [vmem:[#allocation4 + $0x3f8] sm:$0xff]
    %v313 = vld [vmem:[#allocation4 + $0x400] sm:$0xff]
    %v314 = vld [vmem:[#allocation4 + $0x408] sm:$0xff]
    %v315 = vld [vmem:[#allocation4 + $0x410] sm:$0xff]
    %v316 = vld [vmem:[#allocation4 + $0x418] sm:$0xff]
    %v317 = vld [vmem:[#allocation4 + $0x420] sm:$0xff]
    %v318 = vld [vmem:[#allocation4 + $0x428] sm:$0xff]
    %v319 = vld [vmem:[#allocation4 + $0x430] sm:$0xff]
    %v320 = vld [vmem:[#allocation4 + $0x438] sm:$0xff]
    %v321 = vld [vmem:[#allocation4 + $0x440] sm:$0xff]
    %v322 = vld [vmem:[#allocation4 + $0x448] sm:$0xff]
    %v323 = vld [vmem:[#allocation4 + $0x450] sm:$0xff]
    %v324 = vld [vmem:[#allocation4 + $0x458] sm:$0xff]
    %v325 = vld [vmem:[#allocation4 + $0x460] sm:$0xff]
    %v326 = vld [vmem:[#allocation4 + $0x468] sm:$0xff]
    %v327 = vld [vmem:[#allocation4 + $0x470] sm:$0xff]
    %v328 = vld [vmem:[#allocation4 + $0x478] sm:$0xff]
    %v329 = vld [vmem:[#allocation4 + $0x480] sm:$0xff]
    %v330 = vld [vmem:[#allocation4 + $0x488] sm:$0xff]
    %v331 = vld [vmem:[#allocation4 + $0x490] sm:$0xff]
    %v332 = vld [vmem:[#allocation4 + $0x498] sm:$0xff]
    %v333 = vld [vmem:[#allocation4 + $0x4a0] sm:$0xff]
    %v334 = vld [vmem:[#allocation4 + $0x4a8] sm:$0xff]
    %v335 = vld [vmem:[#allocation4 + $0x4b0] sm:$0xff]
    %v336 = vld [vmem:[#allocation4 + $0x4b8] sm:$0xff]
    %v337 = vld [vmem:[#allocation4 + $0x4c0] sm:$0xff]
    %v338 = vld [vmem:[#allocation4 + $0x4c8] sm:$0xff]
    %v339 = vld [vmem:[#allocation4 + $0x4d0] sm:$0xff]
    %v340 = vld [vmem:[#allocation4 + $0x4d8] sm:$0xff]
    %v341 = vld [vmem:[#allocation4 + $0x4e0] sm:$0xff]
    %v342 = vld [vmem:[#allocation4 + $0x4e8] sm:$0xff]
    %v343 = vld [vmem:[#allocation4 + $0x4f0] sm:$0xff]
    %v344 = vld [vmem:[#allocation4 + $0x4f8] sm:$0xff]
    %v345 = vld [vmem:[#allocation4 + $0x500] sm:$0xff]
    %v346 = vld [vmem:[#allocation4 + $0x508] sm:$0xff]
    %v347 = vld [vmem:[#allocation4 + $0x510] sm:$0xff]
    %v348 = vld [vmem:[#allocation4 + $0x518] sm:$0xff]
    %v349 = vld [vmem:[#allocation4 + $0x520] sm:$0xff]
    %v350 = vld [vmem:[#allocation4 + $0x528] sm:$0xff]
    %v351 = vld [vmem:[#allocation4 + $0x530] sm:$0xff]
    %v352 = vld [vmem:[#allocation4 + $0x538] sm:$0xff]
    %v353 = vld [vmem:[#allocation4 + $0x540] sm:$0xff]
    %v354 = vld [vmem:[#allocation4 + $0x548] sm:$0xff]
    %v355 = vld [vmem:[#allocation4 + $0x550] sm:$0xff]
    %v356 = vld [vmem:[#allocation4 + $0x558] sm:$0xff]
    %v357 = vld [vmem:[#allocation4 + $0x560] sm:$0xff]
    %v358 = vld [vmem:[#allocation4 + $0x568] sm:$0xff]
    %v359 = vld [vmem:[#allocation4 + $0x570] sm:$0xff]
    %v360 = vld [vmem:[#allocation4 + $0x578] sm:$0xff]
    %v361 = vld [vmem:[#allocation4 + $0x580] sm:$0xff]
    %v362 = vld [vmem:[#allocation4 + $0x588] sm:$0xff]
    %v363 = vld [vmem:[#allocation4 + $0x590] sm:$0xff]
    %v364 = vld [vmem:[#allocation4 + $0x598] sm:$0xff]
    %v365 = vld [vmem:[#allocation4 + $0x5a0] sm:$0xff]
    %v366 = vld [vmem:[#allocation4 + $0x5a8] sm:$0xff]
    %v367 = vld [vmem:[#allocation4 + $0x5b0] sm:$0xff]
    %v368 = vld [vmem:[#allocation4 + $0x5b8] sm:$0xff]
    %v369 = vld [vmem:[#allocation4 + $0x5c0] sm:$0xff]
    %v370 = vld [vmem:[#allocation4 + $0x5c8] sm:$0xff]
    %v371 = vld [vmem:[#allocation4 + $0x5d0] sm:$0xff]
    %v372 = vld [vmem:[#allocation4 + $0x5d8] sm:$0xff]
    %v373 = vld [vmem:[#allocation4 + $0x5e0] sm:$0xff]
    %v374 = vld [vmem:[#allocation4 + $0x5e8] sm:$0xff]
    %v375 = vld [vmem:[#allocation4 + $0x5f0] sm:$0xff]
    %v376 = vld [vmem:[#allocation4 + $0x5f8] sm:$0xff]
    %v377 = vld [vmem:[#allocation4 + $0x600] sm:$0xff]
    %v378 = vld [vmem:[#allocation4 + $0x608] sm:$0xff]
    %v379 = vld [vmem:[#allocation4 + $0x610] sm:$0xff]
    %v380 = vld [vmem:[#allocation4 + $0x618] sm:$0xff]
    %v381 = vld [vmem:[#allocation4 + $0x620] sm:$0xff]
    %v382 = vld [vmem:[#allocation4 + $0x628] sm:$0xff]
    %v383 = vld [vmem:[#allocation4 + $0x630] sm:$0xff]
    %v384 = vld [vmem:[#allocation4 + $0x638] sm:$0xff]
    %v385 = vld [vmem:[#allocation4 + $0x640] sm:$0xff]
    %v386 = vld [vmem:[#allocation4 + $0x648] sm:$0xff]
    %v387 = vld [vmem:[#allocation4 + $0x650] sm:$0xff]
    %v388 = vld [vmem:[#allocation4 + $0x658] sm:$0xff]
    %v389 = vld [vmem:[#allocation4 + $0x660] sm:$0xff]
    %v390 = vld [vmem:[#allocation4 + $0x668] sm:$0xff]
    %v391 = vld [vmem:[#allocation4 + $0x670] sm:$0xff]
    %v392 = vld [vmem:[#allocation4 + $0x678] sm:$0xff]
    %v393 = vld [vmem:[#allocation4 + $0x680] sm:$0xff]
    %v394 = vld [vmem:[#allocation4 + $0x688] sm:$0xff]
    %v395 = vld [vmem:[#allocation4 + $0x690] sm:$0xff]
    %v396 = vld [vmem:[#allocation4 + $0x698] sm:$0xff]
    %v397 = vld [vmem:[#allocation4 + $0x6a0] sm:$0xff]
    %v398 = vld [vmem:[#allocation4 + $0x6a8] sm:$0xff]
    %v399 = vld [vmem:[#allocation4 + $0x6b0] sm:$0xff]
    %v400 = vld [vmem:[#allocation4 + $0x6b8] sm:$0xff]
    %v401 = vld [vmem:[#allocation4 + $0x6c0] sm:$0xff]
    %v402 = vld [vmem:[#allocation4 + $0x6c8] sm:$0xff]
    %v403 = vld [vmem:[#allocation4 + $0x6d0] sm:$0xff]
    %v404 = vld [vmem:[#allocation4 + $0x6d8] sm:$0xff]
    %v405 = vld [vmem:[#allocation4 + $0x6e0] sm:$0xff]
    %v406 = vld [vmem:[#allocation4 + $0x6e8] sm:$0xff]
    %v407 = vld [vmem:[#allocation4 + $0x6f0] sm:$0xff]
    %v408 = vld [vmem:[#allocation4 + $0x6f8] sm:$0xff]
    %v409 = vld [vmem:[#allocation4 + $0x700] sm:$0xff]
    %v410 = vld [vmem:[#allocation4 + $0x708] sm:$0xff]
    %v411 = vld [vmem:[#allocation4 + $0x710] sm:$0xff]
    %v412 = vld [vmem:[#allocation4 + $0x718] sm:$0xff]
    %v413 = vld [vmem:[#allocation4 + $0x720] sm:$0xff]
    %v414 = vld [vmem:[#allocation4 + $0x728] sm:$0xff]
    %v415 = vld [vmem:[#allocation4 + $0x730] sm:$0xff]
    %v416 = vld [vmem:[#allocation4 + $0x738] sm:$0xff]
    %v417 = vld [vmem:[#allocation4 + $0x740] sm:$0xff]
    %v418 = vld [vmem:[#allocation4 + $0x748] sm:$0xff]
    %v419 = vld [vmem:[#allocation4 + $0x750] sm:$0xff]
    %v420 = vld [vmem:[#allocation4 + $0x758] sm:$0xff]
    %v421 = vld [vmem:[#allocation4 + $0x760] sm:$0xff]
    %v422 = vld [vmem:[#allocation4 + $0x768] sm:$0xff]
    %v423 = vld [vmem:[#allocation4 + $0x770] sm:$0xff]
    %v424 = vld [vmem:[#allocation4 + $0x778] sm:$0xff]
    %v425 = vld [vmem:[#allocation4 + $0x780] sm:$0xff]
    %v426 = vld [vmem:[#allocation4 + $0x788] sm:$0xff]
    %v427 = vld [vmem:[#allocation4 + $0x790] sm:$0xff]
    %v428 = vld [vmem:[#allocation4 + $0x798] sm:$0xff]
    %v429 = vld [vmem:[#allocation4 + $0x7a0] sm:$0xff]
    %v430 = vld [vmem:[#allocation4 + $0x7a8] sm:$0xff]
    %v431 = vld [vmem:[#allocation4 + $0x7b0] sm:$0xff]
    %v432 = vld [vmem:[#allocation4 + $0x7b8] sm:$0xff]
    %v433 = vld [vmem:[#allocation4 + $0x7c0] sm:$0xff]
    %v434 = vld [vmem:[#allocation4 + $0x7c8] sm:$0xff]
    %v435 = vld [vmem:[#allocation4 + $0x7d0] sm:$0xff]
    %v436 = vld [vmem:[#allocation4 + $0x7d8] sm:$0xff]
    %v437 = vld [vmem:[#allocation4 + $0x7e0] sm:$0xff]
    %v438 = vld [vmem:[#allocation4 + $0x7e8] sm:$0xff]
    %v439 = vld [vmem:[#allocation4 + $0x7f0] sm:$0xff]
    %v440 = vld [vmem:[#allocation4 + $0x7f8] sm:$0xff]
    %v441 = vld [vmem:[#allocation4 + $0x800] sm:$0xff]
    %v442 = vld [vmem:[#allocation4 + $0x808] sm:$0xff]
    %v443 = vld [vmem:[#allocation4 + $0x810] sm:$0xff]
    %v444 = vld [vmem:[#allocation4 + $0x818] sm:$0xff]
    %v445 = vld [vmem:[#allocation4 + $0x820] sm:$0xff]
    %v446 = vld [vmem:[#allocation4 + $0x828] sm:$0xff]
    %v447 = vld [vmem:[#allocation4 + $0x830] sm:$0xff]
    %v448 = vld [vmem:[#allocation4 + $0x838] sm:$0xff]
    %v449 = vld [vmem:[#allocation4 + $0x840] sm:$0xff]
    %v450 = vld [vmem:[#allocation4 + $0x848] sm:$0xff]
    %v451 = vld [vmem:[#allocation4 + $0x850] sm:$0xff]
    %v452 = vld [vmem:[#allocation4 + $0x858] sm:$0xff]
    %v453 = vld [vmem:[#allocation4 + $0x860] sm:$0xff]
    %v454 = vld [vmem:[#allocation4 + $0x868] sm:$0xff]
    %v455 = vld [vmem:[#allocation4 + $0x870] sm:$0xff]
    %v456 = vld [vmem:[#allocation4 + $0x878] sm:$0xff]
    %v457 = vld [vmem:[#allocation4 + $0x880] sm:$0xff]
    %v458 = vld [vmem:[#allocation4 + $0x888] sm:$0xff]
    %v459 = vld [vmem:[#allocation4 + $0x890] sm:$0xff]
    %v460 = vld [vmem:[#allocation4 + $0x898] sm:$0xff]
    %v461 = vld [vmem:[#allocation4 + $0x8a0] sm:$0xff]
    %v462 = vld [vmem:[#allocation4 + $0x8a8] sm:$0xff]
    %v463 = vld [vmem:[#allocation4 + $0x8b0] sm:$0xff]
    %v464 = vld [vmem:[#allocation4 + $0x8b8] sm:$0xff]
    %v465 = vld [vmem:[#allocation4 + $0x8c0] sm:$0xff]
    %v466 = vld [vmem:[#allocation4 + $0x8c8] sm:$0xff]
    %v467 = vld [vmem:[#allocation4 + $0x8d0] sm:$0xff]
    %v468 = vld [vmem:[#allocation4 + $0x8d8] sm:$0xff]
    %v469 = vld [vmem:[#allocation4 + $0x8e0] sm:$0xff]
    %v470 = vld [vmem:[#allocation4 + $0x8e8] sm:$0xff]
    %v471 = vld [vmem:[#allocation4 + $0x8f0] sm:$0xff]
    %v472 = vld [vmem:[#allocation4 + $0x8f8] sm:$0xff]
    %v473 = vld [vmem:[#allocation4 + $0x900] sm:$0xff]
    %v474 = vld [vmem:[#allocation4 + $0x908] sm:$0xff]
    %v475 = vld [vmem:[#allocation4 + $0x910] sm:$0xff]
    %v476 = vld [vmem:[#allocation4 + $0x918] sm:$0xff]
    %v477 = vld [vmem:[#allocation4 + $0x920] sm:$0xff]
    %v478 = vld [vmem:[#allocation4 + $0x928] sm:$0xff]
    %v479 = vld [vmem:[#allocation4 + $0x930] sm:$0xff]
    %v480 = vld [vmem:[#allocation4 + $0x938] sm:$0xff]
    %v481 = vld [vmem:[#allocation4 + $0x940] sm:$0xff]
    %v482 = vld [vmem:[#allocation4 + $0x948] sm:$0xff]
    %v483 = vld [vmem:[#allocation4 + $0x950] sm:$0xff]
    %v484 = vld [vmem:[#allocation4 + $0x958] sm:$0xff]
    %v485 = vld [vmem:[#allocation4 + $0x960] sm:$0xff]
    %v486 = vld [vmem:[#allocation4 + $0x968] sm:$0xff]
    %v487 = vld [vmem:[#allocation4 + $0x970] sm:$0xff]
    %v488 = vld [vmem:[#allocation4 + $0x978] sm:$0xff]
    %v489 = vld [vmem:[#allocation4 + $0x980] sm:$0xff]
    %v490 = vld [vmem:[#allocation4 + $0x988] sm:$0xff]
    %v491 = vld [vmem:[#allocation4 + $0x990] sm:$0xff]
    %v492 = vld [vmem:[#allocation4 + $0x998] sm:$0xff]
    %v493 = vld [vmem:[#allocation4 + $0x9a0] sm:$0xff]
    %v494 = vld [vmem:[#allocation4 + $0x9a8] sm:$0xff]
    %v495 = vld [vmem:[#allocation4 + $0x9b0] sm:$0xff]
    %v496 = vld [vmem:[#allocation4 + $0x9b8] sm:$0xff]
    %v497 = vld [vmem:[#allocation4 + $0x9c0] sm:$0xff]
    %v498 = vld [vmem:[#allocation4 + $0x9c8] sm:$0xff]
    %v499 = vld [vmem:[#allocation4 + $0x9d0] sm:$0xff]
    %v500 = vld [vmem:[#allocation4 + $0x9d8] sm:$0xff]
    %v501 = vld [vmem:[#allocation4 + $0x9e0] sm:$0xff]
    %v502 = vld [vmem:[#allocation4 + $0x9e8] sm:$0xff]
    %v503 = vld [vmem:[#allocation4 + $0x9f0] sm:$0xff]
    %v504 = vld [vmem:[#allocation4 + $0x9f8] sm:$0xff]
    %v505 = vld [vmem:[#allocation4 + $0xa00] sm:$0xff]
    %v506 = vld [vmem:[#allocation4 + $0xa08] sm:$0xff]
    %v507 = vld [vmem:[#allocation4 + $0xa10] sm:$0xff]
    %v508 = vld [vmem:[#allocation4 + $0xa18] sm:$0xff]
    %v509 = vld [vmem:[#allocation4 + $0xa20] sm:$0xff]
    %v510 = vld [vmem:[#allocation4 + $0xa28] sm:$0xff]
    %v511 = vld [vmem:[#allocation4 + $0xa30] sm:$0xff]
    %v512 = vld [vmem:[#allocation4 + $0xa38] sm:$0xff]
    %v513 = vld [vmem:[#allocation4 + $0xa40] sm:$0xff]
    %v514 = vld [vmem:[#allocation4 + $0xa48] sm:$0xff]
    %v515 = vld [vmem:[#allocation4 + $0xa50] sm:$0xff]
    %v516 = vld [vmem:[#allocation4 + $0xa58] sm:$0xff]
    %v517 = vld [vmem:[#allocation4 + $0xa60] sm:$0xff]
    %v518 = vld [vmem:[#allocation4 + $0xa68] sm:$0xff]
    %v519 = vld [vmem:[#allocation4 + $0xa70] sm:$0xff]
    %v520 = vld [vmem:[#allocation4 + $0xa78] sm:$0xff]
    %v521 = vld [vmem:[#allocation4 + $0xa80] sm:$0xff]
    %v522 = vld [vmem:[#allocation4 + $0xa88] sm:$0xff]
    %v523 = vld [vmem:[#allocation4 + $0xa90] sm:$0xff]
    %v524 = vld [vmem:[#allocation4 + $0xa98] sm:$0xff]
    %v525 = vld [vmem:[#allocation4 + $0xaa0] sm:$0xff]
    %v526 = vld [vmem:[#allocation4 + $0xaa8] sm:$0xff]
    %v527 = vld [vmem:[#allocation4 + $0xab0] sm:$0xff]
    %v528 = vld [vmem:[#allocation4 + $0xab8] sm:$0xff]
    %v529 = vld [vmem:[#allocation4 + $0xac0] sm:$0xff]
    %v530 = vld [vmem:[#allocation4 + $0xac8] sm:$0xff]
    %v531 = vld [vmem:[#allocation4 + $0xad0] sm:$0xff]
    %v532 = vld [vmem:[#allocation4 + $0xad8] sm:$0xff]
    %v533 = vld [vmem:[#allocation4 + $0xae0] sm:$0xff]
    %v534 = vld [vmem:[#allocation4 + $0xae8] sm:$0xff]
    %v535 = vld [vmem:[#allocation4 + $0xaf0] sm:$0xff]
    %v536 = vld [vmem:[#allocation4 + $0xaf8] sm:$0xff]
    %v537 = vld [vmem:[#allocation4 + $0xb00] sm:$0xff]
    %v538 = vld [vmem:[#allocation4 + $0xb08] sm:$0xff]
    %v539 = vld [vmem:[#allocation4 + $0xb10] sm:$0xff]
    %v540 = vld [vmem:[#allocation4 + $0xb18] sm:$0xff]
    %v541 = vld [vmem:[#allocation4 + $0xb20] sm:$0xff]
    %v542 = vld [vmem:[#allocation4 + $0xb28] sm:$0xff]
    %v543 = vld [vmem:[#allocation4 + $0xb30] sm:$0xff]
    %v544 = vld [vmem:[#allocation4 + $0xb38] sm:$0xff]
    %v545 = vld [vmem:[#allocation4 + $0xb40] sm:$0xff]
    %v546 = vld [vmem:[#allocation4 + $0xb48] sm:$0xff]
    %v547 = vld [vmem:[#allocation4 + $0xb50] sm:$0xff]
    %v548 = vld [vmem:[#allocation4 + $0xb58] sm:$0xff]
    %v549 = vld [vmem:[#allocation4 + $0xb60] sm:$0xff]
    %v550 = vld [vmem:[#allocation4 + $0xb68] sm:$0xff]
    %v551 = vld [vmem:[#allocation4 + $0xb70] sm:$0xff]
    %v552 = vld [vmem:[#allocation4 + $0xb78] sm:$0xff]
    %v553 = vld [vmem:[#allocation4 + $0xb80] sm:$0xff]
    %v554 = vld [vmem:[#allocation4 + $0xb88] sm:$0xff]
    %v555 = vld [vmem:[#allocation4 + $0xb90] sm:$0xff]
    %v556 = vld [vmem:[#allocation4 + $0xb98] sm:$0xff]
    %v557 = vld [vmem:[#allocation4 + $0xba0] sm:$0xff]
    %v558 = vld [vmem:[#allocation4 + $0xba8] sm:$0xff]
    %v559 = vld [vmem:[#allocation4 + $0xbb0] sm:$0xff]
    %v560 = vld [vmem:[#allocation4 + $0xbb8] sm:$0xff]
    %v561 = vld [vmem:[#allocation4 + $0xbc0] sm:$0xff]
    %v562 = vld [vmem:[#allocation4 + $0xbc8] sm:$0xff]
    %v563 = vld [vmem:[#allocation4 + $0xbd0] sm:$0xff]
    %v564 = vld [vmem:[#allocation4 + $0xbd8] sm:$0xff]
    %v565 = vld [vmem:[#allocation4 + $0xbe0] sm:$0xff]
    %v566 = vld [vmem:[#allocation4 + $0xbe8] sm:$0xff]
    %v567 = vld [vmem:[#allocation4 + $0xbf0] sm:$0xff]
    %v568 = vld [vmem:[#allocation4 + $0xbf8] sm:$0xff]
    %v569 = vld [vmem:[#allocation7] sm:$0xff]
    %v571 = vlaneseq
    %v572 = vshrl.u32 %v571, 7
    %v573 = vsub.s32 0, %v572
    %v574 = vrot.slane %v569, %v573
    %v575 = vlaneseq
    %v576 = vshrl.u32 %v575, 7
    %v577 = vsub.s32 1, %v576
    %v578 = vrot.slane %v569, %v577
    %v579 = vlaneseq
    %v580 = vshrl.u32 %v579, 7
    %v581 = vsub.s32 2, %v580
    %v582 = vrot.slane %v569, %v581
    %v583 = vlaneseq
    %v584 = vshrl.u32 %v583, 7
    %v585 = vsub.s32 3, %v584
    %v586 = vrot.slane %v569, %v585
    %v587 = vlaneseq
    %v588 = vshrl.u32 %v587, 7
    %v589 = vsub.s32 4, %v588
    %v590 = vrot.slane %v569, %v589
    %v591 = vlaneseq
    %v592 = vshrl.u32 %v591, 7
    %v593 = vsub.s32 5, %v592
    %v594 = vrot.slane %v569, %v593
    %v595 = vlaneseq
    %v596 = vshrl.u32 %v595, 7
    %v597 = vsub.s32 6, %v596
    %v598 = vrot.slane %v569, %v597
    %v599 = vlaneseq
    %v600 = vshrl.u32 %v599, 7
    %v601 = vsub.s32 7, %v600
    %v602 = vrot.slane %v569, %v601
    %v623 = vunpack.c.l.b16 %v173
    %v624 = vunpack.c.l.b16 %v174
    %v625 = vunpack.c.l.b16 %v175
    %v626 = vunpack.c.l.b16 %v176
    %v627 = vunpack.c.l.b16 %v177
    %v628 = vunpack.c.l.b16 %v178
    %v629 = vunpack.c.l.b16 %v179
    %v630 = vunpack.c.l.b16 %v180
    %v631 = vunpack.c.l.b16 %v181
    %v632 = vunpack.c.l.b16 %v182
    %v633 = vunpack.c.l.b16 %v183
    %v634 = vunpack.c.l.b16 %v184
    %v635 = vrot.slane %v629, 7
    %vm636 = vcmask 1041409
    %v637 = vsel %vm636, %v635, %v623
    %v638 = vrot.slane %v630, 7
    %v639 = vsel %vm636, %v638, %v624
    %v640 = vrot.slane %v631, 7
    %v641 = vsel %vm636, %v640, %v625
    %v642 = vrot.slane %v632, 7
    %v643 = vsel %vm636, %v642, %v626
    %v644 = vrot.slane %v633, 7
    %v645 = vsel %vm636, %v644, %v627
    %v646 = vrot.slane %v634, 7
    %v647 = vsel %vm636, %v646, %v628
    %v648 = vpack.c.b16 %v637, %v637
    %v649 = vpack.c.b16 %v639, %v639
    %v650 = vpack.c.b16 %v641, %v641
    %v651 = vpack.c.b16 %v643, %v643
    %v652 = vpack.c.b16 %v645, %v645
    %v653 = vpack.c.b16 %v647, %v647
    %v1044 = vunpack.c.l.b16 %v185
    %v1045 = vunpack.c.h.b16 %v185
    %v1046 = vunpack.c.l.b16 %v186
    %v1047 = vunpack.c.h.b16 %v186
    %v1048 = vunpack.c.l.b16 %v187
    %v1049 = vunpack.c.h.b16 %v187
    %v1050 = vunpack.c.l.b16 %v188
    %v1051 = vunpack.c.h.b16 %v188
    %v1052 = vunpack.c.l.b16 %v189
    %v1053 = vunpack.c.h.b16 %v189
    %v1054 = vunpack.c.l.b16 %v190
    %v1055 = vunpack.c.h.b16 %v190
    %v1056 = vunpack.c.l.b16 %v191
    %v1057 = vunpack.c.h.b16 %v191
    %v1058 = vunpack.c.l.b16 %v192
    %v1059 = vunpack.c.h.b16 %v192
    %v1060 = vunpack.c.l.b16 %v193
    %v1061 = vunpack.c.h.b16 %v193
    %v1062 = vunpack.c.l.b16 %v194
    %v1063 = vunpack.c.h.b16 %v194
    %v1064 = vunpack.c.l.b16 %v195
    %v1065 = vunpack.c.h.b16 %v195
    %v1066 = vunpack.c.l.b16 %v196
    %v1067 = vunpack.c.h.b16 %v196
    %v1068 = vunpack.c.l.b16 %v197
    %v1069 = vunpack.c.h.b16 %v197
    %v1070 = vunpack.c.l.b16 %v198
    %v1071 = vunpack.c.h.b16 %v198
    %v1072 = vunpack.c.l.b16 %v199
    %v1073 = vunpack.c.h.b16 %v199
    %v1074 = vunpack.c.l.b16 %v200
    %v1075 = vunpack.c.h.b16 %v200
    %v1076 = vunpack.c.l.b16 %v201
    %v1077 = vunpack.c.h.b16 %v201
    %v1078 = vunpack.c.l.b16 %v202
    %v1079 = vunpack.c.h.b16 %v202
    %v1080 = vunpack.c.l.b16 %v203
    %v1081 = vunpack.c.h.b16 %v203
    %v1082 = vunpack.c.l.b16 %v204
    %v1083 = vunpack.c.h.b16 %v204
    %v1084 = vunpack.c.l.b16 %v205
    %v1085 = vunpack.c.h.b16 %v205
    %v1086 = vunpack.c.l.b16 %v206
    %v1087 = vunpack.c.h.b16 %v206
    %v1088 = vunpack.c.l.b16 %v207
    %v1089 = vunpack.c.h.b16 %v207
    %v1090 = vunpack.c.l.b16 %v208
    %v1091 = vunpack.c.h.b16 %v208
    %v1092 = vunpack.c.l.b16 %v209
    %v1093 = vunpack.c.h.b16 %v209
    %v1094 = vunpack.c.l.b16 %v210
    %v1095 = vunpack.c.h.b16 %v210
    %v1096 = vunpack.c.l.b16 %v211
    %v1097 = vunpack.c.h.b16 %v211
    %v1098 = vunpack.c.l.b16 %v212
    %v1099 = vunpack.c.h.b16 %v212
    %v1100 = vunpack.c.l.b16 %v213
    %v1101 = vunpack.c.h.b16 %v213
    %v1102 = vunpack.c.l.b16 %v214
    %v1103 = vunpack.c.h.b16 %v214
    %v1104 = vunpack.c.l.b16 %v215
    %v1105 = vunpack.c.h.b16 %v215
    %v1106 = vunpack.c.l.b16 %v216
    %v1107 = vunpack.c.h.b16 %v216
    %v1108 = vunpack.c.l.b16 %v217
    %v1109 = vunpack.c.h.b16 %v217
    %v1110 = vunpack.c.l.b16 %v218
    %v1111 = vunpack.c.h.b16 %v218
    %v1112 = vunpack.c.l.b16 %v219
    %v1113 = vunpack.c.h.b16 %v219
    %v1114 = vunpack.c.l.b16 %v220
    %v1115 = vunpack.c.h.b16 %v220
    %v1116 = vunpack.c.l.b16 %v221
    %v1117 = vunpack.c.h.b16 %v221
    %v1118 = vunpack.c.l.b16 %v222
    %v1119 = vunpack.c.h.b16 %v222
    %v1120 = vunpack.c.l.b16 %v223
    %v1121 = vunpack.c.h.b16 %v223
    %v1122 = vunpack.c.l.b16 %v224
    %v1123 = vunpack.c.h.b16 %v224
    %v1124 = vunpack.c.l.b16 %v225
    %v1125 = vunpack.c.h.b16 %v225
    %v1126 = vunpack.c.l.b16 %v226
    %v1127 = vunpack.c.h.b16 %v226
    %v1128 = vunpack.c.l.b16 %v227
    %v1129 = vunpack.c.h.b16 %v227
    %v1130 = vunpack.c.l.b16 %v228
    %v1131 = vunpack.c.h.b16 %v228
    %v1132 = vunpack.c.l.b16 %v229
    %v1133 = vunpack.c.h.b16 %v229
    %v1134 = vunpack.c.l.b16 %v230
    %v1135 = vunpack.c.h.b16 %v230
    %v1136 = vunpack.c.l.b16 %v231
    %v1137 = vunpack.c.h.b16 %v231
    %v1138 = vunpack.c.l.b16 %v232
    %v1139 = vunpack.c.h.b16 %v232
    %v1140 = vunpack.c.l.b16 %v233
    %v1141 = vunpack.c.h.b16 %v233
    %v1142 = vunpack.c.l.b16 %v234
    %v1143 = vunpack.c.h.b16 %v234
    %v1144 = vunpack.c.l.b16 %v235
    %v1145 = vunpack.c.h.b16 %v235
    %v1146 = vunpack.c.l.b16 %v236
    %v1147 = vunpack.c.h.b16 %v236
    %v1148 = vunpack.c.l.b16 %v237
    %v1149 = vunpack.c.h.b16 %v237
    %v1150 = vunpack.c.l.b16 %v238
    %v1151 = vunpack.c.h.b16 %v238
    %v1152 = vunpack.c.l.b16 %v239
    %v1153 = vunpack.c.h.b16 %v239
    %v1154 = vunpack.c.l.b16 %v240
    %v1155 = vunpack.c.h.b16 %v240
    %v1156 = vunpack.c.l.b16 %v241
    %v1157 = vunpack.c.h.b16 %v241
    %v1158 = vunpack.c.l.b16 %v242
    %v1159 = vunpack.c.h.b16 %v242
    %v1160 = vunpack.c.l.b16 %v243
    %v1161 = vunpack.c.h.b16 %v243
    %v1162 = vunpack.c.l.b16 %v244
    %v1163 = vunpack.c.h.b16 %v244
    %v1164 = vunpack.c.l.b16 %v245
    %v1165 = vunpack.c.h.b16 %v245
    %v1166 = vunpack.c.l.b16 %v246
    %v1167 = vunpack.c.h.b16 %v246
    %v1168 = vunpack.c.l.b16 %v247
    %v1169 = vunpack.c.h.b16 %v247
    %v1170 = vunpack.c.l.b16 %v248
    %v1171 = vunpack.c.h.b16 %v248
    %v1172 = vunpack.c.l.b16 %v249
    %v1173 = vunpack.c.h.b16 %v249
    %v1174 = vunpack.c.l.b16 %v250
    %v1175 = vunpack.c.h.b16 %v250
    %v1176 = vunpack.c.l.b16 %v251
    %v1177 = vunpack.c.h.b16 %v251
    %v1178 = vunpack.c.l.b16 %v252
    %v1179 = vunpack.c.h.b16 %v252
    %v1180 = vunpack.c.l.b16 %v253
    %v1181 = vunpack.c.h.b16 %v253
    %v1182 = vunpack.c.l.b16 %v254
    %v1183 = vunpack.c.h.b16 %v254
    %v1184 = vunpack.c.l.b16 %v255
    %v1185 = vunpack.c.h.b16 %v255
    %v1186 = vunpack.c.l.b16 %v256
    %v1187 = vunpack.c.h.b16 %v256
    %v1188 = vunpack.c.l.b16 %v257
    %v1189 = vunpack.c.h.b16 %v257
    %v1190 = vunpack.c.l.b16 %v258
    %v1191 = vunpack.c.h.b16 %v258
    %v1192 = vunpack.c.l.b16 %v259
    %v1193 = vunpack.c.h.b16 %v259
    %v1194 = vunpack.c.l.b16 %v260
    %v1195 = vunpack.c.h.b16 %v260
    %v1196 = vunpack.c.l.b16 %v261
    %v1197 = vunpack.c.h.b16 %v261
    %v1198 = vunpack.c.l.b16 %v262
    %v1199 = vunpack.c.h.b16 %v262
    %v1200 = vunpack.c.l.b16 %v263
    %v1201 = vunpack.c.h.b16 %v263
    %v1202 = vunpack.c.l.b16 %v264
    %v1203 = vunpack.c.h.b16 %v264
    %v1204 = vunpack.c.l.b16 %v265
    %v1205 = vunpack.c.h.b16 %v265
    %v1206 = vunpack.c.l.b16 %v266
    %v1207 = vunpack.c.h.b16 %v266
    %v1208 = vunpack.c.l.b16 %v267
    %v1209 = vunpack.c.h.b16 %v267
    %v1210 = vunpack.c.l.b16 %v268
    %v1211 = vunpack.c.h.b16 %v268
    %v1212 = vunpack.c.l.b16 %v269
    %v1213 = vunpack.c.h.b16 %v269
    %v1214 = vunpack.c.l.b16 %v270
    %v1215 = vunpack.c.h.b16 %v270
    %v1216 = vunpack.c.l.b16 %v271
    %v1217 = vunpack.c.h.b16 %v271
    %v1218 = vunpack.c.l.b16 %v272
    %v1219 = vunpack.c.h.b16 %v272
    %v1220 = vunpack.c.l.b16 %v273
    %v1221 = vunpack.c.h.b16 %v273
    %v1222 = vunpack.c.l.b16 %v274
    %v1223 = vunpack.c.h.b16 %v274
    %v1224 = vunpack.c.l.b16 %v275
    %v1225 = vunpack.c.h.b16 %v275
    %v1226 = vunpack.c.l.b16 %v276
    %v1227 = vunpack.c.h.b16 %v276
    %v1228 = vunpack.c.l.b16 %v277
    %v1229 = vunpack.c.h.b16 %v277
    %v1230 = vunpack.c.l.b16 %v278
    %v1231 = vunpack.c.h.b16 %v278
    %v1232 = vunpack.c.l.b16 %v279
    %v1233 = vunpack.c.h.b16 %v279
    %v1234 = vunpack.c.l.b16 %v280
    %v1235 = vunpack.c.h.b16 %v280
    %v1236 = vunpack.c.l.b16 %v281
    %v1237 = vunpack.c.h.b16 %v281
    %v1238 = vunpack.c.l.b16 %v282
    %v1239 = vunpack.c.h.b16 %v282
    %v1240 = vunpack.c.l.b16 %v283
    %v1241 = vunpack.c.h.b16 %v283
    %v1242 = vunpack.c.l.b16 %v284
    %v1243 = vunpack.c.h.b16 %v284
    %v1244 = vunpack.c.l.b16 %v285
    %v1245 = vunpack.c.h.b16 %v285
    %v1246 = vunpack.c.l.b16 %v286
    %v1247 = vunpack.c.h.b16 %v286
    %v1248 = vunpack.c.l.b16 %v287
    %v1249 = vunpack.c.h.b16 %v287
    %v1250 = vunpack.c.l.b16 %v288
    %v1251 = vunpack.c.h.b16 %v288
    %v1252 = vunpack.c.l.b16 %v289
    %v1253 = vunpack.c.h.b16 %v289
    %v1254 = vunpack.c.l.b16 %v290
    %v1255 = vunpack.c.h.b16 %v290
    %v1256 = vunpack.c.l.b16 %v291
    %v1257 = vunpack.c.h.b16 %v291
    %v1258 = vunpack.c.l.b16 %v292
    %v1259 = vunpack.c.h.b16 %v292
    %v1260 = vunpack.c.l.b16 %v293
    %v1261 = vunpack.c.h.b16 %v293
    %v1262 = vunpack.c.l.b16 %v294
    %v1263 = vunpack.c.h.b16 %v294
    %v1264 = vunpack.c.l.b16 %v295
    %v1265 = vunpack.c.h.b16 %v295
    %v1266 = vunpack.c.l.b16 %v296
    %v1267 = vunpack.c.h.b16 %v296
    %v1268 = vunpack.c.l.b16 %v297
    %v1269 = vunpack.c.h.b16 %v297
    %v1270 = vunpack.c.l.b16 %v298
    %v1271 = vunpack.c.h.b16 %v298
    %v1272 = vunpack.c.l.b16 %v299
    %v1273 = vunpack.c.h.b16 %v299
    %v1274 = vunpack.c.l.b16 %v300
    %v1275 = vunpack.c.h.b16 %v300
    %v1276 = vunpack.c.l.b16 %v301
    %v1277 = vunpack.c.h.b16 %v301
    %v1278 = vunpack.c.l.b16 %v302
    %v1279 = vunpack.c.h.b16 %v302
    %v1280 = vunpack.c.l.b16 %v303
    %v1281 = vunpack.c.h.b16 %v303
    %v1282 = vunpack.c.l.b16 %v304
    %v1283 = vunpack.c.h.b16 %v304
    %v1284 = vunpack.c.l.b16 %v305
    %v1285 = vunpack.c.h.b16 %v305
    %v1286 = vunpack.c.l.b16 %v306
    %v1287 = vunpack.c.h.b16 %v306
    %v1288 = vunpack.c.l.b16 %v307
    %v1289 = vunpack.c.h.b16 %v307
    %v1290 = vunpack.c.l.b16 %v308
    %v1291 = vunpack.c.h.b16 %v308
    %v1292 = vunpack.c.l.b16 %v309
    %v1293 = vunpack.c.h.b16 %v309
    %v1294 = vunpack.c.l.b16 %v310
    %v1295 = vunpack.c.h.b16 %v310
    %v1296 = vunpack.c.l.b16 %v311
    %v1297 = vunpack.c.h.b16 %v311
    %v1298 = vunpack.c.l.b16 %v312
    %v1299 = vunpack.c.h.b16 %v312
    %v1300 = vunpack.c.l.b16 %v313
    %v1301 = vunpack.c.h.b16 %v313
    %v1302 = vunpack.c.l.b16 %v314
    %v1303 = vunpack.c.h.b16 %v314
    %v1304 = vunpack.c.l.b16 %v315
    %v1305 = vunpack.c.h.b16 %v315
    %v1306 = vunpack.c.l.b16 %v316
    %v1307 = vunpack.c.h.b16 %v316
    %v1308 = vunpack.c.l.b16 %v317
    %v1309 = vunpack.c.h.b16 %v317
    %v1310 = vunpack.c.l.b16 %v318
    %v1311 = vunpack.c.h.b16 %v318
    %v1312 = vunpack.c.l.b16 %v319
    %v1313 = vunpack.c.h.b16 %v319
    %v1314 = vunpack.c.l.b16 %v320
    %v1315 = vunpack.c.h.b16 %v320
    %v1316 = vunpack.c.l.b16 %v321
    %v1317 = vunpack.c.h.b16 %v321
    %v1318 = vunpack.c.l.b16 %v322
    %v1319 = vunpack.c.h.b16 %v322
    %v1320 = vunpack.c.l.b16 %v323
    %v1321 = vunpack.c.h.b16 %v323
    %v1322 = vunpack.c.l.b16 %v324
    %v1323 = vunpack.c.h.b16 %v324
    %v1324 = vunpack.c.l.b16 %v325
    %v1325 = vunpack.c.h.b16 %v325
    %v1326 = vunpack.c.l.b16 %v326
    %v1327 = vunpack.c.h.b16 %v326
    %v1328 = vunpack.c.l.b16 %v327
    %v1329 = vunpack.c.h.b16 %v327
    %v1330 = vunpack.c.l.b16 %v328
    %v1331 = vunpack.c.h.b16 %v328
    %v1332 = vunpack.c.l.b16 %v329
    %v1333 = vunpack.c.h.b16 %v329
    %v1334 = vunpack.c.l.b16 %v330
    %v1335 = vunpack.c.h.b16 %v330
    %v1336 = vunpack.c.l.b16 %v331
    %v1337 = vunpack.c.h.b16 %v331
    %v1338 = vunpack.c.l.b16 %v332
    %v1339 = vunpack.c.h.b16 %v332
    %v1340 = vunpack.c.l.b16 %v333
    %v1341 = vunpack.c.h.b16 %v333
    %v1342 = vunpack.c.l.b16 %v334
    %v1343 = vunpack.c.h.b16 %v334
    %v1344 = vunpack.c.l.b16 %v335
    %v1345 = vunpack.c.h.b16 %v335
    %v1346 = vunpack.c.l.b16 %v336
    %v1347 = vunpack.c.h.b16 %v336
    %v1348 = vunpack.c.l.b16 %v337
    %v1349 = vunpack.c.h.b16 %v337
    %v1350 = vunpack.c.l.b16 %v338
    %v1351 = vunpack.c.h.b16 %v338
    %v1352 = vunpack.c.l.b16 %v339
    %v1353 = vunpack.c.h.b16 %v339
    %v1354 = vunpack.c.l.b16 %v340
    %v1355 = vunpack.c.h.b16 %v340
    %v1356 = vunpack.c.l.b16 %v341
    %v1357 = vunpack.c.h.b16 %v341
    %v1358 = vunpack.c.l.b16 %v342
    %v1359 = vunpack.c.h.b16 %v342
    %v1360 = vunpack.c.l.b16 %v343
    %v1361 = vunpack.c.h.b16 %v343
    %v1362 = vunpack.c.l.b16 %v344
    %v1363 = vunpack.c.h.b16 %v344
    %v1364 = vunpack.c.l.b16 %v345
    %v1365 = vunpack.c.h.b16 %v345
    %v1366 = vunpack.c.l.b16 %v346
    %v1367 = vunpack.c.h.b16 %v346
    %v1368 = vunpack.c.l.b16 %v347
    %v1369 = vunpack.c.h.b16 %v347
    %v1370 = vunpack.c.l.b16 %v348
    %v1371 = vunpack.c.h.b16 %v348
    %v1372 = vunpack.c.l.b16 %v349
    %v1373 = vunpack.c.h.b16 %v349
    %v1374 = vunpack.c.l.b16 %v350
    %v1375 = vunpack.c.h.b16 %v350
    %v1376 = vunpack.c.l.b16 %v351
    %v1377 = vunpack.c.h.b16 %v351
    %v1378 = vunpack.c.l.b16 %v352
    %v1379 = vunpack.c.h.b16 %v352
    %v1380 = vunpack.c.l.b16 %v353
    %v1381 = vunpack.c.h.b16 %v353
    %v1382 = vunpack.c.l.b16 %v354
    %v1383 = vunpack.c.h.b16 %v354
    %v1384 = vunpack.c.l.b16 %v355
    %v1385 = vunpack.c.h.b16 %v355
    %v1386 = vunpack.c.l.b16 %v356
    %v1387 = vunpack.c.h.b16 %v356
    %v1388 = vunpack.c.l.b16 %v357
    %v1389 = vunpack.c.h.b16 %v357
    %v1390 = vunpack.c.l.b16 %v358
    %v1391 = vunpack.c.h.b16 %v358
    %v1392 = vunpack.c.l.b16 %v359
    %v1393 = vunpack.c.h.b16 %v359
    %v1394 = vunpack.c.l.b16 %v360
    %v1395 = vunpack.c.h.b16 %v360
    %v1396 = vunpack.c.l.b16 %v361
    %v1397 = vunpack.c.h.b16 %v361
    %v1398 = vunpack.c.l.b16 %v362
    %v1399 = vunpack.c.h.b16 %v362
    %v1400 = vunpack.c.l.b16 %v363
    %v1401 = vunpack.c.h.b16 %v363
    %v1402 = vunpack.c.l.b16 %v364
    %v1403 = vunpack.c.h.b16 %v364
    %v1404 = vunpack.c.l.b16 %v365
    %v1405 = vunpack.c.h.b16 %v365
    %v1406 = vunpack.c.l.b16 %v366
    %v1407 = vunpack.c.h.b16 %v366
    %v1408 = vunpack.c.l.b16 %v367
    %v1409 = vunpack.c.h.b16 %v367
    %v1410 = vunpack.c.l.b16 %v368
    %v1411 = vunpack.c.h.b16 %v368
    %v1412 = vunpack.c.l.b16 %v369
    %v1413 = vunpack.c.h.b16 %v369
    %v1414 = vunpack.c.l.b16 %v370
    %v1415 = vunpack.c.h.b16 %v370
    %v1416 = vunpack.c.l.b16 %v371
    %v1417 = vunpack.c.h.b16 %v371
    %v1418 = vunpack.c.l.b16 %v372
    %v1419 = vunpack.c.h.b16 %v372
    %v1420 = vunpack.c.l.b16 %v373
    %v1421 = vunpack.c.h.b16 %v373
    %v1422 = vunpack.c.l.b16 %v374
    %v1423 = vunpack.c.h.b16 %v374
    %v1424 = vunpack.c.l.b16 %v375
    %v1425 = vunpack.c.h.b16 %v375
    %v1426 = vunpack.c.l.b16 %v376
    %v1427 = vunpack.c.h.b16 %v376
    %v1428 = vunpack.c.l.b16 %v377
    %v1429 = vunpack.c.h.b16 %v377
    %v1430 = vunpack.c.l.b16 %v378
    %v1431 = vunpack.c.h.b16 %v378
    %v1432 = vunpack.c.l.b16 %v379
    %v1433 = vunpack.c.h.b16 %v379
    %v1434 = vunpack.c.l.b16 %v380
    %v1435 = vunpack.c.h.b16 %v380
    %v1436 = vunpack.c.l.b16 %v381
    %v1437 = vunpack.c.h.b16 %v381
    %v1438 = vunpack.c.l.b16 %v382
    %v1439 = vunpack.c.h.b16 %v382
    %v1440 = vunpack.c.l.b16 %v383
    %v1441 = vunpack.c.h.b16 %v383
    %v1442 = vunpack.c.l.b16 %v384
    %v1443 = vunpack.c.h.b16 %v384
    %v1444 = vunpack.c.l.b16 %v385
    %v1445 = vunpack.c.h.b16 %v385
    %v1446 = vunpack.c.l.b16 %v386
    %v1447 = vunpack.c.h.b16 %v386
    %v1448 = vunpack.c.l.b16 %v387
    %v1449 = vunpack.c.h.b16 %v387
    %v1450 = vunpack.c.l.b16 %v388
    %v1451 = vunpack.c.h.b16 %v388
    %v1452 = vunpack.c.l.b16 %v389
    %v1453 = vunpack.c.h.b16 %v389
    %v1454 = vunpack.c.l.b16 %v390
    %v1455 = vunpack.c.h.b16 %v390
    %v1456 = vunpack.c.l.b16 %v391
    %v1457 = vunpack.c.h.b16 %v391
    %v1458 = vunpack.c.l.b16 %v392
    %v1459 = vunpack.c.h.b16 %v392
    %v1460 = vunpack.c.l.b16 %v393
    %v1461 = vunpack.c.h.b16 %v393
    %v1462 = vunpack.c.l.b16 %v394
    %v1463 = vunpack.c.h.b16 %v394
    %v1464 = vunpack.c.l.b16 %v395
    %v1465 = vunpack.c.h.b16 %v395
    %v1466 = vunpack.c.l.b16 %v396
    %v1467 = vunpack.c.h.b16 %v396
    %v1468 = vunpack.c.l.b16 %v397
    %v1469 = vunpack.c.h.b16 %v397
    %v1470 = vunpack.c.l.b16 %v398
    %v1471 = vunpack.c.h.b16 %v398
    %v1472 = vunpack.c.l.b16 %v399
    %v1473 = vunpack.c.h.b16 %v399
    %v1474 = vunpack.c.l.b16 %v400
    %v1475 = vunpack.c.h.b16 %v400
    %v1476 = vunpack.c.l.b16 %v401
    %v1477 = vunpack.c.h.b16 %v401
    %v1478 = vunpack.c.l.b16 %v402
    %v1479 = vunpack.c.h.b16 %v402
    %v1480 = vunpack.c.l.b16 %v403
    %v1481 = vunpack.c.h.b16 %v403
    %v1482 = vunpack.c.l.b16 %v404
    %v1483 = vunpack.c.h.b16 %v404
    %v1484 = vunpack.c.l.b16 %v405
    %v1485 = vunpack.c.h.b16 %v405
    %v1486 = vunpack.c.l.b16 %v406
    %v1487 = vunpack.c.h.b16 %v406
    %v1488 = vunpack.c.l.b16 %v407
    %v1489 = vunpack.c.h.b16 %v407
    %v1490 = vunpack.c.l.b16 %v408
    %v1491 = vunpack.c.h.b16 %v408
    %v1492 = vunpack.c.l.b16 %v409
    %v1493 = vunpack.c.h.b16 %v409
    %v1494 = vunpack.c.l.b16 %v410
    %v1495 = vunpack.c.h.b16 %v410
    %v1496 = vunpack.c.l.b16 %v411
    %v1497 = vunpack.c.h.b16 %v411
    %v1498 = vunpack.c.l.b16 %v412
    %v1499 = vunpack.c.h.b16 %v412
    %v1500 = vunpack.c.l.b16 %v413
    %v1501 = vunpack.c.h.b16 %v413
    %v1502 = vunpack.c.l.b16 %v414
    %v1503 = vunpack.c.h.b16 %v414
    %v1504 = vunpack.c.l.b16 %v415
    %v1505 = vunpack.c.h.b16 %v415
    %v1506 = vunpack.c.l.b16 %v416
    %v1507 = vunpack.c.h.b16 %v416
    %v1508 = vunpack.c.l.b16 %v417
    %v1509 = vunpack.c.h.b16 %v417
    %v1510 = vunpack.c.l.b16 %v418
    %v1511 = vunpack.c.h.b16 %v418
    %v1512 = vunpack.c.l.b16 %v419
    %v1513 = vunpack.c.h.b16 %v419
    %v1514 = vunpack.c.l.b16 %v420
    %v1515 = vunpack.c.h.b16 %v420
    %v1516 = vunpack.c.l.b16 %v421
    %v1517 = vunpack.c.h.b16 %v421
    %v1518 = vunpack.c.l.b16 %v422
    %v1519 = vunpack.c.h.b16 %v422
    %v1520 = vunpack.c.l.b16 %v423
    %v1521 = vunpack.c.h.b16 %v423
    %v1522 = vunpack.c.l.b16 %v424
    %v1523 = vunpack.c.h.b16 %v424
    %v1524 = vunpack.c.l.b16 %v425
    %v1525 = vunpack.c.h.b16 %v425
    %v1526 = vunpack.c.l.b16 %v426
    %v1527 = vunpack.c.h.b16 %v426
    %v1528 = vunpack.c.l.b16 %v427
    %v1529 = vunpack.c.h.b16 %v427
    %v1530 = vunpack.c.l.b16 %v428
    %v1531 = vunpack.c.h.b16 %v428
    %v1532 = vunpack.c.l.b16 %v429
    %v1533 = vunpack.c.h.b16 %v429
    %v1534 = vunpack.c.l.b16 %v430
    %v1535 = vunpack.c.h.b16 %v430
    %v1536 = vunpack.c.l.b16 %v431
    %v1537 = vunpack.c.h.b16 %v431
    %v1538 = vunpack.c.l.b16 %v432
    %v1539 = vunpack.c.h.b16 %v432
    %v1540 = vunpack.c.l.b16 %v433
    %v1541 = vunpack.c.h.b16 %v433
    %v1542 = vunpack.c.l.b16 %v434
    %v1543 = vunpack.c.h.b16 %v434
    %v1544 = vunpack.c.l.b16 %v435
    %v1545 = vunpack.c.h.b16 %v435
    %v1546 = vunpack.c.l.b16 %v436
    %v1547 = vunpack.c.h.b16 %v436
    %v1548 = vunpack.c.l.b16 %v437
    %v1549 = vunpack.c.h.b16 %v437
    %v1550 = vunpack.c.l.b16 %v438
    %v1551 = vunpack.c.h.b16 %v438
    %v1552 = vunpack.c.l.b16 %v439
    %v1553 = vunpack.c.h.b16 %v439
    %v1554 = vunpack.c.l.b16 %v440
    %v1555 = vunpack.c.h.b16 %v440
    %v1556 = vunpack.c.l.b16 %v441
    %v1557 = vunpack.c.h.b16 %v441
    %v1558 = vunpack.c.l.b16 %v442
    %v1559 = vunpack.c.h.b16 %v442
    %v1560 = vunpack.c.l.b16 %v443
    %v1561 = vunpack.c.h.b16 %v443
    %v1562 = vunpack.c.l.b16 %v444
    %v1563 = vunpack.c.h.b16 %v444
    %v1564 = vunpack.c.l.b16 %v445
    %v1565 = vunpack.c.h.b16 %v445
    %v1566 = vunpack.c.l.b16 %v446
    %v1567 = vunpack.c.h.b16 %v446
    %v1568 = vunpack.c.l.b16 %v447
    %v1569 = vunpack.c.h.b16 %v447
    %v1570 = vunpack.c.l.b16 %v448
    %v1571 = vunpack.c.h.b16 %v448
    %v1572 = vunpack.c.l.b16 %v449
    %v1573 = vunpack.c.h.b16 %v449
    %v1574 = vunpack.c.l.b16 %v450
    %v1575 = vunpack.c.h.b16 %v450
    %v1576 = vunpack.c.l.b16 %v451
    %v1577 = vunpack.c.h.b16 %v451
    %v1578 = vunpack.c.l.b16 %v452
    %v1579 = vunpack.c.h.b16 %v452
    %v1580 = vunpack.c.l.b16 %v453
    %v1581 = vunpack.c.h.b16 %v453
    %v1582 = vunpack.c.l.b16 %v454
    %v1583 = vunpack.c.h.b16 %v454
    %v1584 = vunpack.c.l.b16 %v455
    %v1585 = vunpack.c.h.b16 %v455
    %v1586 = vunpack.c.l.b16 %v456
    %v1587 = vunpack.c.h.b16 %v456
    %v1588 = vunpack.c.l.b16 %v457
    %v1589 = vunpack.c.h.b16 %v457
    %v1590 = vunpack.c.l.b16 %v458
    %v1591 = vunpack.c.h.b16 %v458
    %v1592 = vunpack.c.l.b16 %v459
    %v1593 = vunpack.c.h.b16 %v459
    %v1594 = vunpack.c.l.b16 %v460
    %v1595 = vunpack.c.h.b16 %v460
    %v1596 = vunpack.c.l.b16 %v461
    %v1597 = vunpack.c.h.b16 %v461
    %v1598 = vunpack.c.l.b16 %v462
    %v1599 = vunpack.c.h.b16 %v462
    %v1600 = vunpack.c.l.b16 %v463
    %v1601 = vunpack.c.h.b16 %v463
    %v1602 = vunpack.c.l.b16 %v464
    %v1603 = vunpack.c.h.b16 %v464
    %v1604 = vunpack.c.l.b16 %v465
    %v1605 = vunpack.c.h.b16 %v465
    %v1606 = vunpack.c.l.b16 %v466
    %v1607 = vunpack.c.h.b16 %v466
    %v1608 = vunpack.c.l.b16 %v467
    %v1609 = vunpack.c.h.b16 %v467
    %v1610 = vunpack.c.l.b16 %v468
    %v1611 = vunpack.c.h.b16 %v468
    %v1612 = vunpack.c.l.b16 %v469
    %v1613 = vunpack.c.h.b16 %v469
    %v1614 = vunpack.c.l.b16 %v470
    %v1615 = vunpack.c.h.b16 %v470
    %v1616 = vunpack.c.l.b16 %v471
    %v1617 = vunpack.c.h.b16 %v471
    %v1618 = vunpack.c.l.b16 %v472
    %v1619 = vunpack.c.h.b16 %v472
    %v1620 = vunpack.c.l.b16 %v473
    %v1621 = vunpack.c.h.b16 %v473
    %v1622 = vunpack.c.l.b16 %v474
    %v1623 = vunpack.c.h.b16 %v474
    %v1624 = vunpack.c.l.b16 %v475
    %v1625 = vunpack.c.h.b16 %v475
    %v1626 = vunpack.c.l.b16 %v476
    %v1627 = vunpack.c.h.b16 %v476
    %v1628 = vunpack.c.l.b16 %v477
    %v1629 = vunpack.c.h.b16 %v477
    %v1630 = vunpack.c.l.b16 %v478
    %v1631 = vunpack.c.h.b16 %v478
    %v1632 = vunpack.c.l.b16 %v479
    %v1633 = vunpack.c.h.b16 %v479
    %v1634 = vunpack.c.l.b16 %v480
    %v1635 = vunpack.c.h.b16 %v480
    %v1636 = vunpack.c.l.b16 %v481
    %v1637 = vunpack.c.h.b16 %v481
    %v1638 = vunpack.c.l.b16 %v482
    %v1639 = vunpack.c.h.b16 %v482
    %v1640 = vunpack.c.l.b16 %v483
    %v1641 = vunpack.c.h.b16 %v483
    %v1642 = vunpack.c.l.b16 %v484
    %v1643 = vunpack.c.h.b16 %v484
    %v1644 = vunpack.c.l.b16 %v485
    %v1645 = vunpack.c.h.b16 %v485
    %v1646 = vunpack.c.l.b16 %v486
    %v1647 = vunpack.c.h.b16 %v486
    %v1648 = vunpack.c.l.b16 %v487
    %v1649 = vunpack.c.h.b16 %v487
    %v1650 = vunpack.c.l.b16 %v488
    %v1651 = vunpack.c.h.b16 %v488
    %v1652 = vunpack.c.l.b16 %v489
    %v1653 = vunpack.c.h.b16 %v489
    %v1654 = vunpack.c.l.b16 %v490
    %v1655 = vunpack.c.h.b16 %v490
    %v1656 = vunpack.c.l.b16 %v491
    %v1657 = vunpack.c.h.b16 %v491
    %v1658 = vunpack.c.l.b16 %v492
    %v1659 = vunpack.c.h.b16 %v492
    %v1660 = vunpack.c.l.b16 %v493
    %v1661 = vunpack.c.h.b16 %v493
    %v1662 = vunpack.c.l.b16 %v494
    %v1663 = vunpack.c.h.b16 %v494
    %v1664 = vunpack.c.l.b16 %v495
    %v1665 = vunpack.c.h.b16 %v495
    %v1666 = vunpack.c.l.b16 %v496
    %v1667 = vunpack.c.h.b16 %v496
    %v1668 = vunpack.c.l.b16 %v497
    %v1669 = vunpack.c.h.b16 %v497
    %v1670 = vunpack.c.l.b16 %v498
    %v1671 = vunpack.c.h.b16 %v498
    %v1672 = vunpack.c.l.b16 %v499
    %v1673 = vunpack.c.h.b16 %v499
    %v1674 = vunpack.c.l.b16 %v500
    %v1675 = vunpack.c.h.b16 %v500
    %v1676 = vunpack.c.l.b16 %v501
    %v1677 = vunpack.c.h.b16 %v501
    %v1678 = vunpack.c.l.b16 %v502
    %v1679 = vunpack.c.h.b16 %v502
    %v1680 = vunpack.c.l.b16 %v503
    %v1681 = vunpack.c.h.b16 %v503
    %v1682 = vunpack.c.l.b16 %v504
    %v1683 = vunpack.c.h.b16 %v504
    %v1684 = vunpack.c.l.b16 %v505
    %v1685 = vunpack.c.h.b16 %v505
    %v1686 = vunpack.c.l.b16 %v506
    %v1687 = vunpack.c.h.b16 %v506
    %v1688 = vunpack.c.l.b16 %v507
    %v1689 = vunpack.c.h.b16 %v507
    %v1690 = vunpack.c.l.b16 %v508
    %v1691 = vunpack.c.h.b16 %v508
    %v1692 = vunpack.c.l.b16 %v509
    %v1693 = vunpack.c.h.b16 %v509
    %v1694 = vunpack.c.l.b16 %v510
    %v1695 = vunpack.c.h.b16 %v510
    %v1696 = vunpack.c.l.b16 %v511
    %v1697 = vunpack.c.h.b16 %v511
    %v1698 = vunpack.c.l.b16 %v512
    %v1699 = vunpack.c.h.b16 %v512
    %v1700 = vunpack.c.l.b16 %v513
    %v1701 = vunpack.c.h.b16 %v513
    %v1702 = vunpack.c.l.b16 %v514
    %v1703 = vunpack.c.h.b16 %v514
    %v1704 = vunpack.c.l.b16 %v515
    %v1705 = vunpack.c.h.b16 %v515
    %v1706 = vunpack.c.l.b16 %v516
    %v1707 = vunpack.c.h.b16 %v516
    %v1708 = vunpack.c.l.b16 %v517
    %v1709 = vunpack.c.h.b16 %v517
    %v1710 = vunpack.c.l.b16 %v518
    %v1711 = vunpack.c.h.b16 %v518
    %v1712 = vunpack.c.l.b16 %v519
    %v1713 = vunpack.c.h.b16 %v519
    %v1714 = vunpack.c.l.b16 %v520
    %v1715 = vunpack.c.h.b16 %v520
    %v1716 = vunpack.c.l.b16 %v521
    %v1717 = vunpack.c.h.b16 %v521
    %v1718 = vunpack.c.l.b16 %v522
    %v1719 = vunpack.c.h.b16 %v522
    %v1720 = vunpack.c.l.b16 %v523
    %v1721 = vunpack.c.h.b16 %v523
    %v1722 = vunpack.c.l.b16 %v524
    %v1723 = vunpack.c.h.b16 %v524
    %v1724 = vunpack.c.l.b16 %v525
    %v1725 = vunpack.c.h.b16 %v525
    %v1726 = vunpack.c.l.b16 %v526
    %v1727 = vunpack.c.h.b16 %v526
    %v1728 = vunpack.c.l.b16 %v527
    %v1729 = vunpack.c.h.b16 %v527
    %v1730 = vunpack.c.l.b16 %v528
    %v1731 = vunpack.c.h.b16 %v528
    %v1732 = vunpack.c.l.b16 %v529
    %v1733 = vunpack.c.h.b16 %v529
    %v1734 = vunpack.c.l.b16 %v530
    %v1735 = vunpack.c.h.b16 %v530
    %v1736 = vunpack.c.l.b16 %v531
    %v1737 = vunpack.c.h.b16 %v531
    %v1738 = vunpack.c.l.b16 %v532
    %v1739 = vunpack.c.h.b16 %v532
    %v1740 = vunpack.c.l.b16 %v533
    %v1741 = vunpack.c.h.b16 %v533
    %v1742 = vunpack.c.l.b16 %v534
    %v1743 = vunpack.c.h.b16 %v534
    %v1744 = vunpack.c.l.b16 %v535
    %v1745 = vunpack.c.h.b16 %v535
    %v1746 = vunpack.c.l.b16 %v536
    %v1747 = vunpack.c.h.b16 %v536
    %v1748 = vunpack.c.l.b16 %v537
    %v1749 = vunpack.c.h.b16 %v537
    %v1750 = vunpack.c.l.b16 %v538
    %v1751 = vunpack.c.h.b16 %v538
    %v1752 = vunpack.c.l.b16 %v539
    %v1753 = vunpack.c.h.b16 %v539
    %v1754 = vunpack.c.l.b16 %v540
    %v1755 = vunpack.c.h.b16 %v540
    %v1756 = vunpack.c.l.b16 %v541
    %v1757 = vunpack.c.h.b16 %v541
    %v1758 = vunpack.c.l.b16 %v542
    %v1759 = vunpack.c.h.b16 %v542
    %v1760 = vunpack.c.l.b16 %v543
    %v1761 = vunpack.c.h.b16 %v543
    %v1762 = vunpack.c.l.b16 %v544
    %v1763 = vunpack.c.h.b16 %v544
    %v1764 = vunpack.c.l.b16 %v545
    %v1765 = vunpack.c.h.b16 %v545
    %v1766 = vunpack.c.l.b16 %v546
    %v1767 = vunpack.c.h.b16 %v546
    %v1768 = vunpack.c.l.b16 %v547
    %v1769 = vunpack.c.h.b16 %v547
    %v1770 = vunpack.c.l.b16 %v548
    %v1771 = vunpack.c.h.b16 %v548
    %v1772 = vunpack.c.l.b16 %v549
    %v1773 = vunpack.c.h.b16 %v549
    %v1774 = vunpack.c.l.b16 %v550
    %v1775 = vunpack.c.h.b16 %v550
    %v1776 = vunpack.c.l.b16 %v551
    %v1777 = vunpack.c.h.b16 %v551
    %v1778 = vunpack.c.l.b16 %v552
    %v1779 = vunpack.c.h.b16 %v552
    %v1780 = vunpack.c.l.b16 %v553
    %v1781 = vunpack.c.h.b16 %v553
    %v1782 = vunpack.c.l.b16 %v554
    %v1783 = vunpack.c.h.b16 %v554
    %v1784 = vunpack.c.l.b16 %v555
    %v1785 = vunpack.c.h.b16 %v555
    %v1786 = vunpack.c.l.b16 %v556
    %v1787 = vunpack.c.h.b16 %v556
    %v1788 = vunpack.c.l.b16 %v557
    %v1789 = vunpack.c.h.b16 %v557
    %v1790 = vunpack.c.l.b16 %v558
    %v1791 = vunpack.c.h.b16 %v558
    %v1792 = vunpack.c.l.b16 %v559
    %v1793 = vunpack.c.h.b16 %v559
    %v1794 = vunpack.c.l.b16 %v560
    %v1795 = vunpack.c.h.b16 %v560
    %v1796 = vunpack.c.l.b16 %v561
    %v1797 = vunpack.c.h.b16 %v561
    %v1798 = vunpack.c.l.b16 %v562
    %v1799 = vunpack.c.h.b16 %v562
    %v1800 = vunpack.c.l.b16 %v563
    %v1801 = vunpack.c.h.b16 %v563
    %v1802 = vunpack.c.l.b16 %v564
    %v1803 = vunpack.c.h.b16 %v564
    %v1804 = vunpack.c.l.b16 %v565
    %v1805 = vunpack.c.h.b16 %v565
    %v1806 = vunpack.c.l.b16 %v566
    %v1807 = vunpack.c.h.b16 %v566
    %v1808 = vunpack.c.l.b16 %v567
    %v1809 = vunpack.c.h.b16 %v567
    %v1810 = vunpack.c.l.b16 %v568
    %v1811 = vunpack.c.h.b16 %v568
    %v1812 = vpack.c.b16 %v1052, %v1044
    %v1813 = vpack.c.b16 %v1053, %v1045
    %v1814 = vpack.c.b16 %v1054, %v1046
    %v1815 = vpack.c.b16 %v1055, %v1047
    %v1816 = vpack.c.b16 %v1056, %v1048
    %v1817 = vpack.c.b16 %v1057, %v1049
    %v1818 = vpack.c.b16 %v1058, %v1050
    %v1819 = vpack.c.b16 %v1059, %v1051
    %v1820 = vpack.c.b16 %v1068, %v1060
    %v1821 = vpack.c.b16 %v1069, %v1061
    %v1822 = vpack.c.b16 %v1070, %v1062
    %v1823 = vpack.c.b16 %v1071, %v1063
    %v1824 = vpack.c.b16 %v1072, %v1064
    %v1825 = vpack.c.b16 %v1073, %v1065
    %v1826 = vpack.c.b16 %v1074, %v1066
    %v1827 = vpack.c.b16 %v1075, %v1067
    %v1828 = vpack.c.b16 %v1084, %v1076
    %v1829 = vpack.c.b16 %v1085, %v1077
    %v1830 = vpack.c.b16 %v1086, %v1078
    %v1831 = vpack.c.b16 %v1087, %v1079
    %v1832 = vpack.c.b16 %v1088, %v1080
    %v1833 = vpack.c.b16 %v1089, %v1081
    %v1834 = vpack.c.b16 %v1090, %v1082
    %v1835 = vpack.c.b16 %v1091, %v1083
    %v1836 = vpack.c.b16 %v1100, %v1092
    %v1837 = vpack.c.b16 %v1101, %v1093
    %v1838 = vpack.c.b16 %v1102, %v1094
    %v1839 = vpack.c.b16 %v1103, %v1095
    %v1840 = vpack.c.b16 %v1104, %v1096
    %v1841 = vpack.c.b16 %v1105, %v1097
    %v1842 = vpack.c.b16 %v1106, %v1098
    %v1843 = vpack.c.b16 %v1107, %v1099
    %v1844 = vpack.c.b16 %v1116, %v1108
    %v1845 = vpack.c.b16 %v1117, %v1109
    %v1846 = vpack.c.b16 %v1118, %v1110
    %v1847 = vpack.c.b16 %v1119, %v1111
    %v1848 = vpack.c.b16 %v1120, %v1112
    %v1849 = vpack.c.b16 %v1121, %v1113
    %v1850 = vpack.c.b16 %v1122, %v1114
    %v1851 = vpack.c.b16 %v1123, %v1115
    %v1852 = vpack.c.b16 %v1132, %v1124
    %v1853 = vpack.c.b16 %v1133, %v1125
    %v1854 = vpack.c.b16 %v1134, %v1126
    %v1855 = vpack.c.b16 %v1135, %v1127
    %v1856 = vpack.c.b16 %v1136, %v1128
    %v1857 = vpack.c.b16 %v1137, %v1129
    %v1858 = vpack.c.b16 %v1138, %v1130
    %v1859 = vpack.c.b16 %v1139, %v1131
    %v1860 = vpack.c.b16 %v1148, %v1140
    %v1861 = vpack.c.b16 %v1149, %v1141
    %v1862 = vpack.c.b16 %v1150, %v1142
    %v1863 = vpack.c.b16 %v1151, %v1143
    %v1864 = vpack.c.b16 %v1152, %v1144
    %v1865 = vpack.c.b16 %v1153, %v1145
    %v1866 = vpack.c.b16 %v1154, %v1146
    %v1867 = vpack.c.b16 %v1155, %v1147
    %v1868 = vpack.c.b16 %v1164, %v1156
    %v1869 = vpack.c.b16 %v1165, %v1157
    %v1870 = vpack.c.b16 %v1166, %v1158
    %v1871 = vpack.c.b16 %v1167, %v1159
    %v1872 = vpack.c.b16 %v1168, %v1160
    %v1873 = vpack.c.b16 %v1169, %v1161
    %v1874 = vpack.c.b16 %v1170, %v1162
    %v1875 = vpack.c.b16 %v1171, %v1163
    %v1876 = vpack.c.b16 %v1180, %v1172
    %v1877 = vpack.c.b16 %v1181, %v1173
    %v1878 = vpack.c.b16 %v1182, %v1174
    %v1879 = vpack.c.b16 %v1183, %v1175
    %v1880 = vpack.c.b16 %v1184, %v1176
    %v1881 = vpack.c.b16 %v1185, %v1177
    %v1882 = vpack.c.b16 %v1186, %v1178
    %v1883 = vpack.c.b16 %v1187, %v1179
    %v1884 = vpack.c.b16 %v1196, %v1188
    %v1885 = vpack.c.b16 %v1197, %v1189
    %v1886 = vpack.c.b16 %v1198, %v1190
    %v1887 = vpack.c.b16 %v1199, %v1191
    %v1888 = vpack.c.b16 %v1200, %v1192
    %v1889 = vpack.c.b16 %v1201, %v1193
    %v1890 = vpack.c.b16 %v1202, %v1194
    %v1891 = vpack.c.b16 %v1203, %v1195
    %v1892 = vpack.c.b16 %v1212, %v1204
    %v1893 = vpack.c.b16 %v1213, %v1205
    %v1894 = vpack.c.b16 %v1214, %v1206
    %v1895 = vpack.c.b16 %v1215, %v1207
    %v1896 = vpack.c.b16 %v1216, %v1208
    %v1897 = vpack.c.b16 %v1217, %v1209
    %v1898 = vpack.c.b16 %v1218, %v1210
    %v1899 = vpack.c.b16 %v1219, %v1211
    %v1900 = vpack.c.b16 %v1228, %v1220
    %v1901 = vpack.c.b16 %v1229, %v1221
    %v1902 = vpack.c.b16 %v1230, %v1222
    %v1903 = vpack.c.b16 %v1231, %v1223
    %v1904 = vpack.c.b16 %v1232, %v1224
    %v1905 = vpack.c.b16 %v1233, %v1225
    %v1906 = vpack.c.b16 %v1234, %v1226
    %v1907 = vpack.c.b16 %v1235, %v1227
    %v1908 = vpack.c.b16 %v1244, %v1236
    %v1909 = vpack.c.b16 %v1245, %v1237
    %v1910 = vpack.c.b16 %v1246, %v1238
    %v1911 = vpack.c.b16 %v1247, %v1239
    %v1912 = vpack.c.b16 %v1248, %v1240
    %v1913 = vpack.c.b16 %v1249, %v1241
    %v1914 = vpack.c.b16 %v1250, %v1242
    %v1915 = vpack.c.b16 %v1251, %v1243
    %v1916 = vpack.c.b16 %v1260, %v1252
    %v1917 = vpack.c.b16 %v1261, %v1253
    %v1918 = vpack.c.b16 %v1262, %v1254
    %v1919 = vpack.c.b16 %v1263, %v1255
    %v1920 = vpack.c.b16 %v1264, %v1256
    %v1921 = vpack.c.b16 %v1265, %v1257
    %v1922 = vpack.c.b16 %v1266, %v1258
    %v1923 = vpack.c.b16 %v1267, %v1259
    %v1924 = vpack.c.b16 %v1276, %v1268
    %v1925 = vpack.c.b16 %v1277, %v1269
    %v1926 = vpack.c.b16 %v1278, %v1270
    %v1927 = vpack.c.b16 %v1279, %v1271
    %v1928 = vpack.c.b16 %v1280, %v1272
    %v1929 = vpack.c.b16 %v1281, %v1273
    %v1930 = vpack.c.b16 %v1282, %v1274
    %v1931 = vpack.c.b16 %v1283, %v1275
    %v1932 = vpack.c.b16 %v1292, %v1284
    %v1933 = vpack.c.b16 %v1293, %v1285
    %v1934 = vpack.c.b16 %v1294, %v1286
    %v1935 = vpack.c.b16 %v1295, %v1287
    %v1936 = vpack.c.b16 %v1296, %v1288
    %v1937 = vpack.c.b16 %v1297, %v1289
    %v1938 = vpack.c.b16 %v1298, %v1290
    %v1939 = vpack.c.b16 %v1299, %v1291
    %v1940 = vpack.c.b16 %v1308, %v1300
    %v1941 = vpack.c.b16 %v1309, %v1301
    %v1942 = vpack.c.b16 %v1310, %v1302
    %v1943 = vpack.c.b16 %v1311, %v1303
    %v1944 = vpack.c.b16 %v1312, %v1304
    %v1945 = vpack.c.b16 %v1313, %v1305
    %v1946 = vpack.c.b16 %v1314, %v1306
    %v1947 = vpack.c.b16 %v1315, %v1307
    %v1948 = vpack.c.b16 %v1324, %v1316
    %v1949 = vpack.c.b16 %v1325, %v1317
    %v1950 = vpack.c.b16 %v1326, %v1318
    %v1951 = vpack.c.b16 %v1327, %v1319
    %v1952 = vpack.c.b16 %v1328, %v1320
    %v1953 = vpack.c.b16 %v1329, %v1321
    %v1954 = vpack.c.b16 %v1330, %v1322
    %v1955 = vpack.c.b16 %v1331, %v1323
    %v1956 = vpack.c.b16 %v1340, %v1332
    %v1957 = vpack.c.b16 %v1341, %v1333
    %v1958 = vpack.c.b16 %v1342, %v1334
    %v1959 = vpack.c.b16 %v1343, %v1335
    %v1960 = vpack.c.b16 %v1344, %v1336
    %v1961 = vpack.c.b16 %v1345, %v1337
    %v1962 = vpack.c.b16 %v1346, %v1338
    %v1963 = vpack.c.b16 %v1347, %v1339
    %v1964 = vpack.c.b16 %v1356, %v1348
    %v1965 = vpack.c.b16 %v1357, %v1349
    %v1966 = vpack.c.b16 %v1358, %v1350
    %v1967 = vpack.c.b16 %v1359, %v1351
    %v1968 = vpack.c.b16 %v1360, %v1352
    %v1969 = vpack.c.b16 %v1361, %v1353
    %v1970 = vpack.c.b16 %v1362, %v1354
    %v1971 = vpack.c.b16 %v1363, %v1355
    %v1972 = vpack.c.b16 %v1372, %v1364
    %v1973 = vpack.c.b16 %v1373, %v1365
    %v1974 = vpack.c.b16 %v1374, %v1366
    %v1975 = vpack.c.b16 %v1375, %v1367
    %v1976 = vpack.c.b16 %v1376, %v1368
    %v1977 = vpack.c.b16 %v1377, %v1369
    %v1978 = vpack.c.b16 %v1378, %v1370
    %v1979 = vpack.c.b16 %v1379, %v1371
    %v1980 = vpack.c.b16 %v1388, %v1380
    %v1981 = vpack.c.b16 %v1389, %v1381
    %v1982 = vpack.c.b16 %v1390, %v1382
    %v1983 = vpack.c.b16 %v1391, %v1383
    %v1984 = vpack.c.b16 %v1392, %v1384
    %v1985 = vpack.c.b16 %v1393, %v1385
    %v1986 = vpack.c.b16 %v1394, %v1386
    %v1987 = vpack.c.b16 %v1395, %v1387
    %v1988 = vpack.c.b16 %v1404, %v1396
    %v1989 = vpack.c.b16 %v1405, %v1397
    %v1990 = vpack.c.b16 %v1406, %v1398
    %v1991 = vpack.c.b16 %v1407, %v1399
    %v1992 = vpack.c.b16 %v1408, %v1400
    %v1993 = vpack.c.b16 %v1409, %v1401
    %v1994 = vpack.c.b16 %v1410, %v1402
    %v1995 = vpack.c.b16 %v1411, %v1403
    %v1996 = vpack.c.b16 %v1420, %v1412
    %v1997 = vpack.c.b16 %v1421, %v1413
    %v1998 = vpack.c.b16 %v1422, %v1414
    %v1999 = vpack.c.b16 %v1423, %v1415
    %v2000 = vpack.c.b16 %v1424, %v1416
    %v2001 = vpack.c.b16 %v1425, %v1417
    %v2002 = vpack.c.b16 %v1426, %v1418
    %v2003 = vpack.c.b16 %v1427, %v1419
    %v2004 = vpack.c.b16 %v1436, %v1428
    %v2005 = vpack.c.b16 %v1437, %v1429
    %v2006 = vpack.c.b16 %v1438, %v1430
    %v2007 = vpack.c.b16 %v1439, %v1431
    %v2008 = vpack.c.b16 %v1440, %v1432
    %v2009 = vpack.c.b16 %v1441, %v1433
    %v2010 = vpack.c.b16 %v1442, %v1434
    %v2011 = vpack.c.b16 %v1443, %v1435
    %v2012 = vpack.c.b16 %v1452, %v1444
    %v2013 = vpack.c.b16 %v1453, %v1445
    %v2014 = vpack.c.b16 %v1454, %v1446
    %v2015 = vpack.c.b16 %v1455, %v1447
    %v2016 = vpack.c.b16 %v1456, %v1448
    %v2017 = vpack.c.b16 %v1457, %v1449
    %v2018 = vpack.c.b16 %v1458, %v1450
    %v2019 = vpack.c.b16 %v1459, %v1451
    %v2020 = vpack.c.b16 %v1468, %v1460
    %v2021 = vpack.c.b16 %v1469, %v1461
    %v2022 = vpack.c.b16 %v1470, %v1462
    %v2023 = vpack.c.b16 %v1471, %v1463
    %v2024 = vpack.c.b16 %v1472, %v1464
    %v2025 = vpack.c.b16 %v1473, %v1465
    %v2026 = vpack.c.b16 %v1474, %v1466
    %v2027 = vpack.c.b16 %v1475, %v1467
    %v2028 = vpack.c.b16 %v1484, %v1476
    %v2029 = vpack.c.b16 %v1485, %v1477
    %v2030 = vpack.c.b16 %v1486, %v1478
    %v2031 = vpack.c.b16 %v1487, %v1479
    %v2032 = vpack.c.b16 %v1488, %v1480
    %v2033 = vpack.c.b16 %v1489, %v1481
    %v2034 = vpack.c.b16 %v1490, %v1482
    %v2035 = vpack.c.b16 %v1491, %v1483
    %v2036 = vpack.c.b16 %v1500, %v1492
    %v2037 = vpack.c.b16 %v1501, %v1493
    %v2038 = vpack.c.b16 %v1502, %v1494
    %v2039 = vpack.c.b16 %v1503, %v1495
    %v2040 = vpack.c.b16 %v1504, %v1496
    %v2041 = vpack.c.b16 %v1505, %v1497
    %v2042 = vpack.c.b16 %v1506, %v1498
    %v2043 = vpack.c.b16 %v1507, %v1499
    %v2044 = vpack.c.b16 %v1516, %v1508
    %v2045 = vpack.c.b16 %v1517, %v1509
    %v2046 = vpack.c.b16 %v1518, %v1510
    %v2047 = vpack.c.b16 %v1519, %v1511
    %v2048 = vpack.c.b16 %v1520, %v1512
    %v2049 = vpack.c.b16 %v1521, %v1513
    %v2050 = vpack.c.b16 %v1522, %v1514
    %v2051 = vpack.c.b16 %v1523, %v1515
    %v2052 = vpack.c.b16 %v1532, %v1524
    %v2053 = vpack.c.b16 %v1533, %v1525
    %v2054 = vpack.c.b16 %v1534, %v1526
    %v2055 = vpack.c.b16 %v1535, %v1527
    %v2056 = vpack.c.b16 %v1536, %v1528
    %v2057 = vpack.c.b16 %v1537, %v1529
    %v2058 = vpack.c.b16 %v1538, %v1530
    %v2059 = vpack.c.b16 %v1539, %v1531
    %v2060 = vpack.c.b16 %v1548, %v1540
    %v2061 = vpack.c.b16 %v1549, %v1541
    %v2062 = vpack.c.b16 %v1550, %v1542
    %v2063 = vpack.c.b16 %v1551, %v1543
    %v2064 = vpack.c.b16 %v1552, %v1544
    %v2065 = vpack.c.b16 %v1553, %v1545
    %v2066 = vpack.c.b16 %v1554, %v1546
    %v2067 = vpack.c.b16 %v1555, %v1547
    %v2068 = vpack.c.b16 %v1564, %v1556
    %v2069 = vpack.c.b16 %v1565, %v1557
    %v2070 = vpack.c.b16 %v1566, %v1558
    %v2071 = vpack.c.b16 %v1567, %v1559
    %v2072 = vpack.c.b16 %v1568, %v1560
    %v2073 = vpack.c.b16 %v1569, %v1561
    %v2074 = vpack.c.b16 %v1570, %v1562
    %v2075 = vpack.c.b16 %v1571, %v1563
    %v2076 = vpack.c.b16 %v1580, %v1572
    %v2077 = vpack.c.b16 %v1581, %v1573
    %v2078 = vpack.c.b16 %v1582, %v1574
    %v2079 = vpack.c.b16 %v1583, %v1575
    %v2080 = vpack.c.b16 %v1584, %v1576
    %v2081 = vpack.c.b16 %v1585, %v1577
    %v2082 = vpack.c.b16 %v1586, %v1578
    %v2083 = vpack.c.b16 %v1587, %v1579
    %v2084 = vpack.c.b16 %v1596, %v1588
    %v2085 = vpack.c.b16 %v1597, %v1589
    %v2086 = vpack.c.b16 %v1598, %v1590
    %v2087 = vpack.c.b16 %v1599, %v1591
    %v2088 = vpack.c.b16 %v1600, %v1592
    %v2089 = vpack.c.b16 %v1601, %v1593
    %v2090 = vpack.c.b16 %v1602, %v1594
    %v2091 = vpack.c.b16 %v1603, %v1595
    %v2092 = vpack.c.b16 %v1612, %v1604
    %v2093 = vpack.c.b16 %v1613, %v1605
    %v2094 = vpack.c.b16 %v1614, %v1606
    %v2095 = vpack.c.b16 %v1615, %v1607
    %v2096 = vpack.c.b16 %v1616, %v1608
    %v2097 = vpack.c.b16 %v1617, %v1609
    %v2098 = vpack.c.b16 %v1618, %v1610
    %v2099 = vpack.c.b16 %v1619, %v1611
    %v2100 = vpack.c.b16 %v1628, %v1620
    %v2101 = vpack.c.b16 %v1629, %v1621
    %v2102 = vpack.c.b16 %v1630, %v1622
    %v2103 = vpack.c.b16 %v1631, %v1623
    %v2104 = vpack.c.b16 %v1632, %v1624
    %v2105 = vpack.c.b16 %v1633, %v1625
    %v2106 = vpack.c.b16 %v1634, %v1626
    %v2107 = vpack.c.b16 %v1635, %v1627
    %v2108 = vpack.c.b16 %v1644, %v1636
    %v2109 = vpack.c.b16 %v1645, %v1637
    %v2110 = vpack.c.b16 %v1646, %v1638
    %v2111 = vpack.c.b16 %v1647, %v1639
    %v2112 = vpack.c.b16 %v1648, %v1640
    %v2113 = vpack.c.b16 %v1649, %v1641
    %v2114 = vpack.c.b16 %v1650, %v1642
    %v2115 = vpack.c.b16 %v1651, %v1643
    %v2116 = vpack.c.b16 %v1660, %v1652
    %v2117 = vpack.c.b16 %v1661, %v1653
    %v2118 = vpack.c.b16 %v1662, %v1654
    %v2119 = vpack.c.b16 %v1663, %v1655
    %v2120 = vpack.c.b16 %v1664, %v1656
    %v2121 = vpack.c.b16 %v1665, %v1657
    %v2122 = vpack.c.b16 %v1666, %v1658
    %v2123 = vpack.c.b16 %v1667, %v1659
    %v2124 = vpack.c.b16 %v1676, %v1668
    %v2125 = vpack.c.b16 %v1677, %v1669
    %v2126 = vpack.c.b16 %v1678, %v1670
    %v2127 = vpack.c.b16 %v1679, %v1671
    %v2128 = vpack.c.b16 %v1680, %v1672
    %v2129 = vpack.c.b16 %v1681, %v1673
    %v2130 = vpack.c.b16 %v1682, %v1674
    %v2131 = vpack.c.b16 %v1683, %v1675
    %v2132 = vpack.c.b16 %v1692, %v1684
    %v2133 = vpack.c.b16 %v1693, %v1685
    %v2134 = vpack.c.b16 %v1694, %v1686
    %v2135 = vpack.c.b16 %v1695, %v1687
    %v2136 = vpack.c.b16 %v1696, %v1688
    %v2137 = vpack.c.b16 %v1697, %v1689
    %v2138 = vpack.c.b16 %v1698, %v1690
    %v2139 = vpack.c.b16 %v1699, %v1691
    %v2140 = vpack.c.b16 %v1708, %v1700
    %v2141 = vpack.c.b16 %v1709, %v1701
    %v2142 = vpack.c.b16 %v1710, %v1702
    %v2143 = vpack.c.b16 %v1711, %v1703
    %v2144 = vpack.c.b16 %v1712, %v1704
    %v2145 = vpack.c.b16 %v1713, %v1705
    %v2146 = vpack.c.b16 %v1714, %v1706
    %v2147 = vpack.c.b16 %v1715, %v1707
    %v2148 = vpack.c.b16 %v1724, %v1716
    %v2149 = vpack.c.b16 %v1725, %v1717
    %v2150 = vpack.c.b16 %v1726, %v1718
    %v2151 = vpack.c.b16 %v1727, %v1719
    %v2152 = vpack.c.b16 %v1728, %v1720
    %v2153 = vpack.c.b16 %v1729, %v1721
    %v2154 = vpack.c.b16 %v1730, %v1722
    %v2155 = vpack.c.b16 %v1731, %v1723
    %v2156 = vpack.c.b16 %v1740, %v1732
    %v2157 = vpack.c.b16 %v1741, %v1733
    %v2158 = vpack.c.b16 %v1742, %v1734
    %v2159 = vpack.c.b16 %v1743, %v1735
    %v2160 = vpack.c.b16 %v1744, %v1736
    %v2161 = vpack.c.b16 %v1745, %v1737
    %v2162 = vpack.c.b16 %v1746, %v1738
    %v2163 = vpack.c.b16 %v1747, %v1739
    %v2164 = vpack.c.b16 %v1756, %v1748
    %v2165 = vpack.c.b16 %v1757, %v1749
    %v2166 = vpack.c.b16 %v1758, %v1750
    %v2167 = vpack.c.b16 %v1759, %v1751
    %v2168 = vpack.c.b16 %v1760, %v1752
    %v2169 = vpack.c.b16 %v1761, %v1753
    %v2170 = vpack.c.b16 %v1762, %v1754
    %v2171 = vpack.c.b16 %v1763, %v1755
    %v2172 = vpack.c.b16 %v1772, %v1764
    %v2173 = vpack.c.b16 %v1773, %v1765
    %v2174 = vpack.c.b16 %v1774, %v1766
    %v2175 = vpack.c.b16 %v1775, %v1767
    %v2176 = vpack.c.b16 %v1776, %v1768
    %v2177 = vpack.c.b16 %v1777, %v1769
    %v2178 = vpack.c.b16 %v1778, %v1770
    %v2179 = vpack.c.b16 %v1779, %v1771
    %v2180 = vpack.c.b16 %v1788, %v1780
    %v2181 = vpack.c.b16 %v1789, %v1781
    %v2182 = vpack.c.b16 %v1790, %v1782
    %v2183 = vpack.c.b16 %v1791, %v1783
    %v2184 = vpack.c.b16 %v1792, %v1784
    %v2185 = vpack.c.b16 %v1793, %v1785
    %v2186 = vpack.c.b16 %v1794, %v1786
    %v2187 = vpack.c.b16 %v1795, %v1787
    %v2188 = vpack.c.b16 %v1804, %v1796
    %v2189 = vpack.c.b16 %v1805, %v1797
    %v2190 = vpack.c.b16 %v1806, %v1798
    %v2191 = vpack.c.b16 %v1807, %v1799
    %v2192 = vpack.c.b16 %v1808, %v1800
    %v2193 = vpack.c.b16 %v1809, %v1801
    %v2194 = vpack.c.b16 %v1810, %v1802
    %v2195 = vpack.c.b16 %v1811, %v1803
    %2580 = vmatprep.subr.bf16.mxu0 %v1813
    %2581 = vmatpush1.bf16.msra.mxu0 %v1812
    %2582 = vmatprep.subr.bf16.mxu0 %v1821
    %2583 = vmatpush1.bf16.msra.mxu0 %v1820
    %2584 = vmatprep.subr.bf16.mxu0 %v1829
    %2585 = vmatpush1.bf16.msra.mxu0 %v1828
    %2586 = vmatprep.subr.bf16.mxu0 %v1837
    %2587 = vmatpush1.bf16.msra.mxu0 %v1836
    %2588 = vmatprep.subr.bf16.mxu0 %v1845
    %2589 = vmatpush1.bf16.msra.mxu0 %v1844
    %2590 = vmatprep.subr.bf16.mxu0 %v1853
    %2591 = vmatpush1.bf16.msra.mxu0 %v1852
    %2592 = vmatprep.subr.bf16.mxu0 %v1861
    %2593 = vmatpush1.bf16.msra.mxu0 %v1860
    %2594 = vmatprep.subr.bf16.mxu0 %v1869
    %2595 = vmatpush1.bf16.msra.mxu0 %v1868
    %2596 = vmatprep.subr.bf16.mxu0 %v1877
    %2597 = vmatpush1.bf16.msra.mxu0 %v1876
    %2598 = vmatprep.subr.bf16.mxu0 %v1885
    %2599 = vmatpush1.bf16.msra.mxu0 %v1884
    %2600 = vmatprep.subr.bf16.mxu0 %v1893
    %2601 = vmatpush1.bf16.msra.mxu0 %v1892
    %2602 = vmatprep.subr.bf16.mxu0 %v1901
    %2603 = vmatpush1.bf16.msra.mxu0 %v1900
    %2604 = vmatprep.subr.bf16.mxu0 %v1909
    %2605 = vmatpush1.bf16.msra.mxu0 %v1908
    %2606 = vmatprep.subr.bf16.mxu0 %v1917
    %2607 = vmatpush1.bf16.msra.mxu0 %v1916
    %2608 = vmatprep.subr.bf16.mxu0 %v1925
    %2609 = vmatpush1.bf16.msra.mxu0 %v1924
    %2610 = vmatprep.subr.bf16.mxu0 %v1933
    %2611 = vmatpush1.bf16.msra.mxu0 %v1932
    %2612 = vmatprep.mubr.bf16.mxu0 %v649
    %2613 = vmatmul.mubr.bf16.gmra.mrb[0].mxu0 %v648
    %v2614 = vpop.f32.mrb[0].mxu0
    %v2615 = vadd.f32 %v574, %v2614
    %v2616 = vpop.f32.mrb[0].mxu0
    %v2617 = vadd.f32 %v578, %v2616
    %v2618 = vpop.f32.mrb[0].mxu0
    %v2619 = vpop.f32.mrb[0].mxu0
    %2620 = vdwg.mxu0
    %2621 = vmatprep.subr.bf16.mxu0 %v1941
    %2622 = vmatpush1.bf16.msra.mxu0 %v1940
    %2623 = vmatprep.subr.bf16.mxu0 %v1949
    %2624 = vmatpush1.bf16.msra.mxu0 %v1948
    %2625 = vmatprep.subr.bf16.mxu0 %v1957
    %2626 = vmatpush1.bf16.msra.mxu0 %v1956
    %2627 = vmatprep.subr.bf16.mxu0 %v1965
    %2628 = vmatpush1.bf16.msra.mxu0 %v1964
    %2629 = vmatprep.subr.bf16.mxu0 %v1973
    %2630 = vmatpush1.bf16.msra.mxu0 %v1972
    %2631 = vmatprep.subr.bf16.mxu0 %v1981
    %2632 = vmatpush1.bf16.msra.mxu0 %v1980
    %2633 = vmatprep.subr.bf16.mxu0 %v1989
    %2634 = vmatpush1.bf16.msra.mxu0 %v1988
    %2635 = vmatprep.subr.bf16.mxu0 %v1997
    %2636 = vmatpush1.bf16.msra.mxu0 %v1996
    %2637 = vmatprep.subr.bf16.mxu0 %v2005
    %2638 = vmatpush1.bf16.msra.mxu0 %v2004
    %2639 = vmatprep.subr.bf16.mxu0 %v2013
    %2640 = vmatpush1.bf16.msra.mxu0 %v2012
    %2641 = vmatprep.subr.bf16.mxu0 %v2021
    %2642 = vmatpush1.bf16.msra.mxu0 %v2020
    %2643 = vmatprep.subr.bf16.mxu0 %v2029
    %2644 = vmatpush1.bf16.msra.mxu0 %v2028
    %2645 = vmatprep.subr.bf16.mxu0 %v2037
    %2646 = vmatpush1.bf16.msra.mxu0 %v2036
    %2647 = vmatprep.subr.bf16.mxu0 %v2045
    %2648 = vmatpush1.bf16.msra.mxu0 %v2044
    %2649 = vmatprep.subr.bf16.mxu0 %v2053
    %2650 = vmatpush1.bf16.msra.mxu0 %v2052
    %2651 = vmatprep.subr.bf16.mxu0 %v2061
    %2652 = vmatpush1.bf16.msra.mxu0 %v2060
    %2653 = vmatprep.mubr.bf16.mxu0 %v651
    %2654 = vmatmul.mubr.bf16.gmra.mrb[0].mxu0 %v650
    %v2655 = vpop.f32.mrb[0].mxu0
    %v2656 = vadd.f32 %v2615, %v2655
    %v2657 = vpop.f32.mrb[0].mxu0
    %v2658 = vadd.f32 %v2617, %v2657
    %v2659 = vpop.f32.mrb[0].mxu0
    %v2660 = vpop.f32.mrb[0].mxu0
    %2661 = vdwg.mxu0
    %2662 = vmatprep.subr.bf16.mxu0 %v2069
    %2663 = vmatpush1.bf16.msra.mxu0 %v2068
    %2664 = vmatprep.subr.bf16.mxu0 %v2077
    %2665 = vmatpush1.bf16.msra.mxu0 %v2076
    %2666 = vmatprep.subr.bf16.mxu0 %v2085
    %2667 = vmatpush1.bf16.msra.mxu0 %v2084
    %2668 = vmatprep.subr.bf16.mxu0 %v2093
    %2669 = vmatpush1.bf16.msra.mxu0 %v2092
    %2670 = vmatprep.subr.bf16.mxu0 %v2101
    %2671 = vmatpush1.bf16.msra.mxu0 %v2100
    %2672 = vmatprep.subr.bf16.mxu0 %v2109
    %2673 = vmatpush1.bf16.msra.mxu0 %v2108
    %2674 = vmatprep.subr.bf16.mxu0 %v2117
    %2675 = vmatpush1.bf16.msra.mxu0 %v2116
    %2676 = vmatprep.subr.bf16.mxu0 %v2125
    %2677 = vmatpush1.bf16.msra.mxu0 %v2124
    %2678 = vmatprep.subr.bf16.mxu0 %v2133
    %2679 = vmatpush1.bf16.msra.mxu0 %v2132
    %2680 = vmatprep.subr.bf16.mxu0 %v2141
    %2681 = vmatpush1.bf16.msra.mxu0 %v2140
    %2682 = vmatprep.subr.bf16.mxu0 %v2149
    %2683 = vmatpush1.bf16.msra.mxu0 %v2148
    %2684 = vmatprep.subr.bf16.mxu0 %v2157
    %2685 = vmatpush1.bf16.msra.mxu0 %v2156
    %2686 = vmatprep.subr.bf16.mxu0 %v2165
    %2687 = vmatpush1.bf16.msra.mxu0 %v2164
    %2688 = vmatprep.subr.bf16.mxu0 %v2173
    %2689 = vmatpush1.bf16.msra.mxu0 %v2172
    %2690 = vmatprep.subr.bf16.mxu0 %v2181
    %2691 = vmatpush1.bf16.msra.mxu0 %v2180
    %2692 = vmatprep.subr.bf16.mxu0 %v2189
    %2693 = vmatpush1.bf16.msra.mxu0 %v2188
    %2694 = vmatprep.mubr.bf16.mxu0 %v653
    %2695 = vmatmul.mubr.bf16.gmra.mrb[0].mxu0 %v652
    %v2696 = vpop.f32.mrb[0].mxu0
    %v2697 = vadd.f32 %v2656, %v2696
    %v2698 = vpop.f32.mrb[0].mxu0
    %v2699 = vadd.f32 %v2658, %v2698
    %v2700 = vpop.f32.mrb[0].mxu0
    %v2701 = vpop.f32.mrb[0].mxu0
    %2702 = vdwg.mxu0
    %2703 = vmatprep.subr.bf16.mxu0 %v1815
    %2704 = vmatpush1.bf16.msra.mxu0 %v1814
    %2705 = vmatprep.subr.bf16.mxu0 %v1823
    %2706 = vmatpush1.bf16.msra.mxu0 %v1822
    %2707 = vmatprep.subr.bf16.mxu0 %v1831
    %2708 = vmatpush1.bf16.msra.mxu0 %v1830
    %2709 = vmatprep.subr.bf16.mxu0 %v1839
    %2710 = vmatpush1.bf16.msra.mxu0 %v1838
    %2711 = vmatprep.subr.bf16.mxu0 %v1847
    %2712 = vmatpush1.bf16.msra.mxu0 %v1846
    %2713 = vmatprep.subr.bf16.mxu0 %v1855
    %2714 = vmatpush1.bf16.msra.mxu0 %v1854
    %2715 = vmatprep.subr.bf16.mxu0 %v1863
    %2716 = vmatpush1.bf16.msra.mxu0 %v1862
    %2717 = vmatprep.subr.bf16.mxu0 %v1871
    %2718 = vmatpush1.bf16.msra.mxu0 %v1870
    %2719 = vmatprep.subr.bf16.mxu0 %v1879
    %2720 = vmatpush1.bf16.msra.mxu0 %v1878
    %2721 = vmatprep.subr.bf16.mxu0 %v1887
    %2722 = vmatpush1.bf16.msra.mxu0 %v1886
    %2723 = vmatprep.subr.bf16.mxu0 %v1895
    %2724 = vmatpush1.bf16.msra.mxu0 %v1894
    %2725 = vmatprep.subr.bf16.mxu0 %v1903
    %2726 = vmatpush1.bf16.msra.mxu0 %v1902
    %2727 = vmatprep.subr.bf16.mxu0 %v1911
    %2728 = vmatpush1.bf16.msra.mxu0 %v1910
    %2729 = vmatprep.subr.bf16.mxu0 %v1919
    %2730 = vmatpush1.bf16.msra.mxu0 %v1918
    %2731 = vmatprep.subr.bf16.mxu0 %v1927
    %2732 = vmatpush1.bf16.msra.mxu0 %v1926
    %2733 = vmatprep.subr.bf16.mxu0 %v1935
    %2734 = vmatpush1.bf16.msra.mxu0 %v1934
    %2735 = vmatprep.mubr.bf16.mxu0 %v649
    %2736 = vmatmul.mubr.bf16.gmra.mrb[0].mxu0 %v648
    %v2737 = vpop.f32.mrb[0].mxu0
    %v2738 = vadd.f32 %v582, %v2737
    %v2739 = vpop.f32.mrb[0].mxu0
    %v2740 = vadd.f32 %v586, %v2739
    %v2741 = vpop.f32.mrb[0].mxu0
    %v2742 = vpop.f32.mrb[0].mxu0
    %2743 = vdwg.mxu0
    %2744 = vmatprep.subr.bf16.mxu0 %v1943
    %2745 = vmatpush1.bf16.msra.mxu0 %v1942
    %2746 = vmatprep.subr.bf16.mxu0 %v1951
    %2747 = vmatpush1.bf16.msra.mxu0 %v1950
    %2748 = vmatprep.subr.bf16.mxu0 %v1959
    %2749 = vmatpush1.bf16.msra.mxu0 %v1958
    %2750 = vmatprep.subr.bf16.mxu0 %v1967
    %2751 = vmatpush1.bf16.msra.mxu0 %v1966
    %2752 = vmatprep.subr.bf16.mxu0 %v1975
    %2753 = vmatpush1.bf16.msra.mxu0 %v1974
    %2754 = vmatprep.subr.bf16.mxu0 %v1983
    %2755 = vmatpush1.bf16.msra.mxu0 %v1982
    %2756 = vmatprep.subr.bf16.mxu0 %v1991
    %2757 = vmatpush1.bf16.msra.mxu0 %v1990
    %2758 = vmatprep.subr.bf16.mxu0 %v1999
    %2759 = vmatpush1.bf16.msra.mxu0 %v1998
    %2760 = vmatprep.subr.bf16.mxu0 %v2007
    %2761 = vmatpush1.bf16.msra.mxu0 %v2006
    %2762 = vmatprep.subr.bf16.mxu0 %v2015
    %2763 = vmatpush1.bf16.msra.mxu0 %v2014
    %2764 = vmatprep.subr.bf16.mxu0 %v2023
    %2765 = vmatpush1.bf16.msra.mxu0 %v2022
    %2766 = vmatprep.subr.bf16.mxu0 %v2031
    %2767 = vmatpush1.bf16.msra.mxu0 %v2030
    %2768 = vmatprep.subr.bf16.mxu0 %v2039
    %2769 = vmatpush1.bf16.msra.mxu0 %v2038
    %2770 = vmatprep.subr.bf16.mxu0 %v2047
    %2771 = vmatpush1.bf16.msra.mxu0 %v2046
    %2772 = vmatprep.subr.bf16.mxu0 %v2055
    %2773 = vmatpush1.bf16.msra.mxu0 %v2054
    %2774 = vmatprep.subr.bf16.mxu0 %v2063
    %2775 = vmatpush1.bf16.msra.mxu0 %v2062
    %2776 = vmatprep.mubr.bf16.mxu0 %v651
    %2777 = vmatmul.mubr.bf16.gmra.mrb[0].mxu0 %v650
    %v2778 = vpop.f32.mrb[0].mxu0
    %v2779 = vadd.f32 %v2738, %v2778
    %v2780 = vpop.f32.mrb[0].mxu0
    %v2781 = vadd.f32 %v2740, %v2780
    %v2782 = vpop.f32.mrb[0].mxu0
    %v2783 = vpop.f32.mrb[0].mxu0
    %2784 = vdwg.mxu0
    %2785 = vmatprep.subr.bf16.mxu0 %v2071
    %2786 = vmatpush1.bf16.msra.mxu0 %v2070
    %2787 = vmatprep.subr.bf16.mxu0 %v2079
    %2788 = vmatpush1.bf16.msra.mxu0 %v2078
    %2789 = vmatprep.subr.bf16.mxu0 %v2087
    %2790 = vmatpush1.bf16.msra.mxu0 %v2086
    %2791 = vmatprep.subr.bf16.mxu0 %v2095
    %2792 = vmatpush1.bf16.msra.mxu0 %v2094
    %2793 = vmatprep.subr.bf16.mxu0 %v2103
    %2794 = vmatpush1.bf16.msra.mxu0 %v2102
    %2795 = vmatprep.subr.bf16.mxu0 %v2111
    %2796 = vmatpush1.bf16.msra.mxu0 %v2110
    %2797 = vmatprep.subr.bf16.mxu0 %v2119
    %2798 = vmatpush1.bf16.msra.mxu0 %v2118
    %2799 = vmatprep.subr.bf16.mxu0 %v2127
    %2800 = vmatpush1.bf16.msra.mxu0 %v2126
    %2801 = vmatprep.subr.bf16.mxu0 %v2135
    %2802 = vmatpush1.bf16.msra.mxu0 %v2134
    %2803 = vmatprep.subr.bf16.mxu0 %v2143
    %2804 = vmatpush1.bf16.msra.mxu0 %v2142
    %2805 = vmatprep.subr.bf16.mxu0 %v2151
    %2806 = vmatpush1.bf16.msra.mxu0 %v2150
    %2807 = vmatprep.subr.bf16.mxu0 %v2159
    %2808 = vmatpush1.bf16.msra.mxu0 %v2158
    %2809 = vmatprep.subr.bf16.mxu0 %v2167
    %2810 = vmatpush1.bf16.msra.mxu0 %v2166
    %2811 = vmatprep.subr.bf16.mxu0 %v2175
    %2812 = vmatpush1.bf16.msra.mxu0 %v2174
    %2813 = vmatprep.subr.bf16.mxu0 %v2183
    %2814 = vmatpush1.bf16.msra.mxu0 %v2182
    %2815 = vmatprep.subr.bf16.mxu0 %v2191
    %2816 = vmatpush1.bf16.msra.mxu0 %v2190
    %2817 = vmatprep.mubr.bf16.mxu0 %v653
    %2818 = vmatmul.mubr.bf16.gmra.mrb[0].mxu0 %v652
    %v2819 = vpop.f32.mrb[0].mxu0
    %v2820 = vadd.f32 %v2779, %v2819
    %v2821 = vpop.f32.mrb[0].mxu0
    %v2822 = vadd.f32 %v2781, %v2821
    %v2823 = vpop.f32.mrb[0].mxu0
    %v2824 = vpop.f32.mrb[0].mxu0
    %2825 = vdwg.mxu0
    %2826 = vmatprep.subr.bf16.mxu0 %v1817
    %2827 = vmatpush1.bf16.msra.mxu0 %v1816
    %2828 = vmatprep.subr.bf16.mxu0 %v1825
    %2829 = vmatpush1.bf16.msra.mxu0 %v1824
    %2830 = vmatprep.subr.bf16.mxu0 %v1833
    %2831 = vmatpush1.bf16.msra.mxu0 %v1832
    %2832 = vmatprep.subr.bf16.mxu0 %v1841
    %2833 = vmatpush1.bf16.msra.mxu0 %v1840
    %2834 = vmatprep.subr.bf16.mxu0 %v1849
    %2835 = vmatpush1.bf16.msra.mxu0 %v1848
    %2836 = vmatprep.subr.bf16.mxu0 %v1857
    %2837 = vmatpush1.bf16.msra.mxu0 %v1856
    %2838 = vmatprep.subr.bf16.mxu0 %v1865
    %2839 = vmatpush1.bf16.msra.mxu0 %v1864
    %2840 = vmatprep.subr.bf16.mxu0 %v1873
    %2841 = vmatpush1.bf16.msra.mxu0 %v1872
    %2842 = vmatprep.subr.bf16.mxu0 %v1881
    %2843 = vmatpush1.bf16.msra.mxu0 %v1880
    %2844 = vmatprep.subr.bf16.mxu0 %v1889
    %2845 = vmatpush1.bf16.msra.mxu0 %v1888
    %2846 = vmatprep.subr.bf16.mxu0 %v1897
    %2847 = vmatpush1.bf16.msra.mxu0 %v1896
    %2848 = vmatprep.subr.bf16.mxu0 %v1905
    %2849 = vmatpush1.bf16.msra.mxu0 %v1904
    %2850 = vmatprep.subr.bf16.mxu0 %v1913
    %2851 = vmatpush1.bf16.msra.mxu0 %v1912
    %2852 = vmatprep.subr.bf16.mxu0 %v1921
    %2853 = vmatpush1.bf16.msra.mxu0 %v1920
    %2854 = vmatprep.subr.bf16.mxu0 %v1929
    %2855 = vmatpush1.bf16.msra.mxu0 %v1928
    %2856 = vmatprep.subr.bf16.mxu0 %v1937
    %2857 = vmatpush1.bf16.msra.mxu0 %v1936
    %2858 = vmatprep.mubr.bf16.mxu0 %v649
    %2859 = vmatmul.mubr.bf16.gmra.mrb[0].mxu0 %v648
    %v2860 = vpop.f32.mrb[0].mxu0
    %v2861 = vadd.f32 %v590, %v2860
    %v2862 = vpop.f32.mrb[0].mxu0
    %v2863 = vadd.f32 %v594, %v2862
    %v2864 = vpop.f32.mrb[0].mxu0
    %v2865 = vpop.f32.mrb[0].mxu0
    %2866 = vdwg.mxu0
    %2867 = vmatprep.subr.bf16.mxu0 %v1945
    %2868 = vmatpush1.bf16.msra.mxu0 %v1944
    %2869 = vmatprep.subr.bf16.mxu0 %v1953
    %2870 = vmatpush1.bf16.msra.mxu0 %v1952
    %2871 = vmatprep.subr.bf16.mxu0 %v1961
    %2872 = vmatpush1.bf16.msra.mxu0 %v1960
    %2873 = vmatprep.subr.bf16.mxu0 %v1969
    %2874 = vmatpush1.bf16.msra.mxu0 %v1968
    %2875 = vmatprep.subr.bf16.mxu0 %v1977
    %2876 = vmatpush1.bf16.msra.mxu0 %v1976
    %2877 = vmatprep.subr.bf16.mxu0 %v1985
    %2878 = vmatpush1.bf16.msra.mxu0 %v1984
    %2879 = vmatprep.subr.bf16.mxu0 %v1993
    %2880 = vmatpush1.bf16.msra.mxu0 %v1992
    %2881 = vmatprep.subr.bf16.mxu0 %v2001
    %2882 = vmatpush1.bf16.msra.mxu0 %v2000
    %2883 = vmatprep.subr.bf16.mxu0 %v2009
    %2884 = vmatpush1.bf16.msra.mxu0 %v2008
    %2885 = vmatprep.subr.bf16.mxu0 %v2017
    %2886 = vmatpush1.bf16.msra.mxu0 %v2016
    %2887 = vmatprep.subr.bf16.mxu0 %v2025
    %2888 = vmatpush1.bf16.msra.mxu0 %v2024
    %2889 = vmatprep.subr.bf16.mxu0 %v2033
    %2890 = vmatpush1.bf16.msra.mxu0 %v2032
    %2891 = vmatprep.subr.bf16.mxu0 %v2041
    %2892 = vmatpush1.bf16.msra.mxu0 %v2040
    %2893 = vmatprep.subr.bf16.mxu0 %v2049
    %2894 = vmatpush1.bf16.msra.mxu0 %v2048
    %2895 = vmatprep.subr.bf16.mxu0 %v2057
    %2896 = vmatpush1.bf16.msra.mxu0 %v2056
    %2897 = vmatprep.subr.bf16.mxu0 %v2065
    %2898 = vmatpush1.bf16.msra.mxu0 %v2064
    %2899 = vmatprep.mubr.bf16.mxu0 %v651
    %2900 = vmatmul.mubr.bf16.gmra.mrb[0].mxu0 %v650
    %v2901 = vpop.f32.mrb[0].mxu0
    %v2902 = vadd.f32 %v2861, %v2901
    %v2903 = vpop.f32.mrb[0].mxu0
    %v2904 = vadd.f32 %v2863, %v2903
    %v2905 = vpop.f32.mrb[0].mxu0
    %v2906 = vpop.f32.mrb[0].mxu0
    %2907 = vdwg.mxu0
    %2908 = vmatprep.subr.bf16.mxu0 %v2073
    %2909 = vmatpush1.bf16.msra.mxu0 %v2072
    %2910 = vmatprep.subr.bf16.mxu0 %v2081
    %2911 = vmatpush1.bf16.msra.mxu0 %v2080
    %2912 = vmatprep.subr.bf16.mxu0 %v2089
    %2913 = vmatpush1.bf16.msra.mxu0 %v2088
    %2914 = vmatprep.subr.bf16.mxu0 %v2097
    %2915 = vmatpush1.bf16.msra.mxu0 %v2096
    %2916 = vmatprep.subr.bf16.mxu0 %v2105
    %2917 = vmatpush1.bf16.msra.mxu0 %v2104
    %2918 = vmatprep.subr.bf16.mxu0 %v2113
    %2919 = vmatpush1.bf16.msra.mxu0 %v2112
    %2920 = vmatprep.subr.bf16.mxu0 %v2121
    %2921 = vmatpush1.bf16.msra.mxu0 %v2120
    %2922 = vmatprep.subr.bf16.mxu0 %v2129
    %2923 = vmatpush1.bf16.msra.mxu0 %v2128
    %2924 = vmatprep.subr.bf16.mxu0 %v2137
    %2925 = vmatpush1.bf16.msra.mxu0 %v2136
    %2926 = vmatprep.subr.bf16.mxu0 %v2145
    %2927 = vmatpush1.bf16.msra.mxu0 %v2144
    %2928 = vmatprep.subr.bf16.mxu0 %v2153
    %2929 = vmatpush1.bf16.msra.mxu0 %v2152
    %2930 = vmatprep.subr.bf16.mxu0 %v2161
    %2931 = vmatpush1.bf16.msra.mxu0 %v2160
    %2932 = vmatprep.subr.bf16.mxu0 %v2169
    %2933 = vmatpush1.bf16.msra.mxu0 %v2168
    %2934 = vmatprep.subr.bf16.mxu0 %v2177
    %2935 = vmatpush1.bf16.msra.mxu0 %v2176
    %2936 = vmatprep.subr.bf16.mxu0 %v2185
    %2937 = vmatpush1.bf16.msra.mxu0 %v2184
    %2938 = vmatprep.subr.bf16.mxu0 %v2193
    %2939 = vmatpush1.bf16.msra.mxu0 %v2192
    %2940 = vmatprep.mubr.bf16.mxu0 %v653
    %2941 = vmatmul.mubr.bf16.gmra.mrb[0].mxu0 %v652
    %v2942 = vpop.f32.mrb[0].mxu0
    %v2943 = vadd.f32 %v2902, %v2942
    %v2944 = vpop.f32.mrb[0].mxu0
    %v2945 = vadd.f32 %v2904, %v2944
    %v2946 = vpop.f32.mrb[0].mxu0
    %v2947 = vpop.f32.mrb[0].mxu0
    %2948 = vdwg.mxu0
    %2949 = vmatprep.subr.bf16.mxu0 %v1819
    %2950 = vmatpush1.bf16.msra.mxu0 %v1818
    %2951 = vmatprep.subr.bf16.mxu0 %v1827
    %2952 = vmatpush1.bf16.msra.mxu0 %v1826
    %2953 = vmatprep.subr.bf16.mxu0 %v1835
    %2954 = vmatpush1.bf16.msra.mxu0 %v1834
    %2955 = vmatprep.subr.bf16.mxu0 %v1843
    %2956 = vmatpush1.bf16.msra.mxu0 %v1842
    %2957 = vmatprep.subr.bf16.mxu0 %v1851
    %2958 = vmatpush1.bf16.msra.mxu0 %v1850
    %2959 = vmatprep.subr.bf16.mxu0 %v1859
    %2960 = vmatpush1.bf16.msra.mxu0 %v1858
    %2961 = vmatprep.subr.bf16.mxu0 %v1867
    %2962 = vmatpush1.bf16.msra.mxu0 %v1866
    %2963 = vmatprep.subr.bf16.mxu0 %v1875
    %2964 = vmatpush1.bf16.msra.mxu0 %v1874
    %2965 = vmatprep.subr.bf16.mxu0 %v1883
    %2966 = vmatpush1.bf16.msra.mxu0 %v1882
    %2967 = vmatprep.subr.bf16.mxu0 %v1891
    %2968 = vmatpush1.bf16.msra.mxu0 %v1890
    %2969 = vmatprep.subr.bf16.mxu0 %v1899
    %2970 = vmatpush1.bf16.msra.mxu0 %v1898
    %2971 = vmatprep.subr.bf16.mxu0 %v1907
    %2972 = vmatpush1.bf16.msra.mxu0 %v1906
    %2973 = vmatprep.subr.bf16.mxu0 %v1915
    %2974 = vmatpush1.bf16.msra.mxu0 %v1914
    %2975 = vmatprep.subr.bf16.mxu0 %v1923
    %2976 = vmatpush1.bf16.msra.mxu0 %v1922
    %2977 = vmatprep.subr.bf16.mxu0 %v1931
    %2978 = vmatpush1.bf16.msra.mxu0 %v1930
    %2979 = vmatprep.subr.bf16.mxu0 %v1939
    %2980 = vmatpush1.bf16.msra.mxu0 %v1938
    %2981 = vmatprep.mubr.bf16.mxu0 %v649
    %2982 = vmatmul.mubr.bf16.gmra.mrb[0].mxu0 %v648
    %v2983 = vpop.f32.mrb[0].mxu0
    %v2984 = vadd.f32 %v598, %v2983
    %v2985 = vpop.f32.mrb[0].mxu0
    %v2986 = vadd.f32 %v602, %v2985
    %v2987 = vpop.f32.mrb[0].mxu0
    %v2988 = vpop.f32.mrb[0].mxu0
    %2989 = vdwg.mxu0
    %2990 = vmatprep.subr.bf16.mxu0 %v1947
    %2991 = vmatpush1.bf16.msra.mxu0 %v1946
    %2992 = vmatprep.subr.bf16.mxu0 %v1955
    %2993 = vmatpush1.bf16.msra.mxu0 %v1954
    %2994 = vmatprep.subr.bf16.mxu0 %v1963
    %2995 = vmatpush1.bf16.msra.mxu0 %v1962
    %2996 = vmatprep.subr.bf16.mxu0 %v1971
    %2997 = vmatpush1.bf16.msra.mxu0 %v1970
    %2998 = vmatprep.subr.bf16.mxu0 %v1979
    %2999 = vmatpush1.bf16.msra.mxu0 %v1978
    %3000 = vmatprep.subr.bf16.mxu0 %v1987
    %3001 = vmatpush1.bf16.msra.mxu0 %v1986
    %3002 = vmatprep.subr.bf16.mxu0 %v1995
    %3003 = vmatpush1.bf16.msra.mxu0 %v1994
    %3004 = vmatprep.subr.bf16.mxu0 %v2003
    %3005 = vmatpush1.bf16.msra.mxu0 %v2002
    %3006 = vmatprep.subr.bf16.mxu0 %v2011
    %3007 = vmatpush1.bf16.msra.mxu0 %v2010
    %3008 = vmatprep.subr.bf16.mxu0 %v2019
    %3009 = vmatpush1.bf16.msra.mxu0 %v2018
    %3010 = vmatprep.subr.bf16.mxu0 %v2027
    %3011 = vmatpush1.bf16.msra.mxu0 %v2026
    %3012 = vmatprep.subr.bf16.mxu0 %v2035
    %3013 = vmatpush1.bf16.msra.mxu0 %v2034
    %3014 = vmatprep.subr.bf16.mxu0 %v2043
    %3015 = vmatpush1.bf16.msra.mxu0 %v2042
    %3016 = vmatprep.subr.bf16.mxu0 %v2051
    %3017 = vmatpush1.bf16.msra.mxu0 %v2050
    %3018 = vmatprep.subr.bf16.mxu0 %v2059
    %3019 = vmatpush1.bf16.msra.mxu0 %v2058
    %3020 = vmatprep.subr.bf16.mxu0 %v2067
    %3021 = vmatpush1.bf16.msra.mxu0 %v2066
    %3022 = vmatprep.mubr.bf16.mxu0 %v651
    %3023 = vmatmul.mubr.bf16.gmra.mrb[0].mxu0 %v650
    %v3024 = vpop.f32.mrb[0].mxu0
    %v3025 = vadd.f32 %v2984, %v3024
    %v3026 = vpop.f32.mrb[0].mxu0
    %v3027 = vadd.f32 %v2986, %v3026
    %v3028 = vpop.f32.mrb[0].mxu0
    %v3029 = vpop.f32.mrb[0].mxu0
    %3030 = vdwg.mxu0
    %3031 = vmatprep.subr.bf16.mxu0 %v2075
    %3032 = vmatpush1.bf16.msra.mxu0 %v2074
    %3033 = vmatprep.subr.bf16.mxu0 %v2083
    %3034 = vmatpush1.bf16.msra.mxu0 %v2082
    %3035 = vmatprep.subr.bf16.mxu0 %v2091
    %3036 = vmatpush1.bf16.msra.mxu0 %v2090
    %3037 = vmatprep.subr.bf16.mxu0 %v2099
    %3038 = vmatpush1.bf16.msra.mxu0 %v2098
    %3039 = vmatprep.subr.bf16.mxu0 %v2107
    %3040 = vmatpush1.bf16.msra.mxu0 %v2106
    %3041 = vmatprep.subr.bf16.mxu0 %v2115
    %3042 = vmatpush1.bf16.msra.mxu0 %v2114
    %3043 = vmatprep.subr.bf16.mxu0 %v2123
    %3044 = vmatpush1.bf16.msra.mxu0 %v2122
    %3045 = vmatprep.subr.bf16.mxu0 %v2131
    %3046 = vmatpush1.bf16.msra.mxu0 %v2130
    %3047 = vmatprep.subr.bf16.mxu0 %v2139
    %3048 = vmatpush1.bf16.msra.mxu0 %v2138
    %3049 = vmatprep.subr.bf16.mxu0 %v2147
    %3050 = vmatpush1.bf16.msra.mxu0 %v2146
    %3051 = vmatprep.subr.bf16.mxu0 %v2155
    %3052 = vmatpush1.bf16.msra.mxu0 %v2154
    %3053 = vmatprep.subr.bf16.mxu0 %v2163
    %3054 = vmatpush1.bf16.msra.mxu0 %v2162
    %3055 = vmatprep.subr.bf16.mxu0 %v2171
    %3056 = vmatpush1.bf16.msra.mxu0 %v2170
    %3057 = vmatprep.subr.bf16.mxu0 %v2179
    %3058 = vmatpush1.bf16.msra.mxu0 %v2178
    %3059 = vmatprep.subr.bf16.mxu0 %v2187
    %3060 = vmatpush1.bf16.msra.mxu0 %v2186
    %3061 = vmatprep.subr.bf16.mxu0 %v2195
    %3062 = vmatpush1.bf16.msra.mxu0 %v2194
    %3063 = vmatprep.mubr.bf16.mxu0 %v653
    %3064 = vmatmul.mubr.bf16.gmra.mrb[0].mxu0 %v652
    %v3065 = vpop.f32.mrb[0].mxu0
    %v3066 = vadd.f32 %v3025, %v3065
    %v3067 = vpop.f32.mrb[0].mxu0
    %v3068 = vadd.f32 %v3027, %v3067
    %v3069 = vpop.f32.mrb[0].mxu0
    %v3070 = vpop.f32.mrb[0].mxu0
    %3071 = vdwg.mxu0
    %v3072 = vmax.f32 %v2697, 0.0
    %v3073 = vmax.f32 %v2699, 0.0
    %v3074 = vmax.f32 %v2820, 0.0
    %v3075 = vmax.f32 %v2822, 0.0
    %v3076 = vmax.f32 %v2943, 0.0
    %v3077 = vmax.f32 %v2945, 0.0
    %v3078 = vmax.f32 %v3066, 0.0
    %v3079 = vmax.f32 %v3068, 0.0
    %v3080 = vpack.c.bf16 %v3072, %v3072
    %v3081 = vpack.c.bf16 %v3073, %v3073
    %v3082 = vpack.c.bf16 %v3074, %v3074
    %v3083 = vpack.c.bf16 %v3075, %v3075
    %v3084 = vpack.c.bf16 %v3076, %v3076
    %v3085 = vpack.c.bf16 %v3077, %v3077
    %v3086 = vpack.c.bf16 %v3078, %v3078
    %v3087 = vpack.c.bf16 %v3079, %v3079
    %v3088 = vld [vmem:[#allocation9] sm:$0xff]
    %v3089 = vld [vmem:[#allocation9 + $0x8] sm:$0xff]
    %v3090 = vld [vmem:[#allocation9 + $0x10] sm:$0xff]
    %v3091 = vld [vmem:[#allocation9 + $0x18] sm:$0xff]
    %v3092 = vld [vmem:[#allocation9 + $0x20] sm:$0xff]
    %v3093 = vld [vmem:[#allocation9 + $0x28] sm:$0xff]
    %v3094 = vld [vmem:[#allocation9 + $0x30] sm:$0xff]
    %v3095 = vld [vmem:[#allocation9 + $0x38] sm:$0xff]
    %v3096 = vld [vmem:[#allocation9 + $0x40] sm:$0xff]
    %v3097 = vld [vmem:[#allocation9 + $0x48] sm:$0xff]
    %v3098 = vld [vmem:[#allocation9 + $0x50] sm:$0xff]
    %v3099 = vld [vmem:[#allocation9 + $0x58] sm:$0xff]
    %v3100 = vld [vmem:[#allocation9 + $0x60] sm:$0xff]
    %v3101 = vld [vmem:[#allocation9 + $0x68] sm:$0xff]
    %v3102 = vld [vmem:[#allocation9 + $0x70] sm:$0xff]
    %v3103 = vld [vmem:[#allocation9 + $0x78] sm:$0xff]
    %v3104 = vld [vmem:[#allocation9 + $0x80] sm:$0xff]
    %v3105 = vld [vmem:[#allocation9 + $0x88] sm:$0xff]
    %v3106 = vld [vmem:[#allocation9 + $0x90] sm:$0xff]
    %v3107 = vld [vmem:[#allocation9 + $0x98] sm:$0xff]
    %v3108 = vld [vmem:[#allocation9 + $0xa0] sm:$0xff]
    %v3109 = vld [vmem:[#allocation9 + $0xa8] sm:$0xff]
    %v3110 = vld [vmem:[#allocation9 + $0xb0] sm:$0xff]
    %v3111 = vld [vmem:[#allocation9 + $0xb8] sm:$0xff]
    %v3112 = vld [vmem:[#allocation9 + $0xc0] sm:$0xff]
    %v3113 = vld [vmem:[#allocation9 + $0xc8] sm:$0xff]
    %v3114 = vld [vmem:[#allocation9 + $0xd0] sm:$0xff]
    %v3115 = vld [vmem:[#allocation9 + $0xd8] sm:$0xff]
    %v3116 = vld [vmem:[#allocation9 + $0xe0] sm:$0xff]
    %v3117 = vld [vmem:[#allocation9 + $0xe8] sm:$0xff]
    %v3118 = vld [vmem:[#allocation9 + $0xf0] sm:$0xff]
    %v3119 = vld [vmem:[#allocation9 + $0xf8] sm:$0xff]
    %v3120 = vld [vmem:[#allocation9 + $0x100] sm:$0xff]
    %v3121 = vld [vmem:[#allocation9 + $0x108] sm:$0xff]
    %v3122 = vld [vmem:[#allocation9 + $0x110] sm:$0xff]
    %v3123 = vld [vmem:[#allocation9 + $0x118] sm:$0xff]
    %v3124 = vld [vmem:[#allocation9 + $0x120] sm:$0xff]
    %v3125 = vld [vmem:[#allocation9 + $0x128] sm:$0xff]
    %v3126 = vld [vmem:[#allocation9 + $0x130] sm:$0xff]
    %v3127 = vld [vmem:[#allocation9 + $0x138] sm:$0xff]
    %v3128 = vld [vmem:[#allocation9 + $0x140] sm:$0xff]
    %v3129 = vld [vmem:[#allocation9 + $0x148] sm:$0xff]
    %v3130 = vld [vmem:[#allocation9 + $0x150] sm:$0xff]
    %v3131 = vld [vmem:[#allocation9 + $0x158] sm:$0xff]
    %v3132 = vld [vmem:[#allocation9 + $0x160] sm:$0xff]
    %v3133 = vld [vmem:[#allocation9 + $0x168] sm:$0xff]
    %v3134 = vld [vmem:[#allocation9 + $0x170] sm:$0xff]
    %v3135 = vld [vmem:[#allocation9 + $0x178] sm:$0xff]
    %v3136 = vld [vmem:[#allocation9 + $0x180] sm:$0xff]
    %v3137 = vld [vmem:[#allocation9 + $0x188] sm:$0xff]
    %v3138 = vld [vmem:[#allocation9 + $0x190] sm:$0xff]
    %v3139 = vld [vmem:[#allocation9 + $0x198] sm:$0xff]
    %v3140 = vld [vmem:[#allocation9 + $0x1a0] sm:$0xff]
    %v3141 = vld [vmem:[#allocation9 + $0x1a8] sm:$0xff]
    %v3142 = vld [vmem:[#allocation9 + $0x1b0] sm:$0xff]
    %v3143 = vld [vmem:[#allocation9 + $0x1b8] sm:$0xff]
    %v3144 = vld [vmem:[#allocation9 + $0x1c0] sm:$0xff]
    %v3145 = vld [vmem:[#allocation9 + $0x1c8] sm:$0xff]
    %v3146 = vld [vmem:[#allocation9 + $0x1d0] sm:$0xff]
    %v3147 = vld [vmem:[#allocation9 + $0x1d8] sm:$0xff]
    %v3148 = vld [vmem:[#allocation9 + $0x1e0] sm:$0xff]
    %v3149 = vld [vmem:[#allocation9 + $0x1e8] sm:$0xff]
    %v3150 = vld [vmem:[#allocation9 + $0x1f0] sm:$0xff]
    %v3151 = vld [vmem:[#allocation9 + $0x1f8] sm:$0xff]
    %v3152 = vld [vmem:[#allocation9 + $0x200] sm:$0xff]
    %v3153 = vld [vmem:[#allocation9 + $0x208] sm:$0xff]
    %v3154 = vld [vmem:[#allocation9 + $0x210] sm:$0xff]
    %v3155 = vld [vmem:[#allocation9 + $0x218] sm:$0xff]
    %v3156 = vld [vmem:[#allocation9 + $0x220] sm:$0xff]
    %v3157 = vld [vmem:[#allocation9 + $0x228] sm:$0xff]
    %v3158 = vld [vmem:[#allocation9 + $0x230] sm:$0xff]
    %v3159 = vld [vmem:[#allocation9 + $0x238] sm:$0xff]
    %v3160 = vld [vmem:[#allocation9 + $0x240] sm:$0xff]
    %v3161 = vld [vmem:[#allocation9 + $0x248] sm:$0xff]
    %v3162 = vld [vmem:[#allocation9 + $0x250] sm:$0xff]
    %v3163 = vld [vmem:[#allocation9 + $0x258] sm:$0xff]
    %v3164 = vld [vmem:[#allocation9 + $0x260] sm:$0xff]
    %v3165 = vld [vmem:[#allocation9 + $0x268] sm:$0xff]
    %v3166 = vld [vmem:[#allocation9 + $0x270] sm:$0xff]
    %v3167 = vld [vmem:[#allocation9 + $0x278] sm:$0xff]
    %v3168 = vld [vmem:[#allocation9 + $0x280] sm:$0xff]
    %v3169 = vld [vmem:[#allocation9 + $0x288] sm:$0xff]
    %v3170 = vld [vmem:[#allocation9 + $0x290] sm:$0xff]
    %v3171 = vld [vmem:[#allocation9 + $0x298] sm:$0xff]
    %v3172 = vld [vmem:[#allocation9 + $0x2a0] sm:$0xff]
    %v3173 = vld [vmem:[#allocation9 + $0x2a8] sm:$0xff]
    %v3174 = vld [vmem:[#allocation9 + $0x2b0] sm:$0xff]
    %v3175 = vld [vmem:[#allocation9 + $0x2b8] sm:$0xff]
    %v3176 = vld [vmem:[#allocation9 + $0x2c0] sm:$0xff]
    %v3177 = vld [vmem:[#allocation9 + $0x2c8] sm:$0xff]
    %v3178 = vld [vmem:[#allocation9 + $0x2d0] sm:$0xff]
    %v3179 = vld [vmem:[#allocation9 + $0x2d8] sm:$0xff]
    %v3180 = vld [vmem:[#allocation9 + $0x2e0] sm:$0xff]
    %v3181 = vld [vmem:[#allocation9 + $0x2e8] sm:$0xff]
    %v3182 = vld [vmem:[#allocation9 + $0x2f0] sm:$0xff]
    %v3183 = vld [vmem:[#allocation9 + $0x2f8] sm:$0xff]
    %v3184 = vld [vmem:[#allocation9 + $0x300] sm:$0xff]
    %v3185 = vld [vmem:[#allocation9 + $0x308] sm:$0xff]
    %v3186 = vld [vmem:[#allocation9 + $0x310] sm:$0xff]
    %v3187 = vld [vmem:[#allocation9 + $0x318] sm:$0xff]
    %v3188 = vld [vmem:[#allocation9 + $0x320] sm:$0xff]
    %v3189 = vld [vmem:[#allocation9 + $0x328] sm:$0xff]
    %v3190 = vld [vmem:[#allocation9 + $0x330] sm:$0xff]
    %v3191 = vld [vmem:[#allocation9 + $0x338] sm:$0xff]
    %v3192 = vld [vmem:[#allocation9 + $0x340] sm:$0xff]
    %v3193 = vld [vmem:[#allocation9 + $0x348] sm:$0xff]
    %v3194 = vld [vmem:[#allocation9 + $0x350] sm:$0xff]
    %v3195 = vld [vmem:[#allocation9 + $0x358] sm:$0xff]
    %v3196 = vld [vmem:[#allocation9 + $0x360] sm:$0xff]
    %v3197 = vld [vmem:[#allocation9 + $0x368] sm:$0xff]
    %v3198 = vld [vmem:[#allocation9 + $0x370] sm:$0xff]
    %v3199 = vld [vmem:[#allocation9 + $0x378] sm:$0xff]
    %v3200 = vld [vmem:[#allocation9 + $0x380] sm:$0xff]
    %v3201 = vld [vmem:[#allocation9 + $0x388] sm:$0xff]
    %v3202 = vld [vmem:[#allocation9 + $0x390] sm:$0xff]
    %v3203 = vld [vmem:[#allocation9 + $0x398] sm:$0xff]
    %v3204 = vld [vmem:[#allocation9 + $0x3a0] sm:$0xff]
    %v3205 = vld [vmem:[#allocation9 + $0x3a8] sm:$0xff]
    %v3206 = vld [vmem:[#allocation9 + $0x3b0] sm:$0xff]
    %v3207 = vld [vmem:[#allocation9 + $0x3b8] sm:$0xff]
    %v3208 = vld [vmem:[#allocation9 + $0x3c0] sm:$0xff]
    %v3209 = vld [vmem:[#allocation9 + $0x3c8] sm:$0xff]
    %v3210 = vld [vmem:[#allocation9 + $0x3d0] sm:$0xff]
    %v3211 = vld [vmem:[#allocation9 + $0x3d8] sm:$0xff]
    %v3212 = vld [vmem:[#allocation9 + $0x3e0] sm:$0xff]
    %v3213 = vld [vmem:[#allocation9 + $0x3e8] sm:$0xff]
    %v3214 = vld [vmem:[#allocation9 + $0x3f0] sm:$0xff]
    %v3215 = vld [vmem:[#allocation9 + $0x3f8] sm:$0xff]
    %v3216 = vld [vmem:[#allocation9 + $0x400] sm:$0xff]
    %v3217 = vld [vmem:[#allocation9 + $0x408] sm:$0xff]
    %v3218 = vld [vmem:[#allocation9 + $0x410] sm:$0xff]
    %v3219 = vld [vmem:[#allocation9 + $0x418] sm:$0xff]
    %v3220 = vld [vmem:[#allocation9 + $0x420] sm:$0xff]
    %v3221 = vld [vmem:[#allocation9 + $0x428] sm:$0xff]
    %v3222 = vld [vmem:[#allocation9 + $0x430] sm:$0xff]
    %v3223 = vld [vmem:[#allocation9 + $0x438] sm:$0xff]
    %v3224 = vld [vmem:[#allocation9 + $0x440] sm:$0xff]
    %v3225 = vld [vmem:[#allocation9 + $0x448] sm:$0xff]
    %v3226 = vld [vmem:[#allocation9 + $0x450] sm:$0xff]
    %v3227 = vld [vmem:[#allocation9 + $0x458] sm:$0xff]
    %v3228 = vld [vmem:[#allocation9 + $0x460] sm:$0xff]
    %v3229 = vld [vmem:[#allocation9 + $0x468] sm:$0xff]
    %v3230 = vld [vmem:[#allocation9 + $0x470] sm:$0xff]
    %v3231 = vld [vmem:[#allocation9 + $0x478] sm:$0xff]
    %v3232 = vld [vmem:[#allocation9 + $0x480] sm:$0xff]
    %v3233 = vld [vmem:[#allocation9 + $0x488] sm:$0xff]
    %v3234 = vld [vmem:[#allocation9 + $0x490] sm:$0xff]
    %v3235 = vld [vmem:[#allocation9 + $0x498] sm:$0xff]
    %v3236 = vld [vmem:[#allocation9 + $0x4a0] sm:$0xff]
    %v3237 = vld [vmem:[#allocation9 + $0x4a8] sm:$0xff]
    %v3238 = vld [vmem:[#allocation9 + $0x4b0] sm:$0xff]
    %v3239 = vld [vmem:[#allocation9 + $0x4b8] sm:$0xff]
    %v3240 = vld [vmem:[#allocation9 + $0x4c0] sm:$0xff]
    %v3241 = vld [vmem:[#allocation9 + $0x4c8] sm:$0xff]
    %v3242 = vld [vmem:[#allocation9 + $0x4d0] sm:$0xff]
    %v3243 = vld [vmem:[#allocation9 + $0x4d8] sm:$0xff]
    %v3244 = vld [vmem:[#allocation9 + $0x4e0] sm:$0xff]
    %v3245 = vld [vmem:[#allocation9 + $0x4e8] sm:$0xff]
    %v3246 = vld [vmem:[#allocation9 + $0x4f0] sm:$0xff]
    %v3247 = vld [vmem:[#allocation9 + $0x4f8] sm:$0xff]
    %v3248 = vld [vmem:[#allocation9 + $0x500] sm:$0xff]
    %v3249 = vld [vmem:[#allocation9 + $0x508] sm:$0xff]
    %v3250 = vld [vmem:[#allocation9 + $0x510] sm:$0xff]
    %v3251 = vld [vmem:[#allocation9 + $0x518] sm:$0xff]
    %v3252 = vld [vmem:[#allocation9 + $0x520] sm:$0xff]
    %v3253 = vld [vmem:[#allocation9 + $0x528] sm:$0xff]
    %v3254 = vld [vmem:[#allocation9 + $0x530] sm:$0xff]
    %v3255 = vld [vmem:[#allocation9 + $0x538] sm:$0xff]
    %v3256 = vld [vmem:[#allocation9 + $0x540] sm:$0xff]
    %v3257 = vld [vmem:[#allocation9 + $0x548] sm:$0xff]
    %v3258 = vld [vmem:[#allocation9 + $0x550] sm:$0xff]
    %v3259 = vld [vmem:[#allocation9 + $0x558] sm:$0xff]
    %v3260 = vld [vmem:[#allocation9 + $0x560] sm:$0xff]
    %v3261 = vld [vmem:[#allocation9 + $0x568] sm:$0xff]
    %v3262 = vld [vmem:[#allocation9 + $0x570] sm:$0xff]
    %v3263 = vld [vmem:[#allocation9 + $0x578] sm:$0xff]
    %v3264 = vld [vmem:[#allocation9 + $0x580] sm:$0xff]
    %v3265 = vld [vmem:[#allocation9 + $0x588] sm:$0xff]
    %v3266 = vld [vmem:[#allocation9 + $0x590] sm:$0xff]
    %v3267 = vld [vmem:[#allocation9 + $0x598] sm:$0xff]
    %v3268 = vld [vmem:[#allocation9 + $0x5a0] sm:$0xff]
    %v3269 = vld [vmem:[#allocation9 + $0x5a8] sm:$0xff]
    %v3270 = vld [vmem:[#allocation9 + $0x5b0] sm:$0xff]
    %v3271 = vld [vmem:[#allocation9 + $0x5b8] sm:$0xff]
    %v3272 = vld [vmem:[#allocation9 + $0x5c0] sm:$0xff]
    %v3273 = vld [vmem:[#allocation9 + $0x5c8] sm:$0xff]
    %v3274 = vld [vmem:[#allocation9 + $0x5d0] sm:$0xff]
    %v3275 = vld [vmem:[#allocation9 + $0x5d8] sm:$0xff]
    %v3276 = vld [vmem:[#allocation9 + $0x5e0] sm:$0xff]
    %v3277 = vld [vmem:[#allocation9 + $0x5e8] sm:$0xff]
    %v3278 = vld [vmem:[#allocation9 + $0x5f0] sm:$0xff]
    %v3279 = vld [vmem:[#allocation9 + $0x5f8] sm:$0xff]
    %v3280 = vld [vmem:[#allocation9 + $0x600] sm:$0xff]
    %v3281 = vld [vmem:[#allocation9 + $0x608] sm:$0xff]
    %v3282 = vld [vmem:[#allocation9 + $0x610] sm:$0xff]
    %v3283 = vld [vmem:[#allocation9 + $0x618] sm:$0xff]
    %v3284 = vld [vmem:[#allocation9 + $0x620] sm:$0xff]
    %v3285 = vld [vmem:[#allocation9 + $0x628] sm:$0xff]
    %v3286 = vld [vmem:[#allocation9 + $0x630] sm:$0xff]
    %v3287 = vld [vmem:[#allocation9 + $0x638] sm:$0xff]
    %v3288 = vld [vmem:[#allocation9 + $0x640] sm:$0xff]
    %v3289 = vld [vmem:[#allocation9 + $0x648] sm:$0xff]
    %v3290 = vld [vmem:[#allocation9 + $0x650] sm:$0xff]
    %v3291 = vld [vmem:[#allocation9 + $0x658] sm:$0xff]
    %v3292 = vld [vmem:[#allocation9 + $0x660] sm:$0xff]
    %v3293 = vld [vmem:[#allocation9 + $0x668] sm:$0xff]
    %v3294 = vld [vmem:[#allocation9 + $0x670] sm:$0xff]
    %v3295 = vld [vmem:[#allocation9 + $0x678] sm:$0xff]
    %v3296 = vld [vmem:[#allocation9 + $0x680] sm:$0xff]
    %v3297 = vld [vmem:[#allocation9 + $0x688] sm:$0xff]
    %v3298 = vld [vmem:[#allocation9 + $0x690] sm:$0xff]
    %v3299 = vld [vmem:[#allocation9 + $0x698] sm:$0xff]
    %v3300 = vld [vmem:[#allocation9 + $0x6a0] sm:$0xff]
    %v3301 = vld [vmem:[#allocation9 + $0x6a8] sm:$0xff]
    %v3302 = vld [vmem:[#allocation9 + $0x6b0] sm:$0xff]
    %v3303 = vld [vmem:[#allocation9 + $0x6b8] sm:$0xff]
    %v3304 = vld [vmem:[#allocation9 + $0x6c0] sm:$0xff]
    %v3305 = vld [vmem:[#allocation9 + $0x6c8] sm:$0xff]
    %v3306 = vld [vmem:[#allocation9 + $0x6d0] sm:$0xff]
    %v3307 = vld [vmem:[#allocation9 + $0x6d8] sm:$0xff]
    %v3308 = vld [vmem:[#allocation9 + $0x6e0] sm:$0xff]
    %v3309 = vld [vmem:[#allocation9 + $0x6e8] sm:$0xff]
    %v3310 = vld [vmem:[#allocation9 + $0x6f0] sm:$0xff]
    %v3311 = vld [vmem:[#allocation9 + $0x6f8] sm:$0xff]
    %v3312 = vld [vmem:[#allocation9 + $0x700] sm:$0xff]
    %v3313 = vld [vmem:[#allocation9 + $0x708] sm:$0xff]
    %v3314 = vld [vmem:[#allocation9 + $0x710] sm:$0xff]
    %v3315 = vld [vmem:[#allocation9 + $0x718] sm:$0xff]
    %v3316 = vld [vmem:[#allocation9 + $0x720] sm:$0xff]
    %v3317 = vld [vmem:[#allocation9 + $0x728] sm:$0xff]
    %v3318 = vld [vmem:[#allocation9 + $0x730] sm:$0xff]
    %v3319 = vld [vmem:[#allocation9 + $0x738] sm:$0xff]
    %v3320 = vld [vmem:[#allocation9 + $0x740] sm:$0xff]
    %v3321 = vld [vmem:[#allocation9 + $0x748] sm:$0xff]
    %v3322 = vld [vmem:[#allocation9 + $0x750] sm:$0xff]
    %v3323 = vld [vmem:[#allocation9 + $0x758] sm:$0xff]
    %v3324 = vld [vmem:[#allocation9 + $0x760] sm:$0xff]
    %v3325 = vld [vmem:[#allocation9 + $0x768] sm:$0xff]
    %v3326 = vld [vmem:[#allocation9 + $0x770] sm:$0xff]
    %v3327 = vld [vmem:[#allocation9 + $0x778] sm:$0xff]
    %v3328 = vld [vmem:[#allocation9 + $0x780] sm:$0xff]
    %v3329 = vld [vmem:[#allocation9 + $0x788] sm:$0xff]
    %v3330 = vld [vmem:[#allocation9 + $0x790] sm:$0xff]
    %v3331 = vld [vmem:[#allocation9 + $0x798] sm:$0xff]
    %v3332 = vld [vmem:[#allocation9 + $0x7a0] sm:$0xff]
    %v3333 = vld [vmem:[#allocation9 + $0x7a8] sm:$0xff]
    %v3334 = vld [vmem:[#allocation9 + $0x7b0] sm:$0xff]
    %v3335 = vld [vmem:[#allocation9 + $0x7b8] sm:$0xff]
    %v3336 = vld [vmem:[#allocation9 + $0x7c0] sm:$0xff]
    %v3337 = vld [vmem:[#allocation9 + $0x7c8] sm:$0xff]
    %v3338 = vld [vmem:[#allocation9 + $0x7d0] sm:$0xff]
    %v3339 = vld [vmem:[#allocation9 + $0x7d8] sm:$0xff]
    %v3340 = vld [vmem:[#allocation9 + $0x7e0] sm:$0xff]
    %v3341 = vld [vmem:[#allocation9 + $0x7e8] sm:$0xff]
    %v3342 = vld [vmem:[#allocation9 + $0x7f0] sm:$0xff]
    %v3343 = vld [vmem:[#allocation9 + $0x7f8] sm:$0xff]
    %v3344 = vld [vmem:[#allocation9 + $0x800] sm:$0xff]
    %v3345 = vld [vmem:[#allocation9 + $0x808] sm:$0xff]
    %v3346 = vld [vmem:[#allocation9 + $0x810] sm:$0xff]
    %v3347 = vld [vmem:[#allocation9 + $0x818] sm:$0xff]
    %v3348 = vld [vmem:[#allocation9 + $0x820] sm:$0xff]
    %v3349 = vld [vmem:[#allocation9 + $0x828] sm:$0xff]
    %v3350 = vld [vmem:[#allocation9 + $0x830] sm:$0xff]
    %v3351 = vld [vmem:[#allocation9 + $0x838] sm:$0xff]
    %v3352 = vld [vmem:[#allocation9 + $0x840] sm:$0xff]
    %v3353 = vld [vmem:[#allocation9 + $0x848] sm:$0xff]
    %v3354 = vld [vmem:[#allocation9 + $0x850] sm:$0xff]
    %v3355 = vld [vmem:[#allocation9 + $0x858] sm:$0xff]
    %v3356 = vld [vmem:[#allocation9 + $0x860] sm:$0xff]
    %v3357 = vld [vmem:[#allocation9 + $0x868] sm:$0xff]
    %v3358 = vld [vmem:[#allocation9 + $0x870] sm:$0xff]
    %v3359 = vld [vmem:[#allocation9 + $0x878] sm:$0xff]
    %v3360 = vld [vmem:[#allocation9 + $0x880] sm:$0xff]
    %v3361 = vld [vmem:[#allocation9 + $0x888] sm:$0xff]
    %v3362 = vld [vmem:[#allocation9 + $0x890] sm:$0xff]
    %v3363 = vld [vmem:[#allocation9 + $0x898] sm:$0xff]
    %v3364 = vld [vmem:[#allocation9 + $0x8a0] sm:$0xff]
    %v3365 = vld [vmem:[#allocation9 + $0x8a8] sm:$0xff]
    %v3366 = vld [vmem:[#allocation9 + $0x8b0] sm:$0xff]
    %v3367 = vld [vmem:[#allocation9 + $0x8b8] sm:$0xff]
    %v3368 = vld [vmem:[#allocation9 + $0x8c0] sm:$0xff]
    %v3369 = vld [vmem:[#allocation9 + $0x8c8] sm:$0xff]
    %v3370 = vld [vmem:[#allocation9 + $0x8d0] sm:$0xff]
    %v3371 = vld [vmem:[#allocation9 + $0x8d8] sm:$0xff]
    %v3372 = vld [vmem:[#allocation9 + $0x8e0] sm:$0xff]
    %v3373 = vld [vmem:[#allocation9 + $0x8e8] sm:$0xff]
    %v3374 = vld [vmem:[#allocation9 + $0x8f0] sm:$0xff]
    %v3375 = vld [vmem:[#allocation9 + $0x8f8] sm:$0xff]
    %v3376 = vld [vmem:[#allocation9 + $0x900] sm:$0xff]
    %v3377 = vld [vmem:[#allocation9 + $0x908] sm:$0xff]
    %v3378 = vld [vmem:[#allocation9 + $0x910] sm:$0xff]
    %v3379 = vld [vmem:[#allocation9 + $0x918] sm:$0xff]
    %v3380 = vld [vmem:[#allocation9 + $0x920] sm:$0xff]
    %v3381 = vld [vmem:[#allocation9 + $0x928] sm:$0xff]
    %v3382 = vld [vmem:[#allocation9 + $0x930] sm:$0xff]
    %v3383 = vld [vmem:[#allocation9 + $0x938] sm:$0xff]
    %v3384 = vld [vmem:[#allocation9 + $0x940] sm:$0xff]
    %v3385 = vld [vmem:[#allocation9 + $0x948] sm:$0xff]
    %v3386 = vld [vmem:[#allocation9 + $0x950] sm:$0xff]
    %v3387 = vld [vmem:[#allocation9 + $0x958] sm:$0xff]
    %v3388 = vld [vmem:[#allocation9 + $0x960] sm:$0xff]
    %v3389 = vld [vmem:[#allocation9 + $0x968] sm:$0xff]
    %v3390 = vld [vmem:[#allocation9 + $0x970] sm:$0xff]
    %v3391 = vld [vmem:[#allocation9 + $0x978] sm:$0xff]
    %v3392 = vld [vmem:[#allocation9 + $0x980] sm:$0xff]
    %v3393 = vld [vmem:[#allocation9 + $0x988] sm:$0xff]
    %v3394 = vld [vmem:[#allocation9 + $0x990] sm:$0xff]
    %v3395 = vld [vmem:[#allocation9 + $0x998] sm:$0xff]
    %v3396 = vld [vmem:[#allocation9 + $0x9a0] sm:$0xff]
    %v3397 = vld [vmem:[#allocation9 + $0x9a8] sm:$0xff]
    %v3398 = vld [vmem:[#allocation9 + $0x9b0] sm:$0xff]
    %v3399 = vld [vmem:[#allocation9 + $0x9b8] sm:$0xff]
    %v3400 = vld [vmem:[#allocation9 + $0x9c0] sm:$0xff]
    %v3401 = vld [vmem:[#allocation9 + $0x9c8] sm:$0xff]
    %v3402 = vld [vmem:[#allocation9 + $0x9d0] sm:$0xff]
    %v3403 = vld [vmem:[#allocation9 + $0x9d8] sm:$0xff]
    %v3404 = vld [vmem:[#allocation9 + $0x9e0] sm:$0xff]
    %v3405 = vld [vmem:[#allocation9 + $0x9e8] sm:$0xff]
    %v3406 = vld [vmem:[#allocation9 + $0x9f0] sm:$0xff]
    %v3407 = vld [vmem:[#allocation9 + $0x9f8] sm:$0xff]
    %v3408 = vld [vmem:[#allocation9 + $0xa00] sm:$0xff]
    %v3409 = vld [vmem:[#allocation9 + $0xa08] sm:$0xff]
    %v3410 = vld [vmem:[#allocation9 + $0xa10] sm:$0xff]
    %v3411 = vld [vmem:[#allocation9 + $0xa18] sm:$0xff]
    %v3412 = vld [vmem:[#allocation9 + $0xa20] sm:$0xff]
    %v3413 = vld [vmem:[#allocation9 + $0xa28] sm:$0xff]
    %v3414 = vld [vmem:[#allocation9 + $0xa30] sm:$0xff]
    %v3415 = vld [vmem:[#allocation9 + $0xa38] sm:$0xff]
    %v3416 = vld [vmem:[#allocation9 + $0xa40] sm:$0xff]
    %v3417 = vld [vmem:[#allocation9 + $0xa48] sm:$0xff]
    %v3418 = vld [vmem:[#allocation9 + $0xa50] sm:$0xff]
    %v3419 = vld [vmem:[#allocation9 + $0xa58] sm:$0xff]
    %v3420 = vld [vmem:[#allocation9 + $0xa60] sm:$0xff]
    %v3421 = vld [vmem:[#allocation9 + $0xa68] sm:$0xff]
    %v3422 = vld [vmem:[#allocation9 + $0xa70] sm:$0xff]
    %v3423 = vld [vmem:[#allocation9 + $0xa78] sm:$0xff]
    %v3424 = vld [vmem:[#allocation9 + $0xa80] sm:$0xff]
    %v3425 = vld [vmem:[#allocation9 + $0xa88] sm:$0xff]
    %v3426 = vld [vmem:[#allocation9 + $0xa90] sm:$0xff]
    %v3427 = vld [vmem:[#allocation9 + $0xa98] sm:$0xff]
    %v3428 = vld [vmem:[#allocation9 + $0xaa0] sm:$0xff]
    %v3429 = vld [vmem:[#allocation9 + $0xaa8] sm:$0xff]
    %v3430 = vld [vmem:[#allocation9 + $0xab0] sm:$0xff]
    %v3431 = vld [vmem:[#allocation9 + $0xab8] sm:$0xff]
    %v3432 = vld [vmem:[#allocation9 + $0xac0] sm:$0xff]
    %v3433 = vld [vmem:[#allocation9 + $0xac8] sm:$0xff]
    %v3434 = vld [vmem:[#allocation9 + $0xad0] sm:$0xff]
    %v3435 = vld [vmem:[#allocation9 + $0xad8] sm:$0xff]
    %v3436 = vld [vmem:[#allocation9 + $0xae0] sm:$0xff]
    %v3437 = vld [vmem:[#allocation9 + $0xae8] sm:$0xff]
    %v3438 = vld [vmem:[#allocation9 + $0xaf0] sm:$0xff]
    %v3439 = vld [vmem:[#allocation9 + $0xaf8] sm:$0xff]
    %v3440 = vld [vmem:[#allocation9 + $0xb00] sm:$0xff]
    %v3441 = vld [vmem:[#allocation9 + $0xb08] sm:$0xff]
    %v3442 = vld [vmem:[#allocation9 + $0xb10] sm:$0xff]
    %v3443 = vld [vmem:[#allocation9 + $0xb18] sm:$0xff]
    %v3444 = vld [vmem:[#allocation9 + $0xb20] sm:$0xff]
    %v3445 = vld [vmem:[#allocation9 + $0xb28] sm:$0xff]
    %v3446 = vld [vmem:[#allocation9 + $0xb30] sm:$0xff]
    %v3447 = vld [vmem:[#allocation9 + $0xb38] sm:$0xff]
    %v3448 = vld [vmem:[#allocation9 + $0xb40] sm:$0xff]
    %v3449 = vld [vmem:[#allocation9 + $0xb48] sm:$0xff]
    %v3450 = vld [vmem:[#allocation9 + $0xb50] sm:$0xff]
    %v3451 = vld [vmem:[#allocation9 + $0xb58] sm:$0xff]
    %v3452 = vld [vmem:[#allocation9 + $0xb60] sm:$0xff]
    %v3453 = vld [vmem:[#allocation9 + $0xb68] sm:$0xff]
    %v3454 = vld [vmem:[#allocation9 + $0xb70] sm:$0xff]
    %v3455 = vld [vmem:[#allocation9 + $0xb78] sm:$0xff]
    %v3456 = vld [vmem:[#allocation9 + $0xb80] sm:$0xff]
    %v3457 = vld [vmem:[#allocation9 + $0xb88] sm:$0xff]
    %v3458 = vld [vmem:[#allocation9 + $0xb90] sm:$0xff]
    %v3459 = vld [vmem:[#allocation9 + $0xb98] sm:$0xff]
    %v3460 = vld [vmem:[#allocation9 + $0xba0] sm:$0xff]
    %v3461 = vld [vmem:[#allocation9 + $0xba8] sm:$0xff]
    %v3462 = vld [vmem:[#allocation9 + $0xbb0] sm:$0xff]
    %v3463 = vld [vmem:[#allocation9 + $0xbb8] sm:$0xff]
    %v3464 = vld [vmem:[#allocation9 + $0xbc0] sm:$0xff]
    %v3465 = vld [vmem:[#allocation9 + $0xbc8] sm:$0xff]
    %v3466 = vld [vmem:[#allocation9 + $0xbd0] sm:$0xff]
    %v3467 = vld [vmem:[#allocation9 + $0xbd8] sm:$0xff]
    %v3468 = vld [vmem:[#allocation9 + $0xbe0] sm:$0xff]
    %v3469 = vld [vmem:[#allocation9 + $0xbe8] sm:$0xff]
    %v3470 = vld [vmem:[#allocation9 + $0xbf0] sm:$0xff]
    %v3471 = vld [vmem:[#allocation9 + $0xbf8] sm:$0xff]
    %v3472 = vld [vmem:[#allocation9 + $0xc00] sm:$0xff]
    %v3473 = vld [vmem:[#allocation9 + $0xc08] sm:$0xff]
    %v3474 = vld [vmem:[#allocation9 + $0xc10] sm:$0xff]
    %v3475 = vld [vmem:[#allocation9 + $0xc18] sm:$0xff]
    %v3476 = vld [vmem:[#allocation9 + $0xc20] sm:$0xff]
    %v3477 = vld [vmem:[#allocation9 + $0xc28] sm:$0xff]
    %v3478 = vld [vmem:[#allocation9 + $0xc30] sm:$0xff]
    %v3479 = vld [vmem:[#allocation9 + $0xc38] sm:$0xff]
    %v3480 = vld [vmem:[#allocation9 + $0xc40] sm:$0xff]
    %v3481 = vld [vmem:[#allocation9 + $0xc48] sm:$0xff]
    %v3482 = vld [vmem:[#allocation9 + $0xc50] sm:$0xff]
    %v3483 = vld [vmem:[#allocation9 + $0xc58] sm:$0xff]
    %v3484 = vld [vmem:[#allocation9 + $0xc60] sm:$0xff]
    %v3485 = vld [vmem:[#allocation9 + $0xc68] sm:$0xff]
    %v3486 = vld [vmem:[#allocation9 + $0xc70] sm:$0xff]
    %v3487 = vld [vmem:[#allocation9 + $0xc78] sm:$0xff]
    %v3488 = vld [vmem:[#allocation9 + $0xc80] sm:$0xff]
    %v3489 = vld [vmem:[#allocation9 + $0xc88] sm:$0xff]
    %v3490 = vld [vmem:[#allocation9 + $0xc90] sm:$0xff]
    %v3491 = vld [vmem:[#allocation9 + $0xc98] sm:$0xff]
    %v3492 = vld [vmem:[#allocation9 + $0xca0] sm:$0xff]
    %v3493 = vld [vmem:[#allocation9 + $0xca8] sm:$0xff]
    %v3494 = vld [vmem:[#allocation9 + $0xcb0] sm:$0xff]
    %v3495 = vld [vmem:[#allocation9 + $0xcb8] sm:$0xff]
    %v3496 = vld [vmem:[#allocation9 + $0xcc0] sm:$0xff]
    %v3497 = vld [vmem:[#allocation9 + $0xcc8] sm:$0xff]
    %v3498 = vld [vmem:[#allocation9 + $0xcd0] sm:$0xff]
    %v3499 = vld [vmem:[#allocation9 + $0xcd8] sm:$0xff]
    %v3500 = vld [vmem:[#allocation9 + $0xce0] sm:$0xff]
    %v3501 = vld [vmem:[#allocation9 + $0xce8] sm:$0xff]
    %v3502 = vld [vmem:[#allocation9 + $0xcf0] sm:$0xff]
    %v3503 = vld [vmem:[#allocation9 + $0xcf8] sm:$0xff]
    %v3504 = vld [vmem:[#allocation9 + $0xd00] sm:$0xff]
    %v3505 = vld [vmem:[#allocation9 + $0xd08] sm:$0xff]
    %v3506 = vld [vmem:[#allocation9 + $0xd10] sm:$0xff]
    %v3507 = vld [vmem:[#allocation9 + $0xd18] sm:$0xff]
    %v3508 = vld [vmem:[#allocation9 + $0xd20] sm:$0xff]
    %v3509 = vld [vmem:[#allocation9 + $0xd28] sm:$0xff]
    %v3510 = vld [vmem:[#allocation9 + $0xd30] sm:$0xff]
    %v3511 = vld [vmem:[#allocation9 + $0xd38] sm:$0xff]
    %v3512 = vld [vmem:[#allocation9 + $0xd40] sm:$0xff]
    %v3513 = vld [vmem:[#allocation9 + $0xd48] sm:$0xff]
    %v3514 = vld [vmem:[#allocation9 + $0xd50] sm:$0xff]
    %v3515 = vld [vmem:[#allocation9 + $0xd58] sm:$0xff]
    %v3516 = vld [vmem:[#allocation9 + $0xd60] sm:$0xff]
    %v3517 = vld [vmem:[#allocation9 + $0xd68] sm:$0xff]
    %v3518 = vld [vmem:[#allocation9 + $0xd70] sm:$0xff]
    %v3519 = vld [vmem:[#allocation9 + $0xd78] sm:$0xff]
    %v3520 = vld [vmem:[#allocation9 + $0xd80] sm:$0xff]
    %v3521 = vld [vmem:[#allocation9 + $0xd88] sm:$0xff]
    %v3522 = vld [vmem:[#allocation9 + $0xd90] sm:$0xff]
    %v3523 = vld [vmem:[#allocation9 + $0xd98] sm:$0xff]
    %v3524 = vld [vmem:[#allocation9 + $0xda0] sm:$0xff]
    %v3525 = vld [vmem:[#allocation9 + $0xda8] sm:$0xff]
    %v3526 = vld [vmem:[#allocation9 + $0xdb0] sm:$0xff]
    %v3527 = vld [vmem:[#allocation9 + $0xdb8] sm:$0xff]
    %v3528 = vld [vmem:[#allocation9 + $0xdc0] sm:$0xff]
    %v3529 = vld [vmem:[#allocation9 + $0xdc8] sm:$0xff]
    %v3530 = vld [vmem:[#allocation9 + $0xdd0] sm:$0xff]
    %v3531 = vld [vmem:[#allocation9 + $0xdd8] sm:$0xff]
    %v3532 = vld [vmem:[#allocation9 + $0xde0] sm:$0xff]
    %v3533 = vld [vmem:[#allocation9 + $0xde8] sm:$0xff]
    %v3534 = vld [vmem:[#allocation9 + $0xdf0] sm:$0xff]
    %v3535 = vld [vmem:[#allocation9 + $0xdf8] sm:$0xff]
    %v3536 = vld [vmem:[#allocation9 + $0xe00] sm:$0xff]
    %v3537 = vld [vmem:[#allocation9 + $0xe08] sm:$0xff]
    %v3538 = vld [vmem:[#allocation9 + $0xe10] sm:$0xff]
    %v3539 = vld [vmem:[#allocation9 + $0xe18] sm:$0xff]
    %v3540 = vld [vmem:[#allocation9 + $0xe20] sm:$0xff]
    %v3541 = vld [vmem:[#allocation9 + $0xe28] sm:$0xff]
    %v3542 = vld [vmem:[#allocation9 + $0xe30] sm:$0xff]
    %v3543 = vld [vmem:[#allocation9 + $0xe38] sm:$0xff]
    %v3544 = vld [vmem:[#allocation9 + $0xe40] sm:$0xff]
    %v3545 = vld [vmem:[#allocation9 + $0xe48] sm:$0xff]
    %v3546 = vld [vmem:[#allocation9 + $0xe50] sm:$0xff]
    %v3547 = vld [vmem:[#allocation9 + $0xe58] sm:$0xff]
    %v3548 = vld [vmem:[#allocation9 + $0xe60] sm:$0xff]
    %v3549 = vld [vmem:[#allocation9 + $0xe68] sm:$0xff]
    %v3550 = vld [vmem:[#allocation9 + $0xe70] sm:$0xff]
    %v3551 = vld [vmem:[#allocation9 + $0xe78] sm:$0xff]
    %v3552 = vld [vmem:[#allocation9 + $0xe80] sm:$0xff]
    %v3553 = vld [vmem:[#allocation9 + $0xe88] sm:$0xff]
    %v3554 = vld [vmem:[#allocation9 + $0xe90] sm:$0xff]
    %v3555 = vld [vmem:[#allocation9 + $0xe98] sm:$0xff]
    %v3556 = vld [vmem:[#allocation9 + $0xea0] sm:$0xff]
    %v3557 = vld [vmem:[#allocation9 + $0xea8] sm:$0xff]
    %v3558 = vld [vmem:[#allocation9 + $0xeb0] sm:$0xff]
    %v3559 = vld [vmem:[#allocation9 + $0xeb8] sm:$0xff]
    %v3560 = vld [vmem:[#allocation9 + $0xec0] sm:$0xff]
    %v3561 = vld [vmem:[#allocation9 + $0xec8] sm:$0xff]
    %v3562 = vld [vmem:[#allocation9 + $0xed0] sm:$0xff]
    %v3563 = vld [vmem:[#allocation9 + $0xed8] sm:$0xff]
    %v3564 = vld [vmem:[#allocation9 + $0xee0] sm:$0xff]
    %v3565 = vld [vmem:[#allocation9 + $0xee8] sm:$0xff]
    %v3566 = vld [vmem:[#allocation9 + $0xef0] sm:$0xff]
    %v3567 = vld [vmem:[#allocation9 + $0xef8] sm:$0xff]
    %v3568 = vld [vmem:[#allocation9 + $0xf00] sm:$0xff]
    %v3569 = vld [vmem:[#allocation9 + $0xf08] sm:$0xff]
    %v3570 = vld [vmem:[#allocation9 + $0xf10] sm:$0xff]
    %v3571 = vld [vmem:[#allocation9 + $0xf18] sm:$0xff]
    %v3572 = vld [vmem:[#allocation9 + $0xf20] sm:$0xff]
    %v3573 = vld [vmem:[#allocation9 + $0xf28] sm:$0xff]
    %v3574 = vld [vmem:[#allocation9 + $0xf30] sm:$0xff]
    %v3575 = vld [vmem:[#allocation9 + $0xf38] sm:$0xff]
    %v3576 = vld [vmem:[#allocation9 + $0xf40] sm:$0xff]
    %v3577 = vld [vmem:[#allocation9 + $0xf48] sm:$0xff]
    %v3578 = vld [vmem:[#allocation9 + $0xf50] sm:$0xff]
    %v3579 = vld [vmem:[#allocation9 + $0xf58] sm:$0xff]
    %v3580 = vld [vmem:[#allocation9 + $0xf60] sm:$0xff]
    %v3581 = vld [vmem:[#allocation9 + $0xf68] sm:$0xff]
    %v3582 = vld [vmem:[#allocation9 + $0xf70] sm:$0xff]
    %v3583 = vld [vmem:[#allocation9 + $0xf78] sm:$0xff]
    %v3584 = vld [vmem:[#allocation9 + $0xf80] sm:$0xff]
    %v3585 = vld [vmem:[#allocation9 + $0xf88] sm:$0xff]
    %v3586 = vld [vmem:[#allocation9 + $0xf90] sm:$0xff]
    %v3587 = vld [vmem:[#allocation9 + $0xf98] sm:$0xff]
    %v3588 = vld [vmem:[#allocation9 + $0xfa0] sm:$0xff]
    %v3589 = vld [vmem:[#allocation9 + $0xfa8] sm:$0xff]
    %v3590 = vld [vmem:[#allocation9 + $0xfb0] sm:$0xff]
    %v3591 = vld [vmem:[#allocation9 + $0xfb8] sm:$0xff]
    %v3592 = vld [vmem:[#allocation9 + $0xfc0] sm:$0xff]
    %v3593 = vld [vmem:[#allocation9 + $0xfc8] sm:$0xff]
    %v3594 = vld [vmem:[#allocation9 + $0xfd0] sm:$0xff]
    %v3595 = vld [vmem:[#allocation9 + $0xfd8] sm:$0xff]
    %v3596 = vld [vmem:[#allocation9 + $0xfe0] sm:$0xff]
    %v3597 = vld [vmem:[#allocation9 + $0xfe8] sm:$0xff]
    %v3598 = vld [vmem:[#allocation9 + $0xff0] sm:$0xff]
    %v3599 = vld [vmem:[#allocation9 + $0xff8] sm:$0xff]
    %v3600 = vld [vmem:[#allocation9 + $0x1000] sm:$0xff]
    %v3601 = vld [vmem:[#allocation9 + $0x1008] sm:$0xff]
    %v3602 = vld [vmem:[#allocation9 + $0x1010] sm:$0xff]
    %v3603 = vld [vmem:[#allocation9 + $0x1018] sm:$0xff]
    %v3604 = vld [vmem:[#allocation9 + $0x1020] sm:$0xff]
    %v3605 = vld [vmem:[#allocation9 + $0x1028] sm:$0xff]
    %v3606 = vld [vmem:[#allocation9 + $0x1030] sm:$0xff]
    %v3607 = vld [vmem:[#allocation9 + $0x1038] sm:$0xff]
    %v3608 = vld [vmem:[#allocation9 + $0x1040] sm:$0xff]
    %v3609 = vld [vmem:[#allocation9 + $0x1048] sm:$0xff]
    %v3610 = vld [vmem:[#allocation9 + $0x1050] sm:$0xff]
    %v3611 = vld [vmem:[#allocation9 + $0x1058] sm:$0xff]
    %v3612 = vld [vmem:[#allocation9 + $0x1060] sm:$0xff]
    %v3613 = vld [vmem:[#allocation9 + $0x1068] sm:$0xff]
    %v3614 = vld [vmem:[#allocation9 + $0x1070] sm:$0xff]
    %v3615 = vld [vmem:[#allocation9 + $0x1078] sm:$0xff]
    %v3616 = vld [vmem:[#allocation9 + $0x1080] sm:$0xff]
    %v3617 = vld [vmem:[#allocation9 + $0x1088] sm:$0xff]
    %v3618 = vld [vmem:[#allocation9 + $0x1090] sm:$0xff]
    %v3619 = vld [vmem:[#allocation9 + $0x1098] sm:$0xff]
    %v3620 = vld [vmem:[#allocation9 + $0x10a0] sm:$0xff]
    %v3621 = vld [vmem:[#allocation9 + $0x10a8] sm:$0xff]
    %v3622 = vld [vmem:[#allocation9 + $0x10b0] sm:$0xff]
    %v3623 = vld [vmem:[#allocation9 + $0x10b8] sm:$0xff]
    %v3624 = vld [vmem:[#allocation9 + $0x10c0] sm:$0xff]
    %v3625 = vld [vmem:[#allocation9 + $0x10c8] sm:$0xff]
    %v3626 = vld [vmem:[#allocation9 + $0x10d0] sm:$0xff]
    %v3627 = vld [vmem:[#allocation9 + $0x10d8] sm:$0xff]
    %v3628 = vld [vmem:[#allocation9 + $0x10e0] sm:$0xff]
    %v3629 = vld [vmem:[#allocation9 + $0x10e8] sm:$0xff]
    %v3630 = vld [vmem:[#allocation9 + $0x10f0] sm:$0xff]
    %v3631 = vld [vmem:[#allocation9 + $0x10f8] sm:$0xff]
    %v3632 = vld [vmem:[#allocation9 + $0x1100] sm:$0xff]
    %v3633 = vld [vmem:[#allocation9 + $0x1108] sm:$0xff]
    %v3634 = vld [vmem:[#allocation9 + $0x1110] sm:$0xff]
    %v3635 = vld [vmem:[#allocation9 + $0x1118] sm:$0xff]
    %v3636 = vld [vmem:[#allocation9 + $0x1120] sm:$0xff]
    %v3637 = vld [vmem:[#allocation9 + $0x1128] sm:$0xff]
    %v3638 = vld [vmem:[#allocation9 + $0x1130] sm:$0xff]
    %v3639 = vld [vmem:[#allocation9 + $0x1138] sm:$0xff]
    %v3640 = vld [vmem:[#allocation9 + $0x1140] sm:$0xff]
    %v3641 = vld [vmem:[#allocation9 + $0x1148] sm:$0xff]
    %v3642 = vld [vmem:[#allocation9 + $0x1150] sm:$0xff]
    %v3643 = vld [vmem:[#allocation9 + $0x1158] sm:$0xff]
    %v3644 = vld [vmem:[#allocation9 + $0x1160] sm:$0xff]
    %v3645 = vld [vmem:[#allocation9 + $0x1168] sm:$0xff]
    %v3646 = vld [vmem:[#allocation9 + $0x1170] sm:$0xff]
    %v3647 = vld [vmem:[#allocation9 + $0x1178] sm:$0xff]
    %v3648 = vld [vmem:[#allocation9 + $0x1180] sm:$0xff]
    %v3649 = vld [vmem:[#allocation9 + $0x1188] sm:$0xff]
    %v3650 = vld [vmem:[#allocation9 + $0x1190] sm:$0xff]
    %v3651 = vld [vmem:[#allocation9 + $0x1198] sm:$0xff]
    %v3652 = vld [vmem:[#allocation9 + $0x11a0] sm:$0xff]
    %v3653 = vld [vmem:[#allocation9 + $0x11a8] sm:$0xff]
    %v3654 = vld [vmem:[#allocation9 + $0x11b0] sm:$0xff]
    %v3655 = vld [vmem:[#allocation9 + $0x11b8] sm:$0xff]
    %v3656 = vld [vmem:[#allocation9 + $0x11c0] sm:$0xff]
    %v3657 = vld [vmem:[#allocation9 + $0x11c8] sm:$0xff]
    %v3658 = vld [vmem:[#allocation9 + $0x11d0] sm:$0xff]
    %v3659 = vld [vmem:[#allocation9 + $0x11d8] sm:$0xff]
    %v3660 = vld [vmem:[#allocation9 + $0x11e0] sm:$0xff]
    %v3661 = vld [vmem:[#allocation9 + $0x11e8] sm:$0xff]
    %v3662 = vld [vmem:[#allocation9 + $0x11f0] sm:$0xff]
    %v3663 = vld [vmem:[#allocation9 + $0x11f8] sm:$0xff]
    %v3664 = vld [vmem:[#allocation9 + $0x1200] sm:$0xff]
    %v3665 = vld [vmem:[#allocation9 + $0x1208] sm:$0xff]
    %v3666 = vld [vmem:[#allocation9 + $0x1210] sm:$0xff]
    %v3667 = vld [vmem:[#allocation9 + $0x1218] sm:$0xff]
    %v3668 = vld [vmem:[#allocation9 + $0x1220] sm:$0xff]
    %v3669 = vld [vmem:[#allocation9 + $0x1228] sm:$0xff]
    %v3670 = vld [vmem:[#allocation9 + $0x1230] sm:$0xff]
    %v3671 = vld [vmem:[#allocation9 + $0x1238] sm:$0xff]
    %v3672 = vld [vmem:[#allocation9 + $0x1240] sm:$0xff]
    %v3673 = vld [vmem:[#allocation9 + $0x1248] sm:$0xff]
    %v3674 = vld [vmem:[#allocation9 + $0x1250] sm:$0xff]
    %v3675 = vld [vmem:[#allocation9 + $0x1258] sm:$0xff]
    %v3676 = vld [vmem:[#allocation9 + $0x1260] sm:$0xff]
    %v3677 = vld [vmem:[#allocation9 + $0x1268] sm:$0xff]
    %v3678 = vld [vmem:[#allocation9 + $0x1270] sm:$0xff]
    %v3679 = vld [vmem:[#allocation9 + $0x1278] sm:$0xff]
    %v3680 = vld [vmem:[#allocation9 + $0x1280] sm:$0xff]
    %v3681 = vld [vmem:[#allocation9 + $0x1288] sm:$0xff]
    %v3682 = vld [vmem:[#allocation9 + $0x1290] sm:$0xff]
    %v3683 = vld [vmem:[#allocation9 + $0x1298] sm:$0xff]
    %v3684 = vld [vmem:[#allocation9 + $0x12a0] sm:$0xff]
    %v3685 = vld [vmem:[#allocation9 + $0x12a8] sm:$0xff]
    %v3686 = vld [vmem:[#allocation9 + $0x12b0] sm:$0xff]
    %v3687 = vld [vmem:[#allocation9 + $0x12b8] sm:$0xff]
    %v3688 = vld [vmem:[#allocation9 + $0x12c0] sm:$0xff]
    %v3689 = vld [vmem:[#allocation9 + $0x12c8] sm:$0xff]
    %v3690 = vld [vmem:[#allocation9 + $0x12d0] sm:$0xff]
    %v3691 = vld [vmem:[#allocation9 + $0x12d8] sm:$0xff]
    %v3692 = vld [vmem:[#allocation9 + $0x12e0] sm:$0xff]
    %v3693 = vld [vmem:[#allocation9 + $0x12e8] sm:$0xff]
    %v3694 = vld [vmem:[#allocation9 + $0x12f0] sm:$0xff]
    %v3695 = vld [vmem:[#allocation9 + $0x12f8] sm:$0xff]
    %v3696 = vld [vmem:[#allocation9 + $0x1300] sm:$0xff]
    %v3697 = vld [vmem:[#allocation9 + $0x1308] sm:$0xff]
    %v3698 = vld [vmem:[#allocation9 + $0x1310] sm:$0xff]
    %v3699 = vld [vmem:[#allocation9 + $0x1318] sm:$0xff]
    %v3700 = vld [vmem:[#allocation9 + $0x1320] sm:$0xff]
    %v3701 = vld [vmem:[#allocation9 + $0x1328] sm:$0xff]
    %v3702 = vld [vmem:[#allocation9 + $0x1330] sm:$0xff]
    %v3703 = vld [vmem:[#allocation9 + $0x1338] sm:$0xff]
    %v3704 = vld [vmem:[#allocation9 + $0x1340] sm:$0xff]
    %v3705 = vld [vmem:[#allocation9 + $0x1348] sm:$0xff]
    %v3706 = vld [vmem:[#allocation9 + $0x1350] sm:$0xff]
    %v3707 = vld [vmem:[#allocation9 + $0x1358] sm:$0xff]
    %v3708 = vld [vmem:[#allocation9 + $0x1360] sm:$0xff]
    %v3709 = vld [vmem:[#allocation9 + $0x1368] sm:$0xff]
    %v3710 = vld [vmem:[#allocation9 + $0x1370] sm:$0xff]
    %v3711 = vld [vmem:[#allocation9 + $0x1378] sm:$0xff]
    %v3712 = vld [vmem:[#allocation9 + $0x1380] sm:$0xff]
    %v3713 = vld [vmem:[#allocation9 + $0x1388] sm:$0xff]
    %v3714 = vld [vmem:[#allocation9 + $0x1390] sm:$0xff]
    %v3715 = vld [vmem:[#allocation9 + $0x1398] sm:$0xff]
    %v3716 = vld [vmem:[#allocation9 + $0x13a0] sm:$0xff]
    %v3717 = vld [vmem:[#allocation9 + $0x13a8] sm:$0xff]
    %v3718 = vld [vmem:[#allocation9 + $0x13b0] sm:$0xff]
    %v3719 = vld [vmem:[#allocation9 + $0x13b8] sm:$0xff]
    %v3720 = vld [vmem:[#allocation9 + $0x13c0] sm:$0xff]
    %v3721 = vld [vmem:[#allocation9 + $0x13c8] sm:$0xff]
    %v3722 = vld [vmem:[#allocation9 + $0x13d0] sm:$0xff]
    %v3723 = vld [vmem:[#allocation9 + $0x13d8] sm:$0xff]
    %v3724 = vld [vmem:[#allocation9 + $0x13e0] sm:$0xff]
    %v3725 = vld [vmem:[#allocation9 + $0x13e8] sm:$0xff]
    %v3726 = vld [vmem:[#allocation9 + $0x13f0] sm:$0xff]
    %v3727 = vld [vmem:[#allocation9 + $0x13f8] sm:$0xff]
    %v3728 = vld [vmem:[#allocation9 + $0x1400] sm:$0xff]
    %v3729 = vld [vmem:[#allocation9 + $0x1408] sm:$0xff]
    %v3730 = vld [vmem:[#allocation9 + $0x1410] sm:$0xff]
    %v3731 = vld [vmem:[#allocation9 + $0x1418] sm:$0xff]
    %v3732 = vld [vmem:[#allocation9 + $0x1420] sm:$0xff]
    %v3733 = vld [vmem:[#allocation9 + $0x1428] sm:$0xff]
    %v3734 = vld [vmem:[#allocation9 + $0x1430] sm:$0xff]
    %v3735 = vld [vmem:[#allocation9 + $0x1438] sm:$0xff]
    %v3736 = vld [vmem:[#allocation9 + $0x1440] sm:$0xff]
    %v3737 = vld [vmem:[#allocation9 + $0x1448] sm:$0xff]
    %v3738 = vld [vmem:[#allocation9 + $0x1450] sm:$0xff]
    %v3739 = vld [vmem:[#allocation9 + $0x1458] sm:$0xff]
    %v3740 = vld [vmem:[#allocation9 + $0x1460] sm:$0xff]
    %v3741 = vld [vmem:[#allocation9 + $0x1468] sm:$0xff]
    %v3742 = vld [vmem:[#allocation9 + $0x1470] sm:$0xff]
    %v3743 = vld [vmem:[#allocation9 + $0x1478] sm:$0xff]
    %v3744 = vld [vmem:[#allocation9 + $0x1480] sm:$0xff]
    %v3745 = vld [vmem:[#allocation9 + $0x1488] sm:$0xff]
    %v3746 = vld [vmem:[#allocation9 + $0x1490] sm:$0xff]
    %v3747 = vld [vmem:[#allocation9 + $0x1498] sm:$0xff]
    %v3748 = vld [vmem:[#allocation9 + $0x14a0] sm:$0xff]
    %v3749 = vld [vmem:[#allocation9 + $0x14a8] sm:$0xff]
    %v3750 = vld [vmem:[#allocation9 + $0x14b0] sm:$0xff]
    %v3751 = vld [vmem:[#allocation9 + $0x14b8] sm:$0xff]
    %v3752 = vld [vmem:[#allocation9 + $0x14c0] sm:$0xff]
    %v3753 = vld [vmem:[#allocation9 + $0x14c8] sm:$0xff]
    %v3754 = vld [vmem:[#allocation9 + $0x14d0] sm:$0xff]
    %v3755 = vld [vmem:[#allocation9 + $0x14d8] sm:$0xff]
    %v3756 = vld [vmem:[#allocation9 + $0x14e0] sm:$0xff]
    %v3757 = vld [vmem:[#allocation9 + $0x14e8] sm:$0xff]
    %v3758 = vld [vmem:[#allocation9 + $0x14f0] sm:$0xff]
    %v3759 = vld [vmem:[#allocation9 + $0x14f8] sm:$0xff]
    %v3760 = vld [vmem:[#allocation9 + $0x1500] sm:$0xff]
    %v3761 = vld [vmem:[#allocation9 + $0x1508] sm:$0xff]
    %v3762 = vld [vmem:[#allocation9 + $0x1510] sm:$0xff]
    %v3763 = vld [vmem:[#allocation9 + $0x1518] sm:$0xff]
    %v3764 = vld [vmem:[#allocation9 + $0x1520] sm:$0xff]
    %v3765 = vld [vmem:[#allocation9 + $0x1528] sm:$0xff]
    %v3766 = vld [vmem:[#allocation9 + $0x1530] sm:$0xff]
    %v3767 = vld [vmem:[#allocation9 + $0x1538] sm:$0xff]
    %v3768 = vld [vmem:[#allocation9 + $0x1540] sm:$0xff]
    %v3769 = vld [vmem:[#allocation9 + $0x1548] sm:$0xff]
    %v3770 = vld [vmem:[#allocation9 + $0x1550] sm:$0xff]
    %v3771 = vld [vmem:[#allocation9 + $0x1558] sm:$0xff]
    %v3772 = vld [vmem:[#allocation9 + $0x1560] sm:$0xff]
    %v3773 = vld [vmem:[#allocation9 + $0x1568] sm:$0xff]
    %v3774 = vld [vmem:[#allocation9 + $0x1570] sm:$0xff]
    %v3775 = vld [vmem:[#allocation9 + $0x1578] sm:$0xff]
    %v3776 = vld [vmem:[#allocation9 + $0x1580] sm:$0xff]
    %v3777 = vld [vmem:[#allocation9 + $0x1588] sm:$0xff]
    %v3778 = vld [vmem:[#allocation9 + $0x1590] sm:$0xff]
    %v3779 = vld [vmem:[#allocation9 + $0x1598] sm:$0xff]
    %v3780 = vld [vmem:[#allocation9 + $0x15a0] sm:$0xff]
    %v3781 = vld [vmem:[#allocation9 + $0x15a8] sm:$0xff]
    %v3782 = vld [vmem:[#allocation9 + $0x15b0] sm:$0xff]
    %v3783 = vld [vmem:[#allocation9 + $0x15b8] sm:$0xff]
    %v3784 = vld [vmem:[#allocation9 + $0x15c0] sm:$0xff]
    %v3785 = vld [vmem:[#allocation9 + $0x15c8] sm:$0xff]
    %v3786 = vld [vmem:[#allocation9 + $0x15d0] sm:$0xff]
    %v3787 = vld [vmem:[#allocation9 + $0x15d8] sm:$0xff]
    %v3788 = vld [vmem:[#allocation9 + $0x15e0] sm:$0xff]
    %v3789 = vld [vmem:[#allocation9 + $0x15e8] sm:$0xff]
    %v3790 = vld [vmem:[#allocation9 + $0x15f0] sm:$0xff]
    %v3791 = vld [vmem:[#allocation9 + $0x15f8] sm:$0xff]
    %v3792 = vld [vmem:[#allocation9 + $0x1600] sm:$0xff]
    %v3793 = vld [vmem:[#allocation9 + $0x1608] sm:$0xff]
    %v3794 = vld [vmem:[#allocation9 + $0x1610] sm:$0xff]
    %v3795 = vld [vmem:[#allocation9 + $0x1618] sm:$0xff]
    %v3796 = vld [vmem:[#allocation9 + $0x1620] sm:$0xff]
    %v3797 = vld [vmem:[#allocation9 + $0x1628] sm:$0xff]
    %v3798 = vld [vmem:[#allocation9 + $0x1630] sm:$0xff]
    %v3799 = vld [vmem:[#allocation9 + $0x1638] sm:$0xff]
    %v3800 = vld [vmem:[#allocation9 + $0x1640] sm:$0xff]
    %v3801 = vld [vmem:[#allocation9 + $0x1648] sm:$0xff]
    %v3802 = vld [vmem:[#allocation9 + $0x1650] sm:$0xff]
    %v3803 = vld [vmem:[#allocation9 + $0x1658] sm:$0xff]
    %v3804 = vld [vmem:[#allocation9 + $0x1660] sm:$0xff]
    %v3805 = vld [vmem:[#allocation9 + $0x1668] sm:$0xff]
    %v3806 = vld [vmem:[#allocation9 + $0x1670] sm:$0xff]
    %v3807 = vld [vmem:[#allocation9 + $0x1678] sm:$0xff]
    %v3808 = vld [vmem:[#allocation9 + $0x1680] sm:$0xff]
    %v3809 = vld [vmem:[#allocation9 + $0x1688] sm:$0xff]
    %v3810 = vld [vmem:[#allocation9 + $0x1690] sm:$0xff]
    %v3811 = vld [vmem:[#allocation9 + $0x1698] sm:$0xff]
    %v3812 = vld [vmem:[#allocation9 + $0x16a0] sm:$0xff]
    %v3813 = vld [vmem:[#allocation9 + $0x16a8] sm:$0xff]
    %v3814 = vld [vmem:[#allocation9 + $0x16b0] sm:$0xff]
    %v3815 = vld [vmem:[#allocation9 + $0x16b8] sm:$0xff]
    %v3816 = vld [vmem:[#allocation9 + $0x16c0] sm:$0xff]
    %v3817 = vld [vmem:[#allocation9 + $0x16c8] sm:$0xff]
    %v3818 = vld [vmem:[#allocation9 + $0x16d0] sm:$0xff]
    %v3819 = vld [vmem:[#allocation9 + $0x16d8] sm:$0xff]
    %v3820 = vld [vmem:[#allocation9 + $0x16e0] sm:$0xff]
    %v3821 = vld [vmem:[#allocation9 + $0x16e8] sm:$0xff]
    %v3822 = vld [vmem:[#allocation9 + $0x16f0] sm:$0xff]
    %v3823 = vld [vmem:[#allocation9 + $0x16f8] sm:$0xff]
    %v3824 = vld [vmem:[#allocation9 + $0x1700] sm:$0xff]
    %v3825 = vld [vmem:[#allocation9 + $0x1708] sm:$0xff]
    %v3826 = vld [vmem:[#allocation9 + $0x1710] sm:$0xff]
    %v3827 = vld [vmem:[#allocation9 + $0x1718] sm:$0xff]
    %v3828 = vld [vmem:[#allocation9 + $0x1720] sm:$0xff]
    %v3829 = vld [vmem:[#allocation9 + $0x1728] sm:$0xff]
    %v3830 = vld [vmem:[#allocation9 + $0x1730] sm:$0xff]
    %v3831 = vld [vmem:[#allocation9 + $0x1738] sm:$0xff]
    %v3832 = vld [vmem:[#allocation9 + $0x1740] sm:$0xff]
    %v3833 = vld [vmem:[#allocation9 + $0x1748] sm:$0xff]
    %v3834 = vld [vmem:[#allocation9 + $0x1750] sm:$0xff]
    %v3835 = vld [vmem:[#allocation9 + $0x1758] sm:$0xff]
    %v3836 = vld [vmem:[#allocation9 + $0x1760] sm:$0xff]
    %v3837 = vld [vmem:[#allocation9 + $0x1768] sm:$0xff]
    %v3838 = vld [vmem:[#allocation9 + $0x1770] sm:$0xff]
    %v3839 = vld [vmem:[#allocation9 + $0x1778] sm:$0xff]
    %v3840 = vld [vmem:[#allocation9 + $0x1780] sm:$0xff]
    %v3841 = vld [vmem:[#allocation9 + $0x1788] sm:$0xff]
    %v3842 = vld [vmem:[#allocation9 + $0x1790] sm:$0xff]
    %v3843 = vld [vmem:[#allocation9 + $0x1798] sm:$0xff]
    %v3844 = vld [vmem:[#allocation9 + $0x17a0] sm:$0xff]
    %v3845 = vld [vmem:[#allocation9 + $0x17a8] sm:$0xff]
    %v3846 = vld [vmem:[#allocation9 + $0x17b0] sm:$0xff]
    %v3847 = vld [vmem:[#allocation9 + $0x17b8] sm:$0xff]
    %v3848 = vld [vmem:[#allocation9 + $0x17c0] sm:$0xff]
    %v3849 = vld [vmem:[#allocation9 + $0x17c8] sm:$0xff]
    %v3850 = vld [vmem:[#allocation9 + $0x17d0] sm:$0xff]
    %v3851 = vld [vmem:[#allocation9 + $0x17d8] sm:$0xff]
    %v3852 = vld [vmem:[#allocation9 + $0x17e0] sm:$0xff]
    %v3853 = vld [vmem:[#allocation9 + $0x17e8] sm:$0xff]
    %v3854 = vld [vmem:[#allocation9 + $0x17f0] sm:$0xff]
    %v3855 = vld [vmem:[#allocation9 + $0x17f8] sm:$0xff]
    %v3856 = vld [vmem:[#allocation9 + $0x1800] sm:$0xff]
    %v3857 = vld [vmem:[#allocation9 + $0x1808] sm:$0xff]
    %v3858 = vld [vmem:[#allocation9 + $0x1810] sm:$0xff]
    %v3859 = vld [vmem:[#allocation9 + $0x1818] sm:$0xff]
    %v3860 = vld [vmem:[#allocation9 + $0x1820] sm:$0xff]
    %v3861 = vld [vmem:[#allocation9 + $0x1828] sm:$0xff]
    %v3862 = vld [vmem:[#allocation9 + $0x1830] sm:$0xff]
    %v3863 = vld [vmem:[#allocation9 + $0x1838] sm:$0xff]
    %v3864 = vld [vmem:[#allocation9 + $0x1840] sm:$0xff]
    %v3865 = vld [vmem:[#allocation9 + $0x1848] sm:$0xff]
    %v3866 = vld [vmem:[#allocation9 + $0x1850] sm:$0xff]
    %v3867 = vld [vmem:[#allocation9 + $0x1858] sm:$0xff]
    %v3868 = vld [vmem:[#allocation9 + $0x1860] sm:$0xff]
    %v3869 = vld [vmem:[#allocation9 + $0x1868] sm:$0xff]
    %v3870 = vld [vmem:[#allocation9 + $0x1870] sm:$0xff]
    %v3871 = vld [vmem:[#allocation9 + $0x1878] sm:$0xff]
    %v3872 = vld [vmem:[#allocation9 + $0x1880] sm:$0xff]
    %v3873 = vld [vmem:[#allocation9 + $0x1888] sm:$0xff]
    %v3874 = vld [vmem:[#allocation9 + $0x1890] sm:$0xff]
    %v3875 = vld [vmem:[#allocation9 + $0x1898] sm:$0xff]
    %v3876 = vld [vmem:[#allocation9 + $0x18a0] sm:$0xff]
    %v3877 = vld [vmem:[#allocation9 + $0x18a8] sm:$0xff]
    %v3878 = vld [vmem:[#allocation9 + $0x18b0] sm:$0xff]
    %v3879 = vld [vmem:[#allocation9 + $0x18b8] sm:$0xff]
    %v3880 = vld [vmem:[#allocation9 + $0x18c0] sm:$0xff]
    %v3881 = vld [vmem:[#allocation9 + $0x18c8] sm:$0xff]
    %v3882 = vld [vmem:[#allocation9 + $0x18d0] sm:$0xff]
    %v3883 = vld [vmem:[#allocation9 + $0x18d8] sm:$0xff]
    %v3884 = vld [vmem:[#allocation9 + $0x18e0] sm:$0xff]
    %v3885 = vld [vmem:[#allocation9 + $0x18e8] sm:$0xff]
    %v3886 = vld [vmem:[#allocation9 + $0x18f0] sm:$0xff]
    %v3887 = vld [vmem:[#allocation9 + $0x18f8] sm:$0xff]
    %v3888 = vld [vmem:[#allocation9 + $0x1900] sm:$0xff]
    %v3889 = vld [vmem:[#allocation9 + $0x1908] sm:$0xff]
    %v3890 = vld [vmem:[#allocation9 + $0x1910] sm:$0xff]
    %v3891 = vld [vmem:[#allocation9 + $0x1918] sm:$0xff]
    %v3892 = vld [vmem:[#allocation9 + $0x1920] sm:$0xff]
    %v3893 = vld [vmem:[#allocation9 + $0x1928] sm:$0xff]
    %v3894 = vld [vmem:[#allocation9 + $0x1930] sm:$0xff]
    %v3895 = vld [vmem:[#allocation9 + $0x1938] sm:$0xff]
    %v3896 = vld [vmem:[#allocation9 + $0x1940] sm:$0xff]
    %v3897 = vld [vmem:[#allocation9 + $0x1948] sm:$0xff]
    %v3898 = vld [vmem:[#allocation9 + $0x1950] sm:$0xff]
    %v3899 = vld [vmem:[#allocation9 + $0x1958] sm:$0xff]
    %v3900 = vld [vmem:[#allocation9 + $0x1960] sm:$0xff]
    %v3901 = vld [vmem:[#allocation9 + $0x1968] sm:$0xff]
    %v3902 = vld [vmem:[#allocation9 + $0x1970] sm:$0xff]
    %v3903 = vld [vmem:[#allocation9 + $0x1978] sm:$0xff]
    %v3904 = vld [vmem:[#allocation9 + $0x1980] sm:$0xff]
    %v3905 = vld [vmem:[#allocation9 + $0x1988] sm:$0xff]
    %v3906 = vld [vmem:[#allocation9 + $0x1990] sm:$0xff]
    %v3907 = vld [vmem:[#allocation9 + $0x1998] sm:$0xff]
    %v3908 = vld [vmem:[#allocation9 + $0x19a0] sm:$0xff]
    %v3909 = vld [vmem:[#allocation9 + $0x19a8] sm:$0xff]
    %v3910 = vld [vmem:[#allocation9 + $0x19b0] sm:$0xff]
    %v3911 = vld [vmem:[#allocation9 + $0x19b8] sm:$0xff]
    %v3912 = vld [vmem:[#allocation9 + $0x19c0] sm:$0xff]
    %v3913 = vld [vmem:[#allocation9 + $0x19c8] sm:$0xff]
    %v3914 = vld [vmem:[#allocation9 + $0x19d0] sm:$0xff]
    %v3915 = vld [vmem:[#allocation9 + $0x19d8] sm:$0xff]
    %v3916 = vld [vmem:[#allocation9 + $0x19e0] sm:$0xff]
    %v3917 = vld [vmem:[#allocation9 + $0x19e8] sm:$0xff]
    %v3918 = vld [vmem:[#allocation9 + $0x19f0] sm:$0xff]
    %v3919 = vld [vmem:[#allocation9 + $0x19f8] sm:$0xff]
    %v3920 = vld [vmem:[#allocation9 + $0x1a00] sm:$0xff]
    %v3921 = vld [vmem:[#allocation9 + $0x1a08] sm:$0xff]
    %v3922 = vld [vmem:[#allocation9 + $0x1a10] sm:$0xff]
    %v3923 = vld [vmem:[#allocation9 + $0x1a18] sm:$0xff]
    %v3924 = vld [vmem:[#allocation9 + $0x1a20] sm:$0xff]
    %v3925 = vld [vmem:[#allocation9 + $0x1a28] sm:$0xff]
    %v3926 = vld [vmem:[#allocation9 + $0x1a30] sm:$0xff]
    %v3927 = vld [vmem:[#allocation9 + $0x1a38] sm:$0xff]
    %v3928 = vld [vmem:[#allocation9 + $0x1a40] sm:$0xff]
    %v3929 = vld [vmem:[#allocation9 + $0x1a48] sm:$0xff]
    %v3930 = vld [vmem:[#allocation9 + $0x1a50] sm:$0xff]
    %v3931 = vld [vmem:[#allocation9 + $0x1a58] sm:$0xff]
    %v3932 = vld [vmem:[#allocation9 + $0x1a60] sm:$0xff]
    %v3933 = vld [vmem:[#allocation9 + $0x1a68] sm:$0xff]
    %v3934 = vld [vmem:[#allocation9 + $0x1a70] sm:$0xff]
    %v3935 = vld [vmem:[#allocation9 + $0x1a78] sm:$0xff]
    %v3936 = vld [vmem:[#allocation9 + $0x1a80] sm:$0xff]
    %v3937 = vld [vmem:[#allocation9 + $0x1a88] sm:$0xff]
    %v3938 = vld [vmem:[#allocation9 + $0x1a90] sm:$0xff]
    %v3939 = vld [vmem:[#allocation9 + $0x1a98] sm:$0xff]
    %v3940 = vld [vmem:[#allocation9 + $0x1aa0] sm:$0xff]
    %v3941 = vld [vmem:[#allocation9 + $0x1aa8] sm:$0xff]
    %v3942 = vld [vmem:[#allocation9 + $0x1ab0] sm:$0xff]
    %v3943 = vld [vmem:[#allocation9 + $0x1ab8] sm:$0xff]
    %v3944 = vld [vmem:[#allocation9 + $0x1ac0] sm:$0xff]
    %v3945 = vld [vmem:[#allocation9 + $0x1ac8] sm:$0xff]
    %v3946 = vld [vmem:[#allocation9 + $0x1ad0] sm:$0xff]
    %v3947 = vld [vmem:[#allocation9 + $0x1ad8] sm:$0xff]
    %v3948 = vld [vmem:[#allocation9 + $0x1ae0] sm:$0xff]
    %v3949 = vld [vmem:[#allocation9 + $0x1ae8] sm:$0xff]
    %v3950 = vld [vmem:[#allocation9 + $0x1af0] sm:$0xff]
    %v3951 = vld [vmem:[#allocation9 + $0x1af8] sm:$0xff]
    %v3952 = vld [vmem:[#allocation9 + $0x1b00] sm:$0xff]
    %v3953 = vld [vmem:[#allocation9 + $0x1b08] sm:$0xff]
    %v3954 = vld [vmem:[#allocation9 + $0x1b10] sm:$0xff]
    %v3955 = vld [vmem:[#allocation9 + $0x1b18] sm:$0xff]
    %v3956 = vld [vmem:[#allocation9 + $0x1b20] sm:$0xff]
    %v3957 = vld [vmem:[#allocation9 + $0x1b28] sm:$0xff]
    %v3958 = vld [vmem:[#allocation9 + $0x1b30] sm:$0xff]
    %v3959 = vld [vmem:[#allocation9 + $0x1b38] sm:$0xff]
    %v3960 = vld [vmem:[#allocation9 + $0x1b40] sm:$0xff]
    %v3961 = vld [vmem:[#allocation9 + $0x1b48] sm:$0xff]
    %v3962 = vld [vmem:[#allocation9 + $0x1b50] sm:$0xff]
    %v3963 = vld [vmem:[#allocation9 + $0x1b58] sm:$0xff]
    %v3964 = vld [vmem:[#allocation9 + $0x1b60] sm:$0xff]
    %v3965 = vld [vmem:[#allocation9 + $0x1b68] sm:$0xff]
    %v3966 = vld [vmem:[#allocation9 + $0x1b70] sm:$0xff]
    %v3967 = vld [vmem:[#allocation9 + $0x1b78] sm:$0xff]
    %v3968 = vld [vmem:[#allocation9 + $0x1b80] sm:$0xff]
    %v3969 = vld [vmem:[#allocation9 + $0x1b88] sm:$0xff]
    %v3970 = vld [vmem:[#allocation9 + $0x1b90] sm:$0xff]
    %v3971 = vld [vmem:[#allocation9 + $0x1b98] sm:$0xff]
    %v3972 = vld [vmem:[#allocation9 + $0x1ba0] sm:$0xff]
    %v3973 = vld [vmem:[#allocation9 + $0x1ba8] sm:$0xff]
    %v3974 = vld [vmem:[#allocation9 + $0x1bb0] sm:$0xff]
    %v3975 = vld [vmem:[#allocation9 + $0x1bb8] sm:$0xff]
    %v3976 = vld [vmem:[#allocation9 + $0x1bc0] sm:$0xff]
    %v3977 = vld [vmem:[#allocation9 + $0x1bc8] sm:$0xff]
    %v3978 = vld [vmem:[#allocation9 + $0x1bd0] sm:$0xff]
    %v3979 = vld [vmem:[#allocation9 + $0x1bd8] sm:$0xff]
    %v3980 = vld [vmem:[#allocation9 + $0x1be0] sm:$0xff]
    %v3981 = vld [vmem:[#allocation9 + $0x1be8] sm:$0xff]
    %v3982 = vld [vmem:[#allocation9 + $0x1bf0] sm:$0xff]
    %v3983 = vld [vmem:[#allocation9 + $0x1bf8] sm:$0xff]
    %v3984 = vld [vmem:[#allocation9 + $0x1c00] sm:$0xff]
    %v3985 = vld [vmem:[#allocation9 + $0x1c08] sm:$0xff]
    %v3986 = vld [vmem:[#allocation9 + $0x1c10] sm:$0xff]
    %v3987 = vld [vmem:[#allocation9 + $0x1c18] sm:$0xff]
    %v3988 = vld [vmem:[#allocation9 + $0x1c20] sm:$0xff]
    %v3989 = vld [vmem:[#allocation9 + $0x1c28] sm:$0xff]
    %v3990 = vld [vmem:[#allocation9 + $0x1c30] sm:$0xff]
    %v3991 = vld [vmem:[#allocation9 + $0x1c38] sm:$0xff]
    %v3992 = vld [vmem:[#allocation9 + $0x1c40] sm:$0xff]
    %v3993 = vld [vmem:[#allocation9 + $0x1c48] sm:$0xff]
    %v3994 = vld [vmem:[#allocation9 + $0x1c50] sm:$0xff]
    %v3995 = vld [vmem:[#allocation9 + $0x1c58] sm:$0xff]
    %v3996 = vld [vmem:[#allocation9 + $0x1c60] sm:$0xff]
    %v3997 = vld [vmem:[#allocation9 + $0x1c68] sm:$0xff]
    %v3998 = vld [vmem:[#allocation9 + $0x1c70] sm:$0xff]
    %v3999 = vld [vmem:[#allocation9 + $0x1c78] sm:$0xff]
    %v4000 = vld [vmem:[#allocation9 + $0x1c80] sm:$0xff]
    %v4001 = vld [vmem:[#allocation9 + $0x1c88] sm:$0xff]
    %v4002 = vld [vmem:[#allocation9 + $0x1c90] sm:$0xff]
    %v4003 = vld [vmem:[#allocation9 + $0x1c98] sm:$0xff]
    %v4004 = vld [vmem:[#allocation9 + $0x1ca0] sm:$0xff]
    %v4005 = vld [vmem:[#allocation9 + $0x1ca8] sm:$0xff]
    %v4006 = vld [vmem:[#allocation9 + $0x1cb0] sm:$0xff]
    %v4007 = vld [vmem:[#allocation9 + $0x1cb8] sm:$0xff]
    %v4008 = vld [vmem:[#allocation9 + $0x1cc0] sm:$0xff]
    %v4009 = vld [vmem:[#allocation9 + $0x1cc8] sm:$0xff]
    %v4010 = vld [vmem:[#allocation9 + $0x1cd0] sm:$0xff]
    %v4011 = vld [vmem:[#allocation9 + $0x1cd8] sm:$0xff]
    %v4012 = vld [vmem:[#allocation9 + $0x1ce0] sm:$0xff]
    %v4013 = vld [vmem:[#allocation9 + $0x1ce8] sm:$0xff]
    %v4014 = vld [vmem:[#allocation9 + $0x1cf0] sm:$0xff]
    %v4015 = vld [vmem:[#allocation9 + $0x1cf8] sm:$0xff]
    %v4016 = vld [vmem:[#allocation9 + $0x1d00] sm:$0xff]
    %v4017 = vld [vmem:[#allocation9 + $0x1d08] sm:$0xff]
    %v4018 = vld [vmem:[#allocation9 + $0x1d10] sm:$0xff]
    %v4019 = vld [vmem:[#allocation9 + $0x1d18] sm:$0xff]
    %v4020 = vld [vmem:[#allocation9 + $0x1d20] sm:$0xff]
    %v4021 = vld [vmem:[#allocation9 + $0x1d28] sm:$0xff]
    %v4022 = vld [vmem:[#allocation9 + $0x1d30] sm:$0xff]
    %v4023 = vld [vmem:[#allocation9 + $0x1d38] sm:$0xff]
    %v4024 = vld [vmem:[#allocation9 + $0x1d40] sm:$0xff]
    %v4025 = vld [vmem:[#allocation9 + $0x1d48] sm:$0xff]
    %v4026 = vld [vmem:[#allocation9 + $0x1d50] sm:$0xff]
    %v4027 = vld [vmem:[#allocation9 + $0x1d58] sm:$0xff]
    %v4028 = vld [vmem:[#allocation9 + $0x1d60] sm:$0xff]
    %v4029 = vld [vmem:[#allocation9 + $0x1d68] sm:$0xff]
    %v4030 = vld [vmem:[#allocation9 + $0x1d70] sm:$0xff]
    %v4031 = vld [vmem:[#allocation9 + $0x1d78] sm:$0xff]
    %v4032 = vld [vmem:[#allocation9 + $0x1d80] sm:$0xff]
    %v4033 = vld [vmem:[#allocation9 + $0x1d88] sm:$0xff]
    %v4034 = vld [vmem:[#allocation9 + $0x1d90] sm:$0xff]
    %v4035 = vld [vmem:[#allocation9 + $0x1d98] sm:$0xff]
    %v4036 = vld [vmem:[#allocation9 + $0x1da0] sm:$0xff]
    %v4037 = vld [vmem:[#allocation9 + $0x1da8] sm:$0xff]
    %v4038 = vld [vmem:[#allocation9 + $0x1db0] sm:$0xff]
    %v4039 = vld [vmem:[#allocation9 + $0x1db8] sm:$0xff]
    %v4040 = vld [vmem:[#allocation9 + $0x1dc0] sm:$0xff]
    %v4041 = vld [vmem:[#allocation9 + $0x1dc8] sm:$0xff]
    %v4042 = vld [vmem:[#allocation9 + $0x1dd0] sm:$0xff]
    %v4043 = vld [vmem:[#allocation9 + $0x1dd8] sm:$0xff]
    %v4044 = vld [vmem:[#allocation9 + $0x1de0] sm:$0xff]
    %v4045 = vld [vmem:[#allocation9 + $0x1de8] sm:$0xff]
    %v4046 = vld [vmem:[#allocation9 + $0x1df0] sm:$0xff]
    %v4047 = vld [vmem:[#allocation9 + $0x1df8] sm:$0xff]
    %v4048 = vld [vmem:[#allocation9 + $0x1e00] sm:$0xff]
    %v4049 = vld [vmem:[#allocation9 + $0x1e08] sm:$0xff]
    %v4050 = vld [vmem:[#allocation9 + $0x1e10] sm:$0xff]
    %v4051 = vld [vmem:[#allocation9 + $0x1e18] sm:$0xff]
    %v4052 = vld [vmem:[#allocation9 + $0x1e20] sm:$0xff]
    %v4053 = vld [vmem:[#allocation9 + $0x1e28] sm:$0xff]
    %v4054 = vld [vmem:[#allocation9 + $0x1e30] sm:$0xff]
    %v4055 = vld [vmem:[#allocation9 + $0x1e38] sm:$0xff]
    %v4056 = vld [vmem:[#allocation9 + $0x1e40] sm:$0xff]
    %v4057 = vld [vmem:[#allocation9 + $0x1e48] sm:$0xff]
    %v4058 = vld [vmem:[#allocation9 + $0x1e50] sm:$0xff]
    %v4059 = vld [vmem:[#allocation9 + $0x1e58] sm:$0xff]
    %v4060 = vld [vmem:[#allocation9 + $0x1e60] sm:$0xff]
    %v4061 = vld [vmem:[#allocation9 + $0x1e68] sm:$0xff]
    %v4062 = vld [vmem:[#allocation9 + $0x1e70] sm:$0xff]
    %v4063 = vld [vmem:[#allocation9 + $0x1e78] sm:$0xff]
    %v4064 = vld [vmem:[#allocation9 + $0x1e80] sm:$0xff]
    %v4065 = vld [vmem:[#allocation9 + $0x1e88] sm:$0xff]
    %v4066 = vld [vmem:[#allocation9 + $0x1e90] sm:$0xff]
    %v4067 = vld [vmem:[#allocation9 + $0x1e98] sm:$0xff]
    %v4068 = vld [vmem:[#allocation9 + $0x1ea0] sm:$0xff]
    %v4069 = vld [vmem:[#allocation9 + $0x1ea8] sm:$0xff]
    %v4070 = vld [vmem:[#allocation9 + $0x1eb0] sm:$0xff]
    %v4071 = vld [vmem:[#allocation9 + $0x1eb8] sm:$0xff]
    %v4072 = vld [vmem:[#allocation9 + $0x1ec0] sm:$0xff]
    %v4073 = vld [vmem:[#allocation9 + $0x1ec8] sm:$0xff]
    %v4074 = vld [vmem:[#allocation9 + $0x1ed0] sm:$0xff]
    %v4075 = vld [vmem:[#allocation9 + $0x1ed8] sm:$0xff]
    %v4076 = vld [vmem:[#allocation9 + $0x1ee0] sm:$0xff]
    %v4077 = vld [vmem:[#allocation9 + $0x1ee8] sm:$0xff]
    %v4078 = vld [vmem:[#allocation9 + $0x1ef0] sm:$0xff]
    %v4079 = vld [vmem:[#allocation9 + $0x1ef8] sm:$0xff]
    %v4080 = vld [vmem:[#allocation9 + $0x1f00] sm:$0xff]
    %v4081 = vld [vmem:[#allocation9 + $0x1f08] sm:$0xff]
    %v4082 = vld [vmem:[#allocation9 + $0x1f10] sm:$0xff]
    %v4083 = vld [vmem:[#allocation9 + $0x1f18] sm:$0xff]
    %v4084 = vld [vmem:[#allocation9 + $0x1f20] sm:$0xff]
    %v4085 = vld [vmem:[#allocation9 + $0x1f28] sm:$0xff]
    %v4086 = vld [vmem:[#allocation9 + $0x1f30] sm:$0xff]
    %v4087 = vld [vmem:[#allocation9 + $0x1f38] sm:$0xff]
    %v4088 = vld [vmem:[#allocation9 + $0x1f40] sm:$0xff]
    %v4089 = vld [vmem:[#allocation9 + $0x1f48] sm:$0xff]
    %v4090 = vld [vmem:[#allocation9 + $0x1f50] sm:$0xff]
    %v4091 = vld [vmem:[#allocation9 + $0x1f58] sm:$0xff]
    %v4092 = vld [vmem:[#allocation9 + $0x1f60] sm:$0xff]
    %v4093 = vld [vmem:[#allocation9 + $0x1f68] sm:$0xff]
    %v4094 = vld [vmem:[#allocation9 + $0x1f70] sm:$0xff]
    %v4095 = vld [vmem:[#allocation9 + $0x1f78] sm:$0xff]
    %v4096 = vld [vmem:[#allocation9 + $0x1f80] sm:$0xff]
    %v4097 = vld [vmem:[#allocation9 + $0x1f88] sm:$0xff]
    %v4098 = vld [vmem:[#allocation9 + $0x1f90] sm:$0xff]
    %v4099 = vld [vmem:[#allocation9 + $0x1f98] sm:$0xff]
    %v4100 = vld [vmem:[#allocation9 + $0x1fa0] sm:$0xff]
    %v4101 = vld [vmem:[#allocation9 + $0x1fa8] sm:$0xff]
    %v4102 = vld [vmem:[#allocation9 + $0x1fb0] sm:$0xff]
    %v4103 = vld [vmem:[#allocation9 + $0x1fb8] sm:$0xff]
    %v4104 = vld [vmem:[#allocation9 + $0x1fc0] sm:$0xff]
    %v4105 = vld [vmem:[#allocation9 + $0x1fc8] sm:$0xff]
    %v4106 = vld [vmem:[#allocation9 + $0x1fd0] sm:$0xff]
    %v4107 = vld [vmem:[#allocation9 + $0x1fd8] sm:$0xff]
    %v4108 = vld [vmem:[#allocation9 + $0x1fe0] sm:$0xff]
    %v4109 = vld [vmem:[#allocation9 + $0x1fe8] sm:$0xff]
    %v4110 = vld [vmem:[#allocation9 + $0x1ff0] sm:$0xff]
    %v4111 = vld [vmem:[#allocation9 + $0x1ff8] sm:$0xff]
    %v4112 = vld [vmem:[#allocation10] sm:$0xff]
    %v4113 = vld [vmem:[#allocation10 + $0x8] sm:$0xff]
    %v4116 = vlaneseq
    %v4117 = vshrl.u32 %v4116, 7
    %v4118 = vsub.s32 0, %v4117
    %v4119 = vrot.slane %v4112, %v4118
    %v4120 = vlaneseq
    %v4121 = vshrl.u32 %v4120, 7
    %v4122 = vsub.s32 1, %v4121
    %v4123 = vrot.slane %v4112, %v4122
    %v4124 = vlaneseq
    %v4125 = vshrl.u32 %v4124, 7
    %v4126 = vsub.s32 2, %v4125
    %v4127 = vrot.slane %v4112, %v4126
    %v4128 = vlaneseq
    %v4129 = vshrl.u32 %v4128, 7
    %v4130 = vsub.s32 3, %v4129
    %v4131 = vrot.slane %v4112, %v4130
    %v4132 = vlaneseq
    %v4133 = vshrl.u32 %v4132, 7
    %v4134 = vsub.s32 4, %v4133
    %v4135 = vrot.slane %v4112, %v4134
    %v4136 = vlaneseq
    %v4137 = vshrl.u32 %v4136, 7
    %v4138 = vsub.s32 5, %v4137
    %v4139 = vrot.slane %v4112, %v4138
    %v4140 = vlaneseq
    %v4141 = vshrl.u32 %v4140, 7
    %v4142 = vsub.s32 6, %v4141
    %v4143 = vrot.slane %v4112, %v4142
    %v4144 = vlaneseq
    %v4145 = vshrl.u32 %v4144, 7
    %v4146 = vsub.s32 7, %v4145
    %v4147 = vrot.slane %v4112, %v4146
    %v4148 = vlaneseq
    %v4149 = vshrl.u32 %v4148, 7
    %v4150 = vsub.s32 0, %v4149
    %v4151 = vrot.slane %v4113, %v4150
    %v4152 = vlaneseq
    %v4153 = vshrl.u32 %v4152, 7
    %v4154 = vsub.s32 1, %v4153
    %v4155 = vrot.slane %v4113, %v4154
    %v4156 = vlaneseq
    %v4157 = vshrl.u32 %v4156, 7
    %v4158 = vsub.s32 2, %v4157
    %v4159 = vrot.slane %v4113, %v4158
    %v4160 = vlaneseq
    %v4161 = vshrl.u32 %v4160, 7
    %v4162 = vsub.s32 3, %v4161
    %v4163 = vrot.slane %v4113, %v4162
    %v4164 = vlaneseq
    %v4165 = vshrl.u32 %v4164, 7
    %v4166 = vsub.s32 4, %v4165
    %v4167 = vrot.slane %v4113, %v4166
    %v4168 = vlaneseq
    %v4169 = vshrl.u32 %v4168, 7
    %v4170 = vsub.s32 5, %v4169
    %v4171 = vrot.slane %v4113, %v4170
    %v4172 = vlaneseq
    %v4173 = vshrl.u32 %v4172, 7
    %v4174 = vsub.s32 6, %v4173
    %v4175 = vrot.slane %v4113, %v4174
    %v4176 = vlaneseq
    %v4177 = vshrl.u32 %v4176, 7
    %v4178 = vsub.s32 7, %v4177
    %v4179 = vrot.slane %v4113, %v4178
    %v5220 = vunpack.c.l.b16 %v3088
    %v5221 = vunpack.c.h.b16 %v3088
    %v5222 = vunpack.c.l.b16 %v3089
    %v5223 = vunpack.c.h.b16 %v3089
    %v5224 = vunpack.c.l.b16 %v3090
    %v5225 = vunpack.c.h.b16 %v3090
    %v5226 = vunpack.c.l.b16 %v3091
    %v5227 = vunpack.c.h.b16 %v3091
    %v5228 = vunpack.c.l.b16 %v3092
    %v5229 = vunpack.c.h.b16 %v3092
    %v5230 = vunpack.c.l.b16 %v3093
    %v5231 = vunpack.c.h.b16 %v3093
    %v5232 = vunpack.c.l.b16 %v3094
    %v5233 = vunpack.c.h.b16 %v3094
    %v5234 = vunpack.c.l.b16 %v3095
    %v5235 = vunpack.c.h.b16 %v3095
    %v5236 = vunpack.c.l.b16 %v3096
    %v5237 = vunpack.c.h.b16 %v3096
    %v5238 = vunpack.c.l.b16 %v3097
    %v5239 = vunpack.c.h.b16 %v3097
    %v5240 = vunpack.c.l.b16 %v3098
    %v5241 = vunpack.c.h.b16 %v3098
    %v5242 = vunpack.c.l.b16 %v3099
    %v5243 = vunpack.c.h.b16 %v3099
    %v5244 = vunpack.c.l.b16 %v3100
    %v5245 = vunpack.c.h.b16 %v3100
    %v5246 = vunpack.c.l.b16 %v3101
    %v5247 = vunpack.c.h.b16 %v3101
    %v5248 = vunpack.c.l.b16 %v3102
    %v5249 = vunpack.c.h.b16 %v3102
    %v5250 = vunpack.c.l.b16 %v3103
    %v5251 = vunpack.c.h.b16 %v3103
    %v5252 = vunpack.c.l.b16 %v3104
    %v5253 = vunpack.c.h.b16 %v3104
    %v5254 = vunpack.c.l.b16 %v3105
    %v5255 = vunpack.c.h.b16 %v3105
    %v5256 = vunpack.c.l.b16 %v3106
    %v5257 = vunpack.c.h.b16 %v3106
    %v5258 = vunpack.c.l.b16 %v3107
    %v5259 = vunpack.c.h.b16 %v3107
    %v5260 = vunpack.c.l.b16 %v3108
    %v5261 = vunpack.c.h.b16 %v3108
    %v5262 = vunpack.c.l.b16 %v3109
    %v5263 = vunpack.c.h.b16 %v3109
    %v5264 = vunpack.c.l.b16 %v3110
    %v5265 = vunpack.c.h.b16 %v3110
    %v5266 = vunpack.c.l.b16 %v3111
    %v5267 = vunpack.c.h.b16 %v3111
    %v5268 = vunpack.c.l.b16 %v3112
    %v5269 = vunpack.c.h.b16 %v3112
    %v5270 = vunpack.c.l.b16 %v3113
    %v5271 = vunpack.c.h.b16 %v3113
    %v5272 = vunpack.c.l.b16 %v3114
    %v5273 = vunpack.c.h.b16 %v3114
    %v5274 = vunpack.c.l.b16 %v3115
    %v5275 = vunpack.c.h.b16 %v3115
    %v5276 = vunpack.c.l.b16 %v3116
    %v5277 = vunpack.c.h.b16 %v3116
    %v5278 = vunpack.c.l.b16 %v3117
    %v5279 = vunpack.c.h.b16 %v3117
    %v5280 = vunpack.c.l.b16 %v3118
    %v5281 = vunpack.c.h.b16 %v3118
    %v5282 = vunpack.c.l.b16 %v3119
    %v5283 = vunpack.c.h.b16 %v3119
    %v5284 = vunpack.c.l.b16 %v3120
    %v5285 = vunpack.c.h.b16 %v3120
    %v5286 = vunpack.c.l.b16 %v3121
    %v5287 = vunpack.c.h.b16 %v3121
    %v5288 = vunpack.c.l.b16 %v3122
    %v5289 = vunpack.c.h.b16 %v3122
    %v5290 = vunpack.c.l.b16 %v3123
    %v5291 = vunpack.c.h.b16 %v3123
    %v5292 = vunpack.c.l.b16 %v3124
    %v5293 = vunpack.c.h.b16 %v3124
    %v5294 = vunpack.c.l.b16 %v3125
    %v5295 = vunpack.c.h.b16 %v3125
    %v5296 = vunpack.c.l.b16 %v3126
    %v5297 = vunpack.c.h.b16 %v3126
    %v5298 = vunpack.c.l.b16 %v3127
    %v5299 = vunpack.c.h.b16 %v3127
    %v5300 = vunpack.c.l.b16 %v3128
    %v5301 = vunpack.c.h.b16 %v3128
    %v5302 = vunpack.c.l.b16 %v3129
    %v5303 = vunpack.c.h.b16 %v3129
    %v5304 = vunpack.c.l.b16 %v3130
    %v5305 = vunpack.c.h.b16 %v3130
    %v5306 = vunpack.c.l.b16 %v3131
    %v5307 = vunpack.c.h.b16 %v3131
    %v5308 = vunpack.c.l.b16 %v3132
    %v5309 = vunpack.c.h.b16 %v3132
    %v5310 = vunpack.c.l.b16 %v3133
    %v5311 = vunpack.c.h.b16 %v3133
    %v5312 = vunpack.c.l.b16 %v3134
    %v5313 = vunpack.c.h.b16 %v3134
    %v5314 = vunpack.c.l.b16 %v3135
    %v5315 = vunpack.c.h.b16 %v3135
    %v5316 = vunpack.c.l.b16 %v3136
    %v5317 = vunpack.c.h.b16 %v3136
    %v5318 = vunpack.c.l.b16 %v3137
    %v5319 = vunpack.c.h.b16 %v3137
    %v5320 = vunpack.c.l.b16 %v3138
    %v5321 = vunpack.c.h.b16 %v3138
    %v5322 = vunpack.c.l.b16 %v3139
    %v5323 = vunpack.c.h.b16 %v3139
    %v5324 = vunpack.c.l.b16 %v3140
    %v5325 = vunpack.c.h.b16 %v3140
    %v5326 = vunpack.c.l.b16 %v3141
    %v5327 = vunpack.c.h.b16 %v3141
    %v5328 = vunpack.c.l.b16 %v3142
    %v5329 = vunpack.c.h.b16 %v3142
    %v5330 = vunpack.c.l.b16 %v3143
    %v5331 = vunpack.c.h.b16 %v3143
    %v5332 = vunpack.c.l.b16 %v3144
    %v5333 = vunpack.c.h.b16 %v3144
    %v5334 = vunpack.c.l.b16 %v3145
    %v5335 = vunpack.c.h.b16 %v3145
    %v5336 = vunpack.c.l.b16 %v3146
    %v5337 = vunpack.c.h.b16 %v3146
    %v5338 = vunpack.c.l.b16 %v3147
    %v5339 = vunpack.c.h.b16 %v3147
    %v5340 = vunpack.c.l.b16 %v3148
    %v5341 = vunpack.c.h.b16 %v3148
    %v5342 = vunpack.c.l.b16 %v3149
    %v5343 = vunpack.c.h.b16 %v3149
    %v5344 = vunpack.c.l.b16 %v3150
    %v5345 = vunpack.c.h.b16 %v3150
    %v5346 = vunpack.c.l.b16 %v3151
    %v5347 = vunpack.c.h.b16 %v3151
    %v5348 = vunpack.c.l.b16 %v3152
    %v5349 = vunpack.c.h.b16 %v3152
    %v5350 = vunpack.c.l.b16 %v3153
    %v5351 = vunpack.c.h.b16 %v3153
    %v5352 = vunpack.c.l.b16 %v3154
    %v5353 = vunpack.c.h.b16 %v3154
    %v5354 = vunpack.c.l.b16 %v3155
    %v5355 = vunpack.c.h.b16 %v3155
    %v5356 = vunpack.c.l.b16 %v3156
    %v5357 = vunpack.c.h.b16 %v3156
    %v5358 = vunpack.c.l.b16 %v3157
    %v5359 = vunpack.c.h.b16 %v3157
    %v5360 = vunpack.c.l.b16 %v3158
    %v5361 = vunpack.c.h.b16 %v3158
    %v5362 = vunpack.c.l.b16 %v3159
    %v5363 = vunpack.c.h.b16 %v3159
    %v5364 = vunpack.c.l.b16 %v3160
    %v5365 = vunpack.c.h.b16 %v3160
    %v5366 = vunpack.c.l.b16 %v3161
    %v5367 = vunpack.c.h.b16 %v3161
    %v5368 = vunpack.c.l.b16 %v3162
    %v5369 = vunpack.c.h.b16 %v3162
    %v5370 = vunpack.c.l.b16 %v3163
    %v5371 = vunpack.c.h.b16 %v3163
    %v5372 = vunpack.c.l.b16 %v3164
    %v5373 = vunpack.c.h.b16 %v3164
    %v5374 = vunpack.c.l.b16 %v3165
    %v5375 = vunpack.c.h.b16 %v3165
    %v5376 = vunpack.c.l.b16 %v3166
    %v5377 = vunpack.c.h.b16 %v3166
    %v5378 = vunpack.c.l.b16 %v3167
    %v5379 = vunpack.c.h.b16 %v3167
    %v5380 = vunpack.c.l.b16 %v3168
    %v5381 = vunpack.c.h.b16 %v3168
    %v5382 = vunpack.c.l.b16 %v3169
    %v5383 = vunpack.c.h.b16 %v3169
    %v5384 = vunpack.c.l.b16 %v3170
    %v5385 = vunpack.c.h.b16 %v3170
    %v5386 = vunpack.c.l.b16 %v3171
    %v5387 = vunpack.c.h.b16 %v3171
    %v5388 = vunpack.c.l.b16 %v3172
    %v5389 = vunpack.c.h.b16 %v3172
    %v5390 = vunpack.c.l.b16 %v3173
    %v5391 = vunpack.c.h.b16 %v3173
    %v5392 = vunpack.c.l.b16 %v3174
    %v5393 = vunpack.c.h.b16 %v3174
    %v5394 = vunpack.c.l.b16 %v3175
    %v5395 = vunpack.c.h.b16 %v3175
    %v5396 = vunpack.c.l.b16 %v3176
    %v5397 = vunpack.c.h.b16 %v3176
    %v5398 = vunpack.c.l.b16 %v3177
    %v5399 = vunpack.c.h.b16 %v3177
    %v5400 = vunpack.c.l.b16 %v3178
    %v5401 = vunpack.c.h.b16 %v3178
    %v5402 = vunpack.c.l.b16 %v3179
    %v5403 = vunpack.c.h.b16 %v3179
    %v5404 = vunpack.c.l.b16 %v3180
    %v5405 = vunpack.c.h.b16 %v3180
    %v5406 = vunpack.c.l.b16 %v3181
    %v5407 = vunpack.c.h.b16 %v3181
    %v5408 = vunpack.c.l.b16 %v3182
    %v5409 = vunpack.c.h.b16 %v3182
    %v5410 = vunpack.c.l.b16 %v3183
    %v5411 = vunpack.c.h.b16 %v3183
    %v5412 = vunpack.c.l.b16 %v3184
    %v5413 = vunpack.c.h.b16 %v3184
    %v5414 = vunpack.c.l.b16 %v3185
    %v5415 = vunpack.c.h.b16 %v3185
    %v5416 = vunpack.c.l.b16 %v3186
    %v5417 = vunpack.c.h.b16 %v3186
    %v5418 = vunpack.c.l.b16 %v3187
    %v5419 = vunpack.c.h.b16 %v3187
    %v5420 = vunpack.c.l.b16 %v3188
    %v5421 = vunpack.c.h.b16 %v3188
    %v5422 = vunpack.c.l.b16 %v3189
    %v5423 = vunpack.c.h.b16 %v3189
    %v5424 = vunpack.c.l.b16 %v3190
    %v5425 = vunpack.c.h.b16 %v3190
    %v5426 = vunpack.c.l.b16 %v3191
    %v5427 = vunpack.c.h.b16 %v3191
    %v5428 = vunpack.c.l.b16 %v3192
    %v5429 = vunpack.c.h.b16 %v3192
    %v5430 = vunpack.c.l.b16 %v3193
    %v5431 = vunpack.c.h.b16 %v3193
    %v5432 = vunpack.c.l.b16 %v3194
    %v5433 = vunpack.c.h.b16 %v3194
    %v5434 = vunpack.c.l.b16 %v3195
    %v5435 = vunpack.c.h.b16 %v3195
    %v5436 = vunpack.c.l.b16 %v3196
    %v5437 = vunpack.c.h.b16 %v3196
    %v5438 = vunpack.c.l.b16 %v3197
    %v5439 = vunpack.c.h.b16 %v3197
    %v5440 = vunpack.c.l.b16 %v3198
    %v5441 = vunpack.c.h.b16 %v3198
    %v5442 = vunpack.c.l.b16 %v3199
    %v5443 = vunpack.c.h.b16 %v3199
    %v5444 = vunpack.c.l.b16 %v3200
    %v5445 = vunpack.c.h.b16 %v3200
    %v5446 = vunpack.c.l.b16 %v3201
    %v5447 = vunpack.c.h.b16 %v3201
    %v5448 = vunpack.c.l.b16 %v3202
    %v5449 = vunpack.c.h.b16 %v3202
    %v5450 = vunpack.c.l.b16 %v3203
    %v5451 = vunpack.c.h.b16 %v3203
    %v5452 = vunpack.c.l.b16 %v3204
    %v5453 = vunpack.c.h.b16 %v3204
    %v5454 = vunpack.c.l.b16 %v3205
    %v5455 = vunpack.c.h.b16 %v3205
    %v5456 = vunpack.c.l.b16 %v3206
    %v5457 = vunpack.c.h.b16 %v3206
    %v5458 = vunpack.c.l.b16 %v3207
    %v5459 = vunpack.c.h.b16 %v3207
    %v5460 = vunpack.c.l.b16 %v3208
    %v5461 = vunpack.c.h.b16 %v3208
    %v5462 = vunpack.c.l.b16 %v3209
    %v5463 = vunpack.c.h.b16 %v3209
    %v5464 = vunpack.c.l.b16 %v3210
    %v5465 = vunpack.c.h.b16 %v3210
    %v5466 = vunpack.c.l.b16 %v3211
    %v5467 = vunpack.c.h.b16 %v3211
    %v5468 = vunpack.c.l.b16 %v3212
    %v5469 = vunpack.c.h.b16 %v3212
    %v5470 = vunpack.c.l.b16 %v3213
    %v5471 = vunpack.c.h.b16 %v3213
    %v5472 = vunpack.c.l.b16 %v3214
    %v5473 = vunpack.c.h.b16 %v3214
    %v5474 = vunpack.c.l.b16 %v3215
    %v5475 = vunpack.c.h.b16 %v3215
    %v5476 = vunpack.c.l.b16 %v3216
    %v5477 = vunpack.c.h.b16 %v3216
    %v5478 = vunpack.c.l.b16 %v3217
    %v5479 = vunpack.c.h.b16 %v3217
    %v5480 = vunpack.c.l.b16 %v3218
    %v5481 = vunpack.c.h.b16 %v3218
    %v5482 = vunpack.c.l.b16 %v3219
    %v5483 = vunpack.c.h.b16 %v3219
    %v5484 = vunpack.c.l.b16 %v3220
    %v5485 = vunpack.c.h.b16 %v3220
    %v5486 = vunpack.c.l.b16 %v3221
    %v5487 = vunpack.c.h.b16 %v3221
    %v5488 = vunpack.c.l.b16 %v3222
    %v5489 = vunpack.c.h.b16 %v3222
    %v5490 = vunpack.c.l.b16 %v3223
    %v5491 = vunpack.c.h.b16 %v3223
    %v5492 = vunpack.c.l.b16 %v3224
    %v5493 = vunpack.c.h.b16 %v3224
    %v5494 = vunpack.c.l.b16 %v3225
    %v5495 = vunpack.c.h.b16 %v3225
    %v5496 = vunpack.c.l.b16 %v3226
    %v5497 = vunpack.c.h.b16 %v3226
    %v5498 = vunpack.c.l.b16 %v3227
    %v5499 = vunpack.c.h.b16 %v3227
    %v5500 = vunpack.c.l.b16 %v3228
    %v5501 = vunpack.c.h.b16 %v3228
    %v5502 = vunpack.c.l.b16 %v3229
    %v5503 = vunpack.c.h.b16 %v3229
    %v5504 = vunpack.c.l.b16 %v3230
    %v5505 = vunpack.c.h.b16 %v3230
    %v5506 = vunpack.c.l.b16 %v3231
    %v5507 = vunpack.c.h.b16 %v3231
    %v5508 = vunpack.c.l.b16 %v3232
    %v5509 = vunpack.c.h.b16 %v3232
    %v5510 = vunpack.c.l.b16 %v3233
    %v5511 = vunpack.c.h.b16 %v3233
    %v5512 = vunpack.c.l.b16 %v3234
    %v5513 = vunpack.c.h.b16 %v3234
    %v5514 = vunpack.c.l.b16 %v3235
    %v5515 = vunpack.c.h.b16 %v3235
    %v5516 = vunpack.c.l.b16 %v3236
    %v5517 = vunpack.c.h.b16 %v3236
    %v5518 = vunpack.c.l.b16 %v3237
    %v5519 = vunpack.c.h.b16 %v3237
    %v5520 = vunpack.c.l.b16 %v3238
    %v5521 = vunpack.c.h.b16 %v3238
    %v5522 = vunpack.c.l.b16 %v3239
    %v5523 = vunpack.c.h.b16 %v3239
    %v5524 = vunpack.c.l.b16 %v3240
    %v5525 = vunpack.c.h.b16 %v3240
    %v5526 = vunpack.c.l.b16 %v3241
    %v5527 = vunpack.c.h.b16 %v3241
    %v5528 = vunpack.c.l.b16 %v3242
    %v5529 = vunpack.c.h.b16 %v3242
    %v5530 = vunpack.c.l.b16 %v3243
    %v5531 = vunpack.c.h.b16 %v3243
    %v5532 = vunpack.c.l.b16 %v3244
    %v5533 = vunpack.c.h.b16 %v3244
    %v5534 = vunpack.c.l.b16 %v3245
    %v5535 = vunpack.c.h.b16 %v3245
    %v5536 = vunpack.c.l.b16 %v3246
    %v5537 = vunpack.c.h.b16 %v3246
    %v5538 = vunpack.c.l.b16 %v3247
    %v5539 = vunpack.c.h.b16 %v3247
    %v5540 = vunpack.c.l.b16 %v3248
    %v5541 = vunpack.c.h.b16 %v3248
    %v5542 = vunpack.c.l.b16 %v3249
    %v5543 = vunpack.c.h.b16 %v3249
    %v5544 = vunpack.c.l.b16 %v3250
    %v5545 = vunpack.c.h.b16 %v3250
    %v5546 = vunpack.c.l.b16 %v3251
    %v5547 = vunpack.c.h.b16 %v3251
    %v5548 = vunpack.c.l.b16 %v3252
    %v5549 = vunpack.c.h.b16 %v3252
    %v5550 = vunpack.c.l.b16 %v3253
    %v5551 = vunpack.c.h.b16 %v3253
    %v5552 = vunpack.c.l.b16 %v3254
    %v5553 = vunpack.c.h.b16 %v3254
    %v5554 = vunpack.c.l.b16 %v3255
    %v5555 = vunpack.c.h.b16 %v3255
    %v5556 = vunpack.c.l.b16 %v3256
    %v5557 = vunpack.c.h.b16 %v3256
    %v5558 = vunpack.c.l.b16 %v3257
    %v5559 = vunpack.c.h.b16 %v3257
    %v5560 = vunpack.c.l.b16 %v3258
    %v5561 = vunpack.c.h.b16 %v3258
    %v5562 = vunpack.c.l.b16 %v3259
    %v5563 = vunpack.c.h.b16 %v3259
    %v5564 = vunpack.c.l.b16 %v3260
    %v5565 = vunpack.c.h.b16 %v3260
    %v5566 = vunpack.c.l.b16 %v3261
    %v5567 = vunpack.c.h.b16 %v3261
    %v5568 = vunpack.c.l.b16 %v3262
    %v5569 = vunpack.c.h.b16 %v3262
    %v5570 = vunpack.c.l.b16 %v3263
    %v5571 = vunpack.c.h.b16 %v3263
    %v5572 = vunpack.c.l.b16 %v3264
    %v5573 = vunpack.c.h.b16 %v3264
    %v5574 = vunpack.c.l.b16 %v3265
    %v5575 = vunpack.c.h.b16 %v3265
    %v5576 = vunpack.c.l.b16 %v3266
    %v5577 = vunpack.c.h.b16 %v3266
    %v5578 = vunpack.c.l.b16 %v3267
    %v5579 = vunpack.c.h.b16 %v3267
    %v5580 = vunpack.c.l.b16 %v3268
    %v5581 = vunpack.c.h.b16 %v3268
    %v5582 = vunpack.c.l.b16 %v3269
    %v5583 = vunpack.c.h.b16 %v3269
    %v5584 = vunpack.c.l.b16 %v3270
    %v5585 = vunpack.c.h.b16 %v3270
    %v5586 = vunpack.c.l.b16 %v3271
    %v5587 = vunpack.c.h.b16 %v3271
    %v5588 = vunpack.c.l.b16 %v3272
    %v5589 = vunpack.c.h.b16 %v3272
    %v5590 = vunpack.c.l.b16 %v3273
    %v5591 = vunpack.c.h.b16 %v3273
    %v5592 = vunpack.c.l.b16 %v3274
    %v5593 = vunpack.c.h.b16 %v3274
    %v5594 = vunpack.c.l.b16 %v3275
    %v5595 = vunpack.c.h.b16 %v3275
    %v5596 = vunpack.c.l.b16 %v3276
    %v5597 = vunpack.c.h.b16 %v3276
    %v5598 = vunpack.c.l.b16 %v3277
    %v5599 = vunpack.c.h.b16 %v3277
    %v5600 = vunpack.c.l.b16 %v3278
    %v5601 = vunpack.c.h.b16 %v3278
    %v5602 = vunpack.c.l.b16 %v3279
    %v5603 = vunpack.c.h.b16 %v3279
    %v5604 = vunpack.c.l.b16 %v3280
    %v5605 = vunpack.c.h.b16 %v3280
    %v5606 = vunpack.c.l.b16 %v3281
    %v5607 = vunpack.c.h.b16 %v3281
    %v5608 = vunpack.c.l.b16 %v3282
    %v5609 = vunpack.c.h.b16 %v3282
    %v5610 = vunpack.c.l.b16 %v3283
    %v5611 = vunpack.c.h.b16 %v3283
    %v5612 = vunpack.c.l.b16 %v3284
    %v5613 = vunpack.c.h.b16 %v3284
    %v5614 = vunpack.c.l.b16 %v3285
    %v5615 = vunpack.c.h.b16 %v3285
    %v5616 = vunpack.c.l.b16 %v3286
    %v5617 = vunpack.c.h.b16 %v3286
    %v5618 = vunpack.c.l.b16 %v3287
    %v5619 = vunpack.c.h.b16 %v3287
    %v5620 = vunpack.c.l.b16 %v3288
    %v5621 = vunpack.c.h.b16 %v3288
    %v5622 = vunpack.c.l.b16 %v3289
    %v5623 = vunpack.c.h.b16 %v3289
    %v5624 = vunpack.c.l.b16 %v3290
    %v5625 = vunpack.c.h.b16 %v3290
    %v5626 = vunpack.c.l.b16 %v3291
    %v5627 = vunpack.c.h.b16 %v3291
    %v5628 = vunpack.c.l.b16 %v3292
    %v5629 = vunpack.c.h.b16 %v3292
    %v5630 = vunpack.c.l.b16 %v3293
    %v5631 = vunpack.c.h.b16 %v3293
    %v5632 = vunpack.c.l.b16 %v3294
    %v5633 = vunpack.c.h.b16 %v3294
    %v5634 = vunpack.c.l.b16 %v3295
    %v5635 = vunpack.c.h.b16 %v3295
    %v5636 = vunpack.c.l.b16 %v3296
    %v5637 = vunpack.c.h.b16 %v3296
    %v5638 = vunpack.c.l.b16 %v3297
    %v5639 = vunpack.c.h.b16 %v3297
    %v5640 = vunpack.c.l.b16 %v3298
    %v5641 = vunpack.c.h.b16 %v3298
    %v5642 = vunpack.c.l.b16 %v3299
    %v5643 = vunpack.c.h.b16 %v3299
    %v5644 = vunpack.c.l.b16 %v3300
    %v5645 = vunpack.c.h.b16 %v3300
    %v5646 = vunpack.c.l.b16 %v3301
    %v5647 = vunpack.c.h.b16 %v3301
    %v5648 = vunpack.c.l.b16 %v3302
    %v5649 = vunpack.c.h.b16 %v3302
    %v5650 = vunpack.c.l.b16 %v3303
    %v5651 = vunpack.c.h.b16 %v3303
    %v5652 = vunpack.c.l.b16 %v3304
    %v5653 = vunpack.c.h.b16 %v3304
    %v5654 = vunpack.c.l.b16 %v3305
    %v5655 = vunpack.c.h.b16 %v3305
    %v5656 = vunpack.c.l.b16 %v3306
    %v5657 = vunpack.c.h.b16 %v3306
    %v5658 = vunpack.c.l.b16 %v3307
    %v5659 = vunpack.c.h.b16 %v3307
    %v5660 = vunpack.c.l.b16 %v3308
    %v5661 = vunpack.c.h.b16 %v3308
    %v5662 = vunpack.c.l.b16 %v3309
    %v5663 = vunpack.c.h.b16 %v3309
    %v5664 = vunpack.c.l.b16 %v3310
    %v5665 = vunpack.c.h.b16 %v3310
    %v5666 = vunpack.c.l.b16 %v3311
    %v5667 = vunpack.c.h.b16 %v3311
    %v5668 = vunpack.c.l.b16 %v3312
    %v5669 = vunpack.c.h.b16 %v3312
    %v5670 = vunpack.c.l.b16 %v3313
    %v5671 = vunpack.c.h.b16 %v3313
    %v5672 = vunpack.c.l.b16 %v3314
    %v5673 = vunpack.c.h.b16 %v3314
    %v5674 = vunpack.c.l.b16 %v3315
    %v5675 = vunpack.c.h.b16 %v3315
    %v5676 = vunpack.c.l.b16 %v3316
    %v5677 = vunpack.c.h.b16 %v3316
    %v5678 = vunpack.c.l.b16 %v3317
    %v5679 = vunpack.c.h.b16 %v3317
    %v5680 = vunpack.c.l.b16 %v3318
    %v5681 = vunpack.c.h.b16 %v3318
    %v5682 = vunpack.c.l.b16 %v3319
    %v5683 = vunpack.c.h.b16 %v3319
    %v5684 = vunpack.c.l.b16 %v3320
    %v5685 = vunpack.c.h.b16 %v3320
    %v5686 = vunpack.c.l.b16 %v3321
    %v5687 = vunpack.c.h.b16 %v3321
    %v5688 = vunpack.c.l.b16 %v3322
    %v5689 = vunpack.c.h.b16 %v3322
    %v5690 = vunpack.c.l.b16 %v3323
    %v5691 = vunpack.c.h.b16 %v3323
    %v5692 = vunpack.c.l.b16 %v3324
    %v5693 = vunpack.c.h.b16 %v3324
    %v5694 = vunpack.c.l.b16 %v3325
    %v5695 = vunpack.c.h.b16 %v3325
    %v5696 = vunpack.c.l.b16 %v3326
    %v5697 = vunpack.c.h.b16 %v3326
    %v5698 = vunpack.c.l.b16 %v3327
    %v5699 = vunpack.c.h.b16 %v3327
    %v5700 = vunpack.c.l.b16 %v3328
    %v5701 = vunpack.c.h.b16 %v3328
    %v5702 = vunpack.c.l.b16 %v3329
    %v5703 = vunpack.c.h.b16 %v3329
    %v5704 = vunpack.c.l.b16 %v3330
    %v5705 = vunpack.c.h.b16 %v3330
    %v5706 = vunpack.c.l.b16 %v3331
    %v5707 = vunpack.c.h.b16 %v3331
    %v5708 = vunpack.c.l.b16 %v3332
    %v5709 = vunpack.c.h.b16 %v3332
    %v5710 = vunpack.c.l.b16 %v3333
    %v5711 = vunpack.c.h.b16 %v3333
    %v5712 = vunpack.c.l.b16 %v3334
    %v5713 = vunpack.c.h.b16 %v3334
    %v5714 = vunpack.c.l.b16 %v3335
    %v5715 = vunpack.c.h.b16 %v3335
    %v5716 = vunpack.c.l.b16 %v3336
    %v5717 = vunpack.c.h.b16 %v3336
    %v5718 = vunpack.c.l.b16 %v3337
    %v5719 = vunpack.c.h.b16 %v3337
    %v5720 = vunpack.c.l.b16 %v3338
    %v5721 = vunpack.c.h.b16 %v3338
    %v5722 = vunpack.c.l.b16 %v3339
    %v5723 = vunpack.c.h.b16 %v3339
    %v5724 = vunpack.c.l.b16 %v3340
    %v5725 = vunpack.c.h.b16 %v3340
    %v5726 = vunpack.c.l.b16 %v3341
    %v5727 = vunpack.c.h.b16 %v3341
    %v5728 = vunpack.c.l.b16 %v3342
    %v5729 = vunpack.c.h.b16 %v3342
    %v5730 = vunpack.c.l.b16 %v3343
    %v5731 = vunpack.c.h.b16 %v3343
    %v5732 = vunpack.c.l.b16 %v3344
    %v5733 = vunpack.c.h.b16 %v3344
    %v5734 = vunpack.c.l.b16 %v3345
    %v5735 = vunpack.c.h.b16 %v3345
    %v5736 = vunpack.c.l.b16 %v3346
    %v5737 = vunpack.c.h.b16 %v3346
    %v5738 = vunpack.c.l.b16 %v3347
    %v5739 = vunpack.c.h.b16 %v3347
    %v5740 = vunpack.c.l.b16 %v3348
    %v5741 = vunpack.c.h.b16 %v3348
    %v5742 = vunpack.c.l.b16 %v3349
    %v5743 = vunpack.c.h.b16 %v3349
    %v5744 = vunpack.c.l.b16 %v3350
    %v5745 = vunpack.c.h.b16 %v3350
    %v5746 = vunpack.c.l.b16 %v3351
    %v5747 = vunpack.c.h.b16 %v3351
    %v5748 = vunpack.c.l.b16 %v3352
    %v5749 = vunpack.c.h.b16 %v3352
    %v5750 = vunpack.c.l.b16 %v3353
    %v5751 = vunpack.c.h.b16 %v3353
    %v5752 = vunpack.c.l.b16 %v3354
    %v5753 = vunpack.c.h.b16 %v3354
    %v5754 = vunpack.c.l.b16 %v3355
    %v5755 = vunpack.c.h.b16 %v3355
    %v5756 = vunpack.c.l.b16 %v3356
    %v5757 = vunpack.c.h.b16 %v3356
    %v5758 = vunpack.c.l.b16 %v3357
    %v5759 = vunpack.c.h.b16 %v3357
    %v5760 = vunpack.c.l.b16 %v3358
    %v5761 = vunpack.c.h.b16 %v3358
    %v5762 = vunpack.c.l.b16 %v3359
    %v5763 = vunpack.c.h.b16 %v3359
    %v5764 = vunpack.c.l.b16 %v3360
    %v5765 = vunpack.c.h.b16 %v3360
    %v5766 = vunpack.c.l.b16 %v3361
    %v5767 = vunpack.c.h.b16 %v3361
    %v5768 = vunpack.c.l.b16 %v3362
    %v5769 = vunpack.c.h.b16 %v3362
    %v5770 = vunpack.c.l.b16 %v3363
    %v5771 = vunpack.c.h.b16 %v3363
    %v5772 = vunpack.c.l.b16 %v3364
    %v5773 = vunpack.c.h.b16 %v3364
    %v5774 = vunpack.c.l.b16 %v3365
    %v5775 = vunpack.c.h.b16 %v3365
    %v5776 = vunpack.c.l.b16 %v3366
    %v5777 = vunpack.c.h.b16 %v3366
    %v5778 = vunpack.c.l.b16 %v3367
    %v5779 = vunpack.c.h.b16 %v3367
    %v5780 = vunpack.c.l.b16 %v3368
    %v5781 = vunpack.c.h.b16 %v3368
    %v5782 = vunpack.c.l.b16 %v3369
    %v5783 = vunpack.c.h.b16 %v3369
    %v5784 = vunpack.c.l.b16 %v3370
    %v5785 = vunpack.c.h.b16 %v3370
    %v5786 = vunpack.c.l.b16 %v3371
    %v5787 = vunpack.c.h.b16 %v3371
    %v5788 = vunpack.c.l.b16 %v3372
    %v5789 = vunpack.c.h.b16 %v3372
    %v5790 = vunpack.c.l.b16 %v3373
    %v5791 = vunpack.c.h.b16 %v3373
    %v5792 = vunpack.c.l.b16 %v3374
    %v5793 = vunpack.c.h.b16 %v3374
    %v5794 = vunpack.c.l.b16 %v3375
    %v5795 = vunpack.c.h.b16 %v3375
    %v5796 = vunpack.c.l.b16 %v3376
    %v5797 = vunpack.c.h.b16 %v3376
    %v5798 = vunpack.c.l.b16 %v3377
    %v5799 = vunpack.c.h.b16 %v3377
    %v5800 = vunpack.c.l.b16 %v3378
    %v5801 = vunpack.c.h.b16 %v3378
    %v5802 = vunpack.c.l.b16 %v3379
    %v5803 = vunpack.c.h.b16 %v3379
    %v5804 = vunpack.c.l.b16 %v3380
    %v5805 = vunpack.c.h.b16 %v3380
    %v5806 = vunpack.c.l.b16 %v3381
    %v5807 = vunpack.c.h.b16 %v3381
    %v5808 = vunpack.c.l.b16 %v3382
    %v5809 = vunpack.c.h.b16 %v3382
    %v5810 = vunpack.c.l.b16 %v3383
    %v5811 = vunpack.c.h.b16 %v3383
    %v5812 = vunpack.c.l.b16 %v3384
    %v5813 = vunpack.c.h.b16 %v3384
    %v5814 = vunpack.c.l.b16 %v3385
    %v5815 = vunpack.c.h.b16 %v3385
    %v5816 = vunpack.c.l.b16 %v3386
    %v5817 = vunpack.c.h.b16 %v3386
    %v5818 = vunpack.c.l.b16 %v3387
    %v5819 = vunpack.c.h.b16 %v3387
    %v5820 = vunpack.c.l.b16 %v3388
    %v5821 = vunpack.c.h.b16 %v3388
    %v5822 = vunpack.c.l.b16 %v3389
    %v5823 = vunpack.c.h.b16 %v3389
    %v5824 = vunpack.c.l.b16 %v3390
    %v5825 = vunpack.c.h.b16 %v3390
    %v5826 = vunpack.c.l.b16 %v3391
    %v5827 = vunpack.c.h.b16 %v3391
    %v5828 = vunpack.c.l.b16 %v3392
    %v5829 = vunpack.c.h.b16 %v3392
    %v5830 = vunpack.c.l.b16 %v3393
    %v5831 = vunpack.c.h.b16 %v3393
    %v5832 = vunpack.c.l.b16 %v3394
    %v5833 = vunpack.c.h.b16 %v3394
    %v5834 = vunpack.c.l.b16 %v3395
    %v5835 = vunpack.c.h.b16 %v3395
    %v5836 = vunpack.c.l.b16 %v3396
    %v5837 = vunpack.c.h.b16 %v3396
    %v5838 = vunpack.c.l.b16 %v3397
    %v5839 = vunpack.c.h.b16 %v3397
    %v5840 = vunpack.c.l.b16 %v3398
    %v5841 = vunpack.c.h.b16 %v3398
    %v5842 = vunpack.c.l.b16 %v3399
    %v5843 = vunpack.c.h.b16 %v3399
    %v5844 = vunpack.c.l.b16 %v3400
    %v5845 = vunpack.c.h.b16 %v3400
    %v5846 = vunpack.c.l.b16 %v3401
    %v5847 = vunpack.c.h.b16 %v3401
    %v5848 = vunpack.c.l.b16 %v3402
    %v5849 = vunpack.c.h.b16 %v3402
    %v5850 = vunpack.c.l.b16 %v3403
    %v5851 = vunpack.c.h.b16 %v3403
    %v5852 = vunpack.c.l.b16 %v3404
    %v5853 = vunpack.c.h.b16 %v3404
    %v5854 = vunpack.c.l.b16 %v3405
    %v5855 = vunpack.c.h.b16 %v3405
    %v5856 = vunpack.c.l.b16 %v3406
    %v5857 = vunpack.c.h.b16 %v3406
    %v5858 = vunpack.c.l.b16 %v3407
    %v5859 = vunpack.c.h.b16 %v3407
    %v5860 = vunpack.c.l.b16 %v3408
    %v5861 = vunpack.c.h.b16 %v3408
    %v5862 = vunpack.c.l.b16 %v3409
    %v5863 = vunpack.c.h.b16 %v3409
    %v5864 = vunpack.c.l.b16 %v3410
    %v5865 = vunpack.c.h.b16 %v3410
    %v5866 = vunpack.c.l.b16 %v3411
    %v5867 = vunpack.c.h.b16 %v3411
    %v5868 = vunpack.c.l.b16 %v3412
    %v5869 = vunpack.c.h.b16 %v3412
    %v5870 = vunpack.c.l.b16 %v3413
    %v5871 = vunpack.c.h.b16 %v3413
    %v5872 = vunpack.c.l.b16 %v3414
    %v5873 = vunpack.c.h.b16 %v3414
    %v5874 = vunpack.c.l.b16 %v3415
    %v5875 = vunpack.c.h.b16 %v3415
    %v5876 = vunpack.c.l.b16 %v3416
    %v5877 = vunpack.c.h.b16 %v3416
    %v5878 = vunpack.c.l.b16 %v3417
    %v5879 = vunpack.c.h.b16 %v3417
    %v5880 = vunpack.c.l.b16 %v3418
    %v5881 = vunpack.c.h.b16 %v3418
    %v5882 = vunpack.c.l.b16 %v3419
    %v5883 = vunpack.c.h.b16 %v3419
    %v5884 = vunpack.c.l.b16 %v3420
    %v5885 = vunpack.c.h.b16 %v3420
    %v5886 = vunpack.c.l.b16 %v3421
    %v5887 = vunpack.c.h.b16 %v3421
    %v5888 = vunpack.c.l.b16 %v3422
    %v5889 = vunpack.c.h.b16 %v3422
    %v5890 = vunpack.c.l.b16 %v3423
    %v5891 = vunpack.c.h.b16 %v3423
    %v5892 = vunpack.c.l.b16 %v3424
    %v5893 = vunpack.c.h.b16 %v3424
    %v5894 = vunpack.c.l.b16 %v3425
    %v5895 = vunpack.c.h.b16 %v3425
    %v5896 = vunpack.c.l.b16 %v3426
    %v5897 = vunpack.c.h.b16 %v3426
    %v5898 = vunpack.c.l.b16 %v3427
    %v5899 = vunpack.c.h.b16 %v3427
    %v5900 = vunpack.c.l.b16 %v3428
    %v5901 = vunpack.c.h.b16 %v3428
    %v5902 = vunpack.c.l.b16 %v3429
    %v5903 = vunpack.c.h.b16 %v3429
    %v5904 = vunpack.c.l.b16 %v3430
    %v5905 = vunpack.c.h.b16 %v3430
    %v5906 = vunpack.c.l.b16 %v3431
    %v5907 = vunpack.c.h.b16 %v3431
    %v5908 = vunpack.c.l.b16 %v3432
    %v5909 = vunpack.c.h.b16 %v3432
    %v5910 = vunpack.c.l.b16 %v3433
    %v5911 = vunpack.c.h.b16 %v3433
    %v5912 = vunpack.c.l.b16 %v3434
    %v5913 = vunpack.c.h.b16 %v3434
    %v5914 = vunpack.c.l.b16 %v3435
    %v5915 = vunpack.c.h.b16 %v3435
    %v5916 = vunpack.c.l.b16 %v3436
    %v5917 = vunpack.c.h.b16 %v3436
    %v5918 = vunpack.c.l.b16 %v3437
    %v5919 = vunpack.c.h.b16 %v3437
    %v5920 = vunpack.c.l.b16 %v3438
    %v5921 = vunpack.c.h.b16 %v3438
    %v5922 = vunpack.c.l.b16 %v3439
    %v5923 = vunpack.c.h.b16 %v3439
    %v5924 = vunpack.c.l.b16 %v3440
    %v5925 = vunpack.c.h.b16 %v3440
    %v5926 = vunpack.c.l.b16 %v3441
    %v5927 = vunpack.c.h.b16 %v3441
    %v5928 = vunpack.c.l.b16 %v3442
    %v5929 = vunpack.c.h.b16 %v3442
    %v5930 = vunpack.c.l.b16 %v3443
    %v5931 = vunpack.c.h.b16 %v3443
    %v5932 = vunpack.c.l.b16 %v3444
    %v5933 = vunpack.c.h.b16 %v3444
    %v5934 = vunpack.c.l.b16 %v3445
    %v5935 = vunpack.c.h.b16 %v3445
    %v5936 = vunpack.c.l.b16 %v3446
    %v5937 = vunpack.c.h.b16 %v3446
    %v5938 = vunpack.c.l.b16 %v3447
    %v5939 = vunpack.c.h.b16 %v3447
    %v5940 = vunpack.c.l.b16 %v3448
    %v5941 = vunpack.c.h.b16 %v3448
    %v5942 = vunpack.c.l.b16 %v3449
    %v5943 = vunpack.c.h.b16 %v3449
    %v5944 = vunpack.c.l.b16 %v3450
    %v5945 = vunpack.c.h.b16 %v3450
    %v5946 = vunpack.c.l.b16 %v3451
    %v5947 = vunpack.c.h.b16 %v3451
    %v5948 = vunpack.c.l.b16 %v3452
    %v5949 = vunpack.c.h.b16 %v3452
    %v5950 = vunpack.c.l.b16 %v3453
    %v5951 = vunpack.c.h.b16 %v3453
    %v5952 = vunpack.c.l.b16 %v3454
    %v5953 = vunpack.c.h.b16 %v3454
    %v5954 = vunpack.c.l.b16 %v3455
    %v5955 = vunpack.c.h.b16 %v3455
    %v5956 = vunpack.c.l.b16 %v3456
    %v5957 = vunpack.c.h.b16 %v3456
    %v5958 = vunpack.c.l.b16 %v3457
    %v5959 = vunpack.c.h.b16 %v3457
    %v5960 = vunpack.c.l.b16 %v3458
    %v5961 = vunpack.c.h.b16 %v3458
    %v5962 = vunpack.c.l.b16 %v3459
    %v5963 = vunpack.c.h.b16 %v3459
    %v5964 = vunpack.c.l.b16 %v3460
    %v5965 = vunpack.c.h.b16 %v3460
    %v5966 = vunpack.c.l.b16 %v3461
    %v5967 = vunpack.c.h.b16 %v3461
    %v5968 = vunpack.c.l.b16 %v3462
    %v5969 = vunpack.c.h.b16 %v3462
    %v5970 = vunpack.c.l.b16 %v3463
    %v5971 = vunpack.c.h.b16 %v3463
    %v5972 = vunpack.c.l.b16 %v3464
    %v5973 = vunpack.c.h.b16 %v3464
    %v5974 = vunpack.c.l.b16 %v3465
    %v5975 = vunpack.c.h.b16 %v3465
    %v5976 = vunpack.c.l.b16 %v3466
    %v5977 = vunpack.c.h.b16 %v3466
    %v5978 = vunpack.c.l.b16 %v3467
    %v5979 = vunpack.c.h.b16 %v3467
    %v5980 = vunpack.c.l.b16 %v3468
    %v5981 = vunpack.c.h.b16 %v3468
    %v5982 = vunpack.c.l.b16 %v3469
    %v5983 = vunpack.c.h.b16 %v3469
    %v5984 = vunpack.c.l.b16 %v3470
    %v5985 = vunpack.c.h.b16 %v3470
    %v5986 = vunpack.c.l.b16 %v3471
    %v5987 = vunpack.c.h.b16 %v3471
    %v5988 = vunpack.c.l.b16 %v3472
    %v5989 = vunpack.c.h.b16 %v3472
    %v5990 = vunpack.c.l.b16 %v3473
    %v5991 = vunpack.c.h.b16 %v3473
    %v5992 = vunpack.c.l.b16 %v3474
    %v5993 = vunpack.c.h.b16 %v3474
    %v5994 = vunpack.c.l.b16 %v3475
    %v5995 = vunpack.c.h.b16 %v3475
    %v5996 = vunpack.c.l.b16 %v3476
    %v5997 = vunpack.c.h.b16 %v3476
    %v5998 = vunpack.c.l.b16 %v3477
    %v5999 = vunpack.c.h.b16 %v3477
    %v6000 = vunpack.c.l.b16 %v3478
    %v6001 = vunpack.c.h.b16 %v3478
    %v6002 = vunpack.c.l.b16 %v3479
    %v6003 = vunpack.c.h.b16 %v3479
    %v6004 = vunpack.c.l.b16 %v3480
    %v6005 = vunpack.c.h.b16 %v3480
    %v6006 = vunpack.c.l.b16 %v3481
    %v6007 = vunpack.c.h.b16 %v3481
    %v6008 = vunpack.c.l.b16 %v3482
    %v6009 = vunpack.c.h.b16 %v3482
    %v6010 = vunpack.c.l.b16 %v3483
    %v6011 = vunpack.c.h.b16 %v3483
    %v6012 = vunpack.c.l.b16 %v3484
    %v6013 = vunpack.c.h.b16 %v3484
    %v6014 = vunpack.c.l.b16 %v3485
    %v6015 = vunpack.c.h.b16 %v3485
    %v6016 = vunpack.c.l.b16 %v3486
    %v6017 = vunpack.c.h.b16 %v3486
    %v6018 = vunpack.c.l.b16 %v3487
    %v6019 = vunpack.c.h.b16 %v3487
    %v6020 = vunpack.c.l.b16 %v3488
    %v6021 = vunpack.c.h.b16 %v3488
    %v6022 = vunpack.c.l.b16 %v3489
    %v6023 = vunpack.c.h.b16 %v3489
    %v6024 = vunpack.c.l.b16 %v3490
    %v6025 = vunpack.c.h.b16 %v3490
    %v6026 = vunpack.c.l.b16 %v3491
    %v6027 = vunpack.c.h.b16 %v3491
    %v6028 = vunpack.c.l.b16 %v3492
    %v6029 = vunpack.c.h.b16 %v3492
    %v6030 = vunpack.c.l.b16 %v3493
    %v6031 = vunpack.c.h.b16 %v3493
    %v6032 = vunpack.c.l.b16 %v3494
    %v6033 = vunpack.c.h.b16 %v3494
    %v6034 = vunpack.c.l.b16 %v3495
    %v6035 = vunpack.c.h.b16 %v3495
    %v6036 = vunpack.c.l.b16 %v3496
    %v6037 = vunpack.c.h.b16 %v3496
    %v6038 = vunpack.c.l.b16 %v3497
    %v6039 = vunpack.c.h.b16 %v3497
    %v6040 = vunpack.c.l.b16 %v3498
    %v6041 = vunpack.c.h.b16 %v3498
    %v6042 = vunpack.c.l.b16 %v3499
    %v6043 = vunpack.c.h.b16 %v3499
    %v6044 = vunpack.c.l.b16 %v3500
    %v6045 = vunpack.c.h.b16 %v3500
    %v6046 = vunpack.c.l.b16 %v3501
    %v6047 = vunpack.c.h.b16 %v3501
    %v6048 = vunpack.c.l.b16 %v3502
    %v6049 = vunpack.c.h.b16 %v3502
    %v6050 = vunpack.c.l.b16 %v3503
    %v6051 = vunpack.c.h.b16 %v3503
    %v6052 = vunpack.c.l.b16 %v3504
    %v6053 = vunpack.c.h.b16 %v3504
    %v6054 = vunpack.c.l.b16 %v3505
    %v6055 = vunpack.c.h.b16 %v3505
    %v6056 = vunpack.c.l.b16 %v3506
    %v6057 = vunpack.c.h.b16 %v3506
    %v6058 = vunpack.c.l.b16 %v3507
    %v6059 = vunpack.c.h.b16 %v3507
    %v6060 = vunpack.c.l.b16 %v3508
    %v6061 = vunpack.c.h.b16 %v3508
    %v6062 = vunpack.c.l.b16 %v3509
    %v6063 = vunpack.c.h.b16 %v3509
    %v6064 = vunpack.c.l.b16 %v3510
    %v6065 = vunpack.c.h.b16 %v3510
    %v6066 = vunpack.c.l.b16 %v3511
    %v6067 = vunpack.c.h.b16 %v3511
    %v6068 = vunpack.c.l.b16 %v3512
    %v6069 = vunpack.c.h.b16 %v3512
    %v6070 = vunpack.c.l.b16 %v3513
    %v6071 = vunpack.c.h.b16 %v3513
    %v6072 = vunpack.c.l.b16 %v3514
    %v6073 = vunpack.c.h.b16 %v3514
    %v6074 = vunpack.c.l.b16 %v3515
    %v6075 = vunpack.c.h.b16 %v3515
    %v6076 = vunpack.c.l.b16 %v3516
    %v6077 = vunpack.c.h.b16 %v3516
    %v6078 = vunpack.c.l.b16 %v3517
    %v6079 = vunpack.c.h.b16 %v3517
    %v6080 = vunpack.c.l.b16 %v3518
    %v6081 = vunpack.c.h.b16 %v3518
    %v6082 = vunpack.c.l.b16 %v3519
    %v6083 = vunpack.c.h.b16 %v3519
    %v6084 = vunpack.c.l.b16 %v3520
    %v6085 = vunpack.c.h.b16 %v3520
    %v6086 = vunpack.c.l.b16 %v3521
    %v6087 = vunpack.c.h.b16 %v3521
    %v6088 = vunpack.c.l.b16 %v3522
    %v6089 = vunpack.c.h.b16 %v3522
    %v6090 = vunpack.c.l.b16 %v3523
    %v6091 = vunpack.c.h.b16 %v3523
    %v6092 = vunpack.c.l.b16 %v3524
    %v6093 = vunpack.c.h.b16 %v3524
    %v6094 = vunpack.c.l.b16 %v3525
    %v6095 = vunpack.c.h.b16 %v3525
    %v6096 = vunpack.c.l.b16 %v3526
    %v6097 = vunpack.c.h.b16 %v3526
    %v6098 = vunpack.c.l.b16 %v3527
    %v6099 = vunpack.c.h.b16 %v3527
    %v6100 = vunpack.c.l.b16 %v3528
    %v6101 = vunpack.c.h.b16 %v3528
    %v6102 = vunpack.c.l.b16 %v3529
    %v6103 = vunpack.c.h.b16 %v3529
    %v6104 = vunpack.c.l.b16 %v3530
    %v6105 = vunpack.c.h.b16 %v3530
    %v6106 = vunpack.c.l.b16 %v3531
    %v6107 = vunpack.c.h.b16 %v3531
    %v6108 = vunpack.c.l.b16 %v3532
    %v6109 = vunpack.c.h.b16 %v3532
    %v6110 = vunpack.c.l.b16 %v3533
    %v6111 = vunpack.c.h.b16 %v3533
    %v6112 = vunpack.c.l.b16 %v3534
    %v6113 = vunpack.c.h.b16 %v3534
    %v6114 = vunpack.c.l.b16 %v3535
    %v6115 = vunpack.c.h.b16 %v3535
    %v6116 = vunpack.c.l.b16 %v3536
    %v6117 = vunpack.c.h.b16 %v3536
    %v6118 = vunpack.c.l.b16 %v3537
    %v6119 = vunpack.c.h.b16 %v3537
    %v6120 = vunpack.c.l.b16 %v3538
    %v6121 = vunpack.c.h.b16 %v3538
    %v6122 = vunpack.c.l.b16 %v3539
    %v6123 = vunpack.c.h.b16 %v3539
    %v6124 = vunpack.c.l.b16 %v3540
    %v6125 = vunpack.c.h.b16 %v3540
    %v6126 = vunpack.c.l.b16 %v3541
    %v6127 = vunpack.c.h.b16 %v3541
    %v6128 = vunpack.c.l.b16 %v3542
    %v6129 = vunpack.c.h.b16 %v3542
    %v6130 = vunpack.c.l.b16 %v3543
    %v6131 = vunpack.c.h.b16 %v3543
    %v6132 = vunpack.c.l.b16 %v3544
    %v6133 = vunpack.c.h.b16 %v3544
    %v6134 = vunpack.c.l.b16 %v3545
    %v6135 = vunpack.c.h.b16 %v3545
    %v6136 = vunpack.c.l.b16 %v3546
    %v6137 = vunpack.c.h.b16 %v3546
    %v6138 = vunpack.c.l.b16 %v3547
    %v6139 = vunpack.c.h.b16 %v3547
    %v6140 = vunpack.c.l.b16 %v3548
    %v6141 = vunpack.c.h.b16 %v3548
    %v6142 = vunpack.c.l.b16 %v3549
    %v6143 = vunpack.c.h.b16 %v3549
    %v6144 = vunpack.c.l.b16 %v3550
    %v6145 = vunpack.c.h.b16 %v3550
    %v6146 = vunpack.c.l.b16 %v3551
    %v6147 = vunpack.c.h.b16 %v3551
    %v6148 = vunpack.c.l.b16 %v3552
    %v6149 = vunpack.c.h.b16 %v3552
    %v6150 = vunpack.c.l.b16 %v3553
    %v6151 = vunpack.c.h.b16 %v3553
    %v6152 = vunpack.c.l.b16 %v3554
    %v6153 = vunpack.c.h.b16 %v3554
    %v6154 = vunpack.c.l.b16 %v3555
    %v6155 = vunpack.c.h.b16 %v3555
    %v6156 = vunpack.c.l.b16 %v3556
    %v6157 = vunpack.c.h.b16 %v3556
    %v6158 = vunpack.c.l.b16 %v3557
    %v6159 = vunpack.c.h.b16 %v3557
    %v6160 = vunpack.c.l.b16 %v3558
    %v6161 = vunpack.c.h.b16 %v3558
    %v6162 = vunpack.c.l.b16 %v3559
    %v6163 = vunpack.c.h.b16 %v3559
    %v6164 = vunpack.c.l.b16 %v3560
    %v6165 = vunpack.c.h.b16 %v3560
    %v6166 = vunpack.c.l.b16 %v3561
    %v6167 = vunpack.c.h.b16 %v3561
    %v6168 = vunpack.c.l.b16 %v3562
    %v6169 = vunpack.c.h.b16 %v3562
    %v6170 = vunpack.c.l.b16 %v3563
    %v6171 = vunpack.c.h.b16 %v3563
    %v6172 = vunpack.c.l.b16 %v3564
    %v6173 = vunpack.c.h.b16 %v3564
    %v6174 = vunpack.c.l.b16 %v3565
    %v6175 = vunpack.c.h.b16 %v3565
    %v6176 = vunpack.c.l.b16 %v3566
    %v6177 = vunpack.c.h.b16 %v3566
    %v6178 = vunpack.c.l.b16 %v3567
    %v6179 = vunpack.c.h.b16 %v3567
    %v6180 = vunpack.c.l.b16 %v3568
    %v6181 = vunpack.c.h.b16 %v3568
    %v6182 = vunpack.c.l.b16 %v3569
    %v6183 = vunpack.c.h.b16 %v3569
    %v6184 = vunpack.c.l.b16 %v3570
    %v6185 = vunpack.c.h.b16 %v3570
    %v6186 = vunpack.c.l.b16 %v3571
    %v6187 = vunpack.c.h.b16 %v3571
    %v6188 = vunpack.c.l.b16 %v3572
    %v6189 = vunpack.c.h.b16 %v3572
    %v6190 = vunpack.c.l.b16 %v3573
    %v6191 = vunpack.c.h.b16 %v3573
    %v6192 = vunpack.c.l.b16 %v3574
    %v6193 = vunpack.c.h.b16 %v3574
    %v6194 = vunpack.c.l.b16 %v3575
    %v6195 = vunpack.c.h.b16 %v3575
    %v6196 = vunpack.c.l.b16 %v3576
    %v6197 = vunpack.c.h.b16 %v3576
    %v6198 = vunpack.c.l.b16 %v3577
    %v6199 = vunpack.c.h.b16 %v3577
    %v6200 = vunpack.c.l.b16 %v3578
    %v6201 = vunpack.c.h.b16 %v3578
    %v6202 = vunpack.c.l.b16 %v3579
    %v6203 = vunpack.c.h.b16 %v3579
    %v6204 = vunpack.c.l.b16 %v3580
    %v6205 = vunpack.c.h.b16 %v3580
    %v6206 = vunpack.c.l.b16 %v3581
    %v6207 = vunpack.c.h.b16 %v3581
    %v6208 = vunpack.c.l.b16 %v3582
    %v6209 = vunpack.c.h.b16 %v3582
    %v6210 = vunpack.c.l.b16 %v3583
    %v6211 = vunpack.c.h.b16 %v3583
    %v6212 = vunpack.c.l.b16 %v3584
    %v6213 = vunpack.c.h.b16 %v3584
    %v6214 = vunpack.c.l.b16 %v3585
    %v6215 = vunpack.c.h.b16 %v3585
    %v6216 = vunpack.c.l.b16 %v3586
    %v6217 = vunpack.c.h.b16 %v3586
    %v6218 = vunpack.c.l.b16 %v3587
    %v6219 = vunpack.c.h.b16 %v3587
    %v6220 = vunpack.c.l.b16 %v3588
    %v6221 = vunpack.c.h.b16 %v3588
    %v6222 = vunpack.c.l.b16 %v3589
    %v6223 = vunpack.c.h.b16 %v3589
    %v6224 = vunpack.c.l.b16 %v3590
    %v6225 = vunpack.c.h.b16 %v3590
    %v6226 = vunpack.c.l.b16 %v3591
    %v6227 = vunpack.c.h.b16 %v3591
    %v6228 = vunpack.c.l.b16 %v3592
    %v6229 = vunpack.c.h.b16 %v3592
    %v6230 = vunpack.c.l.b16 %v3593
    %v6231 = vunpack.c.h.b16 %v3593
    %v6232 = vunpack.c.l.b16 %v3594
    %v6233 = vunpack.c.h.b16 %v3594
    %v6234 = vunpack.c.l.b16 %v3595
    %v6235 = vunpack.c.h.b16 %v3595
    %v6236 = vunpack.c.l.b16 %v3596
    %v6237 = vunpack.c.h.b16 %v3596
    %v6238 = vunpack.c.l.b16 %v3597
    %v6239 = vunpack.c.h.b16 %v3597
    %v6240 = vunpack.c.l.b16 %v3598
    %v6241 = vunpack.c.h.b16 %v3598
    %v6242 = vunpack.c.l.b16 %v3599
    %v6243 = vunpack.c.h.b16 %v3599
    %v6244 = vunpack.c.l.b16 %v3600
    %v6245 = vunpack.c.h.b16 %v3600
    %v6246 = vunpack.c.l.b16 %v3601
    %v6247 = vunpack.c.h.b16 %v3601
    %v6248 = vunpack.c.l.b16 %v3602
    %v6249 = vunpack.c.h.b16 %v3602
    %v6250 = vunpack.c.l.b16 %v3603
    %v6251 = vunpack.c.h.b16 %v3603
    %v6252 = vunpack.c.l.b16 %v3604
    %v6253 = vunpack.c.h.b16 %v3604
    %v6254 = vunpack.c.l.b16 %v3605
    %v6255 = vunpack.c.h.b16 %v3605
    %v6256 = vunpack.c.l.b16 %v3606
    %v6257 = vunpack.c.h.b16 %v3606
    %v6258 = vunpack.c.l.b16 %v3607
    %v6259 = vunpack.c.h.b16 %v3607
    %v6260 = vunpack.c.l.b16 %v3608
    %v6261 = vunpack.c.h.b16 %v3608
    %v6262 = vunpack.c.l.b16 %v3609
    %v6263 = vunpack.c.h.b16 %v3609
    %v6264 = vunpack.c.l.b16 %v3610
    %v6265 = vunpack.c.h.b16 %v3610
    %v6266 = vunpack.c.l.b16 %v3611
    %v6267 = vunpack.c.h.b16 %v3611
    %v6268 = vunpack.c.l.b16 %v3612
    %v6269 = vunpack.c.h.b16 %v3612
    %v6270 = vunpack.c.l.b16 %v3613
    %v6271 = vunpack.c.h.b16 %v3613
    %v6272 = vunpack.c.l.b16 %v3614
    %v6273 = vunpack.c.h.b16 %v3614
    %v6274 = vunpack.c.l.b16 %v3615
    %v6275 = vunpack.c.h.b16 %v3615
    %v6276 = vunpack.c.l.b16 %v3616
    %v6277 = vunpack.c.h.b16 %v3616
    %v6278 = vunpack.c.l.b16 %v3617
    %v6279 = vunpack.c.h.b16 %v3617
    %v6280 = vunpack.c.l.b16 %v3618
    %v6281 = vunpack.c.h.b16 %v3618
    %v6282 = vunpack.c.l.b16 %v3619
    %v6283 = vunpack.c.h.b16 %v3619
    %v6284 = vunpack.c.l.b16 %v3620
    %v6285 = vunpack.c.h.b16 %v3620
    %v6286 = vunpack.c.l.b16 %v3621
    %v6287 = vunpack.c.h.b16 %v3621
    %v6288 = vunpack.c.l.b16 %v3622
    %v6289 = vunpack.c.h.b16 %v3622
    %v6290 = vunpack.c.l.b16 %v3623
    %v6291 = vunpack.c.h.b16 %v3623
    %v6292 = vunpack.c.l.b16 %v3624
    %v6293 = vunpack.c.h.b16 %v3624
    %v6294 = vunpack.c.l.b16 %v3625
    %v6295 = vunpack.c.h.b16 %v3625
    %v6296 = vunpack.c.l.b16 %v3626
    %v6297 = vunpack.c.h.b16 %v3626
    %v6298 = vunpack.c.l.b16 %v3627
    %v6299 = vunpack.c.h.b16 %v3627
    %v6300 = vunpack.c.l.b16 %v3628
    %v6301 = vunpack.c.h.b16 %v3628
    %v6302 = vunpack.c.l.b16 %v3629
    %v6303 = vunpack.c.h.b16 %v3629
    %v6304 = vunpack.c.l.b16 %v3630
    %v6305 = vunpack.c.h.b16 %v3630
    %v6306 = vunpack.c.l.b16 %v3631
    %v6307 = vunpack.c.h.b16 %v3631
    %v6308 = vunpack.c.l.b16 %v3632
    %v6309 = vunpack.c.h.b16 %v3632
    %v6310 = vunpack.c.l.b16 %v3633
    %v6311 = vunpack.c.h.b16 %v3633
    %v6312 = vunpack.c.l.b16 %v3634
    %v6313 = vunpack.c.h.b16 %v3634
    %v6314 = vunpack.c.l.b16 %v3635
    %v6315 = vunpack.c.h.b16 %v3635
    %v6316 = vunpack.c.l.b16 %v3636
    %v6317 = vunpack.c.h.b16 %v3636
    %v6318 = vunpack.c.l.b16 %v3637
    %v6319 = vunpack.c.h.b16 %v3637
    %v6320 = vunpack.c.l.b16 %v3638
    %v6321 = vunpack.c.h.b16 %v3638
    %v6322 = vunpack.c.l.b16 %v3639
    %v6323 = vunpack.c.h.b16 %v3639
    %v6324 = vunpack.c.l.b16 %v3640
    %v6325 = vunpack.c.h.b16 %v3640
    %v6326 = vunpack.c.l.b16 %v3641
    %v6327 = vunpack.c.h.b16 %v3641
    %v6328 = vunpack.c.l.b16 %v3642
    %v6329 = vunpack.c.h.b16 %v3642
    %v6330 = vunpack.c.l.b16 %v3643
    %v6331 = vunpack.c.h.b16 %v3643
    %v6332 = vunpack.c.l.b16 %v3644
    %v6333 = vunpack.c.h.b16 %v3644
    %v6334 = vunpack.c.l.b16 %v3645
    %v6335 = vunpack.c.h.b16 %v3645
    %v6336 = vunpack.c.l.b16 %v3646
    %v6337 = vunpack.c.h.b16 %v3646
    %v6338 = vunpack.c.l.b16 %v3647
    %v6339 = vunpack.c.h.b16 %v3647
    %v6340 = vunpack.c.l.b16 %v3648
    %v6341 = vunpack.c.h.b16 %v3648
    %v6342 = vunpack.c.l.b16 %v3649
    %v6343 = vunpack.c.h.b16 %v3649
    %v6344 = vunpack.c.l.b16 %v3650
    %v6345 = vunpack.c.h.b16 %v3650
    %v6346 = vunpack.c.l.b16 %v3651
    %v6347 = vunpack.c.h.b16 %v3651
    %v6348 = vunpack.c.l.b16 %v3652
    %v6349 = vunpack.c.h.b16 %v3652
    %v6350 = vunpack.c.l.b16 %v3653
    %v6351 = vunpack.c.h.b16 %v3653
    %v6352 = vunpack.c.l.b16 %v3654
    %v6353 = vunpack.c.h.b16 %v3654
    %v6354 = vunpack.c.l.b16 %v3655
    %v6355 = vunpack.c.h.b16 %v3655
    %v6356 = vunpack.c.l.b16 %v3656
    %v6357 = vunpack.c.h.b16 %v3656
    %v6358 = vunpack.c.l.b16 %v3657
    %v6359 = vunpack.c.h.b16 %v3657
    %v6360 = vunpack.c.l.b16 %v3658
    %v6361 = vunpack.c.h.b16 %v3658
    %v6362 = vunpack.c.l.b16 %v3659
    %v6363 = vunpack.c.h.b16 %v3659
    %v6364 = vunpack.c.l.b16 %v3660
    %v6365 = vunpack.c.h.b16 %v3660
    %v6366 = vunpack.c.l.b16 %v3661
    %v6367 = vunpack.c.h.b16 %v3661
    %v6368 = vunpack.c.l.b16 %v3662
    %v6369 = vunpack.c.h.b16 %v3662
    %v6370 = vunpack.c.l.b16 %v3663
    %v6371 = vunpack.c.h.b16 %v3663
    %v6372 = vunpack.c.l.b16 %v3664
    %v6373 = vunpack.c.h.b16 %v3664
    %v6374 = vunpack.c.l.b16 %v3665
    %v6375 = vunpack.c.h.b16 %v3665
    %v6376 = vunpack.c.l.b16 %v3666
    %v6377 = vunpack.c.h.b16 %v3666
    %v6378 = vunpack.c.l.b16 %v3667
    %v6379 = vunpack.c.h.b16 %v3667
    %v6380 = vunpack.c.l.b16 %v3668
    %v6381 = vunpack.c.h.b16 %v3668
    %v6382 = vunpack.c.l.b16 %v3669
    %v6383 = vunpack.c.h.b16 %v3669
    %v6384 = vunpack.c.l.b16 %v3670
    %v6385 = vunpack.c.h.b16 %v3670
    %v6386 = vunpack.c.l.b16 %v3671
    %v6387 = vunpack.c.h.b16 %v3671
    %v6388 = vunpack.c.l.b16 %v3672
    %v6389 = vunpack.c.h.b16 %v3672
    %v6390 = vunpack.c.l.b16 %v3673
    %v6391 = vunpack.c.h.b16 %v3673
    %v6392 = vunpack.c.l.b16 %v3674
    %v6393 = vunpack.c.h.b16 %v3674
    %v6394 = vunpack.c.l.b16 %v3675
    %v6395 = vunpack.c.h.b16 %v3675
    %v6396 = vunpack.c.l.b16 %v3676
    %v6397 = vunpack.c.h.b16 %v3676
    %v6398 = vunpack.c.l.b16 %v3677
    %v6399 = vunpack.c.h.b16 %v3677
    %v6400 = vunpack.c.l.b16 %v3678
    %v6401 = vunpack.c.h.b16 %v3678
    %v6402 = vunpack.c.l.b16 %v3679
    %v6403 = vunpack.c.h.b16 %v3679
    %v6404 = vunpack.c.l.b16 %v3680
    %v6405 = vunpack.c.h.b16 %v3680
    %v6406 = vunpack.c.l.b16 %v3681
    %v6407 = vunpack.c.h.b16 %v3681
    %v6408 = vunpack.c.l.b16 %v3682
    %v6409 = vunpack.c.h.b16 %v3682
    %v6410 = vunpack.c.l.b16 %v3683
    %v6411 = vunpack.c.h.b16 %v3683
    %v6412 = vunpack.c.l.b16 %v3684
    %v6413 = vunpack.c.h.b16 %v3684
    %v6414 = vunpack.c.l.b16 %v3685
    %v6415 = vunpack.c.h.b16 %v3685
    %v6416 = vunpack.c.l.b16 %v3686
    %v6417 = vunpack.c.h.b16 %v3686
    %v6418 = vunpack.c.l.b16 %v3687
    %v6419 = vunpack.c.h.b16 %v3687
    %v6420 = vunpack.c.l.b16 %v3688
    %v6421 = vunpack.c.h.b16 %v3688
    %v6422 = vunpack.c.l.b16 %v3689
    %v6423 = vunpack.c.h.b16 %v3689
    %v6424 = vunpack.c.l.b16 %v3690
    %v6425 = vunpack.c.h.b16 %v3690
    %v6426 = vunpack.c.l.b16 %v3691
    %v6427 = vunpack.c.h.b16 %v3691
    %v6428 = vunpack.c.l.b16 %v3692
    %v6429 = vunpack.c.h.b16 %v3692
    %v6430 = vunpack.c.l.b16 %v3693
    %v6431 = vunpack.c.h.b16 %v3693
    %v6432 = vunpack.c.l.b16 %v3694
    %v6433 = vunpack.c.h.b16 %v3694
    %v6434 = vunpack.c.l.b16 %v3695
    %v6435 = vunpack.c.h.b16 %v3695
    %v6436 = vunpack.c.l.b16 %v3696
    %v6437 = vunpack.c.h.b16 %v3696
    %v6438 = vunpack.c.l.b16 %v3697
    %v6439 = vunpack.c.h.b16 %v3697
    %v6440 = vunpack.c.l.b16 %v3698
    %v6441 = vunpack.c.h.b16 %v3698
    %v6442 = vunpack.c.l.b16 %v3699
    %v6443 = vunpack.c.h.b16 %v3699
    %v6444 = vunpack.c.l.b16 %v3700
    %v6445 = vunpack.c.h.b16 %v3700
    %v6446 = vunpack.c.l.b16 %v3701
    %v6447 = vunpack.c.h.b16 %v3701
    %v6448 = vunpack.c.l.b16 %v3702
    %v6449 = vunpack.c.h.b16 %v3702
    %v6450 = vunpack.c.l.b16 %v3703
    %v6451 = vunpack.c.h.b16 %v3703
    %v6452 = vunpack.c.l.b16 %v3704
    %v6453 = vunpack.c.h.b16 %v3704
    %v6454 = vunpack.c.l.b16 %v3705
    %v6455 = vunpack.c.h.b16 %v3705
    %v6456 = vunpack.c.l.b16 %v3706
    %v6457 = vunpack.c.h.b16 %v3706
    %v6458 = vunpack.c.l.b16 %v3707
    %v6459 = vunpack.c.h.b16 %v3707
    %v6460 = vunpack.c.l.b16 %v3708
    %v6461 = vunpack.c.h.b16 %v3708
    %v6462 = vunpack.c.l.b16 %v3709
    %v6463 = vunpack.c.h.b16 %v3709
    %v6464 = vunpack.c.l.b16 %v3710
    %v6465 = vunpack.c.h.b16 %v3710
    %v6466 = vunpack.c.l.b16 %v3711
    %v6467 = vunpack.c.h.b16 %v3711
    %v6468 = vunpack.c.l.b16 %v3712
    %v6469 = vunpack.c.h.b16 %v3712
    %v6470 = vunpack.c.l.b16 %v3713
    %v6471 = vunpack.c.h.b16 %v3713
    %v6472 = vunpack.c.l.b16 %v3714
    %v6473 = vunpack.c.h.b16 %v3714
    %v6474 = vunpack.c.l.b16 %v3715
    %v6475 = vunpack.c.h.b16 %v3715
    %v6476 = vunpack.c.l.b16 %v3716
    %v6477 = vunpack.c.h.b16 %v3716
    %v6478 = vunpack.c.l.b16 %v3717
    %v6479 = vunpack.c.h.b16 %v3717
    %v6480 = vunpack.c.l.b16 %v3718
    %v6481 = vunpack.c.h.b16 %v3718
    %v6482 = vunpack.c.l.b16 %v3719
    %v6483 = vunpack.c.h.b16 %v3719
    %v6484 = vunpack.c.l.b16 %v3720
    %v6485 = vunpack.c.h.b16 %v3720
    %v6486 = vunpack.c.l.b16 %v3721
    %v6487 = vunpack.c.h.b16 %v3721
    %v6488 = vunpack.c.l.b16 %v3722
    %v6489 = vunpack.c.h.b16 %v3722
    %v6490 = vunpack.c.l.b16 %v3723
    %v6491 = vunpack.c.h.b16 %v3723
    %v6492 = vunpack.c.l.b16 %v3724
    %v6493 = vunpack.c.h.b16 %v3724
    %v6494 = vunpack.c.l.b16 %v3725
    %v6495 = vunpack.c.h.b16 %v3725
    %v6496 = vunpack.c.l.b16 %v3726
    %v6497 = vunpack.c.h.b16 %v3726
    %v6498 = vunpack.c.l.b16 %v3727
    %v6499 = vunpack.c.h.b16 %v3727
    %v6500 = vunpack.c.l.b16 %v3728
    %v6501 = vunpack.c.h.b16 %v3728
    %v6502 = vunpack.c.l.b16 %v3729
    %v6503 = vunpack.c.h.b16 %v3729
    %v6504 = vunpack.c.l.b16 %v3730
    %v6505 = vunpack.c.h.b16 %v3730
    %v6506 = vunpack.c.l.b16 %v3731
    %v6507 = vunpack.c.h.b16 %v3731
    %v6508 = vunpack.c.l.b16 %v3732
    %v6509 = vunpack.c.h.b16 %v3732
    %v6510 = vunpack.c.l.b16 %v3733
    %v6511 = vunpack.c.h.b16 %v3733
    %v6512 = vunpack.c.l.b16 %v3734
    %v6513 = vunpack.c.h.b16 %v3734
    %v6514 = vunpack.c.l.b16 %v3735
    %v6515 = vunpack.c.h.b16 %v3735
    %v6516 = vunpack.c.l.b16 %v3736
    %v6517 = vunpack.c.h.b16 %v3736
    %v6518 = vunpack.c.l.b16 %v3737
    %v6519 = vunpack.c.h.b16 %v3737
    %v6520 = vunpack.c.l.b16 %v3738
    %v6521 = vunpack.c.h.b16 %v3738
    %v6522 = vunpack.c.l.b16 %v3739
    %v6523 = vunpack.c.h.b16 %v3739
    %v6524 = vunpack.c.l.b16 %v3740
    %v6525 = vunpack.c.h.b16 %v3740
    %v6526 = vunpack.c.l.b16 %v3741
    %v6527 = vunpack.c.h.b16 %v3741
    %v6528 = vunpack.c.l.b16 %v3742
    %v6529 = vunpack.c.h.b16 %v3742
    %v6530 = vunpack.c.l.b16 %v3743
    %v6531 = vunpack.c.h.b16 %v3743
    %v6532 = vunpack.c.l.b16 %v3744
    %v6533 = vunpack.c.h.b16 %v3744
    %v6534 = vunpack.c.l.b16 %v3745
    %v6535 = vunpack.c.h.b16 %v3745
    %v6536 = vunpack.c.l.b16 %v3746
    %v6537 = vunpack.c.h.b16 %v3746
    %v6538 = vunpack.c.l.b16 %v3747
    %v6539 = vunpack.c.h.b16 %v3747
    %v6540 = vunpack.c.l.b16 %v3748
    %v6541 = vunpack.c.h.b16 %v3748
    %v6542 = vunpack.c.l.b16 %v3749
    %v6543 = vunpack.c.h.b16 %v3749
    %v6544 = vunpack.c.l.b16 %v3750
    %v6545 = vunpack.c.h.b16 %v3750
    %v6546 = vunpack.c.l.b16 %v3751
    %v6547 = vunpack.c.h.b16 %v3751
    %v6548 = vunpack.c.l.b16 %v3752
    %v6549 = vunpack.c.h.b16 %v3752
    %v6550 = vunpack.c.l.b16 %v3753
    %v6551 = vunpack.c.h.b16 %v3753
    %v6552 = vunpack.c.l.b16 %v3754
    %v6553 = vunpack.c.h.b16 %v3754
    %v6554 = vunpack.c.l.b16 %v3755
    %v6555 = vunpack.c.h.b16 %v3755
    %v6556 = vunpack.c.l.b16 %v3756
    %v6557 = vunpack.c.h.b16 %v3756
    %v6558 = vunpack.c.l.b16 %v3757
    %v6559 = vunpack.c.h.b16 %v3757
    %v6560 = vunpack.c.l.b16 %v3758
    %v6561 = vunpack.c.h.b16 %v3758
    %v6562 = vunpack.c.l.b16 %v3759
    %v6563 = vunpack.c.h.b16 %v3759
    %v6564 = vunpack.c.l.b16 %v3760
    %v6565 = vunpack.c.h.b16 %v3760
    %v6566 = vunpack.c.l.b16 %v3761
    %v6567 = vunpack.c.h.b16 %v3761
    %v6568 = vunpack.c.l.b16 %v3762
    %v6569 = vunpack.c.h.b16 %v3762
    %v6570 = vunpack.c.l.b16 %v3763
    %v6571 = vunpack.c.h.b16 %v3763
    %v6572 = vunpack.c.l.b16 %v3764
    %v6573 = vunpack.c.h.b16 %v3764
    %v6574 = vunpack.c.l.b16 %v3765
    %v6575 = vunpack.c.h.b16 %v3765
    %v6576 = vunpack.c.l.b16 %v3766
    %v6577 = vunpack.c.h.b16 %v3766
    %v6578 = vunpack.c.l.b16 %v3767
    %v6579 = vunpack.c.h.b16 %v3767
    %v6580 = vunpack.c.l.b16 %v3768
    %v6581 = vunpack.c.h.b16 %v3768
    %v6582 = vunpack.c.l.b16 %v3769
    %v6583 = vunpack.c.h.b16 %v3769
    %v6584 = vunpack.c.l.b16 %v3770
    %v6585 = vunpack.c.h.b16 %v3770
    %v6586 = vunpack.c.l.b16 %v3771
    %v6587 = vunpack.c.h.b16 %v3771
    %v6588 = vunpack.c.l.b16 %v3772
    %v6589 = vunpack.c.h.b16 %v3772
    %v6590 = vunpack.c.l.b16 %v3773
    %v6591 = vunpack.c.h.b16 %v3773
    %v6592 = vunpack.c.l.b16 %v3774
    %v6593 = vunpack.c.h.b16 %v3774
    %v6594 = vunpack.c.l.b16 %v3775
    %v6595 = vunpack.c.h.b16 %v3775
    %v6596 = vunpack.c.l.b16 %v3776
    %v6597 = vunpack.c.h.b16 %v3776
    %v6598 = vunpack.c.l.b16 %v3777
    %v6599 = vunpack.c.h.b16 %v3777
    %v6600 = vunpack.c.l.b16 %v3778
    %v6601 = vunpack.c.h.b16 %v3778
    %v6602 = vunpack.c.l.b16 %v3779
    %v6603 = vunpack.c.h.b16 %v3779
    %v6604 = vunpack.c.l.b16 %v3780
    %v6605 = vunpack.c.h.b16 %v3780
    %v6606 = vunpack.c.l.b16 %v3781
    %v6607 = vunpack.c.h.b16 %v3781
    %v6608 = vunpack.c.l.b16 %v3782
    %v6609 = vunpack.c.h.b16 %v3782
    %v6610 = vunpack.c.l.b16 %v3783
    %v6611 = vunpack.c.h.b16 %v3783
    %v6612 = vunpack.c.l.b16 %v3784
    %v6613 = vunpack.c.h.b16 %v3784
    %v6614 = vunpack.c.l.b16 %v3785
    %v6615 = vunpack.c.h.b16 %v3785
    %v6616 = vunpack.c.l.b16 %v3786
    %v6617 = vunpack.c.h.b16 %v3786
    %v6618 = vunpack.c.l.b16 %v3787
    %v6619 = vunpack.c.h.b16 %v3787
    %v6620 = vunpack.c.l.b16 %v3788
    %v6621 = vunpack.c.h.b16 %v3788
    %v6622 = vunpack.c.l.b16 %v3789
    %v6623 = vunpack.c.h.b16 %v3789
    %v6624 = vunpack.c.l.b16 %v3790
    %v6625 = vunpack.c.h.b16 %v3790
    %v6626 = vunpack.c.l.b16 %v3791
    %v6627 = vunpack.c.h.b16 %v3791
    %v6628 = vunpack.c.l.b16 %v3792
    %v6629 = vunpack.c.h.b16 %v3792
    %v6630 = vunpack.c.l.b16 %v3793
    %v6631 = vunpack.c.h.b16 %v3793
    %v6632 = vunpack.c.l.b16 %v3794
    %v6633 = vunpack.c.h.b16 %v3794
    %v6634 = vunpack.c.l.b16 %v3795
    %v6635 = vunpack.c.h.b16 %v3795
    %v6636 = vunpack.c.l.b16 %v3796
    %v6637 = vunpack.c.h.b16 %v3796
    %v6638 = vunpack.c.l.b16 %v3797
    %v6639 = vunpack.c.h.b16 %v3797
    %v6640 = vunpack.c.l.b16 %v3798
    %v6641 = vunpack.c.h.b16 %v3798
    %v6642 = vunpack.c.l.b16 %v3799
    %v6643 = vunpack.c.h.b16 %v3799
    %v6644 = vunpack.c.l.b16 %v3800
    %v6645 = vunpack.c.h.b16 %v3800
    %v6646 = vunpack.c.l.b16 %v3801
    %v6647 = vunpack.c.h.b16 %v3801
    %v6648 = vunpack.c.l.b16 %v3802
    %v6649 = vunpack.c.h.b16 %v3802
    %v6650 = vunpack.c.l.b16 %v3803
    %v6651 = vunpack.c.h.b16 %v3803
    %v6652 = vunpack.c.l.b16 %v3804
    %v6653 = vunpack.c.h.b16 %v3804
    %v6654 = vunpack.c.l.b16 %v3805
    %v6655 = vunpack.c.h.b16 %v3805
    %v6656 = vunpack.c.l.b16 %v3806
    %v6657 = vunpack.c.h.b16 %v3806
    %v6658 = vunpack.c.l.b16 %v3807
    %v6659 = vunpack.c.h.b16 %v3807
    %v6660 = vunpack.c.l.b16 %v3808
    %v6661 = vunpack.c.h.b16 %v3808
    %v6662 = vunpack.c.l.b16 %v3809
    %v6663 = vunpack.c.h.b16 %v3809
    %v6664 = vunpack.c.l.b16 %v3810
    %v6665 = vunpack.c.h.b16 %v3810
    %v6666 = vunpack.c.l.b16 %v3811
    %v6667 = vunpack.c.h.b16 %v3811
    %v6668 = vunpack.c.l.b16 %v3812
    %v6669 = vunpack.c.h.b16 %v3812
    %v6670 = vunpack.c.l.b16 %v3813
    %v6671 = vunpack.c.h.b16 %v3813
    %v6672 = vunpack.c.l.b16 %v3814
    %v6673 = vunpack.c.h.b16 %v3814
    %v6674 = vunpack.c.l.b16 %v3815
    %v6675 = vunpack.c.h.b16 %v3815
    %v6676 = vunpack.c.l.b16 %v3816
    %v6677 = vunpack.c.h.b16 %v3816
    %v6678 = vunpack.c.l.b16 %v3817
    %v6679 = vunpack.c.h.b16 %v3817
    %v6680 = vunpack.c.l.b16 %v3818
    %v6681 = vunpack.c.h.b16 %v3818
    %v6682 = vunpack.c.l.b16 %v3819
    %v6683 = vunpack.c.h.b16 %v3819
    %v6684 = vunpack.c.l.b16 %v3820
    %v6685 = vunpack.c.h.b16 %v3820
    %v6686 = vunpack.c.l.b16 %v3821
    %v6687 = vunpack.c.h.b16 %v3821
    %v6688 = vunpack.c.l.b16 %v3822
    %v6689 = vunpack.c.h.b16 %v3822
    %v6690 = vunpack.c.l.b16 %v3823
    %v6691 = vunpack.c.h.b16 %v3823
    %v6692 = vunpack.c.l.b16 %v3824
    %v6693 = vunpack.c.h.b16 %v3824
    %v6694 = vunpack.c.l.b16 %v3825
    %v6695 = vunpack.c.h.b16 %v3825
    %v6696 = vunpack.c.l.b16 %v3826
    %v6697 = vunpack.c.h.b16 %v3826
    %v6698 = vunpack.c.l.b16 %v3827
    %v6699 = vunpack.c.h.b16 %v3827
    %v6700 = vunpack.c.l.b16 %v3828
    %v6701 = vunpack.c.h.b16 %v3828
    %v6702 = vunpack.c.l.b16 %v3829
    %v6703 = vunpack.c.h.b16 %v3829
    %v6704 = vunpack.c.l.b16 %v3830
    %v6705 = vunpack.c.h.b16 %v3830
    %v6706 = vunpack.c.l.b16 %v3831
    %v6707 = vunpack.c.h.b16 %v3831
    %v6708 = vunpack.c.l.b16 %v3832
    %v6709 = vunpack.c.h.b16 %v3832
    %v6710 = vunpack.c.l.b16 %v3833
    %v6711 = vunpack.c.h.b16 %v3833
    %v6712 = vunpack.c.l.b16 %v3834
    %v6713 = vunpack.c.h.b16 %v3834
    %v6714 = vunpack.c.l.b16 %v3835
    %v6715 = vunpack.c.h.b16 %v3835
    %v6716 = vunpack.c.l.b16 %v3836
    %v6717 = vunpack.c.h.b16 %v3836
    %v6718 = vunpack.c.l.b16 %v3837
    %v6719 = vunpack.c.h.b16 %v3837
    %v6720 = vunpack.c.l.b16 %v3838
    %v6721 = vunpack.c.h.b16 %v3838
    %v6722 = vunpack.c.l.b16 %v3839
    %v6723 = vunpack.c.h.b16 %v3839
    %v6724 = vunpack.c.l.b16 %v3840
    %v6725 = vunpack.c.h.b16 %v3840
    %v6726 = vunpack.c.l.b16 %v3841
    %v6727 = vunpack.c.h.b16 %v3841
    %v6728 = vunpack.c.l.b16 %v3842
    %v6729 = vunpack.c.h.b16 %v3842
    %v6730 = vunpack.c.l.b16 %v3843
    %v6731 = vunpack.c.h.b16 %v3843
    %v6732 = vunpack.c.l.b16 %v3844
    %v6733 = vunpack.c.h.b16 %v3844
    %v6734 = vunpack.c.l.b16 %v3845
    %v6735 = vunpack.c.h.b16 %v3845
    %v6736 = vunpack.c.l.b16 %v3846
    %v6737 = vunpack.c.h.b16 %v3846
    %v6738 = vunpack.c.l.b16 %v3847
    %v6739 = vunpack.c.h.b16 %v3847
    %v6740 = vunpack.c.l.b16 %v3848
    %v6741 = vunpack.c.h.b16 %v3848
    %v6742 = vunpack.c.l.b16 %v3849
    %v6743 = vunpack.c.h.b16 %v3849
    %v6744 = vunpack.c.l.b16 %v3850
    %v6745 = vunpack.c.h.b16 %v3850
    %v6746 = vunpack.c.l.b16 %v3851
    %v6747 = vunpack.c.h.b16 %v3851
    %v6748 = vunpack.c.l.b16 %v3852
    %v6749 = vunpack.c.h.b16 %v3852
    %v6750 = vunpack.c.l.b16 %v3853
    %v6751 = vunpack.c.h.b16 %v3853
    %v6752 = vunpack.c.l.b16 %v3854
    %v6753 = vunpack.c.h.b16 %v3854
    %v6754 = vunpack.c.l.b16 %v3855
    %v6755 = vunpack.c.h.b16 %v3855
    %v6756 = vunpack.c.l.b16 %v3856
    %v6757 = vunpack.c.h.b16 %v3856
    %v6758 = vunpack.c.l.b16 %v3857
    %v6759 = vunpack.c.h.b16 %v3857
    %v6760 = vunpack.c.l.b16 %v3858
    %v6761 = vunpack.c.h.b16 %v3858
    %v6762 = vunpack.c.l.b16 %v3859
    %v6763 = vunpack.c.h.b16 %v3859
    %v6764 = vunpack.c.l.b16 %v3860
    %v6765 = vunpack.c.h.b16 %v3860
    %v6766 = vunpack.c.l.b16 %v3861
    %v6767 = vunpack.c.h.b16 %v3861
    %v6768 = vunpack.c.l.b16 %v3862
    %v6769 = vunpack.c.h.b16 %v3862
    %v6770 = vunpack.c.l.b16 %v3863
    %v6771 = vunpack.c.h.b16 %v3863
    %v6772 = vunpack.c.l.b16 %v3864
    %v6773 = vunpack.c.h.b16 %v3864
    %v6774 = vunpack.c.l.b16 %v3865
    %v6775 = vunpack.c.h.b16 %v3865
    %v6776 = vunpack.c.l.b16 %v3866
    %v6777 = vunpack.c.h.b16 %v3866
    %v6778 = vunpack.c.l.b16 %v3867
    %v6779 = vunpack.c.h.b16 %v3867
    %v6780 = vunpack.c.l.b16 %v3868
    %v6781 = vunpack.c.h.b16 %v3868
    %v6782 = vunpack.c.l.b16 %v3869
    %v6783 = vunpack.c.h.b16 %v3869
    %v6784 = vunpack.c.l.b16 %v3870
    %v6785 = vunpack.c.h.b16 %v3870
    %v6786 = vunpack.c.l.b16 %v3871
    %v6787 = vunpack.c.h.b16 %v3871
    %v6788 = vunpack.c.l.b16 %v3872
    %v6789 = vunpack.c.h.b16 %v3872
    %v6790 = vunpack.c.l.b16 %v3873
    %v6791 = vunpack.c.h.b16 %v3873
    %v6792 = vunpack.c.l.b16 %v3874
    %v6793 = vunpack.c.h.b16 %v3874
    %v6794 = vunpack.c.l.b16 %v3875
    %v6795 = vunpack.c.h.b16 %v3875
    %v6796 = vunpack.c.l.b16 %v3876
    %v6797 = vunpack.c.h.b16 %v3876
    %v6798 = vunpack.c.l.b16 %v3877
    %v6799 = vunpack.c.h.b16 %v3877
    %v6800 = vunpack.c.l.b16 %v3878
    %v6801 = vunpack.c.h.b16 %v3878
    %v6802 = vunpack.c.l.b16 %v3879
    %v6803 = vunpack.c.h.b16 %v3879
    %v6804 = vunpack.c.l.b16 %v3880
    %v6805 = vunpack.c.h.b16 %v3880
    %v6806 = vunpack.c.l.b16 %v3881
    %v6807 = vunpack.c.h.b16 %v3881
    %v6808 = vunpack.c.l.b16 %v3882
    %v6809 = vunpack.c.h.b16 %v3882
    %v6810 = vunpack.c.l.b16 %v3883
    %v6811 = vunpack.c.h.b16 %v3883
    %v6812 = vunpack.c.l.b16 %v3884
    %v6813 = vunpack.c.h.b16 %v3884
    %v6814 = vunpack.c.l.b16 %v3885
    %v6815 = vunpack.c.h.b16 %v3885
    %v6816 = vunpack.c.l.b16 %v3886
    %v6817 = vunpack.c.h.b16 %v3886
    %v6818 = vunpack.c.l.b16 %v3887
    %v6819 = vunpack.c.h.b16 %v3887
    %v6820 = vunpack.c.l.b16 %v3888
    %v6821 = vunpack.c.h.b16 %v3888
    %v6822 = vunpack.c.l.b16 %v3889
    %v6823 = vunpack.c.h.b16 %v3889
    %v6824 = vunpack.c.l.b16 %v3890
    %v6825 = vunpack.c.h.b16 %v3890
    %v6826 = vunpack.c.l.b16 %v3891
    %v6827 = vunpack.c.h.b16 %v3891
    %v6828 = vunpack.c.l.b16 %v3892
    %v6829 = vunpack.c.h.b16 %v3892
    %v6830 = vunpack.c.l.b16 %v3893
    %v6831 = vunpack.c.h.b16 %v3893
    %v6832 = vunpack.c.l.b16 %v3894
    %v6833 = vunpack.c.h.b16 %v3894
    %v6834 = vunpack.c.l.b16 %v3895
    %v6835 = vunpack.c.h.b16 %v3895
    %v6836 = vunpack.c.l.b16 %v3896
    %v6837 = vunpack.c.h.b16 %v3896
    %v6838 = vunpack.c.l.b16 %v3897
    %v6839 = vunpack.c.h.b16 %v3897
    %v6840 = vunpack.c.l.b16 %v3898
    %v6841 = vunpack.c.h.b16 %v3898
    %v6842 = vunpack.c.l.b16 %v3899
    %v6843 = vunpack.c.h.b16 %v3899
    %v6844 = vunpack.c.l.b16 %v3900
    %v6845 = vunpack.c.h.b16 %v3900
    %v6846 = vunpack.c.l.b16 %v3901
    %v6847 = vunpack.c.h.b16 %v3901
    %v6848 = vunpack.c.l.b16 %v3902
    %v6849 = vunpack.c.h.b16 %v3902
    %v6850 = vunpack.c.l.b16 %v3903
    %v6851 = vunpack.c.h.b16 %v3903
    %v6852 = vunpack.c.l.b16 %v3904
    %v6853 = vunpack.c.h.b16 %v3904
    %v6854 = vunpack.c.l.b16 %v3905
    %v6855 = vunpack.c.h.b16 %v3905
    %v6856 = vunpack.c.l.b16 %v3906
    %v6857 = vunpack.c.h.b16 %v3906
    %v6858 = vunpack.c.l.b16 %v3907
    %v6859 = vunpack.c.h.b16 %v3907
    %v6860 = vunpack.c.l.b16 %v3908
    %v6861 = vunpack.c.h.b16 %v3908
    %v6862 = vunpack.c.l.b16 %v3909
    %v6863 = vunpack.c.h.b16 %v3909
    %v6864 = vunpack.c.l.b16 %v3910
    %v6865 = vunpack.c.h.b16 %v3910
    %v6866 = vunpack.c.l.b16 %v3911
    %v6867 = vunpack.c.h.b16 %v3911
    %v6868 = vunpack.c.l.b16 %v3912
    %v6869 = vunpack.c.h.b16 %v3912
    %v6870 = vunpack.c.l.b16 %v3913
    %v6871 = vunpack.c.h.b16 %v3913
    %v6872 = vunpack.c.l.b16 %v3914
    %v6873 = vunpack.c.h.b16 %v3914
    %v6874 = vunpack.c.l.b16 %v3915
    %v6875 = vunpack.c.h.b16 %v3915
    %v6876 = vunpack.c.l.b16 %v3916
    %v6877 = vunpack.c.h.b16 %v3916
    %v6878 = vunpack.c.l.b16 %v3917
    %v6879 = vunpack.c.h.b16 %v3917
    %v6880 = vunpack.c.l.b16 %v3918
    %v6881 = vunpack.c.h.b16 %v3918
    %v6882 = vunpack.c.l.b16 %v3919
    %v6883 = vunpack.c.h.b16 %v3919
    %v6884 = vunpack.c.l.b16 %v3920
    %v6885 = vunpack.c.h.b16 %v3920
    %v6886 = vunpack.c.l.b16 %v3921
    %v6887 = vunpack.c.h.b16 %v3921
    %v6888 = vunpack.c.l.b16 %v3922
    %v6889 = vunpack.c.h.b16 %v3922
    %v6890 = vunpack.c.l.b16 %v3923
    %v6891 = vunpack.c.h.b16 %v3923
    %v6892 = vunpack.c.l.b16 %v3924
    %v6893 = vunpack.c.h.b16 %v3924
    %v6894 = vunpack.c.l.b16 %v3925
    %v6895 = vunpack.c.h.b16 %v3925
    %v6896 = vunpack.c.l.b16 %v3926
    %v6897 = vunpack.c.h.b16 %v3926
    %v6898 = vunpack.c.l.b16 %v3927
    %v6899 = vunpack.c.h.b16 %v3927
    %v6900 = vunpack.c.l.b16 %v3928
    %v6901 = vunpack.c.h.b16 %v3928
    %v6902 = vunpack.c.l.b16 %v3929
    %v6903 = vunpack.c.h.b16 %v3929
    %v6904 = vunpack.c.l.b16 %v3930
    %v6905 = vunpack.c.h.b16 %v3930
    %v6906 = vunpack.c.l.b16 %v3931
    %v6907 = vunpack.c.h.b16 %v3931
    %v6908 = vunpack.c.l.b16 %v3932
    %v6909 = vunpack.c.h.b16 %v3932
    %v6910 = vunpack.c.l.b16 %v3933
    %v6911 = vunpack.c.h.b16 %v3933
    %v6912 = vunpack.c.l.b16 %v3934
    %v6913 = vunpack.c.h.b16 %v3934
    %v6914 = vunpack.c.l.b16 %v3935
    %v6915 = vunpack.c.h.b16 %v3935
    %v6916 = vunpack.c.l.b16 %v3936
    %v6917 = vunpack.c.h.b16 %v3936
    %v6918 = vunpack.c.l.b16 %v3937
    %v6919 = vunpack.c.h.b16 %v3937
    %v6920 = vunpack.c.l.b16 %v3938
    %v6921 = vunpack.c.h.b16 %v3938
    %v6922 = vunpack.c.l.b16 %v3939
    %v6923 = vunpack.c.h.b16 %v3939
    %v6924 = vunpack.c.l.b16 %v3940
    %v6925 = vunpack.c.h.b16 %v3940
    %v6926 = vunpack.c.l.b16 %v3941
    %v6927 = vunpack.c.h.b16 %v3941
    %v6928 = vunpack.c.l.b16 %v3942
    %v6929 = vunpack.c.h.b16 %v3942
    %v6930 = vunpack.c.l.b16 %v3943
    %v6931 = vunpack.c.h.b16 %v3943
    %v6932 = vunpack.c.l.b16 %v3944
    %v6933 = vunpack.c.h.b16 %v3944
    %v6934 = vunpack.c.l.b16 %v3945
    %v6935 = vunpack.c.h.b16 %v3945
    %v6936 = vunpack.c.l.b16 %v3946
    %v6937 = vunpack.c.h.b16 %v3946
    %v6938 = vunpack.c.l.b16 %v3947
    %v6939 = vunpack.c.h.b16 %v3947
    %v6940 = vunpack.c.l.b16 %v3948
    %v6941 = vunpack.c.h.b16 %v3948
    %v6942 = vunpack.c.l.b16 %v3949
    %v6943 = vunpack.c.h.b16 %v3949
    %v6944 = vunpack.c.l.b16 %v3950
    %v6945 = vunpack.c.h.b16 %v3950
    %v6946 = vunpack.c.l.b16 %v3951
    %v6947 = vunpack.c.h.b16 %v3951
    %v6948 = vunpack.c.l.b16 %v3952
    %v6949 = vunpack.c.h.b16 %v3952
    %v6950 = vunpack.c.l.b16 %v3953
    %v6951 = vunpack.c.h.b16 %v3953
    %v6952 = vunpack.c.l.b16 %v3954
    %v6953 = vunpack.c.h.b16 %v3954
    %v6954 = vunpack.c.l.b16 %v3955
    %v6955 = vunpack.c.h.b16 %v3955
    %v6956 = vunpack.c.l.b16 %v3956
    %v6957 = vunpack.c.h.b16 %v3956
    %v6958 = vunpack.c.l.b16 %v3957
    %v6959 = vunpack.c.h.b16 %v3957
    %v6960 = vunpack.c.l.b16 %v3958
    %v6961 = vunpack.c.h.b16 %v3958
    %v6962 = vunpack.c.l.b16 %v3959
    %v6963 = vunpack.c.h.b16 %v3959
    %v6964 = vunpack.c.l.b16 %v3960
    %v6965 = vunpack.c.h.b16 %v3960
    %v6966 = vunpack.c.l.b16 %v3961
    %v6967 = vunpack.c.h.b16 %v3961
    %v6968 = vunpack.c.l.b16 %v3962
    %v6969 = vunpack.c.h.b16 %v3962
    %v6970 = vunpack.c.l.b16 %v3963
    %v6971 = vunpack.c.h.b16 %v3963
    %v6972 = vunpack.c.l.b16 %v3964
    %v6973 = vunpack.c.h.b16 %v3964
    %v6974 = vunpack.c.l.b16 %v3965
    %v6975 = vunpack.c.h.b16 %v3965
    %v6976 = vunpack.c.l.b16 %v3966
    %v6977 = vunpack.c.h.b16 %v3966
    %v6978 = vunpack.c.l.b16 %v3967
    %v6979 = vunpack.c.h.b16 %v3967
    %v6980 = vunpack.c.l.b16 %v3968
    %v6981 = vunpack.c.h.b16 %v3968
    %v6982 = vunpack.c.l.b16 %v3969
    %v6983 = vunpack.c.h.b16 %v3969
    %v6984 = vunpack.c.l.b16 %v3970
    %v6985 = vunpack.c.h.b16 %v3970
    %v6986 = vunpack.c.l.b16 %v3971
    %v6987 = vunpack.c.h.b16 %v3971
    %v6988 = vunpack.c.l.b16 %v3972
    %v6989 = vunpack.c.h.b16 %v3972
    %v6990 = vunpack.c.l.b16 %v3973
    %v6991 = vunpack.c.h.b16 %v3973
    %v6992 = vunpack.c.l.b16 %v3974
    %v6993 = vunpack.c.h.b16 %v3974
    %v6994 = vunpack.c.l.b16 %v3975
    %v6995 = vunpack.c.h.b16 %v3975
    %v6996 = vunpack.c.l.b16 %v3976
    %v6997 = vunpack.c.h.b16 %v3976
    %v6998 = vunpack.c.l.b16 %v3977
    %v6999 = vunpack.c.h.b16 %v3977
    %v7000 = vunpack.c.l.b16 %v3978
    %v7001 = vunpack.c.h.b16 %v3978
    %v7002 = vunpack.c.l.b16 %v3979
    %v7003 = vunpack.c.h.b16 %v3979
    %v7004 = vunpack.c.l.b16 %v3980
    %v7005 = vunpack.c.h.b16 %v3980
    %v7006 = vunpack.c.l.b16 %v3981
    %v7007 = vunpack.c.h.b16 %v3981
    %v7008 = vunpack.c.l.b16 %v3982
    %v7009 = vunpack.c.h.b16 %v3982
    %v7010 = vunpack.c.l.b16 %v3983
    %v7011 = vunpack.c.h.b16 %v3983
    %v7012 = vunpack.c.l.b16 %v3984
    %v7013 = vunpack.c.h.b16 %v3984
    %v7014 = vunpack.c.l.b16 %v3985
    %v7015 = vunpack.c.h.b16 %v3985
    %v7016 = vunpack.c.l.b16 %v3986
    %v7017 = vunpack.c.h.b16 %v3986
    %v7018 = vunpack.c.l.b16 %v3987
    %v7019 = vunpack.c.h.b16 %v3987
    %v7020 = vunpack.c.l.b16 %v3988
    %v7021 = vunpack.c.h.b16 %v3988
    %v7022 = vunpack.c.l.b16 %v3989
    %v7023 = vunpack.c.h.b16 %v3989
    %v7024 = vunpack.c.l.b16 %v3990
    %v7025 = vunpack.c.h.b16 %v3990
    %v7026 = vunpack.c.l.b16 %v3991
    %v7027 = vunpack.c.h.b16 %v3991
    %v7028 = vunpack.c.l.b16 %v3992
    %v7029 = vunpack.c.h.b16 %v3992
    %v7030 = vunpack.c.l.b16 %v3993
    %v7031 = vunpack.c.h.b16 %v3993
    %v7032 = vunpack.c.l.b16 %v3994
    %v7033 = vunpack.c.h.b16 %v3994
    %v7034 = vunpack.c.l.b16 %v3995
    %v7035 = vunpack.c.h.b16 %v3995
    %v7036 = vunpack.c.l.b16 %v3996
    %v7037 = vunpack.c.h.b16 %v3996
    %v7038 = vunpack.c.l.b16 %v3997
    %v7039 = vunpack.c.h.b16 %v3997
    %v7040 = vunpack.c.l.b16 %v3998
    %v7041 = vunpack.c.h.b16 %v3998
    %v7042 = vunpack.c.l.b16 %v3999
    %v7043 = vunpack.c.h.b16 %v3999
    %v7044 = vunpack.c.l.b16 %v4000
    %v7045 = vunpack.c.h.b16 %v4000
    %v7046 = vunpack.c.l.b16 %v4001
    %v7047 = vunpack.c.h.b16 %v4001
    %v7048 = vunpack.c.l.b16 %v4002
    %v7049 = vunpack.c.h.b16 %v4002
    %v7050 = vunpack.c.l.b16 %v4003
    %v7051 = vunpack.c.h.b16 %v4003
    %v7052 = vunpack.c.l.b16 %v4004
    %v7053 = vunpack.c.h.b16 %v4004
    %v7054 = vunpack.c.l.b16 %v4005
    %v7055 = vunpack.c.h.b16 %v4005
    %v7056 = vunpack.c.l.b16 %v4006
    %v7057 = vunpack.c.h.b16 %v4006
    %v7058 = vunpack.c.l.b16 %v4007
    %v7059 = vunpack.c.h.b16 %v4007
    %v7060 = vunpack.c.l.b16 %v4008
    %v7061 = vunpack.c.h.b16 %v4008
    %v7062 = vunpack.c.l.b16 %v4009
    %v7063 = vunpack.c.h.b16 %v4009
    %v7064 = vunpack.c.l.b16 %v4010
    %v7065 = vunpack.c.h.b16 %v4010
    %v7066 = vunpack.c.l.b16 %v4011
    %v7067 = vunpack.c.h.b16 %v4011
    %v7068 = vunpack.c.l.b16 %v4012
    %v7069 = vunpack.c.h.b16 %v4012
    %v7070 = vunpack.c.l.b16 %v4013
    %v7071 = vunpack.c.h.b16 %v4013
    %v7072 = vunpack.c.l.b16 %v4014
    %v7073 = vunpack.c.h.b16 %v4014
    %v7074 = vunpack.c.l.b16 %v4015
    %v7075 = vunpack.c.h.b16 %v4015
    %v7076 = vunpack.c.l.b16 %v4016
    %v7077 = vunpack.c.h.b16 %v4016
    %v7078 = vunpack.c.l.b16 %v4017
    %v7079 = vunpack.c.h.b16 %v4017
    %v7080 = vunpack.c.l.b16 %v4018
    %v7081 = vunpack.c.h.b16 %v4018
    %v7082 = vunpack.c.l.b16 %v4019
    %v7083 = vunpack.c.h.b16 %v4019
    %v7084 = vunpack.c.l.b16 %v4020
    %v7085 = vunpack.c.h.b16 %v4020
    %v7086 = vunpack.c.l.b16 %v4021
    %v7087 = vunpack.c.h.b16 %v4021
    %v7088 = vunpack.c.l.b16 %v4022
    %v7089 = vunpack.c.h.b16 %v4022
    %v7090 = vunpack.c.l.b16 %v4023
    %v7091 = vunpack.c.h.b16 %v4023
    %v7092 = vunpack.c.l.b16 %v4024
    %v7093 = vunpack.c.h.b16 %v4024
    %v7094 = vunpack.c.l.b16 %v4025
    %v7095 = vunpack.c.h.b16 %v4025
    %v7096 = vunpack.c.l.b16 %v4026
    %v7097 = vunpack.c.h.b16 %v4026
    %v7098 = vunpack.c.l.b16 %v4027
    %v7099 = vunpack.c.h.b16 %v4027
    %v7100 = vunpack.c.l.b16 %v4028
    %v7101 = vunpack.c.h.b16 %v4028
    %v7102 = vunpack.c.l.b16 %v4029
    %v7103 = vunpack.c.h.b16 %v4029
    %v7104 = vunpack.c.l.b16 %v4030
    %v7105 = vunpack.c.h.b16 %v4030
    %v7106 = vunpack.c.l.b16 %v4031
    %v7107 = vunpack.c.h.b16 %v4031
    %v7108 = vunpack.c.l.b16 %v4032
    %v7109 = vunpack.c.h.b16 %v4032
    %v7110 = vunpack.c.l.b16 %v4033
    %v7111 = vunpack.c.h.b16 %v4033
    %v7112 = vunpack.c.l.b16 %v4034
    %v7113 = vunpack.c.h.b16 %v4034
    %v7114 = vunpack.c.l.b16 %v4035
    %v7115 = vunpack.c.h.b16 %v4035
    %v7116 = vunpack.c.l.b16 %v4036
    %v7117 = vunpack.c.h.b16 %v4036
    %v7118 = vunpack.c.l.b16 %v4037
    %v7119 = vunpack.c.h.b16 %v4037
    %v7120 = vunpack.c.l.b16 %v4038
    %v7121 = vunpack.c.h.b16 %v4038
    %v7122 = vunpack.c.l.b16 %v4039
    %v7123 = vunpack.c.h.b16 %v4039
    %v7124 = vunpack.c.l.b16 %v4040
    %v7125 = vunpack.c.h.b16 %v4040
    %v7126 = vunpack.c.l.b16 %v4041
    %v7127 = vunpack.c.h.b16 %v4041
    %v7128 = vunpack.c.l.b16 %v4042
    %v7129 = vunpack.c.h.b16 %v4042
    %v7130 = vunpack.c.l.b16 %v4043
    %v7131 = vunpack.c.h.b16 %v4043
    %v7132 = vunpack.c.l.b16 %v4044
    %v7133 = vunpack.c.h.b16 %v4044
    %v7134 = vunpack.c.l.b16 %v4045
    %v7135 = vunpack.c.h.b16 %v4045
    %v7136 = vunpack.c.l.b16 %v4046
    %v7137 = vunpack.c.h.b16 %v4046
    %v7138 = vunpack.c.l.b16 %v4047
    %v7139 = vunpack.c.h.b16 %v4047
    %v7140 = vunpack.c.l.b16 %v4048
    %v7141 = vunpack.c.h.b16 %v4048
    %v7142 = vunpack.c.l.b16 %v4049
    %v7143 = vunpack.c.h.b16 %v4049
    %v7144 = vunpack.c.l.b16 %v4050
    %v7145 = vunpack.c.h.b16 %v4050
    %v7146 = vunpack.c.l.b16 %v4051
    %v7147 = vunpack.c.h.b16 %v4051
    %v7148 = vunpack.c.l.b16 %v4052
    %v7149 = vunpack.c.h.b16 %v4052
    %v7150 = vunpack.c.l.b16 %v4053
    %v7151 = vunpack.c.h.b16 %v4053
    %v7152 = vunpack.c.l.b16 %v4054
    %v7153 = vunpack.c.h.b16 %v4054
    %v7154 = vunpack.c.l.b16 %v4055
    %v7155 = vunpack.c.h.b16 %v4055
    %v7156 = vunpack.c.l.b16 %v4056
    %v7157 = vunpack.c.h.b16 %v4056
    %v7158 = vunpack.c.l.b16 %v4057
    %v7159 = vunpack.c.h.b16 %v4057
    %v7160 = vunpack.c.l.b16 %v4058
    %v7161 = vunpack.c.h.b16 %v4058
    %v7162 = vunpack.c.l.b16 %v4059
    %v7163 = vunpack.c.h.b16 %v4059
    %v7164 = vunpack.c.l.b16 %v4060
    %v7165 = vunpack.c.h.b16 %v4060
    %v7166 = vunpack.c.l.b16 %v4061
    %v7167 = vunpack.c.h.b16 %v4061
    %v7168 = vunpack.c.l.b16 %v4062
    %v7169 = vunpack.c.h.b16 %v4062
    %v7170 = vunpack.c.l.b16 %v4063
    %v7171 = vunpack.c.h.b16 %v4063
    %v7172 = vunpack.c.l.b16 %v4064
    %v7173 = vunpack.c.h.b16 %v4064
    %v7174 = vunpack.c.l.b16 %v4065
    %v7175 = vunpack.c.h.b16 %v4065
    %v7176 = vunpack.c.l.b16 %v4066
    %v7177 = vunpack.c.h.b16 %v4066
    %v7178 = vunpack.c.l.b16 %v4067
    %v7179 = vunpack.c.h.b16 %v4067
    %v7180 = vunpack.c.l.b16 %v4068
    %v7181 = vunpack.c.h.b16 %v4068
    %v7182 = vunpack.c.l.b16 %v4069
    %v7183 = vunpack.c.h.b16 %v4069
    %v7184 = vunpack.c.l.b16 %v4070
    %v7185 = vunpack.c.h.b16 %v4070
    %v7186 = vunpack.c.l.b16 %v4071
    %v7187 = vunpack.c.h.b16 %v4071
    %v7188 = vunpack.c.l.b16 %v4072
    %v7189 = vunpack.c.h.b16 %v4072
    %v7190 = vunpack.c.l.b16 %v4073
    %v7191 = vunpack.c.h.b16 %v4073
    %v7192 = vunpack.c.l.b16 %v4074
    %v7193 = vunpack.c.h.b16 %v4074
    %v7194 = vunpack.c.l.b16 %v4075
    %v7195 = vunpack.c.h.b16 %v4075
    %v7196 = vunpack.c.l.b16 %v4076
    %v7197 = vunpack.c.h.b16 %v4076
    %v7198 = vunpack.c.l.b16 %v4077
    %v7199 = vunpack.c.h.b16 %v4077
    %v7200 = vunpack.c.l.b16 %v4078
    %v7201 = vunpack.c.h.b16 %v4078
    %v7202 = vunpack.c.l.b16 %v4079
    %v7203 = vunpack.c.h.b16 %v4079
    %v7204 = vunpack.c.l.b16 %v4080
    %v7205 = vunpack.c.h.b16 %v4080
    %v7206 = vunpack.c.l.b16 %v4081
    %v7207 = vunpack.c.h.b16 %v4081
    %v7208 = vunpack.c.l.b16 %v4082
    %v7209 = vunpack.c.h.b16 %v4082
    %v7210 = vunpack.c.l.b16 %v4083
    %v7211 = vunpack.c.h.b16 %v4083
    %v7212 = vunpack.c.l.b16 %v4084
    %v7213 = vunpack.c.h.b16 %v4084
    %v7214 = vunpack.c.l.b16 %v4085
    %v7215 = vunpack.c.h.b16 %v4085
    %v7216 = vunpack.c.l.b16 %v4086
    %v7217 = vunpack.c.h.b16 %v4086
    %v7218 = vunpack.c.l.b16 %v4087
    %v7219 = vunpack.c.h.b16 %v4087
    %v7220 = vunpack.c.l.b16 %v4088
    %v7221 = vunpack.c.h.b16 %v4088
    %v7222 = vunpack.c.l.b16 %v4089
    %v7223 = vunpack.c.h.b16 %v4089
    %v7224 = vunpack.c.l.b16 %v4090
    %v7225 = vunpack.c.h.b16 %v4090
    %v7226 = vunpack.c.l.b16 %v4091
    %v7227 = vunpack.c.h.b16 %v4091
    %v7228 = vunpack.c.l.b16 %v4092
    %v7229 = vunpack.c.h.b16 %v4092
    %v7230 = vunpack.c.l.b16 %v4093
    %v7231 = vunpack.c.h.b16 %v4093
    %v7232 = vunpack.c.l.b16 %v4094
    %v7233 = vunpack.c.h.b16 %v4094
    %v7234 = vunpack.c.l.b16 %v4095
    %v7235 = vunpack.c.h.b16 %v4095
    %v7236 = vunpack.c.l.b16 %v4096
    %v7237 = vunpack.c.h.b16 %v4096
    %v7238 = vunpack.c.l.b16 %v4097
    %v7239 = vunpack.c.h.b16 %v4097
    %v7240 = vunpack.c.l.b16 %v4098
    %v7241 = vunpack.c.h.b16 %v4098
    %v7242 = vunpack.c.l.b16 %v4099
    %v7243 = vunpack.c.h.b16 %v4099
    %v7244 = vunpack.c.l.b16 %v4100
    %v7245 = vunpack.c.h.b16 %v4100
    %v7246 = vunpack.c.l.b16 %v4101
    %v7247 = vunpack.c.h.b16 %v4101
    %v7248 = vunpack.c.l.b16 %v4102
    %v7249 = vunpack.c.h.b16 %v4102
    %v7250 = vunpack.c.l.b16 %v4103
    %v7251 = vunpack.c.h.b16 %v4103
    %v7252 = vunpack.c.l.b16 %v4104
    %v7253 = vunpack.c.h.b16 %v4104
    %v7254 = vunpack.c.l.b16 %v4105
    %v7255 = vunpack.c.h.b16 %v4105
    %v7256 = vunpack.c.l.b16 %v4106
    %v7257 = vunpack.c.h.b16 %v4106
    %v7258 = vunpack.c.l.b16 %v4107
    %v7259 = vunpack.c.h.b16 %v4107
    %v7260 = vunpack.c.l.b16 %v4108
    %v7261 = vunpack.c.h.b16 %v4108
    %v7262 = vunpack.c.l.b16 %v4109
    %v7263 = vunpack.c.h.b16 %v4109
    %v7264 = vunpack.c.l.b16 %v4110
    %v7265 = vunpack.c.h.b16 %v4110
    %v7266 = vunpack.c.l.b16 %v4111
    %v7267 = vunpack.c.h.b16 %v4111
    %v7268 = vpack.c.b16 %v5236, %v5220
    %v7269 = vpack.c.b16 %v5237, %v5221
    %v7270 = vpack.c.b16 %v5238, %v5222
    %v7271 = vpack.c.b16 %v5239, %v5223
    %v7272 = vpack.c.b16 %v5240, %v5224
    %v7273 = vpack.c.b16 %v5241, %v5225
    %v7274 = vpack.c.b16 %v5242, %v5226
    %v7275 = vpack.c.b16 %v5243, %v5227
    %v7276 = vpack.c.b16 %v5244, %v5228
    %v7277 = vpack.c.b16 %v5245, %v5229
    %v7278 = vpack.c.b16 %v5246, %v5230
    %v7279 = vpack.c.b16 %v5247, %v5231
    %v7280 = vpack.c.b16 %v5248, %v5232
    %v7281 = vpack.c.b16 %v5249, %v5233
    %v7282 = vpack.c.b16 %v5250, %v5234
    %v7283 = vpack.c.b16 %v5251, %v5235
    %v7284 = vpack.c.b16 %v5268, %v5252
    %v7285 = vpack.c.b16 %v5269, %v5253
    %v7286 = vpack.c.b16 %v5270, %v5254
    %v7287 = vpack.c.b16 %v5271, %v5255
    %v7288 = vpack.c.b16 %v5272, %v5256
    %v7289 = vpack.c.b16 %v5273, %v5257
    %v7290 = vpack.c.b16 %v5274, %v5258
    %v7291 = vpack.c.b16 %v5275, %v5259
    %v7292 = vpack.c.b16 %v5276, %v5260
    %v7293 = vpack.c.b16 %v5277, %v5261
    %v7294 = vpack.c.b16 %v5278, %v5262
    %v7295 = vpack.c.b16 %v5279, %v5263
    %v7296 = vpack.c.b16 %v5280, %v5264
    %v7297 = vpack.c.b16 %v5281, %v5265
    %v7298 = vpack.c.b16 %v5282, %v5266
    %v7299 = vpack.c.b16 %v5283, %v5267
    %v7300 = vpack.c.b16 %v5300, %v5284
    %v7301 = vpack.c.b16 %v5301, %v5285
    %v7302 = vpack.c.b16 %v5302, %v5286
    %v7303 = vpack.c.b16 %v5303, %v5287
    %v7304 = vpack.c.b16 %v5304, %v5288
    %v7305 = vpack.c.b16 %v5305, %v5289
    %v7306 = vpack.c.b16 %v5306, %v5290
    %v7307 = vpack.c.b16 %v5307, %v5291
    %v7308 = vpack.c.b16 %v5308, %v5292
    %v7309 = vpack.c.b16 %v5309, %v5293
    %v7310 = vpack.c.b16 %v5310, %v5294
    %v7311 = vpack.c.b16 %v5311, %v5295
    %v7312 = vpack.c.b16 %v5312, %v5296
    %v7313 = vpack.c.b16 %v5313, %v5297
    %v7314 = vpack.c.b16 %v5314, %v5298
    %v7315 = vpack.c.b16 %v5315, %v5299
    %v7316 = vpack.c.b16 %v5332, %v5316
    %v7317 = vpack.c.b16 %v5333, %v5317
    %v7318 = vpack.c.b16 %v5334, %v5318
    %v7319 = vpack.c.b16 %v5335, %v5319
    %v7320 = vpack.c.b16 %v5336, %v5320
    %v7321 = vpack.c.b16 %v5337, %v5321
    %v7322 = vpack.c.b16 %v5338, %v5322
    %v7323 = vpack.c.b16 %v5339, %v5323
    %v7324 = vpack.c.b16 %v5340, %v5324
    %v7325 = vpack.c.b16 %v5341, %v5325
    %v7326 = vpack.c.b16 %v5342, %v5326
    %v7327 = vpack.c.b16 %v5343, %v5327
    %v7328 = vpack.c.b16 %v5344, %v5328
    %v7329 = vpack.c.b16 %v5345, %v5329
    %v7330 = vpack.c.b16 %v5346, %v5330
    %v7331 = vpack.c.b16 %v5347, %v5331
    %v7332 = vpack.c.b16 %v5364, %v5348
    %v7333 = vpack.c.b16 %v5365, %v5349
    %v7334 = vpack.c.b16 %v5366, %v5350
    %v7335 = vpack.c.b16 %v5367, %v5351
    %v7336 = vpack.c.b16 %v5368, %v5352
    %v7337 = vpack.c.b16 %v5369, %v5353
    %v7338 = vpack.c.b16 %v5370, %v5354
    %v7339 = vpack.c.b16 %v5371, %v5355
    %v7340 = vpack.c.b16 %v5372, %v5356
    %v7341 = vpack.c.b16 %v5373, %v5357
    %v7342 = vpack.c.b16 %v5374, %v5358
    %v7343 = vpack.c.b16 %v5375, %v5359
    %v7344 = vpack.c.b16 %v5376, %v5360
    %v7345 = vpack.c.b16 %v5377, %v5361
    %v7346 = vpack.c.b16 %v5378, %v5362
    %v7347 = vpack.c.b16 %v5379, %v5363
    %v7348 = vpack.c.b16 %v5396, %v5380
    %v7349 = vpack.c.b16 %v5397, %v5381
    %v7350 = vpack.c.b16 %v5398, %v5382
    %v7351 = vpack.c.b16 %v5399, %v5383
    %v7352 = vpack.c.b16 %v5400, %v5384
    %v7353 = vpack.c.b16 %v5401, %v5385
    %v7354 = vpack.c.b16 %v5402, %v5386
    %v7355 = vpack.c.b16 %v5403, %v5387
    %v7356 = vpack.c.b16 %v5404, %v5388
    %v7357 = vpack.c.b16 %v5405, %v5389
    %v7358 = vpack.c.b16 %v5406, %v5390
    %v7359 = vpack.c.b16 %v5407, %v5391
    %v7360 = vpack.c.b16 %v5408, %v5392
    %v7361 = vpack.c.b16 %v5409, %v5393
    %v7362 = vpack.c.b16 %v5410, %v5394
    %v7363 = vpack.c.b16 %v5411, %v5395
    %v7364 = vpack.c.b16 %v5428, %v5412
    %v7365 = vpack.c.b16 %v5429, %v5413
    %v7366 = vpack.c.b16 %v5430, %v5414
    %v7367 = vpack.c.b16 %v5431, %v5415
    %v7368 = vpack.c.b16 %v5432, %v5416
    %v7369 = vpack.c.b16 %v5433, %v5417
    %v7370 = vpack.c.b16 %v5434, %v5418
    %v7371 = vpack.c.b16 %v5435, %v5419
    %v7372 = vpack.c.b16 %v5436, %v5420
    %v7373 = vpack.c.b16 %v5437, %v5421
    %v7374 = vpack.c.b16 %v5438, %v5422
    %v7375 = vpack.c.b16 %v5439, %v5423
    %v7376 = vpack.c.b16 %v5440, %v5424
    %v7377 = vpack.c.b16 %v5441, %v5425
    %v7378 = vpack.c.b16 %v5442, %v5426
    %v7379 = vpack.c.b16 %v5443, %v5427
    %v7380 = vpack.c.b16 %v5460, %v5444
    %v7381 = vpack.c.b16 %v5461, %v5445
    %v7382 = vpack.c.b16 %v5462, %v5446
    %v7383 = vpack.c.b16 %v5463, %v5447
    %v7384 = vpack.c.b16 %v5464, %v5448
    %v7385 = vpack.c.b16 %v5465, %v5449
    %v7386 = vpack.c.b16 %v5466, %v5450
    %v7387 = vpack.c.b16 %v5467, %v5451
    %v7388 = vpack.c.b16 %v5468, %v5452
    %v7389 = vpack.c.b16 %v5469, %v5453
    %v7390 = vpack.c.b16 %v5470, %v5454
    %v7391 = vpack.c.b16 %v5471, %v5455
    %v7392 = vpack.c.b16 %v5472, %v5456
    %v7393 = vpack.c.b16 %v5473, %v5457
    %v7394 = vpack.c.b16 %v5474, %v5458
    %v7395 = vpack.c.b16 %v5475, %v5459
    %v7396 = vpack.c.b16 %v5492, %v5476
    %v7397 = vpack.c.b16 %v5493, %v5477
    %v7398 = vpack.c.b16 %v5494, %v5478
    %v7399 = vpack.c.b16 %v5495, %v5479
    %v7400 = vpack.c.b16 %v5496, %v5480
    %v7401 = vpack.c.b16 %v5497, %v5481
    %v7402 = vpack.c.b16 %v5498, %v5482
    %v7403 = vpack.c.b16 %v5499, %v5483
    %v7404 = vpack.c.b16 %v5500, %v5484
    %v7405 = vpack.c.b16 %v5501, %v5485
    %v7406 = vpack.c.b16 %v5502, %v5486
    %v7407 = vpack.c.b16 %v5503, %v5487
    %v7408 = vpack.c.b16 %v5504, %v5488
    %v7409 = vpack.c.b16 %v5505, %v5489
    %v7410 = vpack.c.b16 %v5506, %v5490
    %v7411 = vpack.c.b16 %v5507, %v5491
    %v7412 = vpack.c.b16 %v5524, %v5508
    %v7413 = vpack.c.b16 %v5525, %v5509
    %v7414 = vpack.c.b16 %v5526, %v5510
    %v7415 = vpack.c.b16 %v5527, %v5511
    %v7416 = vpack.c.b16 %v5528, %v5512
    %v7417 = vpack.c.b16 %v5529, %v5513
    %v7418 = vpack.c.b16 %v5530, %v5514
    %v7419 = vpack.c.b16 %v5531, %v5515
    %v7420 = vpack.c.b16 %v5532, %v5516
    %v7421 = vpack.c.b16 %v5533, %v5517
    %v7422 = vpack.c.b16 %v5534, %v5518
    %v7423 = vpack.c.b16 %v5535, %v5519
    %v7424 = vpack.c.b16 %v5536, %v5520
    %v7425 = vpack.c.b16 %v5537, %v5521
    %v7426 = vpack.c.b16 %v5538, %v5522
    %v7427 = vpack.c.b16 %v5539, %v5523
    %v7428 = vpack.c.b16 %v5556, %v5540
    %v7429 = vpack.c.b16 %v5557, %v5541
    %v7430 = vpack.c.b16 %v5558, %v5542
    %v7431 = vpack.c.b16 %v5559, %v5543
    %v7432 = vpack.c.b16 %v5560, %v5544
    %v7433 = vpack.c.b16 %v5561, %v5545
    %v7434 = vpack.c.b16 %v5562, %v5546
    %v7435 = vpack.c.b16 %v5563, %v5547
    %v7436 = vpack.c.b16 %v5564, %v5548
    %v7437 = vpack.c.b16 %v5565, %v5549
    %v7438 = vpack.c.b16 %v5566, %v5550
    %v7439 = vpack.c.b16 %v5567, %v5551
    %v7440 = vpack.c.b16 %v5568, %v5552
    %v7441 = vpack.c.b16 %v5569, %v5553
    %v7442 = vpack.c.b16 %v5570, %v5554
    %v7443 = vpack.c.b16 %v5571, %v5555
    %v7444 = vpack.c.b16 %v5588, %v5572
    %v7445 = vpack.c.b16 %v5589, %v5573
    %v7446 = vpack.c.b16 %v5590, %v5574
    %v7447 = vpack.c.b16 %v5591, %v5575
    %v7448 = vpack.c.b16 %v5592, %v5576
    %v7449 = vpack.c.b16 %v5593, %v5577
    %v7450 = vpack.c.b16 %v5594, %v5578
    %v7451 = vpack.c.b16 %v5595, %v5579
    %v7452 = vpack.c.b16 %v5596, %v5580
    %v7453 = vpack.c.b16 %v5597, %v5581
    %v7454 = vpack.c.b16 %v5598, %v5582
    %v7455 = vpack.c.b16 %v5599, %v5583
    %v7456 = vpack.c.b16 %v5600, %v5584
    %v7457 = vpack.c.b16 %v5601, %v5585
    %v7458 = vpack.c.b16 %v5602, %v5586
    %v7459 = vpack.c.b16 %v5603, %v5587
    %v7460 = vpack.c.b16 %v5620, %v5604
    %v7461 = vpack.c.b16 %v5621, %v5605
    %v7462 = vpack.c.b16 %v5622, %v5606
    %v7463 = vpack.c.b16 %v5623, %v5607
    %v7464 = vpack.c.b16 %v5624, %v5608
    %v7465 = vpack.c.b16 %v5625, %v5609
    %v7466 = vpack.c.b16 %v5626, %v5610
    %v7467 = vpack.c.b16 %v5627, %v5611
    %v7468 = vpack.c.b16 %v5628, %v5612
    %v7469 = vpack.c.b16 %v5629, %v5613
    %v7470 = vpack.c.b16 %v5630, %v5614
    %v7471 = vpack.c.b16 %v5631, %v5615
    %v7472 = vpack.c.b16 %v5632, %v5616
    %v7473 = vpack.c.b16 %v5633, %v5617
    %v7474 = vpack.c.b16 %v5634, %v5618
    %v7475 = vpack.c.b16 %v5635, %v5619
    %v7476 = vpack.c.b16 %v5652, %v5636
    %v7477 = vpack.c.b16 %v5653, %v5637
    %v7478 = vpack.c.b16 %v5654, %v5638
    %v7479 = vpack.c.b16 %v5655, %v5639
    %v7480 = vpack.c.b16 %v5656, %v5640
    %v7481 = vpack.c.b16 %v5657, %v5641
    %v7482 = vpack.c.b16 %v5658, %v5642
    %v7483 = vpack.c.b16 %v5659, %v5643
    %v7484 = vpack.c.b16 %v5660, %v5644
    %v7485 = vpack.c.b16 %v5661, %v5645
    %v7486 = vpack.c.b16 %v5662, %v5646
    %v7487 = vpack.c.b16 %v5663, %v5647
    %v7488 = vpack.c.b16 %v5664, %v5648
    %v7489 = vpack.c.b16 %v5665, %v5649
    %v7490 = vpack.c.b16 %v5666, %v5650
    %v7491 = vpack.c.b16 %v5667, %v5651
    %v7492 = vpack.c.b16 %v5684, %v5668
    %v7493 = vpack.c.b16 %v5685, %v5669
    %v7494 = vpack.c.b16 %v5686, %v5670
    %v7495 = vpack.c.b16 %v5687, %v5671
    %v7496 = vpack.c.b16 %v5688, %v5672
    %v7497 = vpack.c.b16 %v5689, %v5673
    %v7498 = vpack.c.b16 %v5690, %v5674
    %v7499 = vpack.c.b16 %v5691, %v5675
    %v7500 = vpack.c.b16 %v5692, %v5676
    %v7501 = vpack.c.b16 %v5693, %v5677
    %v7502 = vpack.c.b16 %v5694, %v5678
    %v7503 = vpack.c.b16 %v5695, %v5679
    %v7504 = vpack.c.b16 %v5696, %v5680
    %v7505 = vpack.c.b16 %v5697, %v5681
    %v7506 = vpack.c.b16 %v5698, %v5682
    %v7507 = vpack.c.b16 %v5699, %v5683
    %v7508 = vpack.c.b16 %v5716, %v5700
    %v7509 = vpack.c.b16 %v5717, %v5701
    %v7510 = vpack.c.b16 %v5718, %v5702
    %v7511 = vpack.c.b16 %v5719, %v5703
    %v7512 = vpack.c.b16 %v5720, %v5704
    %v7513 = vpack.c.b16 %v5721, %v5705
    %v7514 = vpack.c.b16 %v5722, %v5706
    %v7515 = vpack.c.b16 %v5723, %v5707
    %v7516 = vpack.c.b16 %v5724, %v5708
    %v7517 = vpack.c.b16 %v5725, %v5709
    %v7518 = vpack.c.b16 %v5726, %v5710
    %v7519 = vpack.c.b16 %v5727, %v5711
    %v7520 = vpack.c.b16 %v5728, %v5712
    %v7521 = vpack.c.b16 %v5729, %v5713
    %v7522 = vpack.c.b16 %v5730, %v5714
    %v7523 = vpack.c.b16 %v5731, %v5715
    %v7524 = vpack.c.b16 %v5748, %v5732
    %v7525 = vpack.c.b16 %v5749, %v5733
    %v7526 = vpack.c.b16 %v5750, %v5734
    %v7527 = vpack.c.b16 %v5751, %v5735
    %v7528 = vpack.c.b16 %v5752, %v5736
    %v7529 = vpack.c.b16 %v5753, %v5737
    %v7530 = vpack.c.b16 %v5754, %v5738
    %v7531 = vpack.c.b16 %v5755, %v5739
    %v7532 = vpack.c.b16 %v5756, %v5740
    %v7533 = vpack.c.b16 %v5757, %v5741
    %v7534 = vpack.c.b16 %v5758, %v5742
    %v7535 = vpack.c.b16 %v5759, %v5743
    %v7536 = vpack.c.b16 %v5760, %v5744
    %v7537 = vpack.c.b16 %v5761, %v5745
    %v7538 = vpack.c.b16 %v5762, %v5746
    %v7539 = vpack.c.b16 %v5763, %v5747
    %v7540 = vpack.c.b16 %v5780, %v5764
    %v7541 = vpack.c.b16 %v5781, %v5765
    %v7542 = vpack.c.b16 %v5782, %v5766
    %v7543 = vpack.c.b16 %v5783, %v5767
    %v7544 = vpack.c.b16 %v5784, %v5768
    %v7545 = vpack.c.b16 %v5785, %v5769
    %v7546 = vpack.c.b16 %v5786, %v5770
    %v7547 = vpack.c.b16 %v5787, %v5771
    %v7548 = vpack.c.b16 %v5788, %v5772
    %v7549 = vpack.c.b16 %v5789, %v5773
    %v7550 = vpack.c.b16 %v5790, %v5774
    %v7551 = vpack.c.b16 %v5791, %v5775
    %v7552 = vpack.c.b16 %v5792, %v5776
    %v7553 = vpack.c.b16 %v5793, %v5777
    %v7554 = vpack.c.b16 %v5794, %v5778
    %v7555 = vpack.c.b16 %v5795, %v5779
    %v7556 = vpack.c.b16 %v5812, %v5796
    %v7557 = vpack.c.b16 %v5813, %v5797
    %v7558 = vpack.c.b16 %v5814, %v5798
    %v7559 = vpack.c.b16 %v5815, %v5799
    %v7560 = vpack.c.b16 %v5816, %v5800
    %v7561 = vpack.c.b16 %v5817, %v5801
    %v7562 = vpack.c.b16 %v5818, %v5802
    %v7563 = vpack.c.b16 %v5819, %v5803
    %v7564 = vpack.c.b16 %v5820, %v5804
    %v7565 = vpack.c.b16 %v5821, %v5805
    %v7566 = vpack.c.b16 %v5822, %v5806
    %v7567 = vpack.c.b16 %v5823, %v5807
    %v7568 = vpack.c.b16 %v5824, %v5808
    %v7569 = vpack.c.b16 %v5825, %v5809
    %v7570 = vpack.c.b16 %v5826, %v5810
    %v7571 = vpack.c.b16 %v5827, %v5811
    %v7572 = vpack.c.b16 %v5844, %v5828
    %v7573 = vpack.c.b16 %v5845, %v5829
    %v7574 = vpack.c.b16 %v5846, %v5830
    %v7575 = vpack.c.b16 %v5847, %v5831
    %v7576 = vpack.c.b16 %v5848, %v5832
    %v7577 = vpack.c.b16 %v5849, %v5833
    %v7578 = vpack.c.b16 %v5850, %v5834
    %v7579 = vpack.c.b16 %v5851, %v5835
    %v7580 = vpack.c.b16 %v5852, %v5836
    %v7581 = vpack.c.b16 %v5853, %v5837
    %v7582 = vpack.c.b16 %v5854, %v5838
    %v7583 = vpack.c.b16 %v5855, %v5839
    %v7584 = vpack.c.b16 %v5856, %v5840
    %v7585 = vpack.c.b16 %v5857, %v5841
    %v7586 = vpack.c.b16 %v5858, %v5842
    %v7587 = vpack.c.b16 %v5859, %v5843
    %v7588 = vpack.c.b16 %v5876, %v5860
    %v7589 = vpack.c.b16 %v5877, %v5861
    %v7590 = vpack.c.b16 %v5878, %v5862
    %v7591 = vpack.c.b16 %v5879, %v5863
    %v7592 = vpack.c.b16 %v5880, %v5864
    %v7593 = vpack.c.b16 %v5881, %v5865
    %v7594 = vpack.c.b16 %v5882, %v5866
    %v7595 = vpack.c.b16 %v5883, %v5867
    %v7596 = vpack.c.b16 %v5884, %v5868
    %v7597 = vpack.c.b16 %v5885, %v5869
    %v7598 = vpack.c.b16 %v5886, %v5870
    %v7599 = vpack.c.b16 %v5887, %v5871
    %v7600 = vpack.c.b16 %v5888, %v5872
    %v7601 = vpack.c.b16 %v5889, %v5873
    %v7602 = vpack.c.b16 %v5890, %v5874
    %v7603 = vpack.c.b16 %v5891, %v5875
    %v7604 = vpack.c.b16 %v5908, %v5892
    %v7605 = vpack.c.b16 %v5909, %v5893
    %v7606 = vpack.c.b16 %v5910, %v5894
    %v7607 = vpack.c.b16 %v5911, %v5895
    %v7608 = vpack.c.b16 %v5912, %v5896
    %v7609 = vpack.c.b16 %v5913, %v5897
    %v7610 = vpack.c.b16 %v5914, %v5898
    %v7611 = vpack.c.b16 %v5915, %v5899
    %v7612 = vpack.c.b16 %v5916, %v5900
    %v7613 = vpack.c.b16 %v5917, %v5901
    %v7614 = vpack.c.b16 %v5918, %v5902
    %v7615 = vpack.c.b16 %v5919, %v5903
    %v7616 = vpack.c.b16 %v5920, %v5904
    %v7617 = vpack.c.b16 %v5921, %v5905
    %v7618 = vpack.c.b16 %v5922, %v5906
    %v7619 = vpack.c.b16 %v5923, %v5907
    %v7620 = vpack.c.b16 %v5940, %v5924
    %v7621 = vpack.c.b16 %v5941, %v5925
    %v7622 = vpack.c.b16 %v5942, %v5926
    %v7623 = vpack.c.b16 %v5943, %v5927
    %v7624 = vpack.c.b16 %v5944, %v5928
    %v7625 = vpack.c.b16 %v5945, %v5929
    %v7626 = vpack.c.b16 %v5946, %v5930
    %v7627 = vpack.c.b16 %v5947, %v5931
    %v7628 = vpack.c.b16 %v5948, %v5932
    %v7629 = vpack.c.b16 %v5949, %v5933
    %v7630 = vpack.c.b16 %v5950, %v5934
    %v7631 = vpack.c.b16 %v5951, %v5935
    %v7632 = vpack.c.b16 %v5952, %v5936
    %v7633 = vpack.c.b16 %v5953, %v5937
    %v7634 = vpack.c.b16 %v5954, %v5938
    %v7635 = vpack.c.b16 %v5955, %v5939
    %v7636 = vpack.c.b16 %v5972, %v5956
    %v7637 = vpack.c.b16 %v5973, %v5957
    %v7638 = vpack.c.b16 %v5974, %v5958
    %v7639 = vpack.c.b16 %v5975, %v5959
    %v7640 = vpack.c.b16 %v5976, %v5960
    %v7641 = vpack.c.b16 %v5977, %v5961
    %v7642 = vpack.c.b16 %v5978, %v5962
    %v7643 = vpack.c.b16 %v5979, %v5963
    %v7644 = vpack.c.b16 %v5980, %v5964
    %v7645 = vpack.c.b16 %v5981, %v5965
    %v7646 = vpack.c.b16 %v5982, %v5966
    %v7647 = vpack.c.b16 %v5983, %v5967
    %v7648 = vpack.c.b16 %v5984, %v5968
    %v7649 = vpack.c.b16 %v5985, %v5969
    %v7650 = vpack.c.b16 %v5986, %v5970
    %v7651 = vpack.c.b16 %v5987, %v5971
    %v7652 = vpack.c.b16 %v6004, %v5988
    %v7653 = vpack.c.b16 %v6005, %v5989
    %v7654 = vpack.c.b16 %v6006, %v5990
    %v7655 = vpack.c.b16 %v6007, %v5991
    %v7656 = vpack.c.b16 %v6008, %v5992
    %v7657 = vpack.c.b16 %v6009, %v5993
    %v7658 = vpack.c.b16 %v6010, %v5994
    %v7659 = vpack.c.b16 %v6011, %v5995
    %v7660 = vpack.c.b16 %v6012, %v5996
    %v7661 = vpack.c.b16 %v6013, %v5997
    %v7662 = vpack.c.b16 %v6014, %v5998
    %v7663 = vpack.c.b16 %v6015, %v5999
    %v7664 = vpack.c.b16 %v6016, %v6000
    %v7665 = vpack.c.b16 %v6017, %v6001
    %v7666 = vpack.c.b16 %v6018, %v6002
    %v7667 = vpack.c.b16 %v6019, %v6003
    %v7668 = vpack.c.b16 %v6036, %v6020
    %v7669 = vpack.c.b16 %v6037, %v6021
    %v7670 = vpack.c.b16 %v6038, %v6022
    %v7671 = vpack.c.b16 %v6039, %v6023
    %v7672 = vpack.c.b16 %v6040, %v6024
    %v7673 = vpack.c.b16 %v6041, %v6025
    %v7674 = vpack.c.b16 %v6042, %v6026
    %v7675 = vpack.c.b16 %v6043, %v6027
    %v7676 = vpack.c.b16 %v6044, %v6028
    %v7677 = vpack.c.b16 %v6045, %v6029
    %v7678 = vpack.c.b16 %v6046, %v6030
    %v7679 = vpack.c.b16 %v6047, %v6031
    %v7680 = vpack.c.b16 %v6048, %v6032
    %v7681 = vpack.c.b16 %v6049, %v6033
    %v7682 = vpack.c.b16 %v6050, %v6034
    %v7683 = vpack.c.b16 %v6051, %v6035
    %v7684 = vpack.c.b16 %v6068, %v6052
    %v7685 = vpack.c.b16 %v6069, %v6053
    %v7686 = vpack.c.b16 %v6070, %v6054
    %v7687 = vpack.c.b16 %v6071, %v6055
    %v7688 = vpack.c.b16 %v6072, %v6056
    %v7689 = vpack.c.b16 %v6073, %v6057
    %v7690 = vpack.c.b16 %v6074, %v6058
    %v7691 = vpack.c.b16 %v6075, %v6059
    %v7692 = vpack.c.b16 %v6076, %v6060
    %v7693 = vpack.c.b16 %v6077, %v6061
    %v7694 = vpack.c.b16 %v6078, %v6062
    %v7695 = vpack.c.b16 %v6079, %v6063
    %v7696 = vpack.c.b16 %v6080, %v6064
    %v7697 = vpack.c.b16 %v6081, %v6065
    %v7698 = vpack.c.b16 %v6082, %v6066
    %v7699 = vpack.c.b16 %v6083, %v6067
    %v7700 = vpack.c.b16 %v6100, %v6084
    %v7701 = vpack.c.b16 %v6101, %v6085
    %v7702 = vpack.c.b16 %v6102, %v6086
    %v7703 = vpack.c.b16 %v6103, %v6087
    %v7704 = vpack.c.b16 %v6104, %v6088
    %v7705 = vpack.c.b16 %v6105, %v6089
    %v7706 = vpack.c.b16 %v6106, %v6090
    %v7707 = vpack.c.b16 %v6107, %v6091
    %v7708 = vpack.c.b16 %v6108, %v6092
    %v7709 = vpack.c.b16 %v6109, %v6093
    %v7710 = vpack.c.b16 %v6110, %v6094
    %v7711 = vpack.c.b16 %v6111, %v6095
    %v7712 = vpack.c.b16 %v6112, %v6096
    %v7713 = vpack.c.b16 %v6113, %v6097
    %v7714 = vpack.c.b16 %v6114, %v6098
    %v7715 = vpack.c.b16 %v6115, %v6099
    %v7716 = vpack.c.b16 %v6132, %v6116
    %v7717 = vpack.c.b16 %v6133, %v6117
    %v7718 = vpack.c.b16 %v6134, %v6118
    %v7719 = vpack.c.b16 %v6135, %v6119
    %v7720 = vpack.c.b16 %v6136, %v6120
    %v7721 = vpack.c.b16 %v6137, %v6121
    %v7722 = vpack.c.b16 %v6138, %v6122
    %v7723 = vpack.c.b16 %v6139, %v6123
    %v7724 = vpack.c.b16 %v6140, %v6124
    %v7725 = vpack.c.b16 %v6141, %v6125
    %v7726 = vpack.c.b16 %v6142, %v6126
    %v7727 = vpack.c.b16 %v6143, %v6127
    %v7728 = vpack.c.b16 %v6144, %v6128
    %v7729 = vpack.c.b16 %v6145, %v6129
    %v7730 = vpack.c.b16 %v6146, %v6130
    %v7731 = vpack.c.b16 %v6147, %v6131
    %v7732 = vpack.c.b16 %v6164, %v6148
    %v7733 = vpack.c.b16 %v6165, %v6149
    %v7734 = vpack.c.b16 %v6166, %v6150
    %v7735 = vpack.c.b16 %v6167, %v6151
    %v7736 = vpack.c.b16 %v6168, %v6152
    %v7737 = vpack.c.b16 %v6169, %v6153
    %v7738 = vpack.c.b16 %v6170, %v6154
    %v7739 = vpack.c.b16 %v6171, %v6155
    %v7740 = vpack.c.b16 %v6172, %v6156
    %v7741 = vpack.c.b16 %v6173, %v6157
    %v7742 = vpack.c.b16 %v6174, %v6158
    %v7743 = vpack.c.b16 %v6175, %v6159
    %v7744 = vpack.c.b16 %v6176, %v6160
    %v7745 = vpack.c.b16 %v6177, %v6161
    %v7746 = vpack.c.b16 %v6178, %v6162
    %v7747 = vpack.c.b16 %v6179, %v6163
    %v7748 = vpack.c.b16 %v6196, %v6180
    %v7749 = vpack.c.b16 %v6197, %v6181
    %v7750 = vpack.c.b16 %v6198, %v6182
    %v7751 = vpack.c.b16 %v6199, %v6183
    %v7752 = vpack.c.b16 %v6200, %v6184
    %v7753 = vpack.c.b16 %v6201, %v6185
    %v7754 = vpack.c.b16 %v6202, %v6186
    %v7755 = vpack.c.b16 %v6203, %v6187
    %v7756 = vpack.c.b16 %v6204, %v6188
    %v7757 = vpack.c.b16 %v6205, %v6189
    %v7758 = vpack.c.b16 %v6206, %v6190
    %v7759 = vpack.c.b16 %v6207, %v6191
    %v7760 = vpack.c.b16 %v6208, %v6192
    %v7761 = vpack.c.b16 %v6209, %v6193
    %v7762 = vpack.c.b16 %v6210, %v6194
    %v7763 = vpack.c.b16 %v6211, %v6195
    %v7764 = vpack.c.b16 %v6228, %v6212
    %v7765 = vpack.c.b16 %v6229, %v6213
    %v7766 = vpack.c.b16 %v6230, %v6214
    %v7767 = vpack.c.b16 %v6231, %v6215
    %v7768 = vpack.c.b16 %v6232, %v6216
    %v7769 = vpack.c.b16 %v6233, %v6217
    %v7770 = vpack.c.b16 %v6234, %v6218
    %v7771 = vpack.c.b16 %v6235, %v6219
    %v7772 = vpack.c.b16 %v6236, %v6220
    %v7773 = vpack.c.b16 %v6237, %v6221
    %v7774 = vpack.c.b16 %v6238, %v6222
    %v7775 = vpack.c.b16 %v6239, %v6223
    %v7776 = vpack.c.b16 %v6240, %v6224
    %v7777 = vpack.c.b16 %v6241, %v6225
    %v7778 = vpack.c.b16 %v6242, %v6226
    %v7779 = vpack.c.b16 %v6243, %v6227
    %v7780 = vpack.c.b16 %v6260, %v6244
    %v7781 = vpack.c.b16 %v6261, %v6245
    %v7782 = vpack.c.b16 %v6262, %v6246
    %v7783 = vpack.c.b16 %v6263, %v6247
    %v7784 = vpack.c.b16 %v6264, %v6248
    %v7785 = vpack.c.b16 %v6265, %v6249
    %v7786 = vpack.c.b16 %v6266, %v6250
    %v7787 = vpack.c.b16 %v6267, %v6251
    %v7788 = vpack.c.b16 %v6268, %v6252
    %v7789 = vpack.c.b16 %v6269, %v6253
    %v7790 = vpack.c.b16 %v6270, %v6254
    %v7791 = vpack.c.b16 %v6271, %v6255
    %v7792 = vpack.c.b16 %v6272, %v6256
    %v7793 = vpack.c.b16 %v6273, %v6257
    %v7794 = vpack.c.b16 %v6274, %v6258
    %v7795 = vpack.c.b16 %v6275, %v6259
    %v7796 = vpack.c.b16 %v6292, %v6276
    %v7797 = vpack.c.b16 %v6293, %v6277
    %v7798 = vpack.c.b16 %v6294, %v6278
    %v7799 = vpack.c.b16 %v6295, %v6279
    %v7800 = vpack.c.b16 %v6296, %v6280
    %v7801 = vpack.c.b16 %v6297, %v6281
    %v7802 = vpack.c.b16 %v6298, %v6282
    %v7803 = vpack.c.b16 %v6299, %v6283
    %v7804 = vpack.c.b16 %v6300, %v6284
    %v7805 = vpack.c.b16 %v6301, %v6285
    %v7806 = vpack.c.b16 %v6302, %v6286
    %v7807 = vpack.c.b16 %v6303, %v6287
    %v7808 = vpack.c.b16 %v6304, %v6288
    %v7809 = vpack.c.b16 %v6305, %v6289
    %v7810 = vpack.c.b16 %v6306, %v6290
    %v7811 = vpack.c.b16 %v6307, %v6291
    %v7812 = vpack.c.b16 %v6324, %v6308
    %v7813 = vpack.c.b16 %v6325, %v6309
    %v7814 = vpack.c.b16 %v6326, %v6310
    %v7815 = vpack.c.b16 %v6327, %v6311
    %v7816 = vpack.c.b16 %v6328, %v6312
    %v7817 = vpack.c.b16 %v6329, %v6313
    %v7818 = vpack.c.b16 %v6330, %v6314
    %v7819 = vpack.c.b16 %v6331, %v6315
    %v7820 = vpack.c.b16 %v6332, %v6316
    %v7821 = vpack.c.b16 %v6333, %v6317
    %v7822 = vpack.c.b16 %v6334, %v6318
    %v7823 = vpack.c.b16 %v6335, %v6319
    %v7824 = vpack.c.b16 %v6336, %v6320
    %v7825 = vpack.c.b16 %v6337, %v6321
    %v7826 = vpack.c.b16 %v6338, %v6322
    %v7827 = vpack.c.b16 %v6339, %v6323
    %v7828 = vpack.c.b16 %v6356, %v6340
    %v7829 = vpack.c.b16 %v6357, %v6341
    %v7830 = vpack.c.b16 %v6358, %v6342
    %v7831 = vpack.c.b16 %v6359, %v6343
    %v7832 = vpack.c.b16 %v6360, %v6344
    %v7833 = vpack.c.b16 %v6361, %v6345
    %v7834 = vpack.c.b16 %v6362, %v6346
    %v7835 = vpack.c.b16 %v6363, %v6347
    %v7836 = vpack.c.b16 %v6364, %v6348
    %v7837 = vpack.c.b16 %v6365, %v6349
    %v7838 = vpack.c.b16 %v6366, %v6350
    %v7839 = vpack.c.b16 %v6367, %v6351
    %v7840 = vpack.c.b16 %v6368, %v6352
    %v7841 = vpack.c.b16 %v6369, %v6353
    %v7842 = vpack.c.b16 %v6370, %v6354
    %v7843 = vpack.c.b16 %v6371, %v6355
    %v7844 = vpack.c.b16 %v6388, %v6372
    %v7845 = vpack.c.b16 %v6389, %v6373
    %v7846 = vpack.c.b16 %v6390, %v6374
    %v7847 = vpack.c.b16 %v6391, %v6375
    %v7848 = vpack.c.b16 %v6392, %v6376
    %v7849 = vpack.c.b16 %v6393, %v6377
    %v7850 = vpack.c.b16 %v6394, %v6378
    %v7851 = vpack.c.b16 %v6395, %v6379
    %v7852 = vpack.c.b16 %v6396, %v6380
    %v7853 = vpack.c.b16 %v6397, %v6381
    %v7854 = vpack.c.b16 %v6398, %v6382
    %v7855 = vpack.c.b16 %v6399, %v6383
    %v7856 = vpack.c.b16 %v6400, %v6384
    %v7857 = vpack.c.b16 %v6401, %v6385
    %v7858 = vpack.c.b16 %v6402, %v6386
    %v7859 = vpack.c.b16 %v6403, %v6387
    %v7860 = vpack.c.b16 %v6420, %v6404
    %v7861 = vpack.c.b16 %v6421, %v6405
    %v7862 = vpack.c.b16 %v6422, %v6406
    %v7863 = vpack.c.b16 %v6423, %v6407
    %v7864 = vpack.c.b16 %v6424, %v6408
    %v7865 = vpack.c.b16 %v6425, %v6409
    %v7866 = vpack.c.b16 %v6426, %v6410
    %v7867 = vpack.c.b16 %v6427, %v6411
    %v7868 = vpack.c.b16 %v6428, %v6412
    %v7869 = vpack.c.b16 %v6429, %v6413
    %v7870 = vpack.c.b16 %v6430, %v6414
    %v7871 = vpack.c.b16 %v6431, %v6415
    %v7872 = vpack.c.b16 %v6432, %v6416
    %v7873 = vpack.c.b16 %v6433, %v6417
    %v7874 = vpack.c.b16 %v6434, %v6418
    %v7875 = vpack.c.b16 %v6435, %v6419
    %v7876 = vpack.c.b16 %v6452, %v6436
    %v7877 = vpack.c.b16 %v6453, %v6437
    %v7878 = vpack.c.b16 %v6454, %v6438
    %v7879 = vpack.c.b16 %v6455, %v6439
    %v7880 = vpack.c.b16 %v6456, %v6440
    %v7881 = vpack.c.b16 %v6457, %v6441
    %v7882 = vpack.c.b16 %v6458, %v6442
    %v7883 = vpack.c.b16 %v6459, %v6443
    %v7884 = vpack.c.b16 %v6460, %v6444
    %v7885 = vpack.c.b16 %v6461, %v6445
    %v7886 = vpack.c.b16 %v6462, %v6446
    %v7887 = vpack.c.b16 %v6463, %v6447
    %v7888 = vpack.c.b16 %v6464, %v6448
    %v7889 = vpack.c.b16 %v6465, %v6449
    %v7890 = vpack.c.b16 %v6466, %v6450
    %v7891 = vpack.c.b16 %v6467, %v6451
    %v7892 = vpack.c.b16 %v6484, %v6468
    %v7893 = vpack.c.b16 %v6485, %v6469
    %v7894 = vpack.c.b16 %v6486, %v6470
    %v7895 = vpack.c.b16 %v6487, %v6471
    %v7896 = vpack.c.b16 %v6488, %v6472
    %v7897 = vpack.c.b16 %v6489, %v6473
    %v7898 = vpack.c.b16 %v6490, %v6474
    %v7899 = vpack.c.b16 %v6491, %v6475
    %v7900 = vpack.c.b16 %v6492, %v6476
    %v7901 = vpack.c.b16 %v6493, %v6477
    %v7902 = vpack.c.b16 %v6494, %v6478
    %v7903 = vpack.c.b16 %v6495, %v6479
    %v7904 = vpack.c.b16 %v6496, %v6480
    %v7905 = vpack.c.b16 %v6497, %v6481
    %v7906 = vpack.c.b16 %v6498, %v6482
    %v7907 = vpack.c.b16 %v6499, %v6483
    %v7908 = vpack.c.b16 %v6516, %v6500
    %v7909 = vpack.c.b16 %v6517, %v6501
    %v7910 = vpack.c.b16 %v6518, %v6502
    %v7911 = vpack.c.b16 %v6519, %v6503
    %v7912 = vpack.c.b16 %v6520, %v6504
    %v7913 = vpack.c.b16 %v6521, %v6505
    %v7914 = vpack.c.b16 %v6522, %v6506
    %v7915 = vpack.c.b16 %v6523, %v6507
    %v7916 = vpack.c.b16 %v6524, %v6508
    %v7917 = vpack.c.b16 %v6525, %v6509
    %v7918 = vpack.c.b16 %v6526, %v6510
    %v7919 = vpack.c.b16 %v6527, %v6511
    %v7920 = vpack.c.b16 %v6528, %v6512
    %v7921 = vpack.c.b16 %v6529, %v6513
    %v7922 = vpack.c.b16 %v6530, %v6514
    %v7923 = vpack.c.b16 %v6531, %v6515
    %v7924 = vpack.c.b16 %v6548, %v6532
    %v7925 = vpack.c.b16 %v6549, %v6533
    %v7926 = vpack.c.b16 %v6550, %v6534
    %v7927 = vpack.c.b16 %v6551, %v6535
    %v7928 = vpack.c.b16 %v6552, %v6536
    %v7929 = vpack.c.b16 %v6553, %v6537
    %v7930 = vpack.c.b16 %v6554, %v6538
    %v7931 = vpack.c.b16 %v6555, %v6539
    %v7932 = vpack.c.b16 %v6556, %v6540
    %v7933 = vpack.c.b16 %v6557, %v6541
    %v7934 = vpack.c.b16 %v6558, %v6542
    %v7935 = vpack.c.b16 %v6559, %v6543
    %v7936 = vpack.c.b16 %v6560, %v6544
    %v7937 = vpack.c.b16 %v6561, %v6545
    %v7938 = vpack.c.b16 %v6562, %v6546
    %v7939 = vpack.c.b16 %v6563, %v6547
    %v7940 = vpack.c.b16 %v6580, %v6564
    %v7941 = vpack.c.b16 %v6581, %v6565
    %v7942 = vpack.c.b16 %v6582, %v6566
    %v7943 = vpack.c.b16 %v6583, %v6567
    %v7944 = vpack.c.b16 %v6584, %v6568
    %v7945 = vpack.c.b16 %v6585, %v6569
    %v7946 = vpack.c.b16 %v6586, %v6570
    %v7947 = vpack.c.b16 %v6587, %v6571
    %v7948 = vpack.c.b16 %v6588, %v6572
    %v7949 = vpack.c.b16 %v6589, %v6573
    %v7950 = vpack.c.b16 %v6590, %v6574
    %v7951 = vpack.c.b16 %v6591, %v6575
    %v7952 = vpack.c.b16 %v6592, %v6576
    %v7953 = vpack.c.b16 %v6593, %v6577
    %v7954 = vpack.c.b16 %v6594, %v6578
    %v7955 = vpack.c.b16 %v6595, %v6579
    %v7956 = vpack.c.b16 %v6612, %v6596
    %v7957 = vpack.c.b16 %v6613, %v6597
    %v7958 = vpack.c.b16 %v6614, %v6598
    %v7959 = vpack.c.b16 %v6615, %v6599
    %v7960 = vpack.c.b16 %v6616, %v6600
    %v7961 = vpack.c.b16 %v6617, %v6601
    %v7962 = vpack.c.b16 %v6618, %v6602
    %v7963 = vpack.c.b16 %v6619, %v6603
    %v7964 = vpack.c.b16 %v6620, %v6604
    %v7965 = vpack.c.b16 %v6621, %v6605
    %v7966 = vpack.c.b16 %v6622, %v6606
    %v7967 = vpack.c.b16 %v6623, %v6607
    %v7968 = vpack.c.b16 %v6624, %v6608
    %v7969 = vpack.c.b16 %v6625, %v6609
    %v7970 = vpack.c.b16 %v6626, %v6610
    %v7971 = vpack.c.b16 %v6627, %v6611
    %v7972 = vpack.c.b16 %v6644, %v6628
    %v7973 = vpack.c.b16 %v6645, %v6629
    %v7974 = vpack.c.b16 %v6646, %v6630
    %v7975 = vpack.c.b16 %v6647, %v6631
    %v7976 = vpack.c.b16 %v6648, %v6632
    %v7977 = vpack.c.b16 %v6649, %v6633
    %v7978 = vpack.c.b16 %v6650, %v6634
    %v7979 = vpack.c.b16 %v6651, %v6635
    %v7980 = vpack.c.b16 %v6652, %v6636
    %v7981 = vpack.c.b16 %v6653, %v6637
    %v7982 = vpack.c.b16 %v6654, %v6638
    %v7983 = vpack.c.b16 %v6655, %v6639
    %v7984 = vpack.c.b16 %v6656, %v6640
    %v7985 = vpack.c.b16 %v6657, %v6641
    %v7986 = vpack.c.b16 %v6658, %v6642
    %v7987 = vpack.c.b16 %v6659, %v6643
    %v7988 = vpack.c.b16 %v6676, %v6660
    %v7989 = vpack.c.b16 %v6677, %v6661
    %v7990 = vpack.c.b16 %v6678, %v6662
    %v7991 = vpack.c.b16 %v6679, %v6663
    %v7992 = vpack.c.b16 %v6680, %v6664
    %v7993 = vpack.c.b16 %v6681, %v6665
    %v7994 = vpack.c.b16 %v6682, %v6666
    %v7995 = vpack.c.b16 %v6683, %v6667
    %v7996 = vpack.c.b16 %v6684, %v6668
    %v7997 = vpack.c.b16 %v6685, %v6669
    %v7998 = vpack.c.b16 %v6686, %v6670
    %v7999 = vpack.c.b16 %v6687, %v6671
    %v8000 = vpack.c.b16 %v6688, %v6672
    %v8001 = vpack.c.b16 %v6689, %v6673
    %v8002 = vpack.c.b16 %v6690, %v6674
    %v8003 = vpack.c.b16 %v6691, %v6675
    %v8004 = vpack.c.b16 %v6708, %v6692
    %v8005 = vpack.c.b16 %v6709, %v6693
    %v8006 = vpack.c.b16 %v6710, %v6694
    %v8007 = vpack.c.b16 %v6711, %v6695
    %v8008 = vpack.c.b16 %v6712, %v6696
    %v8009 = vpack.c.b16 %v6713, %v6697
    %v8010 = vpack.c.b16 %v6714, %v6698
    %v8011 = vpack.c.b16 %v6715, %v6699
    %v8012 = vpack.c.b16 %v6716, %v6700
    %v8013 = vpack.c.b16 %v6717, %v6701
    %v8014 = vpack.c.b16 %v6718, %v6702
    %v8015 = vpack.c.b16 %v6719, %v6703
    %v8016 = vpack.c.b16 %v6720, %v6704
    %v8017 = vpack.c.b16 %v6721, %v6705
    %v8018 = vpack.c.b16 %v6722, %v6706
    %v8019 = vpack.c.b16 %v6723, %v6707
    %v8020 = vpack.c.b16 %v6740, %v6724
    %v8021 = vpack.c.b16 %v6741, %v6725
    %v8022 = vpack.c.b16 %v6742, %v6726
    %v8023 = vpack.c.b16 %v6743, %v6727
    %v8024 = vpack.c.b16 %v6744, %v6728
    %v8025 = vpack.c.b16 %v6745, %v6729
    %v8026 = vpack.c.b16 %v6746, %v6730
    %v8027 = vpack.c.b16 %v6747, %v6731
    %v8028 = vpack.c.b16 %v6748, %v6732
    %v8029 = vpack.c.b16 %v6749, %v6733
    %v8030 = vpack.c.b16 %v6750, %v6734
    %v8031 = vpack.c.b16 %v6751, %v6735
    %v8032 = vpack.c.b16 %v6752, %v6736
    %v8033 = vpack.c.b16 %v6753, %v6737
    %v8034 = vpack.c.b16 %v6754, %v6738
    %v8035 = vpack.c.b16 %v6755, %v6739
    %v8036 = vpack.c.b16 %v6772, %v6756
    %v8037 = vpack.c.b16 %v6773, %v6757
    %v8038 = vpack.c.b16 %v6774, %v6758
    %v8039 = vpack.c.b16 %v6775, %v6759
    %v8040 = vpack.c.b16 %v6776, %v6760
    %v8041 = vpack.c.b16 %v6777, %v6761
    %v8042 = vpack.c.b16 %v6778, %v6762
    %v8043 = vpack.c.b16 %v6779, %v6763
    %v8044 = vpack.c.b16 %v6780, %v6764
    %v8045 = vpack.c.b16 %v6781, %v6765
    %v8046 = vpack.c.b16 %v6782, %v6766
    %v8047 = vpack.c.b16 %v6783, %v6767
    %v8048 = vpack.c.b16 %v6784, %v6768
    %v8049 = vpack.c.b16 %v6785, %v6769
    %v8050 = vpack.c.b16 %v6786, %v6770
    %v8051 = vpack.c.b16 %v6787, %v6771
    %v8052 = vpack.c.b16 %v6804, %v6788
    %v8053 = vpack.c.b16 %v6805, %v6789
    %v8054 = vpack.c.b16 %v6806, %v6790
    %v8055 = vpack.c.b16 %v6807, %v6791
    %v8056 = vpack.c.b16 %v6808, %v6792
    %v8057 = vpack.c.b16 %v6809, %v6793
    %v8058 = vpack.c.b16 %v6810, %v6794
    %v8059 = vpack.c.b16 %v6811, %v6795
    %v8060 = vpack.c.b16 %v6812, %v6796
    %v8061 = vpack.c.b16 %v6813, %v6797
    %v8062 = vpack.c.b16 %v6814, %v6798
    %v8063 = vpack.c.b16 %v6815, %v6799
    %v8064 = vpack.c.b16 %v6816, %v6800
    %v8065 = vpack.c.b16 %v6817, %v6801
    %v8066 = vpack.c.b16 %v6818, %v6802
    %v8067 = vpack.c.b16 %v6819, %v6803
    %v8068 = vpack.c.b16 %v6836, %v6820
    %v8069 = vpack.c.b16 %v6837, %v6821
    %v8070 = vpack.c.b16 %v6838, %v6822
    %v8071 = vpack.c.b16 %v6839, %v6823
    %v8072 = vpack.c.b16 %v6840, %v6824
    %v8073 = vpack.c.b16 %v6841, %v6825
    %v8074 = vpack.c.b16 %v6842, %v6826
    %v8075 = vpack.c.b16 %v6843, %v6827
    %v8076 = vpack.c.b16 %v6844, %v6828
    %v8077 = vpack.c.b16 %v6845, %v6829
    %v8078 = vpack.c.b16 %v6846, %v6830
    %v8079 = vpack.c.b16 %v6847, %v6831
    %v8080 = vpack.c.b16 %v6848, %v6832
    %v8081 = vpack.c.b16 %v6849, %v6833
    %v8082 = vpack.c.b16 %v6850, %v6834
    %v8083 = vpack.c.b16 %v6851, %v6835
    %v8084 = vpack.c.b16 %v6868, %v6852
    %v8085 = vpack.c.b16 %v6869, %v6853
    %v8086 = vpack.c.b16 %v6870, %v6854
    %v8087 = vpack.c.b16 %v6871, %v6855
    %v8088 = vpack.c.b16 %v6872, %v6856
    %v8089 = vpack.c.b16 %v6873, %v6857
    %v8090 = vpack.c.b16 %v6874, %v6858
    %v8091 = vpack.c.b16 %v6875, %v6859
    %v8092 = vpack.c.b16 %v6876, %v6860
    %v8093 = vpack.c.b16 %v6877, %v6861
    %v8094 = vpack.c.b16 %v6878, %v6862
    %v8095 = vpack.c.b16 %v6879, %v6863
    %v8096 = vpack.c.b16 %v6880, %v6864
    %v8097 = vpack.c.b16 %v6881, %v6865
    %v8098 = vpack.c.b16 %v6882, %v6866
    %v8099 = vpack.c.b16 %v6883, %v6867
    %v8100 = vpack.c.b16 %v6900, %v6884
    %v8101 = vpack.c.b16 %v6901, %v6885
    %v8102 = vpack.c.b16 %v6902, %v6886
    %v8103 = vpack.c.b16 %v6903, %v6887
    %v8104 = vpack.c.b16 %v6904, %v6888
    %v8105 = vpack.c.b16 %v6905, %v6889
    %v8106 = vpack.c.b16 %v6906, %v6890
    %v8107 = vpack.c.b16 %v6907, %v6891
    %v8108 = vpack.c.b16 %v6908, %v6892
    %v8109 = vpack.c.b16 %v6909, %v6893
    %v8110 = vpack.c.b16 %v6910, %v6894
    %v8111 = vpack.c.b16 %v6911, %v6895
    %v8112 = vpack.c.b16 %v6912, %v6896
    %v8113 = vpack.c.b16 %v6913, %v6897
    %v8114 = vpack.c.b16 %v6914, %v6898
    %v8115 = vpack.c.b16 %v6915, %v6899
    %v8116 = vpack.c.b16 %v6932, %v6916
    %v8117 = vpack.c.b16 %v6933, %v6917
    %v8118 = vpack.c.b16 %v6934, %v6918
    %v8119 = vpack.c.b16 %v6935, %v6919
    %v8120 = vpack.c.b16 %v6936, %v6920
    %v8121 = vpack.c.b16 %v6937, %v6921
    %v8122 = vpack.c.b16 %v6938, %v6922
    %v8123 = vpack.c.b16 %v6939, %v6923
    %v8124 = vpack.c.b16 %v6940, %v6924
    %v8125 = vpack.c.b16 %v6941, %v6925
    %v8126 = vpack.c.b16 %v6942, %v6926
    %v8127 = vpack.c.b16 %v6943, %v6927
    %v8128 = vpack.c.b16 %v6944, %v6928
    %v8129 = vpack.c.b16 %v6945, %v6929
    %v8130 = vpack.c.b16 %v6946, %v6930
    %v8131 = vpack.c.b16 %v6947, %v6931
    %v8132 = vpack.c.b16 %v6964, %v6948
    %v8133 = vpack.c.b16 %v6965, %v6949
    %v8134 = vpack.c.b16 %v6966, %v6950
    %v8135 = vpack.c.b16 %v6967, %v6951
    %v8136 = vpack.c.b16 %v6968, %v6952
    %v8137 = vpack.c.b16 %v6969, %v6953
    %v8138 = vpack.c.b16 %v6970, %v6954
    %v8139 = vpack.c.b16 %v6971, %v6955
    %v8140 = vpack.c.b16 %v6972, %v6956
    %v8141 = vpack.c.b16 %v6973, %v6957
    %v8142 = vpack.c.b16 %v6974, %v6958
    %v8143 = vpack.c.b16 %v6975, %v6959
    %v8144 = vpack.c.b16 %v6976, %v6960
    %v8145 = vpack.c.b16 %v6977, %v6961
    %v8146 = vpack.c.b16 %v6978, %v6962
    %v8147 = vpack.c.b16 %v6979, %v6963
    %v8148 = vpack.c.b16 %v6996, %v6980
    %v8149 = vpack.c.b16 %v6997, %v6981
    %v8150 = vpack.c.b16 %v6998, %v6982
    %v8151 = vpack.c.b16 %v6999, %v6983
    %v8152 = vpack.c.b16 %v7000, %v6984
    %v8153 = vpack.c.b16 %v7001, %v6985
    %v8154 = vpack.c.b16 %v7002, %v6986
    %v8155 = vpack.c.b16 %v7003, %v6987
    %v8156 = vpack.c.b16 %v7004, %v6988
    %v8157 = vpack.c.b16 %v7005, %v6989
    %v8158 = vpack.c.b16 %v7006, %v6990
    %v8159 = vpack.c.b16 %v7007, %v6991
    %v8160 = vpack.c.b16 %v7008, %v6992
    %v8161 = vpack.c.b16 %v7009, %v6993
    %v8162 = vpack.c.b16 %v7010, %v6994
    %v8163 = vpack.c.b16 %v7011, %v6995
    %v8164 = vpack.c.b16 %v7028, %v7012
    %v8165 = vpack.c.b16 %v7029, %v7013
    %v8166 = vpack.c.b16 %v7030, %v7014
    %v8167 = vpack.c.b16 %v7031, %v7015
    %v8168 = vpack.c.b16 %v7032, %v7016
    %v8169 = vpack.c.b16 %v7033, %v7017
    %v8170 = vpack.c.b16 %v7034, %v7018
    %v8171 = vpack.c.b16 %v7035, %v7019
    %v8172 = vpack.c.b16 %v7036, %v7020
    %v8173 = vpack.c.b16 %v7037, %v7021
    %v8174 = vpack.c.b16 %v7038, %v7022
    %v8175 = vpack.c.b16 %v7039, %v7023
    %v8176 = vpack.c.b16 %v7040, %v7024
    %v8177 = vpack.c.b16 %v7041, %v7025
    %v8178 = vpack.c.b16 %v7042, %v7026
    %v8179 = vpack.c.b16 %v7043, %v7027
    %v8180 = vpack.c.b16 %v7060, %v7044
    %v8181 = vpack.c.b16 %v7061, %v7045
    %v8182 = vpack.c.b16 %v7062, %v7046
    %v8183 = vpack.c.b16 %v7063, %v7047
    %v8184 = vpack.c.b16 %v7064, %v7048
    %v8185 = vpack.c.b16 %v7065, %v7049
    %v8186 = vpack.c.b16 %v7066, %v7050
    %v8187 = vpack.c.b16 %v7067, %v7051
    %v8188 = vpack.c.b16 %v7068, %v7052
    %v8189 = vpack.c.b16 %v7069, %v7053
    %v8190 = vpack.c.b16 %v7070, %v7054
    %v8191 = vpack.c.b16 %v7071, %v7055
    %v8192 = vpack.c.b16 %v7072, %v7056
    %v8193 = vpack.c.b16 %v7073, %v7057
    %v8194 = vpack.c.b16 %v7074, %v7058
    %v8195 = vpack.c.b16 %v7075, %v7059
    %v8196 = vpack.c.b16 %v7092, %v7076
    %v8197 = vpack.c.b16 %v7093, %v7077
    %v8198 = vpack.c.b16 %v7094, %v7078
    %v8199 = vpack.c.b16 %v7095, %v7079
    %v8200 = vpack.c.b16 %v7096, %v7080
    %v8201 = vpack.c.b16 %v7097, %v7081
    %v8202 = vpack.c.b16 %v7098, %v7082
    %v8203 = vpack.c.b16 %v7099, %v7083
    %v8204 = vpack.c.b16 %v7100, %v7084
    %v8205 = vpack.c.b16 %v7101, %v7085
    %v8206 = vpack.c.b16 %v7102, %v7086
    %v8207 = vpack.c.b16 %v7103, %v7087
    %v8208 = vpack.c.b16 %v7104, %v7088
    %v8209 = vpack.c.b16 %v7105, %v7089
    %v8210 = vpack.c.b16 %v7106, %v7090
    %v8211 = vpack.c.b16 %v7107, %v7091
    %v8212 = vpack.c.b16 %v7124, %v7108
    %v8213 = vpack.c.b16 %v7125, %v7109
    %v8214 = vpack.c.b16 %v7126, %v7110
    %v8215 = vpack.c.b16 %v7127, %v7111
    %v8216 = vpack.c.b16 %v7128, %v7112
    %v8217 = vpack.c.b16 %v7129, %v7113
    %v8218 = vpack.c.b16 %v7130, %v7114
    %v8219 = vpack.c.b16 %v7131, %v7115
    %v8220 = vpack.c.b16 %v7132, %v7116
    %v8221 = vpack.c.b16 %v7133, %v7117
    %v8222 = vpack.c.b16 %v7134, %v7118
    %v8223 = vpack.c.b16 %v7135, %v7119
    %v8224 = vpack.c.b16 %v7136, %v7120
    %v8225 = vpack.c.b16 %v7137, %v7121
    %v8226 = vpack.c.b16 %v7138, %v7122
    %v8227 = vpack.c.b16 %v7139, %v7123
    %v8228 = vpack.c.b16 %v7156, %v7140
    %v8229 = vpack.c.b16 %v7157, %v7141
    %v8230 = vpack.c.b16 %v7158, %v7142
    %v8231 = vpack.c.b16 %v7159, %v7143
    %v8232 = vpack.c.b16 %v7160, %v7144
    %v8233 = vpack.c.b16 %v7161, %v7145
    %v8234 = vpack.c.b16 %v7162, %v7146
    %v8235 = vpack.c.b16 %v7163, %v7147
    %v8236 = vpack.c.b16 %v7164, %v7148
    %v8237 = vpack.c.b16 %v7165, %v7149
    %v8238 = vpack.c.b16 %v7166, %v7150
    %v8239 = vpack.c.b16 %v7167, %v7151
    %v8240 = vpack.c.b16 %v7168, %v7152
    %v8241 = vpack.c.b16 %v7169, %v7153
    %v8242 = vpack.c.b16 %v7170, %v7154
    %v8243 = vpack.c.b16 %v7171, %v7155
    %v8244 = vpack.c.b16 %v7188, %v7172
    %v8245 = vpack.c.b16 %v7189, %v7173
    %v8246 = vpack.c.b16 %v7190, %v7174
    %v8247 = vpack.c.b16 %v7191, %v7175
    %v8248 = vpack.c.b16 %v7192, %v7176
    %v8249 = vpack.c.b16 %v7193, %v7177
    %v8250 = vpack.c.b16 %v7194, %v7178
    %v8251 = vpack.c.b16 %v7195, %v7179
    %v8252 = vpack.c.b16 %v7196, %v7180
    %v8253 = vpack.c.b16 %v7197, %v7181
    %v8254 = vpack.c.b16 %v7198, %v7182
    %v8255 = vpack.c.b16 %v7199, %v7183
    %v8256 = vpack.c.b16 %v7200, %v7184
    %v8257 = vpack.c.b16 %v7201, %v7185
    %v8258 = vpack.c.b16 %v7202, %v7186
    %v8259 = vpack.c.b16 %v7203, %v7187
    %v8260 = vpack.c.b16 %v7220, %v7204
    %v8261 = vpack.c.b16 %v7221, %v7205
    %v8262 = vpack.c.b16 %v7222, %v7206
    %v8263 = vpack.c.b16 %v7223, %v7207
    %v8264 = vpack.c.b16 %v7224, %v7208
    %v8265 = vpack.c.b16 %v7225, %v7209
    %v8266 = vpack.c.b16 %v7226, %v7210
    %v8267 = vpack.c.b16 %v7227, %v7211
    %v8268 = vpack.c.b16 %v7228, %v7212
    %v8269 = vpack.c.b16 %v7229, %v7213
    %v8270 = vpack.c.b16 %v7230, %v7214
    %v8271 = vpack.c.b16 %v7231, %v7215
    %v8272 = vpack.c.b16 %v7232, %v7216
    %v8273 = vpack.c.b16 %v7233, %v7217
    %v8274 = vpack.c.b16 %v7234, %v7218
    %v8275 = vpack.c.b16 %v7235, %v7219
    %v8276 = vpack.c.b16 %v7252, %v7236
    %v8277 = vpack.c.b16 %v7253, %v7237
    %v8278 = vpack.c.b16 %v7254, %v7238
    %v8279 = vpack.c.b16 %v7255, %v7239
    %v8280 = vpack.c.b16 %v7256, %v7240
    %v8281 = vpack.c.b16 %v7257, %v7241
    %v8282 = vpack.c.b16 %v7258, %v7242
    %v8283 = vpack.c.b16 %v7259, %v7243
    %v8284 = vpack.c.b16 %v7260, %v7244
    %v8285 = vpack.c.b16 %v7261, %v7245
    %v8286 = vpack.c.b16 %v7262, %v7246
    %v8287 = vpack.c.b16 %v7263, %v7247
    %v8288 = vpack.c.b16 %v7264, %v7248
    %v8289 = vpack.c.b16 %v7265, %v7249
    %v8290 = vpack.c.b16 %v7266, %v7250
    %v8291 = vpack.c.b16 %v7267, %v7251
    %9316 = vmatprep.subr.bf16.mxu0 %v7269
    %9317 = vmatpush1.bf16.msra.mxu0 %v7268
    %9318 = vmatprep.subr.bf16.mxu0 %v7285
    %9319 = vmatpush1.bf16.msra.mxu0 %v7284
    %9320 = vmatprep.subr.bf16.mxu0 %v7301
    %9321 = vmatpush1.bf16.msra.mxu0 %v7300
    %9322 = vmatprep.subr.bf16.mxu0 %v7317
    %9323 = vmatpush1.bf16.msra.mxu0 %v7316
    %9324 = vmatprep.subr.bf16.mxu0 %v7333
    %9325 = vmatpush1.bf16.msra.mxu0 %v7332
    %9326 = vmatprep.subr.bf16.mxu0 %v7349
    %9327 = vmatpush1.bf16.msra.mxu0 %v7348
    %9328 = vmatprep.subr.bf16.mxu0 %v7365
    %9329 = vmatpush1.bf16.msra.mxu0 %v7364
    %9330 = vmatprep.subr.bf16.mxu0 %v7381
    %9331 = vmatpush1.bf16.msra.mxu0 %v7380
    %9332 = vmatprep.subr.bf16.mxu0 %v7397
    %9333 = vmatpush1.bf16.msra.mxu0 %v7396
    %9334 = vmatprep.subr.bf16.mxu0 %v7413
    %9335 = vmatpush1.bf16.msra.mxu0 %v7412
    %9336 = vmatprep.subr.bf16.mxu0 %v7429
    %9337 = vmatpush1.bf16.msra.mxu0 %v7428
    %9338 = vmatprep.subr.bf16.mxu0 %v7445
    %9339 = vmatpush1.bf16.msra.mxu0 %v7444
    %9340 = vmatprep.subr.bf16.mxu0 %v7461
    %9341 = vmatpush1.bf16.msra.mxu0 %v7460
    %9342 = vmatprep.subr.bf16.mxu0 %v7477
    %9343 = vmatpush1.bf16.msra.mxu0 %v7476
    %9344 = vmatprep.subr.bf16.mxu0 %v7493
    %9345 = vmatpush1.bf16.msra.mxu0 %v7492
    %9346 = vmatprep.subr.bf16.mxu0 %v7509
    %9347 = vmatpush1.bf16.msra.mxu0 %v7508
    %9348 = vmatprep.mubr.bf16.mxu0 %v3081
    %9349 = vmatmul.mubr.bf16.gmra.mrb[0].mxu0 %v3080
    %v9350 = vpop.f32.mrb[0].mxu0
    %v9351 = vadd.f32 %v4119, %v9350
    %v9352 = vpop.f32.mrb[0].mxu0
    %v9353 = vadd.f32 %v4123, %v9352
    %v9354 = vpop.f32.mrb[0].mxu0
    %v9355 = vpop.f32.mrb[0].mxu0
    %9356 = vdwg.mxu0
    %9357 = vmatprep.subr.bf16.mxu0 %v7525
    %9358 = vmatpush1.bf16.msra.mxu0 %v7524
    %9359 = vmatprep.subr.bf16.mxu0 %v7541
    %9360 = vmatpush1.bf16.msra.mxu0 %v7540
    %9361 = vmatprep.subr.bf16.mxu0 %v7557
    %9362 = vmatpush1.bf16.msra.mxu0 %v7556
    %9363 = vmatprep.subr.bf16.mxu0 %v7573
    %9364 = vmatpush1.bf16.msra.mxu0 %v7572
    %9365 = vmatprep.subr.bf16.mxu0 %v7589
    %9366 = vmatpush1.bf16.msra.mxu0 %v7588
    %9367 = vmatprep.subr.bf16.mxu0 %v7605
    %9368 = vmatpush1.bf16.msra.mxu0 %v7604
    %9369 = vmatprep.subr.bf16.mxu0 %v7621
    %9370 = vmatpush1.bf16.msra.mxu0 %v7620
    %9371 = vmatprep.subr.bf16.mxu0 %v7637
    %9372 = vmatpush1.bf16.msra.mxu0 %v7636
    %9373 = vmatprep.subr.bf16.mxu0 %v7653
    %9374 = vmatpush1.bf16.msra.mxu0 %v7652
    %9375 = vmatprep.subr.bf16.mxu0 %v7669
    %9376 = vmatpush1.bf16.msra.mxu0 %v7668
    %9377 = vmatprep.subr.bf16.mxu0 %v7685
    %9378 = vmatpush1.bf16.msra.mxu0 %v7684
    %9379 = vmatprep.subr.bf16.mxu0 %v7701
    %9380 = vmatpush1.bf16.msra.mxu0 %v7700
    %9381 = vmatprep.subr.bf16.mxu0 %v7717
    %9382 = vmatpush1.bf16.msra.mxu0 %v7716
    %9383 = vmatprep.subr.bf16.mxu0 %v7733
    %9384 = vmatpush1.bf16.msra.mxu0 %v7732
    %9385 = vmatprep.subr.bf16.mxu0 %v7749
    %9386 = vmatpush1.bf16.msra.mxu0 %v7748
    %9387 = vmatprep.subr.bf16.mxu0 %v7765
    %9388 = vmatpush1.bf16.msra.mxu0 %v7764
    %9389 = vmatprep.mubr.bf16.mxu0 %v3083
    %9390 = vmatmul.mubr.bf16.gmra.mrb[0].mxu0 %v3082
    %v9391 = vpop.f32.mrb[0].mxu0
    %v9392 = vadd.f32 %v9351, %v9391
    %v9393 = vpop.f32.mrb[0].mxu0
    %v9394 = vadd.f32 %v9353, %v9393
    %v9395 = vpop.f32.mrb[0].mxu0
    %v9396 = vpop.f32.mrb[0].mxu0
    %9397 = vdwg.mxu0
    %9398 = vmatprep.subr.bf16.mxu0 %v7781
    %9399 = vmatpush1.bf16.msra.mxu0 %v7780
    %9400 = vmatprep.subr.bf16.mxu0 %v7797
    %9401 = vmatpush1.bf16.msra.mxu0 %v7796
    %9402 = vmatprep.subr.bf16.mxu0 %v7813
    %9403 = vmatpush1.bf16.msra.mxu0 %v7812
    %9404 = vmatprep.subr.bf16.mxu0 %v7829
    %9405 = vmatpush1.bf16.msra.mxu0 %v7828
    %9406 = vmatprep.subr.bf16.mxu0 %v7845
    %9407 = vmatpush1.bf16.msra.mxu0 %v7844
    %9408 = vmatprep.subr.bf16.mxu0 %v7861
    %9409 = vmatpush1.bf16.msra.mxu0 %v7860
    %9410 = vmatprep.subr.bf16.mxu0 %v7877
    %9411 = vmatpush1.bf16.msra.mxu0 %v7876
    %9412 = vmatprep.subr.bf16.mxu0 %v7893
    %9413 = vmatpush1.bf16.msra.mxu0 %v7892
    %9414 = vmatprep.subr.bf16.mxu0 %v7909
    %9415 = vmatpush1.bf16.msra.mxu0 %v7908
    %9416 = vmatprep.subr.bf16.mxu0 %v7925
    %9417 = vmatpush1.bf16.msra.mxu0 %v7924
    %9418 = vmatprep.subr.bf16.mxu0 %v7941
    %9419 = vmatpush1.bf16.msra.mxu0 %v7940
    %9420 = vmatprep.subr.bf16.mxu0 %v7957
    %9421 = vmatpush1.bf16.msra.mxu0 %v7956
    %9422 = vmatprep.subr.bf16.mxu0 %v7973
    %9423 = vmatpush1.bf16.msra.mxu0 %v7972
    %9424 = vmatprep.subr.bf16.mxu0 %v7989
    %9425 = vmatpush1.bf16.msra.mxu0 %v7988
    %9426 = vmatprep.subr.bf16.mxu0 %v8005
    %9427 = vmatpush1.bf16.msra.mxu0 %v8004
    %9428 = vmatprep.subr.bf16.mxu0 %v8021
    %9429 = vmatpush1.bf16.msra.mxu0 %v8020
    %9430 = vmatprep.mubr.bf16.mxu0 %v3085
    %9431 = vmatmul.mubr.bf16.gmra.mrb[0].mxu0 %v3084
    %v9432 = vpop.f32.mrb[0].mxu0
    %v9433 = vadd.f32 %v9392, %v9432
    %v9434 = vpop.f32.mrb[0].mxu0
    %v9435 = vadd.f32 %v9394, %v9434
    %v9436 = vpop.f32.mrb[0].mxu0
    %v9437 = vpop.f32.mrb[0].mxu0
    %9438 = vdwg.mxu0
    %9439 = vmatprep.subr.bf16.mxu0 %v8037
    %9440 = vmatpush1.bf16.msra.mxu0 %v8036
    %9441 = vmatprep.subr.bf16.mxu0 %v8053
    %9442 = vmatpush1.bf16.msra.mxu0 %v8052
    %9443 = vmatprep.subr.bf16.mxu0 %v8069
    %9444 = vmatpush1.bf16.msra.mxu0 %v8068
    %9445 = vmatprep.subr.bf16.mxu0 %v8085
    %9446 = vmatpush1.bf16.msra.mxu0 %v8084
    %9447 = vmatprep.subr.bf16.mxu0 %v8101
    %9448 = vmatpush1.bf16.msra.mxu0 %v8100
    %9449 = vmatprep.subr.bf16.mxu0 %v8117
    %9450 = vmatpush1.bf16.msra.mxu0 %v8116
    %9451 = vmatprep.subr.bf16.mxu0 %v8133
    %9452 = vmatpush1.bf16.msra.mxu0 %v8132
    %9453 = vmatprep.subr.bf16.mxu0 %v8149
    %9454 = vmatpush1.bf16.msra.mxu0 %v8148
    %9455 = vmatprep.subr.bf16.mxu0 %v8165
    %9456 = vmatpush1.bf16.msra.mxu0 %v8164
    %9457 = vmatprep.subr.bf16.mxu0 %v8181
    %9458 = vmatpush1.bf16.msra.mxu0 %v8180
    %9459 = vmatprep.subr.bf16.mxu0 %v8197
    %9460 = vmatpush1.bf16.msra.mxu0 %v8196
    %9461 = vmatprep.subr.bf16.mxu0 %v8213
    %9462 = vmatpush1.bf16.msra.mxu0 %v8212
    %9463 = vmatprep.subr.bf16.mxu0 %v8229
    %9464 = vmatpush1.bf16.msra.mxu0 %v8228
    %9465 = vmatprep.subr.bf16.mxu0 %v8245
    %9466 = vmatpush1.bf16.msra.mxu0 %v8244
    %9467 = vmatprep.subr.bf16.mxu0 %v8261
    %9468 = vmatpush1.bf16.msra.mxu0 %v8260
    %9469 = vmatprep.subr.bf16.mxu0 %v8277
    %9470 = vmatpush1.bf16.msra.mxu0 %v8276
    %9471 = vmatprep.mubr.bf16.mxu0 %v3087
    %9472 = vmatmul.mubr.bf16.gmra.mrb[0].mxu0 %v3086
    %v9473 = vpop.f32.mrb[0].mxu0
    %v9474 = vadd.f32 %v9433, %v9473
    %v9475 = vpop.f32.mrb[0].mxu0
    %v9476 = vadd.f32 %v9435, %v9475
    %v9477 = vpop.f32.mrb[0].mxu0
    %v9478 = vpop.f32.mrb[0].mxu0
    %9479 = vdwg.mxu0
    %9480 = vmatprep.subr.bf16.mxu0 %v7271
    %9481 = vmatpush1.bf16.msra.mxu0 %v7270
    %9482 = vmatprep.subr.bf16.mxu0 %v7287
    %9483 = vmatpush1.bf16.msra.mxu0 %v7286
    %9484 = vmatprep.subr.bf16.mxu0 %v7303
    %9485 = vmatpush1.bf16.msra.mxu0 %v7302
    %9486 = vmatprep.subr.bf16.mxu0 %v7319
    %9487 = vmatpush1.bf16.msra.mxu0 %v7318
    %9488 = vmatprep.subr.bf16.mxu0 %v7335
    %9489 = vmatpush1.bf16.msra.mxu0 %v7334
    %9490 = vmatprep.subr.bf16.mxu0 %v7351
    %9491 = vmatpush1.bf16.msra.mxu0 %v7350
    %9492 = vmatprep.subr.bf16.mxu0 %v7367
    %9493 = vmatpush1.bf16.msra.mxu0 %v7366
    %9494 = vmatprep.subr.bf16.mxu0 %v7383
    %9495 = vmatpush1.bf16.msra.mxu0 %v7382
    %9496 = vmatprep.subr.bf16.mxu0 %v7399
    %9497 = vmatpush1.bf16.msra.mxu0 %v7398
    %9498 = vmatprep.subr.bf16.mxu0 %v7415
    %9499 = vmatpush1.bf16.msra.mxu0 %v7414
    %9500 = vmatprep.subr.bf16.mxu0 %v7431
    %9501 = vmatpush1.bf16.msra.mxu0 %v7430
    %9502 = vmatprep.subr.bf16.mxu0 %v7447
    %9503 = vmatpush1.bf16.msra.mxu0 %v7446
    %9504 = vmatprep.subr.bf16.mxu0 %v7463
    %9505 = vmatpush1.bf16.msra.mxu0 %v7462
    %9506 = vmatprep.subr.bf16.mxu0 %v7479
    %9507 = vmatpush1.bf16.msra.mxu0 %v7478
    %9508 = vmatprep.subr.bf16.mxu0 %v7495
    %9509 = vmatpush1.bf16.msra.mxu0 %v7494
    %9510 = vmatprep.subr.bf16.mxu0 %v7511
    %9511 = vmatpush1.bf16.msra.mxu0 %v7510
    %9512 = vmatprep.mubr.bf16.mxu0 %v3081
    %9513 = vmatmul.mubr.bf16.gmra.mrb[0].mxu0 %v3080
    %v9514 = vpop.f32.mrb[0].mxu0
    %v9515 = vadd.f32 %v4127, %v9514
    %v9516 = vpop.f32.mrb[0].mxu0
    %v9517 = vadd.f32 %v4131, %v9516
    %v9518 = vpop.f32.mrb[0].mxu0
    %v9519 = vpop.f32.mrb[0].mxu0
    %9520 = vdwg.mxu0
    %9521 = vmatprep.subr.bf16.mxu0 %v7527
    %9522 = vmatpush1.bf16.msra.mxu0 %v7526
    %9523 = vmatprep.subr.bf16.mxu0 %v7543
    %9524 = vmatpush1.bf16.msra.mxu0 %v7542
    %9525 = vmatprep.subr.bf16.mxu0 %v7559
    %9526 = vmatpush1.bf16.msra.mxu0 %v7558
    %9527 = vmatprep.subr.bf16.mxu0 %v7575
    %9528 = vmatpush1.bf16.msra.mxu0 %v7574
    %9529 = vmatprep.subr.bf16.mxu0 %v7591
    %9530 = vmatpush1.bf16.msra.mxu0 %v7590
    %9531 = vmatprep.subr.bf16.mxu0 %v7607
    %9532 = vmatpush1.bf16.msra.mxu0 %v7606
    %9533 = vmatprep.subr.bf16.mxu0 %v7623
    %9534 = vmatpush1.bf16.msra.mxu0 %v7622
    %9535 = vmatprep.subr.bf16.mxu0 %v7639
    %9536 = vmatpush1.bf16.msra.mxu0 %v7638
    %9537 = vmatprep.subr.bf16.mxu0 %v7655
    %9538 = vmatpush1.bf16.msra.mxu0 %v7654
    %9539 = vmatprep.subr.bf16.mxu0 %v7671
    %9540 = vmatpush1.bf16.msra.mxu0 %v7670
    %9541 = vmatprep.subr.bf16.mxu0 %v7687
    %9542 = vmatpush1.bf16.msra.mxu0 %v7686
    %9543 = vmatprep.subr.bf16.mxu0 %v7703
    %9544 = vmatpush1.bf16.msra.mxu0 %v7702
    %9545 = vmatprep.subr.bf16.mxu0 %v7719
    %9546 = vmatpush1.bf16.msra.mxu0 %v7718
    %9547 = vmatprep.subr.bf16.mxu0 %v7735
    %9548 = vmatpush1.bf16.msra.mxu0 %v7734
    %9549 = vmatprep.subr.bf16.mxu0 %v7751
    %9550 = vmatpush1.bf16.msra.mxu0 %v7750
    %9551 = vmatprep.subr.bf16.mxu0 %v7767
    %9552 = vmatpush1.bf16.msra.mxu0 %v7766
    %9553 = vmatprep.mubr.bf16.mxu0 %v3083
    %9554 = vmatmul.mubr.bf16.gmra.mrb[0].mxu0 %v3082
    %v9555 = vpop.f32.mrb[0].mxu0
    %v9556 = vadd.f32 %v9515, %v9555
    %v9557 = vpop.f32.mrb[0].mxu0
    %v9558 = vadd.f32 %v9517, %v9557
    %v9559 = vpop.f32.mrb[0].mxu0
    %v9560 = vpop.f32.mrb[0].mxu0
    %9561 = vdwg.mxu0
    %9562 = vmatprep.subr.bf16.mxu0 %v7783
    %9563 = vmatpush1.bf16.msra.mxu0 %v7782
    %9564 = vmatprep.subr.bf16.mxu0 %v7799
    %9565 = vmatpush1.bf16.msra.mxu0 %v7798
    %9566 = vmatprep.subr.bf16.mxu0 %v7815
    %9567 = vmatpush1.bf16.msra.mxu0 %v7814
    %9568 = vmatprep.subr.bf16.mxu0 %v7831
    %9569 = vmatpush1.bf16.msra.mxu0 %v7830
    %9570 = vmatprep.subr.bf16.mxu0 %v7847
    %9571 = vmatpush1.bf16.msra.mxu0 %v7846
    %9572 = vmatprep.subr.bf16.mxu0 %v7863
    %9573 = vmatpush1.bf16.msra.mxu0 %v7862
    %9574 = vmatprep.subr.bf16.mxu0 %v7879
    %9575 = vmatpush1.bf16.msra.mxu0 %v7878
    %9576 = vmatprep.subr.bf16.mxu0 %v7895
    %9577 = vmatpush1.bf16.msra.mxu0 %v7894
    %9578 = vmatprep.subr.bf16.mxu0 %v7911
    %9579 = vmatpush1.bf16.msra.mxu0 %v7910
    %9580 = vmatprep.subr.bf16.mxu0 %v7927
    %9581 = vmatpush1.bf16.msra.mxu0 %v7926
    %9582 = vmatprep.subr.bf16.mxu0 %v7943
    %9583 = vmatpush1.bf16.msra.mxu0 %v7942
    %9584 = vmatprep.subr.bf16.mxu0 %v7959
    %9585 = vmatpush1.bf16.msra.mxu0 %v7958
    %9586 = vmatprep.subr.bf16.mxu0 %v7975
    %9587 = vmatpush1.bf16.msra.mxu0 %v7974
    %9588 = vmatprep.subr.bf16.mxu0 %v7991
    %9589 = vmatpush1.bf16.msra.mxu0 %v7990
    %9590 = vmatprep.subr.bf16.mxu0 %v8007
    %9591 = vmatpush1.bf16.msra.mxu0 %v8006
    %9592 = vmatprep.subr.bf16.mxu0 %v8023
    %9593 = vmatpush1.bf16.msra.mxu0 %v8022
    %9594 = vmatprep.mubr.bf16.mxu0 %v3085
    %9595 = vmatmul.mubr.bf16.gmra.mrb[0].mxu0 %v3084
    %v9596 = vpop.f32.mrb[0].mxu0
    %v9597 = vadd.f32 %v9556, %v9596
    %v9598 = vpop.f32.mrb[0].mxu0
    %v9599 = vadd.f32 %v9558, %v9598
    %v9600 = vpop.f32.mrb[0].mxu0
    %v9601 = vpop.f32.mrb[0].mxu0
    %9602 = vdwg.mxu0
    %9603 = vmatprep.subr.bf16.mxu0 %v8039
    %9604 = vmatpush1.bf16.msra.mxu0 %v8038
    %9605 = vmatprep.subr.bf16.mxu0 %v8055
    %9606 = vmatpush1.bf16.msra.mxu0 %v8054
    %9607 = vmatprep.subr.bf16.mxu0 %v8071
    %9608 = vmatpush1.bf16.msra.mxu0 %v8070
    %9609 = vmatprep.subr.bf16.mxu0 %v8087
    %9610 = vmatpush1.bf16.msra.mxu0 %v8086
    %9611 = vmatprep.subr.bf16.mxu0 %v8103
    %9612 = vmatpush1.bf16.msra.mxu0 %v8102
    %9613 = vmatprep.subr.bf16.mxu0 %v8119
    %9614 = vmatpush1.bf16.msra.mxu0 %v8118
    %9615 = vmatprep.subr.bf16.mxu0 %v8135
    %9616 = vmatpush1.bf16.msra.mxu0 %v8134
    %9617 = vmatprep.subr.bf16.mxu0 %v8151
    %9618 = vmatpush1.bf16.msra.mxu0 %v8150
    %9619 = vmatprep.subr.bf16.mxu0 %v8167
    %9620 = vmatpush1.bf16.msra.mxu0 %v8166
    %9621 = vmatprep.subr.bf16.mxu0 %v8183
    %9622 = vmatpush1.bf16.msra.mxu0 %v8182
    %9623 = vmatprep.subr.bf16.mxu0 %v8199
    %9624 = vmatpush1.bf16.msra.mxu0 %v8198
    %9625 = vmatprep.subr.bf16.mxu0 %v8215
    %9626 = vmatpush1.bf16.msra.mxu0 %v8214
    %9627 = vmatprep.subr.bf16.mxu0 %v8231
    %9628 = vmatpush1.bf16.msra.mxu0 %v8230
    %9629 = vmatprep.subr.bf16.mxu0 %v8247
    %9630 = vmatpush1.bf16.msra.mxu0 %v8246
    %9631 = vmatprep.subr.bf16.mxu0 %v8263
    %9632 = vmatpush1.bf16.msra.mxu0 %v8262
    %9633 = vmatprep.subr.bf16.mxu0 %v8279
    %9634 = vmatpush1.bf16.msra.mxu0 %v8278
    %9635 = vmatprep.mubr.bf16.mxu0 %v3087
    %9636 = vmatmul.mubr.bf16.gmra.mrb[0].mxu0 %v3086
    %v9637 = vpop.f32.mrb[0].mxu0
    %v9638 = vadd.f32 %v9597, %v9637
    %v9639 = vpop.f32.mrb[0].mxu0
    %v9640 = vadd.f32 %v9599, %v9639
    %v9641 = vpop.f32.mrb[0].mxu0
    %v9642 = vpop.f32.mrb[0].mxu0
    %9643 = vdwg.mxu0
    %9644 = vmatprep.subr.bf16.mxu0 %v7273
    %9645 = vmatpush1.bf16.msra.mxu0 %v7272
    %9646 = vmatprep.subr.bf16.mxu0 %v7289
    %9647 = vmatpush1.bf16.msra.mxu0 %v7288
    %9648 = vmatprep.subr.bf16.mxu0 %v7305
    %9649 = vmatpush1.bf16.msra.mxu0 %v7304
    %9650 = vmatprep.subr.bf16.mxu0 %v7321
    %9651 = vmatpush1.bf16.msra.mxu0 %v7320
    %9652 = vmatprep.subr.bf16.mxu0 %v7337
    %9653 = vmatpush1.bf16.msra.mxu0 %v7336
    %9654 = vmatprep.subr.bf16.mxu0 %v7353
    %9655 = vmatpush1.bf16.msra.mxu0 %v7352
    %9656 = vmatprep.subr.bf16.mxu0 %v7369
    %9657 = vmatpush1.bf16.msra.mxu0 %v7368
    %9658 = vmatprep.subr.bf16.mxu0 %v7385
    %9659 = vmatpush1.bf16.msra.mxu0 %v7384
    %9660 = vmatprep.subr.bf16.mxu0 %v7401
    %9661 = vmatpush1.bf16.msra.mxu0 %v7400
    %9662 = vmatprep.subr.bf16.mxu0 %v7417
    %9663 = vmatpush1.bf16.msra.mxu0 %v7416
    %9664 = vmatprep.subr.bf16.mxu0 %v7433
    %9665 = vmatpush1.bf16.msra.mxu0 %v7432
    %9666 = vmatprep.subr.bf16.mxu0 %v7449
    %9667 = vmatpush1.bf16.msra.mxu0 %v7448
    %9668 = vmatprep.subr.bf16.mxu0 %v7465
    %9669 = vmatpush1.bf16.msra.mxu0 %v7464
    %9670 = vmatprep.subr.bf16.mxu0 %v7481
    %9671 = vmatpush1.bf16.msra.mxu0 %v7480
    %9672 = vmatprep.subr.bf16.mxu0 %v7497
    %9673 = vmatpush1.bf16.msra.mxu0 %v7496
    %9674 = vmatprep.subr.bf16.mxu0 %v7513
    %9675 = vmatpush1.bf16.msra.mxu0 %v7512
    %9676 = vmatprep.mubr.bf16.mxu0 %v3081
    %9677 = vmatmul.mubr.bf16.gmra.mrb[0].mxu0 %v3080
    %v9678 = vpop.f32.mrb[0].mxu0
    %v9679 = vadd.f32 %v4135, %v9678
    %v9680 = vpop.f32.mrb[0].mxu0
    %v9681 = vadd.f32 %v4139, %v9680
    %v9682 = vpop.f32.mrb[0].mxu0
    %v9683 = vpop.f32.mrb[0].mxu0
    %9684 = vdwg.mxu0
    %9685 = vmatprep.subr.bf16.mxu0 %v7529
    %9686 = vmatpush1.bf16.msra.mxu0 %v7528
    %9687 = vmatprep.subr.bf16.mxu0 %v7545
    %9688 = vmatpush1.bf16.msra.mxu0 %v7544
    %9689 = vmatprep.subr.bf16.mxu0 %v7561
    %9690 = vmatpush1.bf16.msra.mxu0 %v7560
    %9691 = vmatprep.subr.bf16.mxu0 %v7577
    %9692 = vmatpush1.bf16.msra.mxu0 %v7576
    %9693 = vmatprep.subr.bf16.mxu0 %v7593
    %9694 = vmatpush1.bf16.msra.mxu0 %v7592
    %9695 = vmatprep.subr.bf16.mxu0 %v7609
    %9696 = vmatpush1.bf16.msra.mxu0 %v7608
    %9697 = vmatprep.subr.bf16.mxu0 %v7625
    %9698 = vmatpush1.bf16.msra.mxu0 %v7624
    %9699 = vmatprep.subr.bf16.mxu0 %v7641
    %9700 = vmatpush1.bf16.msra.mxu0 %v7640
    %9701 = vmatprep.subr.bf16.mxu0 %v7657
    %9702 = vmatpush1.bf16.msra.mxu0 %v7656
    %9703 = vmatprep.subr.bf16.mxu0 %v7673
    %9704 = vmatpush1.bf16.msra.mxu0 %v7672
    %9705 = vmatprep.subr.bf16.mxu0 %v7689
    %9706 = vmatpush1.bf16.msra.mxu0 %v7688
    %9707 = vmatprep.subr.bf16.mxu0 %v7705
    %9708 = vmatpush1.bf16.msra.mxu0 %v7704
    %9709 = vmatprep.subr.bf16.mxu0 %v7721
    %9710 = vmatpush1.bf16.msra.mxu0 %v7720
    %9711 = vmatprep.subr.bf16.mxu0 %v7737
    %9712 = vmatpush1.bf16.msra.mxu0 %v7736
    %9713 = vmatprep.subr.bf16.mxu0 %v7753
    %9714 = vmatpush1.bf16.msra.mxu0 %v7752
    %9715 = vmatprep.subr.bf16.mxu0 %v7769
    %9716 = vmatpush1.bf16.msra.mxu0 %v7768
    %9717 = vmatprep.mubr.bf16.mxu0 %v3083
    %9718 = vmatmul.mubr.bf16.gmra.mrb[0].mxu0 %v3082
    %v9719 = vpop.f32.mrb[0].mxu0
    %v9720 = vadd.f32 %v9679, %v9719
    %v9721 = vpop.f32.mrb[0].mxu0
    %v9722 = vadd.f32 %v9681, %v9721
    %v9723 = vpop.f32.mrb[0].mxu0
    %v9724 = vpop.f32.mrb[0].mxu0
    %9725 = vdwg.mxu0
    %9726 = vmatprep.subr.bf16.mxu0 %v7785
    %9727 = vmatpush1.bf16.msra.mxu0 %v7784
    %9728 = vmatprep.subr.bf16.mxu0 %v7801
    %9729 = vmatpush1.bf16.msra.mxu0 %v7800
    %9730 = vmatprep.subr.bf16.mxu0 %v7817
    %9731 = vmatpush1.bf16.msra.mxu0 %v7816
    %9732 = vmatprep.subr.bf16.mxu0 %v7833
    %9733 = vmatpush1.bf16.msra.mxu0 %v7832
    %9734 = vmatprep.subr.bf16.mxu0 %v7849
    %9735 = vmatpush1.bf16.msra.mxu0 %v7848
    %9736 = vmatprep.subr.bf16.mxu0 %v7865
    %9737 = vmatpush1.bf16.msra.mxu0 %v7864
    %9738 = vmatprep.subr.bf16.mxu0 %v7881
    %9739 = vmatpush1.bf16.msra.mxu0 %v7880
    %9740 = vmatprep.subr.bf16.mxu0 %v7897
    %9741 = vmatpush1.bf16.msra.mxu0 %v7896
    %9742 = vmatprep.subr.bf16.mxu0 %v7913
    %9743 = vmatpush1.bf16.msra.mxu0 %v7912
    %9744 = vmatprep.subr.bf16.mxu0 %v7929
    %9745 = vmatpush1.bf16.msra.mxu0 %v7928
    %9746 = vmatprep.subr.bf16.mxu0 %v7945
    %9747 = vmatpush1.bf16.msra.mxu0 %v7944
    %9748 = vmatprep.subr.bf16.mxu0 %v7961
    %9749 = vmatpush1.bf16.msra.mxu0 %v7960
    %9750 = vmatprep.subr.bf16.mxu0 %v7977
    %9751 = vmatpush1.bf16.msra.mxu0 %v7976
    %9752 = vmatprep.subr.bf16.mxu0 %v7993
    %9753 = vmatpush1.bf16.msra.mxu0 %v7992
    %9754 = vmatprep.subr.bf16.mxu0 %v8009
    %9755 = vmatpush1.bf16.msra.mxu0 %v8008
    %9756 = vmatprep.subr.bf16.mxu0 %v8025
    %9757 = vmatpush1.bf16.msra.mxu0 %v8024
    %9758 = vmatprep.mubr.bf16.mxu0 %v3085
    %9759 = vmatmul.mubr.bf16.gmra.mrb[0].mxu0 %v3084
    %v9760 = vpop.f32.mrb[0].mxu0
    %v9761 = vadd.f32 %v9720, %v9760
    %v9762 = vpop.f32.mrb[0].mxu0
    %v9763 = vadd.f32 %v9722, %v9762
    %v9764 = vpop.f32.mrb[0].mxu0
    %v9765 = vpop.f32.mrb[0].mxu0
    %9766 = vdwg.mxu0
    %9767 = vmatprep.subr.bf16.mxu0 %v8041
    %9768 = vmatpush1.bf16.msra.mxu0 %v8040
    %9769 = vmatprep.subr.bf16.mxu0 %v8057
    %9770 = vmatpush1.bf16.msra.mxu0 %v8056
    %9771 = vmatprep.subr.bf16.mxu0 %v8073
    %9772 = vmatpush1.bf16.msra.mxu0 %v8072
    %9773 = vmatprep.subr.bf16.mxu0 %v8089
    %9774 = vmatpush1.bf16.msra.mxu0 %v8088
    %9775 = vmatprep.subr.bf16.mxu0 %v8105
    %9776 = vmatpush1.bf16.msra.mxu0 %v8104
    %9777 = vmatprep.subr.bf16.mxu0 %v8121
    %9778 = vmatpush1.bf16.msra.mxu0 %v8120
    %9779 = vmatprep.subr.bf16.mxu0 %v8137
    %9780 = vmatpush1.bf16.msra.mxu0 %v8136
    %9781 = vmatprep.subr.bf16.mxu0 %v8153
    %9782 = vmatpush1.bf16.msra.mxu0 %v8152
    %9783 = vmatprep.subr.bf16.mxu0 %v8169
    %9784 = vmatpush1.bf16.msra.mxu0 %v8168
    %9785 = vmatprep.subr.bf16.mxu0 %v8185
    %9786 = vmatpush1.bf16.msra.mxu0 %v8184
    %9787 = vmatprep.subr.bf16.mxu0 %v8201
    %9788 = vmatpush1.bf16.msra.mxu0 %v8200
    %9789 = vmatprep.subr.bf16.mxu0 %v8217
    %9790 = vmatpush1.bf16.msra.mxu0 %v8216
    %9791 = vmatprep.subr.bf16.mxu0 %v8233
    %9792 = vmatpush1.bf16.msra.mxu0 %v8232
    %9793 = vmatprep.subr.bf16.mxu0 %v8249
    %9794 = vmatpush1.bf16.msra.mxu0 %v8248
    %9795 = vmatprep.subr.bf16.mxu0 %v8265
    %9796 = vmatpush1.bf16.msra.mxu0 %v8264
    %9797 = vmatprep.subr.bf16.mxu0 %v8281
    %9798 = vmatpush1.bf16.msra.mxu0 %v8280
    %9799 = vmatprep.mubr.bf16.mxu0 %v3087
    %9800 = vmatmul.mubr.bf16.gmra.mrb[0].mxu0 %v3086
    %v9801 = vpop.f32.mrb[0].mxu0
    %v9802 = vadd.f32 %v9761, %v9801
    %v9803 = vpop.f32.mrb[0].mxu0
    %v9804 = vadd.f32 %v9763, %v9803
    %v9805 = vpop.f32.mrb[0].mxu0
    %v9806 = vpop.f32.mrb[0].mxu0
    %9807 = vdwg.mxu0
    %9808 = vmatprep.subr.bf16.mxu0 %v7275
    %9809 = vmatpush1.bf16.msra.mxu0 %v7274
    %9810 = vmatprep.subr.bf16.mxu0 %v7291
    %9811 = vmatpush1.bf16.msra.mxu0 %v7290
    %9812 = vmatprep.subr.bf16.mxu0 %v7307
    %9813 = vmatpush1.bf16.msra.mxu0 %v7306
    %9814 = vmatprep.subr.bf16.mxu0 %v7323
    %9815 = vmatpush1.bf16.msra.mxu0 %v7322
    %9816 = vmatprep.subr.bf16.mxu0 %v7339
    %9817 = vmatpush1.bf16.msra.mxu0 %v7338
    %9818 = vmatprep.subr.bf16.mxu0 %v7355
    %9819 = vmatpush1.bf16.msra.mxu0 %v7354
    %9820 = vmatprep.subr.bf16.mxu0 %v7371
    %9821 = vmatpush1.bf16.msra.mxu0 %v7370
    %9822 = vmatprep.subr.bf16.mxu0 %v7387
    %9823 = vmatpush1.bf16.msra.mxu0 %v7386
    %9824 = vmatprep.subr.bf16.mxu0 %v7403
    %9825 = vmatpush1.bf16.msra.mxu0 %v7402
    %9826 = vmatprep.subr.bf16.mxu0 %v7419
    %9827 = vmatpush1.bf16.msra.mxu0 %v7418
    %9828 = vmatprep.subr.bf16.mxu0 %v7435
    %9829 = vmatpush1.bf16.msra.mxu0 %v7434
    %9830 = vmatprep.subr.bf16.mxu0 %v7451
    %9831 = vmatpush1.bf16.msra.mxu0 %v7450
    %9832 = vmatprep.subr.bf16.mxu0 %v7467
    %9833 = vmatpush1.bf16.msra.mxu0 %v7466
    %9834 = vmatprep.subr.bf16.mxu0 %v7483
    %9835 = vmatpush1.bf16.msra.mxu0 %v7482
    %9836 = vmatprep.subr.bf16.mxu0 %v7499
    %9837 = vmatpush1.bf16.msra.mxu0 %v7498
    %9838 = vmatprep.subr.bf16.mxu0 %v7515
    %9839 = vmatpush1.bf16.msra.mxu0 %v7514
    %9840 = vmatprep.mubr.bf16.mxu0 %v3081
    %9841 = vmatmul.mubr.bf16.gmra.mrb[0].mxu0 %v3080
    %v9842 = vpop.f32.mrb[0].mxu0
    %v9843 = vadd.f32 %v4143, %v9842
    %v9844 = vpop.f32.mrb[0].mxu0
    %v9845 = vadd.f32 %v4147, %v9844
    %v9846 = vpop.f32.mrb[0].mxu0
    %v9847 = vpop.f32.mrb[0].mxu0
    %9848 = vdwg.mxu0
    %9849 = vmatprep.subr.bf16.mxu0 %v7531
    %9850 = vmatpush1.bf16.msra.mxu0 %v7530
    %9851 = vmatprep.subr.bf16.mxu0 %v7547
    %9852 = vmatpush1.bf16.msra.mxu0 %v7546
    %9853 = vmatprep.subr.bf16.mxu0 %v7563
    %9854 = vmatpush1.bf16.msra.mxu0 %v7562
    %9855 = vmatprep.subr.bf16.mxu0 %v7579
    %9856 = vmatpush1.bf16.msra.mxu0 %v7578
    %9857 = vmatprep.subr.bf16.mxu0 %v7595
    %9858 = vmatpush1.bf16.msra.mxu0 %v7594
    %9859 = vmatprep.subr.bf16.mxu0 %v7611
    %9860 = vmatpush1.bf16.msra.mxu0 %v7610
    %9861 = vmatprep.subr.bf16.mxu0 %v7627
    %9862 = vmatpush1.bf16.msra.mxu0 %v7626
    %9863 = vmatprep.subr.bf16.mxu0 %v7643
    %9864 = vmatpush1.bf16.msra.mxu0 %v7642
    %9865 = vmatprep.subr.bf16.mxu0 %v7659
    %9866 = vmatpush1.bf16.msra.mxu0 %v7658
    %9867 = vmatprep.subr.bf16.mxu0 %v7675
    %9868 = vmatpush1.bf16.msra.mxu0 %v7674
    %9869 = vmatprep.subr.bf16.mxu0 %v7691
    %9870 = vmatpush1.bf16.msra.mxu0 %v7690
    %9871 = vmatprep.subr.bf16.mxu0 %v7707
    %9872 = vmatpush1.bf16.msra.mxu0 %v7706
    %9873 = vmatprep.subr.bf16.mxu0 %v7723
    %9874 = vmatpush1.bf16.msra.mxu0 %v7722
    %9875 = vmatprep.subr.bf16.mxu0 %v7739
    %9876 = vmatpush1.bf16.msra.mxu0 %v7738
    %9877 = vmatprep.subr.bf16.mxu0 %v7755
    %9878 = vmatpush1.bf16.msra.mxu0 %v7754
    %9879 = vmatprep.subr.bf16.mxu0 %v7771
    %9880 = vmatpush1.bf16.msra.mxu0 %v7770
    %9881 = vmatprep.mubr.bf16.mxu0 %v3083
    %9882 = vmatmul.mubr.bf16.gmra.mrb[0].mxu0 %v3082
    %v9883 = vpop.f32.mrb[0].mxu0
    %v9884 = vadd.f32 %v9843, %v9883
    %v9885 = vpop.f32.mrb[0].mxu0
    %v9886 = vadd.f32 %v9845, %v9885
    %v9887 = vpop.f32.mrb[0].mxu0
    %v9888 = vpop.f32.mrb[0].mxu0
    %9889 = vdwg.mxu0
    %9890 = vmatprep.subr.bf16.mxu0 %v7787
    %9891 = vmatpush1.bf16.msra.mxu0 %v7786
    %9892 = vmatprep.subr.bf16.mxu0 %v7803
    %9893 = vmatpush1.bf16.msra.mxu0 %v7802
    %9894 = vmatprep.subr.bf16.mxu0 %v7819
    %9895 = vmatpush1.bf16.msra.mxu0 %v7818
    %9896 = vmatprep.subr.bf16.mxu0 %v7835
    %9897 = vmatpush1.bf16.msra.mxu0 %v7834
    %9898 = vmatprep.subr.bf16.mxu0 %v7851
    %9899 = vmatpush1.bf16.msra.mxu0 %v7850
    %9900 = vmatprep.subr.bf16.mxu0 %v7867
    %9901 = vmatpush1.bf16.msra.mxu0 %v7866
    %9902 = vmatprep.subr.bf16.mxu0 %v7883
    %9903 = vmatpush1.bf16.msra.mxu0 %v7882
    %9904 = vmatprep.subr.bf16.mxu0 %v7899
    %9905 = vmatpush1.bf16.msra.mxu0 %v7898
    %9906 = vmatprep.subr.bf16.mxu0 %v7915
    %9907 = vmatpush1.bf16.msra.mxu0 %v7914
    %9908 = vmatprep.subr.bf16.mxu0 %v7931
    %9909 = vmatpush1.bf16.msra.mxu0 %v7930
    %9910 = vmatprep.subr.bf16.mxu0 %v7947
    %9911 = vmatpush1.bf16.msra.mxu0 %v7946
    %9912 = vmatprep.subr.bf16.mxu0 %v7963
    %9913 = vmatpush1.bf16.msra.mxu0 %v7962
    %9914 = vmatprep.subr.bf16.mxu0 %v7979
    %9915 = vmatpush1.bf16.msra.mxu0 %v7978
    %9916 = vmatprep.subr.bf16.mxu0 %v7995
    %9917 = vmatpush1.bf16.msra.mxu0 %v7994
    %9918 = vmatprep.subr.bf16.mxu0 %v8011
    %9919 = vmatpush1.bf16.msra.mxu0 %v8010
    %9920 = vmatprep.subr.bf16.mxu0 %v8027
    %9921 = vmatpush1.bf16.msra.mxu0 %v8026
    %9922 = vmatprep.mubr.bf16.mxu0 %v3085
    %9923 = vmatmul.mubr.bf16.gmra.mrb[0].mxu0 %v3084
    %v9924 = vpop.f32.mrb[0].mxu0
    %v9925 = vadd.f32 %v9884, %v9924
    %v9926 = vpop.f32.mrb[0].mxu0
    %v9927 = vadd.f32 %v9886, %v9926
    %v9928 = vpop.f32.mrb[0].mxu0
    %v9929 = vpop.f32.mrb[0].mxu0
    %9930 = vdwg.mxu0
    %9931 = vmatprep.subr.bf16.mxu0 %v8043
    %9932 = vmatpush1.bf16.msra.mxu0 %v8042
    %9933 = vmatprep.subr.bf16.mxu0 %v8059
    %9934 = vmatpush1.bf16.msra.mxu0 %v8058
    %9935 = vmatprep.subr.bf16.mxu0 %v8075
    %9936 = vmatpush1.bf16.msra.mxu0 %v8074
    %9937 = vmatprep.subr.bf16.mxu0 %v8091
    %9938 = vmatpush1.bf16.msra.mxu0 %v8090
    %9939 = vmatprep.subr.bf16.mxu0 %v8107
    %9940 = vmatpush1.bf16.msra.mxu0 %v8106
    %9941 = vmatprep.subr.bf16.mxu0 %v8123
    %9942 = vmatpush1.bf16.msra.mxu0 %v8122
    %9943 = vmatprep.subr.bf16.mxu0 %v8139
    %9944 = vmatpush1.bf16.msra.mxu0 %v8138
    %9945 = vmatprep.subr.bf16.mxu0 %v8155
    %9946 = vmatpush1.bf16.msra.mxu0 %v8154
    %9947 = vmatprep.subr.bf16.mxu0 %v8171
    %9948 = vmatpush1.bf16.msra.mxu0 %v8170
    %9949 = vmatprep.subr.bf16.mxu0 %v8187
    %9950 = vmatpush1.bf16.msra.mxu0 %v8186
    %9951 = vmatprep.subr.bf16.mxu0 %v8203
    %9952 = vmatpush1.bf16.msra.mxu0 %v8202
    %9953 = vmatprep.subr.bf16.mxu0 %v8219
    %9954 = vmatpush1.bf16.msra.mxu0 %v8218
    %9955 = vmatprep.subr.bf16.mxu0 %v8235
    %9956 = vmatpush1.bf16.msra.mxu0 %v8234
    %9957 = vmatprep.subr.bf16.mxu0 %v8251
    %9958 = vmatpush1.bf16.msra.mxu0 %v8250
    %9959 = vmatprep.subr.bf16.mxu0 %v8267
    %9960 = vmatpush1.bf16.msra.mxu0 %v8266
    %9961 = vmatprep.subr.bf16.mxu0 %v8283
    %9962 = vmatpush1.bf16.msra.mxu0 %v8282
    %9963 = vmatprep.mubr.bf16.mxu0 %v3087
    %9964 = vmatmul.mubr.bf16.gmra.mrb[0].mxu0 %v3086
    %v9965 = vpop.f32.mrb[0].mxu0
    %v9966 = vadd.f32 %v9925, %v9965
    %v9967 = vpop.f32.mrb[0].mxu0
    %v9968 = vadd.f32 %v9927, %v9967
    %v9969 = vpop.f32.mrb[0].mxu0
    %v9970 = vpop.f32.mrb[0].mxu0
    %9971 = vdwg.mxu0
    %9972 = vmatprep.subr.bf16.mxu0 %v7277
    %9973 = vmatpush1.bf16.msra.mxu0 %v7276
    %9974 = vmatprep.subr.bf16.mxu0 %v7293
    %9975 = vmatpush1.bf16.msra.mxu0 %v7292
    %9976 = vmatprep.subr.bf16.mxu0 %v7309
    %9977 = vmatpush1.bf16.msra.mxu0 %v7308
    %9978 = vmatprep.subr.bf16.mxu0 %v7325
    %9979 = vmatpush1.bf16.msra.mxu0 %v7324
    %9980 = vmatprep.subr.bf16.mxu0 %v7341
    %9981 = vmatpush1.bf16.msra.mxu0 %v7340
    %9982 = vmatprep.subr.bf16.mxu0 %v7357
    %9983 = vmatpush1.bf16.msra.mxu0 %v7356
    %9984 = vmatprep.subr.bf16.mxu0 %v7373
    %9985 = vmatpush1.bf16.msra.mxu0 %v7372
    %9986 = vmatprep.subr.bf16.mxu0 %v7389
    %9987 = vmatpush1.bf16.msra.mxu0 %v7388
    %9988 = vmatprep.subr.bf16.mxu0 %v7405
    %9989 = vmatpush1.bf16.msra.mxu0 %v7404
    %9990 = vmatprep.subr.bf16.mxu0 %v7421
    %9991 = vmatpush1.bf16.msra.mxu0 %v7420
    %9992 = vmatprep.subr.bf16.mxu0 %v7437
    %9993 = vmatpush1.bf16.msra.mxu0 %v7436
    %9994 = vmatprep.subr.bf16.mxu0 %v7453
    %9995 = vmatpush1.bf16.msra.mxu0 %v7452
    %9996 = vmatprep.subr.bf16.mxu0 %v7469
    %9997 = vmatpush1.bf16.msra.mxu0 %v7468
    %9998 = vmatprep.subr.bf16.mxu0 %v7485
    %9999 = vmatpush1.bf16.msra.mxu0 %v7484
    %10000 = vmatprep.subr.bf16.mxu0 %v7501
    %10001 = vmatpush1.bf16.msra.mxu0 %v7500
    %10002 = vmatprep.subr.bf16.mxu0 %v7517
    %10003 = vmatpush1.bf16.msra.mxu0 %v7516
    %10004 = vmatprep.mubr.bf16.mxu0 %v3081
    %10005 = vmatmul.mubr.bf16.gmra.mrb[0].mxu0 %v3080
    %v10006 = vpop.f32.mrb[0].mxu0
    %v10007 = vadd.f32 %v4151, %v10006
    %v10008 = vpop.f32.mrb[0].mxu0
    %v10009 = vadd.f32 %v4155, %v10008
    %v10010 = vpop.f32.mrb[0].mxu0
    %v10011 = vpop.f32.mrb[0].mxu0
    %10012 = vdwg.mxu0
    %10013 = vmatprep.subr.bf16.mxu0 %v7533
    %10014 = vmatpush1.bf16.msra.mxu0 %v7532
    %10015 = vmatprep.subr.bf16.mxu0 %v7549
    %10016 = vmatpush1.bf16.msra.mxu0 %v7548
    %10017 = vmatprep.subr.bf16.mxu0 %v7565
    %10018 = vmatpush1.bf16.msra.mxu0 %v7564
    %10019 = vmatprep.subr.bf16.mxu0 %v7581
    %10020 = vmatpush1.bf16.msra.mxu0 %v7580
    %10021 = vmatprep.subr.bf16.mxu0 %v7597
    %10022 = vmatpush1.bf16.msra.mxu0 %v7596
    %10023 = vmatprep.subr.bf16.mxu0 %v7613
    %10024 = vmatpush1.bf16.msra.mxu0 %v7612
    %10025 = vmatprep.subr.bf16.mxu0 %v7629
    %10026 = vmatpush1.bf16.msra.mxu0 %v7628
    %10027 = vmatprep.subr.bf16.mxu0 %v7645
    %10028 = vmatpush1.bf16.msra.mxu0 %v7644
    %10029 = vmatprep.subr.bf16.mxu0 %v7661
    %10030 = vmatpush1.bf16.msra.mxu0 %v7660
    %10031 = vmatprep.subr.bf16.mxu0 %v7677
    %10032 = vmatpush1.bf16.msra.mxu0 %v7676
    %10033 = vmatprep.subr.bf16.mxu0 %v7693
    %10034 = vmatpush1.bf16.msra.mxu0 %v7692
    %10035 = vmatprep.subr.bf16.mxu0 %v7709
    %10036 = vmatpush1.bf16.msra.mxu0 %v7708
    %10037 = vmatprep.subr.bf16.mxu0 %v7725
    %10038 = vmatpush1.bf16.msra.mxu0 %v7724
    %10039 = vmatprep.subr.bf16.mxu0 %v7741
    %10040 = vmatpush1.bf16.msra.mxu0 %v7740
    %10041 = vmatprep.subr.bf16.mxu0 %v7757
    %10042 = vmatpush1.bf16.msra.mxu0 %v7756
    %10043 = vmatprep.subr.bf16.mxu0 %v7773
    %10044 = vmatpush1.bf16.msra.mxu0 %v7772
    %10045 = vmatprep.mubr.bf16.mxu0 %v3083
    %10046 = vmatmul.mubr.bf16.gmra.mrb[0].mxu0 %v3082
    %v10047 = vpop.f32.mrb[0].mxu0
    %v10048 = vadd.f32 %v10007, %v10047
    %v10049 = vpop.f32.mrb[0].mxu0
    %v10050 = vadd.f32 %v10009, %v10049
    %v10051 = vpop.f32.mrb[0].mxu0
    %v10052 = vpop.f32.mrb[0].mxu0
    %10053 = vdwg.mxu0
    %10054 = vmatprep.subr.bf16.mxu0 %v7789
    %10055 = vmatpush1.bf16.msra.mxu0 %v7788
    %10056 = vmatprep.subr.bf16.mxu0 %v7805
    %10057 = vmatpush1.bf16.msra.mxu0 %v7804
    %10058 = vmatprep.subr.bf16.mxu0 %v7821
    %10059 = vmatpush1.bf16.msra.mxu0 %v7820
    %10060 = vmatprep.subr.bf16.mxu0 %v7837
    %10061 = vmatpush1.bf16.msra.mxu0 %v7836
    %10062 = vmatprep.subr.bf16.mxu0 %v7853
    %10063 = vmatpush1.bf16.msra.mxu0 %v7852
    %10064 = vmatprep.subr.bf16.mxu0 %v7869
    %10065 = vmatpush1.bf16.msra.mxu0 %v7868
    %10066 = vmatprep.subr.bf16.mxu0 %v7885
    %10067 = vmatpush1.bf16.msra.mxu0 %v7884
    %10068 = vmatprep.subr.bf16.mxu0 %v7901
    %10069 = vmatpush1.bf16.msra.mxu0 %v7900
    %10070 = vmatprep.subr.bf16.mxu0 %v7917
    %10071 = vmatpush1.bf16.msra.mxu0 %v7916
    %10072 = vmatprep.subr.bf16.mxu0 %v7933
    %10073 = vmatpush1.bf16.msra.mxu0 %v7932
    %10074 = vmatprep.subr.bf16.mxu0 %v7949
    %10075 = vmatpush1.bf16.msra.mxu0 %v7948
    %10076 = vmatprep.subr.bf16.mxu0 %v7965
    %10077 = vmatpush1.bf16.msra.mxu0 %v7964
    %10078 = vmatprep.subr.bf16.mxu0 %v7981
    %10079 = vmatpush1.bf16.msra.mxu0 %v7980
    %10080 = vmatprep.subr.bf16.mxu0 %v7997
    %10081 = vmatpush1.bf16.msra.mxu0 %v7996
    %10082 = vmatprep.subr.bf16.mxu0 %v8013
    %10083 = vmatpush1.bf16.msra.mxu0 %v8012
    %10084 = vmatprep.subr.bf16.mxu0 %v8029
    %10085 = vmatpush1.bf16.msra.mxu0 %v8028
    %10086 = vmatprep.mubr.bf16.mxu0 %v3085
    %10087 = vmatmul.mubr.bf16.gmra.mrb[0].mxu0 %v3084
    %v10088 = vpop.f32.mrb[0].mxu0
    %v10089 = vadd.f32 %v10048, %v10088
    %v10090 = vpop.f32.mrb[0].mxu0
    %v10091 = vadd.f32 %v10050, %v10090
    %v10092 = vpop.f32.mrb[0].mxu0
    %v10093 = vpop.f32.mrb[0].mxu0
    %10094 = vdwg.mxu0
    %10095 = vmatprep.subr.bf16.mxu0 %v8045
    %10096 = vmatpush1.bf16.msra.mxu0 %v8044
    %10097 = vmatprep.subr.bf16.mxu0 %v8061
    %10098 = vmatpush1.bf16.msra.mxu0 %v8060
    %10099 = vmatprep.subr.bf16.mxu0 %v8077
    %10100 = vmatpush1.bf16.msra.mxu0 %v8076
    %10101 = vmatprep.subr.bf16.mxu0 %v8093
    %10102 = vmatpush1.bf16.msra.mxu0 %v8092
    %10103 = vmatprep.subr.bf16.mxu0 %v8109
    %10104 = vmatpush1.bf16.msra.mxu0 %v8108
    %10105 = vmatprep.subr.bf16.mxu0 %v8125
    %10106 = vmatpush1.bf16.msra.mxu0 %v8124
    %10107 = vmatprep.subr.bf16.mxu0 %v8141
    %10108 = vmatpush1.bf16.msra.mxu0 %v8140
    %10109 = vmatprep.subr.bf16.mxu0 %v8157
    %10110 = vmatpush1.bf16.msra.mxu0 %v8156
    %10111 = vmatprep.subr.bf16.mxu0 %v8173
    %10112 = vmatpush1.bf16.msra.mxu0 %v8172
    %10113 = vmatprep.subr.bf16.mxu0 %v8189
    %10114 = vmatpush1.bf16.msra.mxu0 %v8188
    %10115 = vmatprep.subr.bf16.mxu0 %v8205
    %10116 = vmatpush1.bf16.msra.mxu0 %v8204
    %10117 = vmatprep.subr.bf16.mxu0 %v8221
    %10118 = vmatpush1.bf16.msra.mxu0 %v8220
    %10119 = vmatprep.subr.bf16.mxu0 %v8237
    %10120 = vmatpush1.bf16.msra.mxu0 %v8236
    %10121 = vmatprep.subr.bf16.mxu0 %v8253
    %10122 = vmatpush1.bf16.msra.mxu0 %v8252
    %10123 = vmatprep.subr.bf16.mxu0 %v8269
    %10124 = vmatpush1.bf16.msra.mxu0 %v8268
    %10125 = vmatprep.subr.bf16.mxu0 %v8285
    %10126 = vmatpush1.bf16.msra.mxu0 %v8284
    %10127 = vmatprep.mubr.bf16.mxu0 %v3087
    %10128 = vmatmul.mubr.bf16.gmra.mrb[0].mxu0 %v3086
    %v10129 = vpop.f32.mrb[0].mxu0
    %v10130 = vadd.f32 %v10089, %v10129
    %v10131 = vpop.f32.mrb[0].mxu0
    %v10132 = vadd.f32 %v10091, %v10131
    %v10133 = vpop.f32.mrb[0].mxu0
    %v10134 = vpop.f32.mrb[0].mxu0
    %10135 = vdwg.mxu0
    %10136 = vmatprep.subr.bf16.mxu0 %v7279
    %10137 = vmatpush1.bf16.msra.mxu0 %v7278
    %10138 = vmatprep.subr.bf16.mxu0 %v7295
    %10139 = vmatpush1.bf16.msra.mxu0 %v7294
    %10140 = vmatprep.subr.bf16.mxu0 %v7311
    %10141 = vmatpush1.bf16.msra.mxu0 %v7310
    %10142 = vmatprep.subr.bf16.mxu0 %v7327
    %10143 = vmatpush1.bf16.msra.mxu0 %v7326
    %10144 = vmatprep.subr.bf16.mxu0 %v7343
    %10145 = vmatpush1.bf16.msra.mxu0 %v7342
    %10146 = vmatprep.subr.bf16.mxu0 %v7359
    %10147 = vmatpush1.bf16.msra.mxu0 %v7358
    %10148 = vmatprep.subr.bf16.mxu0 %v7375
    %10149 = vmatpush1.bf16.msra.mxu0 %v7374
    %10150 = vmatprep.subr.bf16.mxu0 %v7391
    %10151 = vmatpush1.bf16.msra.mxu0 %v7390
    %10152 = vmatprep.subr.bf16.mxu0 %v7407
    %10153 = vmatpush1.bf16.msra.mxu0 %v7406
    %10154 = vmatprep.subr.bf16.mxu0 %v7423
    %10155 = vmatpush1.bf16.msra.mxu0 %v7422
    %10156 = vmatprep.subr.bf16.mxu0 %v7439
    %10157 = vmatpush1.bf16.msra.mxu0 %v7438
    %10158 = vmatprep.subr.bf16.mxu0 %v7455
    %10159 = vmatpush1.bf16.msra.mxu0 %v7454
    %10160 = vmatprep.subr.bf16.mxu0 %v7471
    %10161 = vmatpush1.bf16.msra.mxu0 %v7470
    %10162 = vmatprep.subr.bf16.mxu0 %v7487
    %10163 = vmatpush1.bf16.msra.mxu0 %v7486
    %10164 = vmatprep.subr.bf16.mxu0 %v7503
    %10165 = vmatpush1.bf16.msra.mxu0 %v7502
    %10166 = vmatprep.subr.bf16.mxu0 %v7519
    %10167 = vmatpush1.bf16.msra.mxu0 %v7518
    %10168 = vmatprep.mubr.bf16.mxu0 %v3081
    %10169 = vmatmul.mubr.bf16.gmra.mrb[0].mxu0 %v3080
    %v10170 = vpop.f32.mrb[0].mxu0
    %v10171 = vadd.f32 %v4159, %v10170
    %v10172 = vpop.f32.mrb[0].mxu0
    %v10173 = vadd.f32 %v4163, %v10172
    %v10174 = vpop.f32.mrb[0].mxu0
    %v10175 = vpop.f32.mrb[0].mxu0
    %10176 = vdwg.mxu0
    %10177 = vmatprep.subr.bf16.mxu0 %v7535
    %10178 = vmatpush1.bf16.msra.mxu0 %v7534
    %10179 = vmatprep.subr.bf16.mxu0 %v7551
    %10180 = vmatpush1.bf16.msra.mxu0 %v7550
    %10181 = vmatprep.subr.bf16.mxu0 %v7567
    %10182 = vmatpush1.bf16.msra.mxu0 %v7566
    %10183 = vmatprep.subr.bf16.mxu0 %v7583
    %10184 = vmatpush1.bf16.msra.mxu0 %v7582
    %10185 = vmatprep.subr.bf16.mxu0 %v7599
    %10186 = vmatpush1.bf16.msra.mxu0 %v7598
    %10187 = vmatprep.subr.bf16.mxu0 %v7615
    %10188 = vmatpush1.bf16.msra.mxu0 %v7614
    %10189 = vmatprep.subr.bf16.mxu0 %v7631
    %10190 = vmatpush1.bf16.msra.mxu0 %v7630
    %10191 = vmatprep.subr.bf16.mxu0 %v7647
    %10192 = vmatpush1.bf16.msra.mxu0 %v7646
    %10193 = vmatprep.subr.bf16.mxu0 %v7663
    %10194 = vmatpush1.bf16.msra.mxu0 %v7662
    %10195 = vmatprep.subr.bf16.mxu0 %v7679
    %10196 = vmatpush1.bf16.msra.mxu0 %v7678
    %10197 = vmatprep.subr.bf16.mxu0 %v7695
    %10198 = vmatpush1.bf16.msra.mxu0 %v7694
    %10199 = vmatprep.subr.bf16.mxu0 %v7711
    %10200 = vmatpush1.bf16.msra.mxu0 %v7710
    %10201 = vmatprep.subr.bf16.mxu0 %v7727
    %10202 = vmatpush1.bf16.msra.mxu0 %v7726
    %10203 = vmatprep.subr.bf16.mxu0 %v7743
    %10204 = vmatpush1.bf16.msra.mxu0 %v7742
    %10205 = vmatprep.subr.bf16.mxu0 %v7759
    %10206 = vmatpush1.bf16.msra.mxu0 %v7758
    %10207 = vmatprep.subr.bf16.mxu0 %v7775
    %10208 = vmatpush1.bf16.msra.mxu0 %v7774
    %10209 = vmatprep.mubr.bf16.mxu0 %v3083
    %10210 = vmatmul.mubr.bf16.gmra.mrb[0].mxu0 %v3082
    %v10211 = vpop.f32.mrb[0].mxu0
    %v10212 = vadd.f32 %v10171, %v10211
    %v10213 = vpop.f32.mrb[0].mxu0
    %v10214 = vadd.f32 %v10173, %v10213
    %v10215 = vpop.f32.mrb[0].mxu0
    %v10216 = vpop.f32.mrb[0].mxu0
    %10217 = vdwg.mxu0
    %10218 = vmatprep.subr.bf16.mxu0 %v7791
    %10219 = vmatpush1.bf16.msra.mxu0 %v7790
    %10220 = vmatprep.subr.bf16.mxu0 %v7807
    %10221 = vmatpush1.bf16.msra.mxu0 %v7806
    %10222 = vmatprep.subr.bf16.mxu0 %v7823
    %10223 = vmatpush1.bf16.msra.mxu0 %v7822
    %10224 = vmatprep.subr.bf16.mxu0 %v7839
    %10225 = vmatpush1.bf16.msra.mxu0 %v7838
    %10226 = vmatprep.subr.bf16.mxu0 %v7855
    %10227 = vmatpush1.bf16.msra.mxu0 %v7854
    %10228 = vmatprep.subr.bf16.mxu0 %v7871
    %10229 = vmatpush1.bf16.msra.mxu0 %v7870
    %10230 = vmatprep.subr.bf16.mxu0 %v7887
    %10231 = vmatpush1.bf16.msra.mxu0 %v7886
    %10232 = vmatprep.subr.bf16.mxu0 %v7903
    %10233 = vmatpush1.bf16.msra.mxu0 %v7902
    %10234 = vmatprep.subr.bf16.mxu0 %v7919
    %10235 = vmatpush1.bf16.msra.mxu0 %v7918
    %10236 = vmatprep.subr.bf16.mxu0 %v7935
    %10237 = vmatpush1.bf16.msra.mxu0 %v7934
    %10238 = vmatprep.subr.bf16.mxu0 %v7951
    %10239 = vmatpush1.bf16.msra.mxu0 %v7950
    %10240 = vmatprep.subr.bf16.mxu0 %v7967
    %10241 = vmatpush1.bf16.msra.mxu0 %v7966
    %10242 = vmatprep.subr.bf16.mxu0 %v7983
    %10243 = vmatpush1.bf16.msra.mxu0 %v7982
    %10244 = vmatprep.subr.bf16.mxu0 %v7999
    %10245 = vmatpush1.bf16.msra.mxu0 %v7998
    %10246 = vmatprep.subr.bf16.mxu0 %v8015
    %10247 = vmatpush1.bf16.msra.mxu0 %v8014
    %10248 = vmatprep.subr.bf16.mxu0 %v8031
    %10249 = vmatpush1.bf16.msra.mxu0 %v8030
    %10250 = vmatprep.mubr.bf16.mxu0 %v3085
    %10251 = vmatmul.mubr.bf16.gmra.mrb[0].mxu0 %v3084
    %v10252 = vpop.f32.mrb[0].mxu0
    %v10253 = vadd.f32 %v10212, %v10252
    %v10254 = vpop.f32.mrb[0].mxu0
    %v10255 = vadd.f32 %v10214, %v10254
    %v10256 = vpop.f32.mrb[0].mxu0
    %v10257 = vpop.f32.mrb[0].mxu0
    %10258 = vdwg.mxu0
    %10259 = vmatprep.subr.bf16.mxu0 %v8047
    %10260 = vmatpush1.bf16.msra.mxu0 %v8046
    %10261 = vmatprep.subr.bf16.mxu0 %v8063
    %10262 = vmatpush1.bf16.msra.mxu0 %v8062
    %10263 = vmatprep.subr.bf16.mxu0 %v8079
    %10264 = vmatpush1.bf16.msra.mxu0 %v8078
    %10265 = vmatprep.subr.bf16.mxu0 %v8095
    %10266 = vmatpush1.bf16.msra.mxu0 %v8094
    %10267 = vmatprep.subr.bf16.mxu0 %v8111
    %10268 = vmatpush1.bf16.msra.mxu0 %v8110
    %10269 = vmatprep.subr.bf16.mxu0 %v8127
    %10270 = vmatpush1.bf16.msra.mxu0 %v8126
    %10271 = vmatprep.subr.bf16.mxu0 %v8143
    %10272 = vmatpush1.bf16.msra.mxu0 %v8142
    %10273 = vmatprep.subr.bf16.mxu0 %v8159
    %10274 = vmatpush1.bf16.msra.mxu0 %v8158
    %10275 = vmatprep.subr.bf16.mxu0 %v8175
    %10276 = vmatpush1.bf16.msra.mxu0 %v8174
    %10277 = vmatprep.subr.bf16.mxu0 %v8191
    %10278 = vmatpush1.bf16.msra.mxu0 %v8190
    %10279 = vmatprep.subr.bf16.mxu0 %v8207
    %10280 = vmatpush1.bf16.msra.mxu0 %v8206
    %10281 = vmatprep.subr.bf16.mxu0 %v8223
    %10282 = vmatpush1.bf16.msra.mxu0 %v8222
    %10283 = vmatprep.subr.bf16.mxu0 %v8239
    %10284 = vmatpush1.bf16.msra.mxu0 %v8238
    %10285 = vmatprep.subr.bf16.mxu0 %v8255
    %10286 = vmatpush1.bf16.msra.mxu0 %v8254
    %10287 = vmatprep.subr.bf16.mxu0 %v8271
    %10288 = vmatpush1.bf16.msra.mxu0 %v8270
    %10289 = vmatprep.subr.bf16.mxu0 %v8287
    %10290 = vmatpush1.bf16.msra.mxu0 %v8286
    %10291 = vmatprep.mubr.bf16.mxu0 %v3087
    %10292 = vmatmul.mubr.bf16.gmra.mrb[0].mxu0 %v3086
    %v10293 = vpop.f32.mrb[0].mxu0
    %v10294 = vadd.f32 %v10253, %v10293
    %v10295 = vpop.f32.mrb[0].mxu0
    %v10296 = vadd.f32 %v10255, %v10295
    %v10297 = vpop.f32.mrb[0].mxu0
    %v10298 = vpop.f32.mrb[0].mxu0
    %10299 = vdwg.mxu0
    %10300 = vmatprep.subr.bf16.mxu0 %v7281
    %10301 = vmatpush1.bf16.msra.mxu0 %v7280
    %10302 = vmatprep.subr.bf16.mxu0 %v7297
    %10303 = vmatpush1.bf16.msra.mxu0 %v7296
    %10304 = vmatprep.subr.bf16.mxu0 %v7313
    %10305 = vmatpush1.bf16.msra.mxu0 %v7312
    %10306 = vmatprep.subr.bf16.mxu0 %v7329
    %10307 = vmatpush1.bf16.msra.mxu0 %v7328
    %10308 = vmatprep.subr.bf16.mxu0 %v7345
    %10309 = vmatpush1.bf16.msra.mxu0 %v7344
    %10310 = vmatprep.subr.bf16.mxu0 %v7361
    %10311 = vmatpush1.bf16.msra.mxu0 %v7360
    %10312 = vmatprep.subr.bf16.mxu0 %v7377
    %10313 = vmatpush1.bf16.msra.mxu0 %v7376
    %10314 = vmatprep.subr.bf16.mxu0 %v7393
    %10315 = vmatpush1.bf16.msra.mxu0 %v7392
    %10316 = vmatprep.subr.bf16.mxu0 %v7409
    %10317 = vmatpush1.bf16.msra.mxu0 %v7408
    %10318 = vmatprep.subr.bf16.mxu0 %v7425
    %10319 = vmatpush1.bf16.msra.mxu0 %v7424
    %10320 = vmatprep.subr.bf16.mxu0 %v7441
    %10321 = vmatpush1.bf16.msra.mxu0 %v7440
    %10322 = vmatprep.subr.bf16.mxu0 %v7457
    %10323 = vmatpush1.bf16.msra.mxu0 %v7456
    %10324 = vmatprep.subr.bf16.mxu0 %v7473
    %10325 = vmatpush1.bf16.msra.mxu0 %v7472
    %10326 = vmatprep.subr.bf16.mxu0 %v7489
    %10327 = vmatpush1.bf16.msra.mxu0 %v7488
    %10328 = vmatprep.subr.bf16.mxu0 %v7505
    %10329 = vmatpush1.bf16.msra.mxu0 %v7504
    %10330 = vmatprep.subr.bf16.mxu0 %v7521
    %10331 = vmatpush1.bf16.msra.mxu0 %v7520
    %10332 = vmatprep.mubr.bf16.mxu0 %v3081
    %10333 = vmatmul.mubr.bf16.gmra.mrb[0].mxu0 %v3080
    %v10334 = vpop.f32.mrb[0].mxu0
    %v10335 = vadd.f32 %v4167, %v10334
    %v10336 = vpop.f32.mrb[0].mxu0
    %v10337 = vadd.f32 %v4171, %v10336
    %v10338 = vpop.f32.mrb[0].mxu0
    %v10339 = vpop.f32.mrb[0].mxu0
    %10340 = vdwg.mxu0
    %10341 = vmatprep.subr.bf16.mxu0 %v7537
    %10342 = vmatpush1.bf16.msra.mxu0 %v7536
    %10343 = vmatprep.subr.bf16.mxu0 %v7553
    %10344 = vmatpush1.bf16.msra.mxu0 %v7552
    %10345 = vmatprep.subr.bf16.mxu0 %v7569
    %10346 = vmatpush1.bf16.msra.mxu0 %v7568
    %10347 = vmatprep.subr.bf16.mxu0 %v7585
    %10348 = vmatpush1.bf16.msra.mxu0 %v7584
    %10349 = vmatprep.subr.bf16.mxu0 %v7601
    %10350 = vmatpush1.bf16.msra.mxu0 %v7600
    %10351 = vmatprep.subr.bf16.mxu0 %v7617
    %10352 = vmatpush1.bf16.msra.mxu0 %v7616
    %10353 = vmatprep.subr.bf16.mxu0 %v7633
    %10354 = vmatpush1.bf16.msra.mxu0 %v7632
    %10355 = vmatprep.subr.bf16.mxu0 %v7649
    %10356 = vmatpush1.bf16.msra.mxu0 %v7648
    %10357 = vmatprep.subr.bf16.mxu0 %v7665
    %10358 = vmatpush1.bf16.msra.mxu0 %v7664
    %10359 = vmatprep.subr.bf16.mxu0 %v7681
    %10360 = vmatpush1.bf16.msra.mxu0 %v7680
    %10361 = vmatprep.subr.bf16.mxu0 %v7697
    %10362 = vmatpush1.bf16.msra.mxu0 %v7696
    %10363 = vmatprep.subr.bf16.mxu0 %v7713
    %10364 = vmatpush1.bf16.msra.mxu0 %v7712
    %10365 = vmatprep.subr.bf16.mxu0 %v7729
    %10366 = vmatpush1.bf16.msra.mxu0 %v7728
    %10367 = vmatprep.subr.bf16.mxu0 %v7745
    %10368 = vmatpush1.bf16.msra.mxu0 %v7744
    %10369 = vmatprep.subr.bf16.mxu0 %v7761
    %10370 = vmatpush1.bf16.msra.mxu0 %v7760
    %10371 = vmatprep.subr.bf16.mxu0 %v7777
    %10372 = vmatpush1.bf16.msra.mxu0 %v7776
    %10373 = vmatprep.mubr.bf16.mxu0 %v3083
    %10374 = vmatmul.mubr.bf16.gmra.mrb[0].mxu0 %v3082
    %v10375 = vpop.f32.mrb[0].mxu0
    %v10376 = vadd.f32 %v10335, %v10375
    %v10377 = vpop.f32.mrb[0].mxu0
    %v10378 = vadd.f32 %v10337, %v10377
    %v10379 = vpop.f32.mrb[0].mxu0
    %v10380 = vpop.f32.mrb[0].mxu0
    %10381 = vdwg.mxu0
    %10382 = vmatprep.subr.bf16.mxu0 %v7793
    %10383 = vmatpush1.bf16.msra.mxu0 %v7792
    %10384 = vmatprep.subr.bf16.mxu0 %v7809
    %10385 = vmatpush1.bf16.msra.mxu0 %v7808
    %10386 = vmatprep.subr.bf16.mxu0 %v7825
    %10387 = vmatpush1.bf16.msra.mxu0 %v7824
    %10388 = vmatprep.subr.bf16.mxu0 %v7841
    %10389 = vmatpush1.bf16.msra.mxu0 %v7840
    %10390 = vmatprep.subr.bf16.mxu0 %v7857
    %10391 = vmatpush1.bf16.msra.mxu0 %v7856
    %10392 = vmatprep.subr.bf16.mxu0 %v7873
    %10393 = vmatpush1.bf16.msra.mxu0 %v7872
    %10394 = vmatprep.subr.bf16.mxu0 %v7889
    %10395 = vmatpush1.bf16.msra.mxu0 %v7888
    %10396 = vmatprep.subr.bf16.mxu0 %v7905
    %10397 = vmatpush1.bf16.msra.mxu0 %v7904
    %10398 = vmatprep.subr.bf16.mxu0 %v7921
    %10399 = vmatpush1.bf16.msra.mxu0 %v7920
    %10400 = vmatprep.subr.bf16.mxu0 %v7937
    %10401 = vmatpush1.bf16.msra.mxu0 %v7936
    %10402 = vmatprep.subr.bf16.mxu0 %v7953
    %10403 = vmatpush1.bf16.msra.mxu0 %v7952
    %10404 = vmatprep.subr.bf16.mxu0 %v7969
    %10405 = vmatpush1.bf16.msra.mxu0 %v7968
    %10406 = vmatprep.subr.bf16.mxu0 %v7985
    %10407 = vmatpush1.bf16.msra.mxu0 %v7984
    %10408 = vmatprep.subr.bf16.mxu0 %v8001
    %10409 = vmatpush1.bf16.msra.mxu0 %v8000
    %10410 = vmatprep.subr.bf16.mxu0 %v8017
    %10411 = vmatpush1.bf16.msra.mxu0 %v8016
    %10412 = vmatprep.subr.bf16.mxu0 %v8033
    %10413 = vmatpush1.bf16.msra.mxu0 %v8032
    %10414 = vmatprep.mubr.bf16.mxu0 %v3085
    %10415 = vmatmul.mubr.bf16.gmra.mrb[0].mxu0 %v3084
    %v10416 = vpop.f32.mrb[0].mxu0
    %v10417 = vadd.f32 %v10376, %v10416
    %v10418 = vpop.f32.mrb[0].mxu0
    %v10419 = vadd.f32 %v10378, %v10418
    %v10420 = vpop.f32.mrb[0].mxu0
    %v10421 = vpop.f32.mrb[0].mxu0
    %10422 = vdwg.mxu0
    %10423 = vmatprep.subr.bf16.mxu0 %v8049
    %10424 = vmatpush1.bf16.msra.mxu0 %v8048
    %10425 = vmatprep.subr.bf16.mxu0 %v8065
    %10426 = vmatpush1.bf16.msra.mxu0 %v8064
    %10427 = vmatprep.subr.bf16.mxu0 %v8081
    %10428 = vmatpush1.bf16.msra.mxu0 %v8080
    %10429 = vmatprep.subr.bf16.mxu0 %v8097
    %10430 = vmatpush1.bf16.msra.mxu0 %v8096
    %10431 = vmatprep.subr.bf16.mxu0 %v8113
    %10432 = vmatpush1.bf16.msra.mxu0 %v8112
    %10433 = vmatprep.subr.bf16.mxu0 %v8129
    %10434 = vmatpush1.bf16.msra.mxu0 %v8128
    %10435 = vmatprep.subr.bf16.mxu0 %v8145
    %10436 = vmatpush1.bf16.msra.mxu0 %v8144
    %10437 = vmatprep.subr.bf16.mxu0 %v8161
    %10438 = vmatpush1.bf16.msra.mxu0 %v8160
    %10439 = vmatprep.subr.bf16.mxu0 %v8177
    %10440 = vmatpush1.bf16.msra.mxu0 %v8176
    %10441 = vmatprep.subr.bf16.mxu0 %v8193
    %10442 = vmatpush1.bf16.msra.mxu0 %v8192
    %10443 = vmatprep.subr.bf16.mxu0 %v8209
    %10444 = vmatpush1.bf16.msra.mxu0 %v8208
    %10445 = vmatprep.subr.bf16.mxu0 %v8225
    %10446 = vmatpush1.bf16.msra.mxu0 %v8224
    %10447 = vmatprep.subr.bf16.mxu0 %v8241
    %10448 = vmatpush1.bf16.msra.mxu0 %v8240
    %10449 = vmatprep.subr.bf16.mxu0 %v8257
    %10450 = vmatpush1.bf16.msra.mxu0 %v8256
    %10451 = vmatprep.subr.bf16.mxu0 %v8273
    %10452 = vmatpush1.bf16.msra.mxu0 %v8272
    %10453 = vmatprep.subr.bf16.mxu0 %v8289
    %10454 = vmatpush1.bf16.msra.mxu0 %v8288
    %10455 = vmatprep.mubr.bf16.mxu0 %v3087
    %10456 = vmatmul.mubr.bf16.gmra.mrb[0].mxu0 %v3086
    %v10457 = vpop.f32.mrb[0].mxu0
    %v10458 = vadd.f32 %v10417, %v10457
    %v10459 = vpop.f32.mrb[0].mxu0
    %v10460 = vadd.f32 %v10419, %v10459
    %v10461 = vpop.f32.mrb[0].mxu0
    %v10462 = vpop.f32.mrb[0].mxu0
    %10463 = vdwg.mxu0
    %10464 = vmatprep.subr.bf16.mxu0 %v7283
    %10465 = vmatpush1.bf16.msra.mxu0 %v7282
    %10466 = vmatprep.subr.bf16.mxu0 %v7299
    %10467 = vmatpush1.bf16.msra.mxu0 %v7298
    %10468 = vmatprep.subr.bf16.mxu0 %v7315
    %10469 = vmatpush1.bf16.msra.mxu0 %v7314
    %10470 = vmatprep.subr.bf16.mxu0 %v7331
    %10471 = vmatpush1.bf16.msra.mxu0 %v7330
    %10472 = vmatprep.subr.bf16.mxu0 %v7347
    %10473 = vmatpush1.bf16.msra.mxu0 %v7346
    %10474 = vmatprep.subr.bf16.mxu0 %v7363
    %10475 = vmatpush1.bf16.msra.mxu0 %v7362
    %10476 = vmatprep.subr.bf16.mxu0 %v7379
    %10477 = vmatpush1.bf16.msra.mxu0 %v7378
    %10478 = vmatprep.subr.bf16.mxu0 %v7395
    %10479 = vmatpush1.bf16.msra.mxu0 %v7394
    %10480 = vmatprep.subr.bf16.mxu0 %v7411
    %10481 = vmatpush1.bf16.msra.mxu0 %v7410
    %10482 = vmatprep.subr.bf16.mxu0 %v7427
    %10483 = vmatpush1.bf16.msra.mxu0 %v7426
    %10484 = vmatprep.subr.bf16.mxu0 %v7443
    %10485 = vmatpush1.bf16.msra.mxu0 %v7442
    %10486 = vmatprep.subr.bf16.mxu0 %v7459
    %10487 = vmatpush1.bf16.msra.mxu0 %v7458
    %10488 = vmatprep.subr.bf16.mxu0 %v7475
    %10489 = vmatpush1.bf16.msra.mxu0 %v7474
    %10490 = vmatprep.subr.bf16.mxu0 %v7491
    %10491 = vmatpush1.bf16.msra.mxu0 %v7490
    %10492 = vmatprep.subr.bf16.mxu0 %v7507
    %10493 = vmatpush1.bf16.msra.mxu0 %v7506
    %10494 = vmatprep.subr.bf16.mxu0 %v7523
    %10495 = vmatpush1.bf16.msra.mxu0 %v7522
    %10496 = vmatprep.mubr.bf16.mxu0 %v3081
    %10497 = vmatmul.mubr.bf16.gmra.mrb[0].mxu0 %v3080
    %v10498 = vpop.f32.mrb[0].mxu0
    %v10499 = vadd.f32 %v4175, %v10498
    %v10500 = vpop.f32.mrb[0].mxu0
    %v10501 = vadd.f32 %v4179, %v10500
    %v10502 = vpop.f32.mrb[0].mxu0
    %v10503 = vpop.f32.mrb[0].mxu0
    %10504 = vdwg.mxu0
    %10505 = vmatprep.subr.bf16.mxu0 %v7539
    %10506 = vmatpush1.bf16.msra.mxu0 %v7538
    %10507 = vmatprep.subr.bf16.mxu0 %v7555
    %10508 = vmatpush1.bf16.msra.mxu0 %v7554
    %10509 = vmatprep.subr.bf16.mxu0 %v7571
    %10510 = vmatpush1.bf16.msra.mxu0 %v7570
    %10511 = vmatprep.subr.bf16.mxu0 %v7587
    %10512 = vmatpush1.bf16.msra.mxu0 %v7586
    %10513 = vmatprep.subr.bf16.mxu0 %v7603
    %10514 = vmatpush1.bf16.msra.mxu0 %v7602
    %10515 = vmatprep.subr.bf16.mxu0 %v7619
    %10516 = vmatpush1.bf16.msra.mxu0 %v7618
    %10517 = vmatprep.subr.bf16.mxu0 %v7635
    %10518 = vmatpush1.bf16.msra.mxu0 %v7634
    %10519 = vmatprep.subr.bf16.mxu0 %v7651
    %10520 = vmatpush1.bf16.msra.mxu0 %v7650
    %10521 = vmatprep.subr.bf16.mxu0 %v7667
    %10522 = vmatpush1.bf16.msra.mxu0 %v7666
    %10523 = vmatprep.subr.bf16.mxu0 %v7683
    %10524 = vmatpush1.bf16.msra.mxu0 %v7682
    %10525 = vmatprep.subr.bf16.mxu0 %v7699
    %10526 = vmatpush1.bf16.msra.mxu0 %v7698
    %10527 = vmatprep.subr.bf16.mxu0 %v7715
    %10528 = vmatpush1.bf16.msra.mxu0 %v7714
    %10529 = vmatprep.subr.bf16.mxu0 %v7731
    %10530 = vmatpush1.bf16.msra.mxu0 %v7730
    %10531 = vmatprep.subr.bf16.mxu0 %v7747
    %10532 = vmatpush1.bf16.msra.mxu0 %v7746
    %10533 = vmatprep.subr.bf16.mxu0 %v7763
    %10534 = vmatpush1.bf16.msra.mxu0 %v7762
    %10535 = vmatprep.subr.bf16.mxu0 %v7779
    %10536 = vmatpush1.bf16.msra.mxu0 %v7778
    %10537 = vmatprep.mubr.bf16.mxu0 %v3083
    %10538 = vmatmul.mubr.bf16.gmra.mrb[0].mxu0 %v3082
    %v10539 = vpop.f32.mrb[0].mxu0
    %v10540 = vadd.f32 %v10499, %v10539
    %v10541 = vpop.f32.mrb[0].mxu0
    %v10542 = vadd.f32 %v10501, %v10541
    %v10543 = vpop.f32.mrb[0].mxu0
    %v10544 = vpop.f32.mrb[0].mxu0
    %10545 = vdwg.mxu0
    %10546 = vmatprep.subr.bf16.mxu0 %v7795
    %10547 = vmatpush1.bf16.msra.mxu0 %v7794
    %10548 = vmatprep.subr.bf16.mxu0 %v7811
    %10549 = vmatpush1.bf16.msra.mxu0 %v7810
    %10550 = vmatprep.subr.bf16.mxu0 %v7827
    %10551 = vmatpush1.bf16.msra.mxu0 %v7826
    %10552 = vmatprep.subr.bf16.mxu0 %v7843
    %10553 = vmatpush1.bf16.msra.mxu0 %v7842
    %10554 = vmatprep.subr.bf16.mxu0 %v7859
    %10555 = vmatpush1.bf16.msra.mxu0 %v7858
    %10556 = vmatprep.subr.bf16.mxu0 %v7875
    %10557 = vmatpush1.bf16.msra.mxu0 %v7874
    %10558 = vmatprep.subr.bf16.mxu0 %v7891
    %10559 = vmatpush1.bf16.msra.mxu0 %v7890
    %10560 = vmatprep.subr.bf16.mxu0 %v7907
    %10561 = vmatpush1.bf16.msra.mxu0 %v7906
    %10562 = vmatprep.subr.bf16.mxu0 %v7923
    %10563 = vmatpush1.bf16.msra.mxu0 %v7922
    %10564 = vmatprep.subr.bf16.mxu0 %v7939
    %10565 = vmatpush1.bf16.msra.mxu0 %v7938
    %10566 = vmatprep.subr.bf16.mxu0 %v7955
    %10567 = vmatpush1.bf16.msra.mxu0 %v7954
    %10568 = vmatprep.subr.bf16.mxu0 %v7971
    %10569 = vmatpush1.bf16.msra.mxu0 %v7970
    %10570 = vmatprep.subr.bf16.mxu0 %v7987
    %10571 = vmatpush1.bf16.msra.mxu0 %v7986
    %10572 = vmatprep.subr.bf16.mxu0 %v8003
    %10573 = vmatpush1.bf16.msra.mxu0 %v8002
    %10574 = vmatprep.subr.bf16.mxu0 %v8019
    %10575 = vmatpush1.bf16.msra.mxu0 %v8018
    %10576 = vmatprep.subr.bf16.mxu0 %v8035
    %10577 = vmatpush1.bf16.msra.mxu0 %v8034
    %10578 = vmatprep.mubr.bf16.mxu0 %v3085
    %10579 = vmatmul.mubr.bf16.gmra.mrb[0].mxu0 %v3084
    %v10580 = vpop.f32.mrb[0].mxu0
    %v10581 = vadd.f32 %v10540, %v10580
    %v10582 = vpop.f32.mrb[0].mxu0
    %v10583 = vadd.f32 %v10542, %v10582
    %v10584 = vpop.f32.mrb[0].mxu0
    %v10585 = vpop.f32.mrb[0].mxu0
    %10586 = vdwg.mxu0
    %10587 = vmatprep.subr.bf16.mxu0 %v8051
    %10588 = vmatpush1.bf16.msra.mxu0 %v8050
    %10589 = vmatprep.subr.bf16.mxu0 %v8067
    %10590 = vmatpush1.bf16.msra.mxu0 %v8066
    %10591 = vmatprep.subr.bf16.mxu0 %v8083
    %10592 = vmatpush1.bf16.msra.mxu0 %v8082
    %10593 = vmatprep.subr.bf16.mxu0 %v8099
    %10594 = vmatpush1.bf16.msra.mxu0 %v8098
    %10595 = vmatprep.subr.bf16.mxu0 %v8115
    %10596 = vmatpush1.bf16.msra.mxu0 %v8114
    %10597 = vmatprep.subr.bf16.mxu0 %v8131
    %10598 = vmatpush1.bf16.msra.mxu0 %v8130
    %10599 = vmatprep.subr.bf16.mxu0 %v8147
    %10600 = vmatpush1.bf16.msra.mxu0 %v8146
    %10601 = vmatprep.subr.bf16.mxu0 %v8163
    %10602 = vmatpush1.bf16.msra.mxu0 %v8162
    %10603 = vmatprep.subr.bf16.mxu0 %v8179
    %10604 = vmatpush1.bf16.msra.mxu0 %v8178
    %10605 = vmatprep.subr.bf16.mxu0 %v8195
    %10606 = vmatpush1.bf16.msra.mxu0 %v8194
    %10607 = vmatprep.subr.bf16.mxu0 %v8211
    %10608 = vmatpush1.bf16.msra.mxu0 %v8210
    %10609 = vmatprep.subr.bf16.mxu0 %v8227
    %10610 = vmatpush1.bf16.msra.mxu0 %v8226
    %10611 = vmatprep.subr.bf16.mxu0 %v8243
    %10612 = vmatpush1.bf16.msra.mxu0 %v8242
    %10613 = vmatprep.subr.bf16.mxu0 %v8259
    %10614 = vmatpush1.bf16.msra.mxu0 %v8258
    %10615 = vmatprep.subr.bf16.mxu0 %v8275
    %10616 = vmatpush1.bf16.msra.mxu0 %v8274
    %10617 = vmatprep.subr.bf16.mxu0 %v8291
    %10618 = vmatpush1.bf16.msra.mxu0 %v8290
    %10619 = vmatprep.mubr.bf16.mxu0 %v3087
    %10620 = vmatmul.mubr.bf16.gmra.mrb[0].mxu0 %v3086
    %v10621 = vpop.f32.mrb[0].mxu0
    %v10622 = vadd.f32 %v10581, %v10621
    %v10623 = vpop.f32.mrb[0].mxu0
    %v10624 = vadd.f32 %v10583, %v10623
    %v10625 = vpop.f32.mrb[0].mxu0
    %v10626 = vpop.f32.mrb[0].mxu0
    %10627 = vdwg.mxu0
    %v10628 = vmax.f32 %v9474, 0.0
    %v10629 = vmax.f32 %v9476, 0.0
    %v10630 = vmax.f32 %v9638, 0.0
    %v10631 = vmax.f32 %v9640, 0.0
    %v10632 = vmax.f32 %v9802, 0.0
    %v10633 = vmax.f32 %v9804, 0.0
    %v10634 = vmax.f32 %v9966, 0.0
    %v10635 = vmax.f32 %v9968, 0.0
    %v10636 = vmax.f32 %v10130, 0.0
    %v10637 = vmax.f32 %v10132, 0.0
    %v10638 = vmax.f32 %v10294, 0.0
    %v10639 = vmax.f32 %v10296, 0.0
    %v10640 = vmax.f32 %v10458, 0.0
    %v10641 = vmax.f32 %v10460, 0.0
    %v10642 = vmax.f32 %v10622, 0.0
    %v10643 = vmax.f32 %v10624, 0.0
    %v10644 = vpack.c.bf16 %v10628, %v10628
    %v10645 = vpack.c.bf16 %v10629, %v10629
    %v10646 = vpack.c.bf16 %v10630, %v10630
    %v10647 = vpack.c.bf16 %v10631, %v10631
    %v10648 = vpack.c.bf16 %v10632, %v10632
    %v10649 = vpack.c.bf16 %v10633, %v10633
    %v10650 = vpack.c.bf16 %v10634, %v10634
    %v10651 = vpack.c.bf16 %v10635, %v10635
    %v10652 = vpack.c.bf16 %v10636, %v10636
    %v10653 = vpack.c.bf16 %v10637, %v10637
    %v10654 = vpack.c.bf16 %v10638, %v10638
    %v10655 = vpack.c.bf16 %v10639, %v10639
    %v10656 = vpack.c.bf16 %v10640, %v10640
    %v10657 = vpack.c.bf16 %v10641, %v10641
    %v10658 = vpack.c.bf16 %v10642, %v10642
    %v10659 = vpack.c.bf16 %v10643, %v10643
    %v10660 = vld [vmem:[#allocation12] sm:$0xff]
    %v10661 = vld [vmem:[#allocation12 + $0x8] sm:$0xff]
    %v10662 = vld [vmem:[#allocation12 + $0x10] sm:$0xff]
    %v10663 = vld [vmem:[#allocation12 + $0x18] sm:$0xff]
    %v10664 = vld [vmem:[#allocation12 + $0x20] sm:$0xff]
    %v10665 = vld [vmem:[#allocation12 + $0x28] sm:$0xff]
    %v10666 = vld [vmem:[#allocation12 + $0x30] sm:$0xff]
    %v10667 = vld [vmem:[#allocation12 + $0x38] sm:$0xff]
    %v10668 = vld [vmem:[#allocation13] sm:$0x1]
    %v10670 = vlaneseq
    %v10671 = vshrl.u32 %v10670, 7
    %v10672 = vsub.s32 0, %v10671
    %v10673 = vrot.slane %v10668, %v10672
    %v10683 = vunpack.c.l.b16 %v10660
    %v10684 = vunpack.c.h.b16 %v10660
    %v10685 = vunpack.c.l.b16 %v10661
    %v10686 = vunpack.c.h.b16 %v10661
    %v10687 = vunpack.c.l.b16 %v10662
    %v10688 = vunpack.c.h.b16 %v10662
    %v10689 = vunpack.c.l.b16 %v10663
    %v10690 = vunpack.c.h.b16 %v10663
    %v10691 = vunpack.c.l.b16 %v10664
    %v10692 = vunpack.c.h.b16 %v10664
    %v10693 = vunpack.c.l.b16 %v10665
    %v10694 = vunpack.c.h.b16 %v10665
    %v10695 = vunpack.c.l.b16 %v10666
    %v10696 = vunpack.c.h.b16 %v10666
    %v10697 = vunpack.c.l.b16 %v10667
    %v10698 = vunpack.c.h.b16 %v10667
    %v10699 = vpack.c.b16 %v10683, %v10683
    %v10700 = vpack.c.b16 %v10684, %v10684
    %v10701 = vpack.c.b16 %v10685, %v10685
    %v10702 = vpack.c.b16 %v10686, %v10686
    %v10703 = vpack.c.b16 %v10687, %v10687
    %v10704 = vpack.c.b16 %v10688, %v10688
    %v10705 = vpack.c.b16 %v10689, %v10689
    %v10706 = vpack.c.b16 %v10690, %v10690
    %v10707 = vpack.c.b16 %v10691, %v10691
    %v10708 = vpack.c.b16 %v10692, %v10692
    %v10709 = vpack.c.b16 %v10693, %v10693
    %v10710 = vpack.c.b16 %v10694, %v10694
    %v10711 = vpack.c.b16 %v10695, %v10695
    %v10712 = vpack.c.b16 %v10696, %v10696
    %v10713 = vpack.c.b16 %v10697, %v10697
    %v10714 = vpack.c.b16 %v10698, %v10698
    %10731 = vmatprep.subr.bf16.mxu0 %v10700
    %10732 = vmatpush1.bf16.xpose.msra.mxu0 %v10699
    %10733 = vmatprep.subr.bf16.mxu0 0
    %10734 = vmatpush1.bf16.xpose.msra.mxu0 0
    %10735 = vmatprep.subr.bf16.mxu0 0
    %10736 = vmatpush1.bf16.xpose.msra.mxu0 0
    %10737 = vmatprep.subr.bf16.mxu0 0
    %10738 = vmatpush1.bf16.xpose.msra.mxu0 0
    %10739 = vmatprep.subr.bf16.mxu0 0
    %10740 = vmatpush1.bf16.xpose.msra.mxu0 0
    %10741 = vmatprep.subr.bf16.mxu0 0
    %10742 = vmatpush1.bf16.xpose.msra.mxu0 0
    %10743 = vmatprep.subr.bf16.mxu0 0
    %10744 = vmatpush1.bf16.xpose.msra.mxu0 0
    %10745 = vmatprep.subr.bf16.mxu0 0
    %10746 = vmatpush1.bf16.xpose.msra.mxu0 0
    %10747 = vmatprep.subr.bf16.mxu0 0
    %10748 = vmatpush1.bf16.xpose.msra.mxu0 0
    %10749 = vmatprep.subr.bf16.mxu0 0
    %10750 = vmatpush1.bf16.xpose.msra.mxu0 0
    %10751 = vmatprep.subr.bf16.mxu0 0
    %10752 = vmatpush1.bf16.xpose.msra.mxu0 0
    %10753 = vmatprep.subr.bf16.mxu0 0
    %10754 = vmatpush1.bf16.xpose.msra.mxu0 0
    %10755 = vmatprep.subr.bf16.mxu0 0
    %10756 = vmatpush1.bf16.xpose.msra.mxu0 0
    %10757 = vmatprep.subr.bf16.mxu0 0
    %10758 = vmatpush1.bf16.xpose.msra.mxu0 0
    %10759 = vmatprep.subr.bf16.mxu0 0
    %10760 = vmatpush1.bf16.xpose.msra.mxu0 0
    %10761 = vmatprep.subr.bf16.mxu0 0
    %10762 = vmatpush1.bf16.xpose.msra.mxu0 0
    %10763 = vmatprep.mubr.bf16.mxu0 %v10645
    %10764 = vmatmul.mubr.bf16.gmra.mrb[0].mxu0 %v10644
    %v10765 = vpop.f32.mrb[0].mxu0
    %v10766 = vadd.f32 %v10673, %v10765
    %v10767 = vpop.f32.mrb[0].mxu0
    %v10768 = vpop.f32.mrb[0].mxu0
    %v10769 = vpop.f32.mrb[0].mxu0
    %10770 = vdwg.mxu0
    %10771 = vmatprep.subr.bf16.mxu0 %v10702
    %10772 = vmatpush1.bf16.xpose.msra.mxu0 %v10701
    %10773 = vmatprep.subr.bf16.mxu0 0
    %10774 = vmatpush1.bf16.xpose.msra.mxu0 0
    %10775 = vmatprep.subr.bf16.mxu0 0
    %10776 = vmatpush1.bf16.xpose.msra.mxu0 0
    %10777 = vmatprep.subr.bf16.mxu0 0
    %10778 = vmatpush1.bf16.xpose.msra.mxu0 0
    %10779 = vmatprep.subr.bf16.mxu0 0
    %10780 = vmatpush1.bf16.xpose.msra.mxu0 0
    %10781 = vmatprep.subr.bf16.mxu0 0
    %10782 = vmatpush1.bf16.xpose.msra.mxu0 0
    %10783 = vmatprep.subr.bf16.mxu0 0
    %10784 = vmatpush1.bf16.xpose.msra.mxu0 0
    %10785 = vmatprep.subr.bf16.mxu0 0
    %10786 = vmatpush1.bf16.xpose.msra.mxu0 0
    %10787 = vmatprep.subr.bf16.mxu0 0
    %10788 = vmatpush1.bf16.xpose.msra.mxu0 0
    %10789 = vmatprep.subr.bf16.mxu0 0
    %10790 = vmatpush1.bf16.xpose.msra.mxu0 0
    %10791 = vmatprep.subr.bf16.mxu0 0
    %10792 = vmatpush1.bf16.xpose.msra.mxu0 0
    %10793 = vmatprep.subr.bf16.mxu0 0
    %10794 = vmatpush1.bf16.xpose.msra.mxu0 0
    %10795 = vmatprep.subr.bf16.mxu0 0
    %10796 = vmatpush1.bf16.xpose.msra.mxu0 0
    %10797 = vmatprep.subr.bf16.mxu0 0
    %10798 = vmatpush1.bf16.xpose.msra.mxu0 0
    %10799 = vmatprep.subr.bf16.mxu0 0
    %10800 = vmatpush1.bf16.xpose.msra.mxu0 0
    %10801 = vmatprep.subr.bf16.mxu0 0
    %10802 = vmatpush1.bf16.xpose.msra.mxu0 0
    %10803 = vmatprep.mubr.bf16.mxu0 %v10647
    %10804 = vmatmul.mubr.bf16.gmra.mrb[0].mxu0 %v10646
    %v10805 = vpop.f32.mrb[0].mxu0
    %v10806 = vadd.f32 %v10766, %v10805
    %v10807 = vpop.f32.mrb[0].mxu0
    %v10808 = vpop.f32.mrb[0].mxu0
    %v10809 = vpop.f32.mrb[0].mxu0
    %10810 = vdwg.mxu0
    %10811 = vmatprep.subr.bf16.mxu0 %v10704
    %10812 = vmatpush1.bf16.xpose.msra.mxu0 %v10703
    %10813 = vmatprep.subr.bf16.mxu0 0
    %10814 = vmatpush1.bf16.xpose.msra.mxu0 0
    %10815 = vmatprep.subr.bf16.mxu0 0
    %10816 = vmatpush1.bf16.xpose.msra.mxu0 0
    %10817 = vmatprep.subr.bf16.mxu0 0
    %10818 = vmatpush1.bf16.xpose.msra.mxu0 0
    %10819 = vmatprep.subr.bf16.mxu0 0
    %10820 = vmatpush1.bf16.xpose.msra.mxu0 0
    %10821 = vmatprep.subr.bf16.mxu0 0
    %10822 = vmatpush1.bf16.xpose.msra.mxu0 0
    %10823 = vmatprep.subr.bf16.mxu0 0
    %10824 = vmatpush1.bf16.xpose.msra.mxu0 0
    %10825 = vmatprep.subr.bf16.mxu0 0
    %10826 = vmatpush1.bf16.xpose.msra.mxu0 0
    %10827 = vmatprep.subr.bf16.mxu0 0
    %10828 = vmatpush1.bf16.xpose.msra.mxu0 0
    %10829 = vmatprep.subr.bf16.mxu0 0
    %10830 = vmatpush1.bf16.xpose.msra.mxu0 0
    %10831 = vmatprep.subr.bf16.mxu0 0
    %10832 = vmatpush1.bf16.xpose.msra.mxu0 0
    %10833 = vmatprep.subr.bf16.mxu0 0
    %10834 = vmatpush1.bf16.xpose.msra.mxu0 0
    %10835 = vmatprep.subr.bf16.mxu0 0
    %10836 = vmatpush1.bf16.xpose.msra.mxu0 0
    %10837 = vmatprep.subr.bf16.mxu0 0
    %10838 = vmatpush1.bf16.xpose.msra.mxu0 0
    %10839 = vmatprep.subr.bf16.mxu0 0
    %10840 = vmatpush1.bf16.xpose.msra.mxu0 0
    %10841 = vmatprep.subr.bf16.mxu0 0
    %10842 = vmatpush1.bf16.xpose.msra.mxu0 0
    %10843 = vmatprep.mubr.bf16.mxu0 %v10649
    %10844 = vmatmul.mubr.bf16.gmra.mrb[0].mxu0 %v10648
    %v10845 = vpop.f32.mrb[0].mxu0
    %v10846 = vadd.f32 %v10806, %v10845
    %v10847 = vpop.f32.mrb[0].mxu0
    %v10848 = vpop.f32.mrb[0].mxu0
    %v10849 = vpop.f32.mrb[0].mxu0
    %10850 = vdwg.mxu0
    %10851 = vmatprep.subr.bf16.mxu0 %v10706
    %10852 = vmatpush1.bf16.xpose.msra.mxu0 %v10705
    %10853 = vmatprep.subr.bf16.mxu0 0
    %10854 = vmatpush1.bf16.xpose.msra.mxu0 0
    %10855 = vmatprep.subr.bf16.mxu0 0
    %10856 = vmatpush1.bf16.xpose.msra.mxu0 0
    %10857 = vmatprep.subr.bf16.mxu0 0
    %10858 = vmatpush1.bf16.xpose.msra.mxu0 0
    %10859 = vmatprep.subr.bf16.mxu0 0
    %10860 = vmatpush1.bf16.xpose.msra.mxu0 0
    %10861 = vmatprep.subr.bf16.mxu0 0
    %10862 = vmatpush1.bf16.xpose.msra.mxu0 0
    %10863 = vmatprep.subr.bf16.mxu0 0
    %10864 = vmatpush1.bf16.xpose.msra.mxu0 0
    %10865 = vmatprep.subr.bf16.mxu0 0
    %10866 = vmatpush1.bf16.xpose.msra.mxu0 0
    %10867 = vmatprep.subr.bf16.mxu0 0
    %10868 = vmatpush1.bf16.xpose.msra.mxu0 0
    %10869 = vmatprep.subr.bf16.mxu0 0
    %10870 = vmatpush1.bf16.xpose.msra.mxu0 0
    %10871 = vmatprep.subr.bf16.mxu0 0
    %10872 = vmatpush1.bf16.xpose.msra.mxu0 0
    %10873 = vmatprep.subr.bf16.mxu0 0
    %10874 = vmatpush1.bf16.xpose.msra.mxu0 0
    %10875 = vmatprep.subr.bf16.mxu0 0
    %10876 = vmatpush1.bf16.xpose.msra.mxu0 0
    %10877 = vmatprep.subr.bf16.mxu0 0
    %10878 = vmatpush1.bf16.xpose.msra.mxu0 0
    %10879 = vmatprep.subr.bf16.mxu0 0
    %10880 = vmatpush1.bf16.xpose.msra.mxu0 0
    %10881 = vmatprep.subr.bf16.mxu0 0
    %10882 = vmatpush1.bf16.xpose.msra.mxu0 0
    %10883 = vmatprep.mubr.bf16.mxu0 %v10651
    %10884 = vmatmul.mubr.bf16.gmra.mrb[0].mxu0 %v10650
    %v10885 = vpop.f32.mrb[0].mxu0
    %v10886 = vadd.f32 %v10846, %v10885
    %v10887 = vpop.f32.mrb[0].mxu0
    %v10888 = vpop.f32.mrb[0].mxu0
    %v10889 = vpop.f32.mrb[0].mxu0
    %10890 = vdwg.mxu0
    %10891 = vmatprep.subr.bf16.mxu0 %v10708
    %10892 = vmatpush1.bf16.xpose.msra.mxu0 %v10707
    %10893 = vmatprep.subr.bf16.mxu0 0
    %10894 = vmatpush1.bf16.xpose.msra.mxu0 0
    %10895 = vmatprep.subr.bf16.mxu0 0
    %10896 = vmatpush1.bf16.xpose.msra.mxu0 0
    %10897 = vmatprep.subr.bf16.mxu0 0
    %10898 = vmatpush1.bf16.xpose.msra.mxu0 0
    %10899 = vmatprep.subr.bf16.mxu0 0
    %10900 = vmatpush1.bf16.xpose.msra.mxu0 0
    %10901 = vmatprep.subr.bf16.mxu0 0
    %10902 = vmatpush1.bf16.xpose.msra.mxu0 0
    %10903 = vmatprep.subr.bf16.mxu0 0
    %10904 = vmatpush1.bf16.xpose.msra.mxu0 0
    %10905 = vmatprep.subr.bf16.mxu0 0
    %10906 = vmatpush1.bf16.xpose.msra.mxu0 0
    %10907 = vmatprep.subr.bf16.mxu0 0
    %10908 = vmatpush1.bf16.xpose.msra.mxu0 0
    %10909 = vmatprep.subr.bf16.mxu0 0
    %10910 = vmatpush1.bf16.xpose.msra.mxu0 0
    %10911 = vmatprep.subr.bf16.mxu0 0
    %10912 = vmatpush1.bf16.xpose.msra.mxu0 0
    %10913 = vmatprep.subr.bf16.mxu0 0
    %10914 = vmatpush1.bf16.xpose.msra.mxu0 0
    %10915 = vmatprep.subr.bf16.mxu0 0
    %10916 = vmatpush1.bf16.xpose.msra.mxu0 0
    %10917 = vmatprep.subr.bf16.mxu0 0
    %10918 = vmatpush1.bf16.xpose.msra.mxu0 0
    %10919 = vmatprep.subr.bf16.mxu0 0
    %10920 = vmatpush1.bf16.xpose.msra.mxu0 0
    %10921 = vmatprep.subr.bf16.mxu0 0
    %10922 = vmatpush1.bf16.xpose.msra.mxu0 0
    %10923 = vmatprep.mubr.bf16.mxu0 %v10653
    %10924 = vmatmul.mubr.bf16.gmra.mrb[0].mxu0 %v10652
    %v10925 = vpop.f32.mrb[0].mxu0
    %v10926 = vadd.f32 %v10886, %v10925
    %v10927 = vpop.f32.mrb[0].mxu0
    %v10928 = vpop.f32.mrb[0].mxu0
    %v10929 = vpop.f32.mrb[0].mxu0
    %10930 = vdwg.mxu0
    %10931 = vmatprep.subr.bf16.mxu0 %v10710
    %10932 = vmatpush1.bf16.xpose.msra.mxu0 %v10709
    %10933 = vmatprep.subr.bf16.mxu0 0
    %10934 = vmatpush1.bf16.xpose.msra.mxu0 0
    %10935 = vmatprep.subr.bf16.mxu0 0
    %10936 = vmatpush1.bf16.xpose.msra.mxu0 0
    %10937 = vmatprep.subr.bf16.mxu0 0
    %10938 = vmatpush1.bf16.xpose.msra.mxu0 0
    %10939 = vmatprep.subr.bf16.mxu0 0
    %10940 = vmatpush1.bf16.xpose.msra.mxu0 0
    %10941 = vmatprep.subr.bf16.mxu0 0
    %10942 = vmatpush1.bf16.xpose.msra.mxu0 0
    %10943 = vmatprep.subr.bf16.mxu0 0
    %10944 = vmatpush1.bf16.xpose.msra.mxu0 0
    %10945 = vmatprep.subr.bf16.mxu0 0
    %10946 = vmatpush1.bf16.xpose.msra.mxu0 0
    %10947 = vmatprep.subr.bf16.mxu0 0
    %10948 = vmatpush1.bf16.xpose.msra.mxu0 0
    %10949 = vmatprep.subr.bf16.mxu0 0
    %10950 = vmatpush1.bf16.xpose.msra.mxu0 0
    %10951 = vmatprep.subr.bf16.mxu0 0
    %10952 = vmatpush1.bf16.xpose.msra.mxu0 0
    %10953 = vmatprep.subr.bf16.mxu0 0
    %10954 = vmatpush1.bf16.xpose.msra.mxu0 0
    %10955 = vmatprep.subr.bf16.mxu0 0
    %10956 = vmatpush1.bf16.xpose.msra.mxu0 0
    %10957 = vmatprep.subr.bf16.mxu0 0
    %10958 = vmatpush1.bf16.xpose.msra.mxu0 0
    %10959 = vmatprep.subr.bf16.mxu0 0
    %10960 = vmatpush1.bf16.xpose.msra.mxu0 0
    %10961 = vmatprep.subr.bf16.mxu0 0
    %10962 = vmatpush1.bf16.xpose.msra.mxu0 0
    %10963 = vmatprep.mubr.bf16.mxu0 %v10655
    %10964 = vmatmul.mubr.bf16.gmra.mrb[0].mxu0 %v10654
    %v10965 = vpop.f32.mrb[0].mxu0
    %v10966 = vadd.f32 %v10926, %v10965
    %v10967 = vpop.f32.mrb[0].mxu0
    %v10968 = vpop.f32.mrb[0].mxu0
    %v10969 = vpop.f32.mrb[0].mxu0
    %10970 = vdwg.mxu0
    %10971 = vmatprep.subr.bf16.mxu0 %v10712
    %10972 = vmatpush1.bf16.xpose.msra.mxu0 %v10711
    %10973 = vmatprep.subr.bf16.mxu0 0
    %10974 = vmatpush1.bf16.xpose.msra.mxu0 0
    %10975 = vmatprep.subr.bf16.mxu0 0
    %10976 = vmatpush1.bf16.xpose.msra.mxu0 0
    %10977 = vmatprep.subr.bf16.mxu0 0
    %10978 = vmatpush1.bf16.xpose.msra.mxu0 0
    %10979 = vmatprep.subr.bf16.mxu0 0
    %10980 = vmatpush1.bf16.xpose.msra.mxu0 0
    %10981 = vmatprep.subr.bf16.mxu0 0
    %10982 = vmatpush1.bf16.xpose.msra.mxu0 0
    %10983 = vmatprep.subr.bf16.mxu0 0
    %10984 = vmatpush1.bf16.xpose.msra.mxu0 0
    %10985 = vmatprep.subr.bf16.mxu0 0
    %10986 = vmatpush1.bf16.xpose.msra.mxu0 0
    %10987 = vmatprep.subr.bf16.mxu0 0
    %10988 = vmatpush1.bf16.xpose.msra.mxu0 0
    %10989 = vmatprep.subr.bf16.mxu0 0
    %10990 = vmatpush1.bf16.xpose.msra.mxu0 0
    %10991 = vmatprep.subr.bf16.mxu0 0
    %10992 = vmatpush1.bf16.xpose.msra.mxu0 0
    %10993 = vmatprep.subr.bf16.mxu0 0
    %10994 = vmatpush1.bf16.xpose.msra.mxu0 0
    %10995 = vmatprep.subr.bf16.mxu0 0
    %10996 = vmatpush1.bf16.xpose.msra.mxu0 0
    %10997 = vmatprep.subr.bf16.mxu0 0
    %10998 = vmatpush1.bf16.xpose.msra.mxu0 0
    %10999 = vmatprep.subr.bf16.mxu0 0
    %11000 = vmatpush1.bf16.xpose.msra.mxu0 0
    %11001 = vmatprep.subr.bf16.mxu0 0
    %11002 = vmatpush1.bf16.xpose.msra.mxu0 0
    %11003 = vmatprep.mubr.bf16.mxu0 %v10657
    %11004 = vmatmul.mubr.bf16.gmra.mrb[0].mxu0 %v10656
    %v11005 = vpop.f32.mrb[0].mxu0
    %v11006 = vadd.f32 %v10966, %v11005
    %v11007 = vpop.f32.mrb[0].mxu0
    %v11008 = vpop.f32.mrb[0].mxu0
    %v11009 = vpop.f32.mrb[0].mxu0
    %11010 = vdwg.mxu0
    %11011 = vmatprep.subr.bf16.mxu0 %v10714
    %11012 = vmatpush1.bf16.xpose.msra.mxu0 %v10713
    %11013 = vmatprep.subr.bf16.mxu0 0
    %11014 = vmatpush1.bf16.xpose.msra.mxu0 0
    %11015 = vmatprep.subr.bf16.mxu0 0
    %11016 = vmatpush1.bf16.xpose.msra.mxu0 0
    %11017 = vmatprep.subr.bf16.mxu0 0
    %11018 = vmatpush1.bf16.xpose.msra.mxu0 0
    %11019 = vmatprep.subr.bf16.mxu0 0
    %11020 = vmatpush1.bf16.xpose.msra.mxu0 0
    %11021 = vmatprep.subr.bf16.mxu0 0
    %11022 = vmatpush1.bf16.xpose.msra.mxu0 0
    %11023 = vmatprep.subr.bf16.mxu0 0
    %11024 = vmatpush1.bf16.xpose.msra.mxu0 0
    %11025 = vmatprep.subr.bf16.mxu0 0
    %11026 = vmatpush1.bf16.xpose.msra.mxu0 0
    %11027 = vmatprep.subr.bf16.mxu0 0
    %11028 = vmatpush1.bf16.xpose.msra.mxu0 0
    %11029 = vmatprep.subr.bf16.mxu0 0
    %11030 = vmatpush1.bf16.xpose.msra.mxu0 0
    %11031 = vmatprep.subr.bf16.mxu0 0
    %11032 = vmatpush1.bf16.xpose.msra.mxu0 0
    %11033 = vmatprep.subr.bf16.mxu0 0
    %11034 = vmatpush1.bf16.xpose.msra.mxu0 0
    %11035 = vmatprep.subr.bf16.mxu0 0
    %11036 = vmatpush1.bf16.xpose.msra.mxu0 0
    %11037 = vmatprep.subr.bf16.mxu0 0
    %11038 = vmatpush1.bf16.xpose.msra.mxu0 0
    %11039 = vmatprep.subr.bf16.mxu0 0
    %11040 = vmatpush1.bf16.xpose.msra.mxu0 0
    %11041 = vmatprep.subr.bf16.mxu0 0
    %11042 = vmatpush1.bf16.xpose.msra.mxu0 0
    %11043 = vmatprep.mubr.bf16.mxu0 %v10659
    %11044 = vmatmul.mubr.bf16.gmra.mrb[0].mxu0 %v10658
    %v11045 = vpop.f32.mrb[0].mxu0
    %v11046 = vadd.f32 %v11006, %v11045
    %v11047 = vpop.f32.mrb[0].mxu0
    %v11048 = vpop.f32.mrb[0].mxu0
    %v11049 = vpop.f32.mrb[0].mxu0
    %11050 = vdwg.mxu0
    %vm11051 = vcmask 58368
    %11052 = vst.msk [vmem:[#allocation15] sm:$0x3] %vm11051, %v11046
    // Predicated region
    $region50: #{tpu_custom_call.1} parent=1 // pred_check
      _
    $region51: #{tpu_custom_call.1} parent=1 // pred_check_branch
      %11054 = sbr.rel (0) target = $region53
    $region52: #{tpu_custom_call.1} parent=1 // pred_region
      %s11056 = ssub.s32 32, 32
      %11057 = vsyncadd [#allocation6], %s11056
      %s11059 = sshll.u32 [#allocation15], 4
      %s11060 = int_to_ptr.vmem [resolvable:$true] %s11059
      %11062 = dma.vmem_to_hbm [thread:$0]  %s11060, 32, %s7, [#allocation6]
    $region53: #{tpu_custom_call.1} parent=1 // pred_fallthru
      _
    // Predicated region
    $region54: #{tpu_custom_call.1} parent=1 // pred_check
      _
    $region55: #{tpu_custom_call.1} parent=1 // pred_check_branch
      %11064 = sbr.rel (0) target = $region57
    $region56: #{tpu_custom_call.1} parent=1 // pred_region
      %11065 = dma.done [#allocation6], 32
    $region57: #{tpu_custom_call.1} parent=1 // pred_fallthru
      _
    %11066 = vsyncpa [#allocation5], 1
    %11067 = vsyncpa [#allocation8], 1
    %11068 = vsyncpa [#allocation11], 1
    %11069 = vsyncpa [#allocation14], 1
    %11070 = vsyncpa [#allocation6], 1
  %11071 = vsyncmov [#allocation3]
  %s11072 = vpop.sfrf %11071
  %p11073 = scmp.eq.s32.totalorder %s11072, 0
  %p11074 = pneg %p11073
  %11076 = shalt.err (%p11074)

</llo_original>
